<compile_context>
chip_gen: v7x
topology: tpu7x:2x2x1
jax: 0.10.0
libtpu: 0.0.40
codegen_flags: <defaults>
</compile_context>

<pallas_src>
import functools

import jax
import jax.numpy as jnp
import numpy as np
from jax.experimental import pallas as pl
from jax.experimental.pallas import tpu as pltpu


def _round_up(x, m):
    return (x + m - 1) // m * m


# ---------------------------------------------------------------------------
# Pallas kernels
# ---------------------------------------------------------------------------
def _mm_bias_act_kernel(x_ref, w_ref, b_ref, o_ref, *, relu):
    """out = act(x @ w + b), whole K in one MXU pass (no K grid, no scratch)."""
    r = jnp.dot(x_ref[...], w_ref[...], preferred_element_type=jnp.float32)
    r = r + b_ref[...]
    if relu:
        r = jnp.maximum(r, 0.0)
    o_ref[...] = r.astype(o_ref.dtype)


def _fc_fused_kernel(x_ref, w1_ref, b1_ref, w2_ref, b2_ref, o_ref):
    """out = (relu(x @ w1 + b1)) @ w2 + b2, both matmuls in one kernel."""
    h = jnp.dot(x_ref[...], w1_ref[...], preferred_element_type=jnp.float32)
    h = jnp.maximum(h + b1_ref[...], 0.0)
    o = jnp.dot(h, w2_ref[...], preferred_element_type=jnp.float32)
    o_ref[...] = (o + b2_ref[...]).astype(o_ref.dtype)


_COMPILER_PARAMS = pltpu.CompilerParams(
    dimension_semantics=("parallel",),          # M axis -> both TCs on v7x
    vmem_limit_bytes=32 * 1024 * 1024,
)


def _pick_tm(m, block_m):
    """Row-block size: aim for >= 2 blocks on the 'parallel' M axis (so both
    v7x TensorCores get work), cap at block_m rows to bound VMEM, keep a
    multiple of 8 sublanes."""
    return max(8, min(block_m, _round_up(pl.cdiv(m, 2), 8)))


# ---------------------------------------------------------------------------
# Pallas wrappers
# ---------------------------------------------------------------------------
def matmul_bias_act(x, w, b, n_out, *, relu, block_m=512):
    """x: (M, K) f32; w: (Kp, Np) pre-padded; b: (1, Np) pre-padded.

    Returns act(x @ w + b)[:, :n_out]."""
    M, K = x.shape
    Kp, Np = w.shape
    assert K <= Kp and b.shape == (1, Np)

    tm = _pick_tm(M, block_m)
    Mp = _round_up(M, tm)
    xp = x if (Mp == M and Kp == K) else jnp.pad(x, ((0, Mp - M), (0, Kp - K)))

    out = pl.pallas_call(
        functools.partial(_mm_bias_act_kernel, relu=relu),
        out_shape=jax.ShapeDtypeStruct((Mp, Np), jnp.float32),
        grid_spec=pltpu.PrefetchScalarGridSpec(
            num_scalar_prefetch=0,
            grid=(Mp // tm,),
            in_specs=[
                pl.BlockSpec((tm, Kp), lambda i: (i, 0)),
                pl.BlockSpec((Kp, Np), lambda i: (0, 0)),
                pl.BlockSpec((1, Np), lambda i: (0, 0)),
            ],
            out_specs=pl.BlockSpec((tm, Np), lambda i: (i, 0)),
        ),
        compiler_params=_COMPILER_PARAMS,
    )(xp, w, b)
    return out[:M, :n_out]


def fc_fused(x, w1, b1, w2, b2, n_out, *, block_m=512):
    """Fused Linear->ReLU->Linear.  w1:(Kp,H), w2:(H,N2p), biases (1,*)."""
    M, K = x.shape
    Kp, H = w1.shape
    H2, N2p = w2.shape
    assert H == H2 and K <= Kp and b1.shape == (1, H) and b2.shape == (1, N2p)

    tm = _pick_tm(M, block_m)
    Mp = _round_up(M, tm)
    xp = x if (Mp == M and Kp == K) else jnp.pad(x, ((0, Mp - M), (0, Kp - K)))

    out = pl.pallas_call(
        _fc_fused_kernel,
        out_shape=jax.ShapeDtypeStruct((Mp, N2p), jnp.float32),
        grid_spec=pltpu.PrefetchScalarGridSpec(
            num_scalar_prefetch=0,
            grid=(Mp // tm,),
            in_specs=[
                pl.BlockSpec((tm, Kp), lambda i: (i, 0)),
                pl.BlockSpec((Kp, H), lambda i: (0, 0)),
                pl.BlockSpec((1, H), lambda i: (0, 0)),
                pl.BlockSpec((H, N2p), lambda i: (0, 0)),
                pl.BlockSpec((1, N2p), lambda i: (0, 0)),
            ],
            out_specs=pl.BlockSpec((tm, N2p), lambda i: (i, 0)),
        ),
        compiler_params=_COMPILER_PARAMS,
    )(xp, w1, b1, w2, b2)
    return out[:M, :n_out]


# ---------------------------------------------------------------------------
# im2col (channels-last, static strided slices -- no gather, no 6-D transpose)
# ---------------------------------------------------------------------------
def _im2col_nhwc(x, kh, kw, stride):
    """x: (N, H, W, C) -> (N*Ho*Wo, kh*kw*C), patch order (kh, kw, C)."""
    # TODO(synk): fuse this patch extraction into the conv pallas_call with
    # in-kernel strided reads to avoid materializing the patch matrix in HBM.
    N, H, W, C = x.shape
    Ho = (H - kh) // stride + 1
    Wo = (W - kw) // stride + 1
    cols = []
    for dh in range(kh):
        for dw in range(kw):
            cols.append(
                jax.lax.slice(
                    x,
                    (0, dh, dw, 0),
                    (N, dh + (Ho - 1) * stride + 1, dw + (Wo - 1) * stride + 1, C),
                    (1, stride, stride, 1),
                )
            )
    patches = jnp.concatenate(cols, axis=-1)            # (N, Ho, Wo, kh*kw*C)
    return patches.reshape(N * Ho * Wo, kh * kw * C), Ho, Wo


def conv2d_act_nhwc(x, w_mat, b, kh, kw, stride, out_c, *, relu=True):
    """x NHWC; w_mat (Kp, Np) pre-padded in (kh, kw, C) row order; b (1, Np)."""
    n = x.shape[0]
    patches, Ho, Wo = _im2col_nhwc(x, kh, kw, stride)
    y = matmul_bias_act(patches, w_mat, b, out_c, relu=relu)
    return y.reshape(n, Ho, Wo, out_c)                   # stays NHWC


# ---------------------------------------------------------------------------
# Parameter init (PyTorch default: U(-1/sqrt(fan_in), 1/sqrt(fan_in)))
# ---------------------------------------------------------------------------
def _init_conv(key, out_c, in_c, kh, kw):
    fan_in = in_c * kh * kw
    bound = 1.0 / np.sqrt(fan_in)
    k1, k2 = jax.random.split(key)
    w = jax.random.uniform(k1, (out_c, in_c, kh, kw), jnp.float32, -bound, bound)
    b = jax.random.uniform(k2, (out_c,), jnp.float32, -bound, bound)
    return w, b


def _init_linear(key, out_f, in_f):
    bound = 1.0 / np.sqrt(in_f)
    k1, k2 = jax.random.split(key)
    w = jax.random.uniform(k1, (out_f, in_f), jnp.float32, -bound, bound)
    b = jax.random.uniform(k2, (out_f,), jnp.float32, -bound, bound)
    return w, b


def build_params(key, c, output_dim):
    """PyTorch-layout parameters (acts like the nn.Module state_dict)."""
    keys = jax.random.split(key, 5)
    c1w, c1b = _init_conv(keys[0], 32, c, 8, 8)
    c2w, c2b = _init_conv(keys[1], 64, 32, 4, 4)
    c3w, c3b = _init_conv(keys[2], 64, 64, 3, 3)
    f1w, f1b = _init_linear(keys[3], 512, 3840)
    f2w, f2b = _init_linear(keys[4], output_dim, 512)
    return dict(c1w=c1w, c1b=c1b, c2w=c2w, c2b=c2b, c3w=c3w, c3b=c3b,
                f1w=f1w, f1b=f1b, f2w=f2w, f2b=f2b)


def _pad2(a, rp, cp):
    r, c = a.shape
    if r == rp and c == cp:
        return a
    return jnp.pad(a, ((0, rp - r), (0, cp - c)))


def prepare_params(p, conv3_hw):
    """One-time conversion to kernel-ready (NHWC / matmul / padded) layout."""
    def conv_w(w):                       # (O, C, kh, kw) -> (Kp, Np)
        o, c, kh, kw = w.shape
        k = kh * kw * c
        m = jnp.transpose(w, (2, 3, 1, 0)).reshape(k, o)   # (kh,kw,C) row order
        return _pad2(m, _round_up(k, 128), _round_up(o, 128))

    def pad_bias(b):
        n = b.shape[0]
        return jnp.pad(b, (0, _round_up(n, 128) - n)).reshape(1, -1)

    h3, w3 = conv3_hw
    f1w = p["f1w"]                                          # (512, 3840) CHW order
    out_f, in_f = f1w.shape
    # Permute FC1 columns from PyTorch (C, H, W) flatten order to NHWC order.
    f1w_nhwc = f1w.reshape(out_f, 64, h3, w3).transpose(0, 2, 3, 1).reshape(out_f, in_f)
    f2w = p["f2w"]                                          # (output_dim, 512)

    return dict(
        c1w=conv_w(p["c1w"]), c1b=pad_bias(p["c1b"]),
        c2w=conv_w(p["c2w"]), c2b=pad_bias(p["c2b"]),
        c3w=conv_w(p["c3w"]), c3b=pad_bias(p["c3b"]),
        f1w=_pad2(f1w_nhwc.T, _round_up(in_f, 128), _round_up(out_f, 128)),
        f1b=pad_bias(p["f1b"]),
        f2w=_pad2(f2w.T, _round_up(f2w.shape[1], 128), _round_up(f2w.shape[0], 128)),
        f2b=pad_bias(p["f2b"]),
    )


# ---------------------------------------------------------------------------
# Forward pass
# ---------------------------------------------------------------------------
@functools.partial(jax.jit, static_argnames=("output_dim",))
def cnn_forward(params, x, *, output_dim):
    x = jnp.transpose(x, (0, 2, 3, 1))                      # NCHW -> NHWC, once
    x = conv2d_act_nhwc(x, params["c1w"], params["c1b"], 8, 8, 4, 32, relu=True)
    x = conv2d_act_nhwc(x, params["c2w"], params["c2b"], 4, 4, 2, 64, relu=True)
    x = conv2d_act_nhwc(x, params["c3w"], params["c3b"], 3, 3, 1, 64, relu=True)
    x = x.reshape(x.shape[0], -1)          # NHWC flatten; f1w columns pre-permuted
    return fc_fused(x, params["f1w"], params["f1b"],
                    params["f2w"], params["f2b"], output_dim)


class Net:
    """JAX/Pallas port of the PyTorch Net (online/target share weights at init)."""

    def __init__(self, input_dim, output_dim, key):
        c, h, w = input_dim
        h1, w1 = (h - 8) // 4 + 1, (w - 8) // 4 + 1
        h2, w2 = (h1 - 4) // 2 + 1, (w1 - 4) // 2 + 1
        h3, w3 = h2 - 2, w2 - 2
        assert 64 * h3 * w3 == 3840, "Linear(3840, 512) requires 64*h3*w3 == 3840"
        self.output_dim = output_dim
        self.online = build_params(key, c, output_dim)
        # Note: arrays are immutable in JAX; this mirrors load_state_dict at init.
        self.target = {k: v for k, v in self.online.items()}
        self._online_prepped = prepare_params(self.online, (h3, w3))
        self._target_prepped = prepare_params(self.target, (h3, w3))

    def forward(self, x, model):
        if model == "online":
            return cnn_forward(self._online_prepped, x, output_dim=self.output_dim)
        elif model == "target":
            return cnn_forward(self._target_prepped, x, output_dim=self.output_dim)


# ---------------------------------------------------------------------------
# Plain-JAX/XLA reference (NCHW, PyTorch-layout params) for a sanity check.
# ---------------------------------------------------------------------------
def _ref_forward(params, x):
    prec = jax.lax.Precision.HIGHEST

    def conv(x, w, b, s):
        y = jax.lax.conv_general_dilated(
            x, w, window_strides=(s, s), padding="VALID",
            dimension_numbers=("NCHW", "OIHW", "NCHW"), precision=prec)
        return jnp.maximum(y + b[None, :, None, None], 0.0)

    x = conv(x, params["c1w"], params["c1b"], 4)
    x = conv(x, params["c2w"], params["c2b"], 2)
    x = conv(x, params["c3w"], params["c3b"], 1)
    x = x.reshape(x.shape[0], -1)                           # (C, H, W) flatten
    x = jnp.maximum(jnp.dot(x, params["f1w"].T, precision=prec) + params["f1b"], 0.0)
    return jnp.dot(x, params["f2w"].T, precision=prec) + params["f2b"]


if __name__ == "__main__":
    key = jax.random.PRNGKey(0)
    kp, kx = jax.random.split(key)

    batch, c, h, w = 2, 4, 76, 108        # (h, w) chosen so Flatten gives 3840
    output_dim = 10

    net = Net((c, h, w), output_dim, kp)
    x = jax.random.normal(kx, (batch, c, h, w), jnp.float32)

    out_online = jax.block_until_ready(net.forward(x, "online"))
    out_target = jax.block_until_ready(net.forward(x, "target"))

    assert out_online.shape == (batch, output_dim)
    assert out_target.shape == (batch, output_dim)
    # online and target share identical weights -> identical outputs
    np.testing.assert_allclose(np.asarray(out_online), np.asarray(out_target))

    ref = np.asarray(_ref_forward(net.online, x))
    np.testing.assert_allclose(np.asarray(out_online), ref, rtol=5e-2, atol=5e-2)

    print("KERNEL_OK")
</pallas_src>

<mosaic_0001>
module attributes {stable_mosaic.version = 11 : i64} {
  func.func @_mm_bias_act_kernel(%arg0: i32, %arg1: memref<472x256xf32, #tpu.memory_space<vmem>>, %arg2: memref<256x128xf32, #tpu.memory_space<vmem>>, %arg3: memref<1x128xf32, #tpu.memory_space<vmem>>, %arg4: memref<472x128xf32, #tpu.memory_space<vmem>>) attributes {dimension_semantics = [#tpu.dimension_semantics<parallel>], iteration_bounds = array<i64: 2>, scalar_prefetch = 0 : i64, scratch_operands = 0 : i64, tpu.core_type = #tpu.core_type<tc>, window_params = [{transform_indices = @transform_0, window_bounds = array<i64: 472, 256>}, {pipeline_mode = #tpu.pipeline_mode<synchronous>, transform_indices = @transform_1, window_bounds = array<i64: 256, 128>}, {pipeline_mode = #tpu.pipeline_mode<synchronous>, transform_indices = @transform_2, window_bounds = array<i64: 1, 128>}, {transform_indices = @transform_3, window_bounds = array<i64: 472, 128>}]} {
    %c0 = arith.constant 0 : index
    %c0_0 = arith.constant 0 : index
    %0 = vector.load %arg1[%c0, %c0_0] : memref<472x256xf32, #tpu.memory_space<vmem>>, vector<472x256xf32>
    %c0_1 = arith.constant 0 : index
    %c0_2 = arith.constant 0 : index
    %1 = vector.load %arg2[%c0_1, %c0_2] : memref<256x128xf32, #tpu.memory_space<vmem>>, vector<256x128xf32>
    %cst = arith.constant dense<0.000000e+00> : vector<472x128xf32>
    %2 = tpu.matmul %0, %1, %cst {dimension_numbers = #tpu.dot_dimension_numbers<[1], [0], [0], [1], [0, 0, 1, 1], [], []>} : vector<472x256xf32>, vector<256x128xf32>, vector<472x128xf32> -> vector<472x128xf32>
    %c0_3 = arith.constant 0 : index
    %c0_4 = arith.constant 0 : index
    %3 = vector.load %arg3[%c0_3, %c0_4] : memref<1x128xf32, #tpu.memory_space<vmem>>, vector<1x128xf32>
    %4 = vector.broadcast %3 : vector<1x128xf32> to vector<472x128xf32>
    %5 = arith.addf %2, %4 : vector<472x128xf32>
    %cst_5 = arith.constant 0.000000e+00 : f32
    %6 = vector.broadcast %cst_5 : f32 to vector<472x128xf32>
    %7 = arith.maximumf %5, %6 : vector<472x128xf32>
    %c0_6 = arith.constant 0 : index
    %c0_7 = arith.constant 0 : index
    %8 = vector.load %arg4[%c0_6, %c0_7] : memref<472x128xf32, #tpu.memory_space<vmem>>, vector<472x128xf32>
    tpu.vector_store %arg4[%c0_6, %c0_7], %7 {strides = array<i32>} : memref<472x128xf32, #tpu.memory_space<vmem>>, vector<472x128xf32>,
    return
  }
  func.func @transform_0(%arg0: i32) -> (i32, i32) {
    %c0_i32 = arith.constant 0 : i32
    %c0_i32_0 = arith.constant 0 : i32
    return %arg0, %c0_i32 : i32, i32
  }
  func.func @transform_1(%arg0: i32) -> (i32, i32) {
    %c0_i32 = arith.constant 0 : i32
    %c0_i32_0 = arith.constant 0 : i32
    %c0_i32_1 = arith.constant 0 : i32
    return %c0_i32, %c0_i32_0 : i32, i32
  }
  func.func @transform_2(%arg0: i32) -> (i32, i32) {
    %c0_i32 = arith.constant 0 : i32
    %c0_i32_0 = arith.constant 0 : i32
    %c0_i32_1 = arith.constant 0 : i32
    return %c0_i32, %c0_i32_0 : i32, i32
  }
  func.func @transform_3(%arg0: i32) -> (i32, i32) {
    %c0_i32 = arith.constant 0 : i32
    %c0_i32_0 = arith.constant 0 : i32
    return %arg0, %c0_i32 : i32, i32
  }
}

module attributes {stable_mosaic.version = 11 : i64} {
  func.func @_mm_bias_act_kernel(%arg0: i32, %arg1: memref<96x512xf32, #tpu.memory_space<vmem>>, %arg2: memref<512x128xf32, #tpu.memory_space<vmem>>, %arg3: memref<1x128xf32, #tpu.memory_space<vmem>>, %arg4: memref<96x128xf32, #tpu.memory_space<vmem>>) attributes {dimension_semantics = [#tpu.dimension_semantics<parallel>], iteration_bounds = array<i64: 2>, scalar_prefetch = 0 : i64, scratch_operands = 0 : i64, tpu.core_type = #tpu.core_type<tc>, window_params = [{transform_indices = @transform_0, window_bounds = array<i64: 96, 512>}, {pipeline_mode = #tpu.pipeline_mode<synchronous>, transform_indices = @transform_1, window_bounds = array<i64: 512, 128>}, {pipeline_mode = #tpu.pipeline_mode<synchronous>, transform_indices = @transform_2, window_bounds = array<i64: 1, 128>}, {transform_indices = @transform_3, window_bounds = array<i64: 96, 128>}]} {
    %c0 = arith.constant 0 : index
    %c0_0 = arith.constant 0 : index
    %0 = vector.load %arg1[%c0, %c0_0] : memref<96x512xf32, #tpu.memory_space<vmem>>, vector<96x512xf32>
    %c0_1 = arith.constant 0 : index
    %c0_2 = arith.constant 0 : index
    %1 = vector.load %arg2[%c0_1, %c0_2] : memref<512x128xf32, #tpu.memory_space<vmem>>, vector<512x128xf32>
    %cst = arith.constant dense<0.000000e+00> : vector<96x128xf32>
    %2 = tpu.matmul %0, %1, %cst {dimension_numbers = #tpu.dot_dimension_numbers<[1], [0], [0], [1], [0, 0, 1, 1], [], []>} : vector<96x512xf32>, vector<512x128xf32>, vector<96x128xf32> -> vector<96x128xf32>
    %c0_3 = arith.constant 0 : index
    %c0_4 = arith.constant 0 : index
    %3 = vector.load %arg3[%c0_3, %c0_4] : memref<1x128xf32, #tpu.memory_space<vmem>>, vector<1x128xf32>
    %4 = vector.broadcast %3 : vector<1x128xf32> to vector<96x128xf32>
    %5 = arith.addf %2, %4 : vector<96x128xf32>
    %cst_5 = arith.constant 0.000000e+00 : f32
    %6 = vector.broadcast %cst_5 : f32 to vector<96x128xf32>
    %7 = arith.maximumf %5, %6 : vector<96x128xf32>
    %c0_6 = arith.constant 0 : index
    %c0_7 = arith.constant 0 : index
    %8 = vector.load %arg4[%c0_6, %c0_7] : memref<96x128xf32, #tpu.memory_space<vmem>>, vector<96x128xf32>
    tpu.vector_store %arg4[%c0_6, %c0_7], %7 {strides = array<i32>} : memref<96x128xf32, #tpu.memory_space<vmem>>, vector<96x128xf32>,
    return
  }
  func.func @transform_0(%arg0: i32) -> (i32, i32) {
    %c0_i32 = arith.constant 0 : i32
    %c0_i32_0 = arith.constant 0 : i32
    return %arg0, %c0_i32 : i32, i32
  }
  func.func @transform_1(%arg0: i32) -> (i32, i32) {
    %c0_i32 = arith.constant 0 : i32
    %c0_i32_0 = arith.constant 0 : i32
    %c0_i32_1 = arith.constant 0 : i32
    return %c0_i32, %c0_i32_0 : i32, i32
  }
  func.func @transform_2(%arg0: i32) -> (i32, i32) {
    %c0_i32 = arith.constant 0 : i32
    %c0_i32_0 = arith.constant 0 : i32
    %c0_i32_1 = arith.constant 0 : i32
    return %c0_i32, %c0_i32_0 : i32, i32
  }
  func.func @transform_3(%arg0: i32) -> (i32, i32) {
    %c0_i32 = arith.constant 0 : i32
    %c0_i32_0 = arith.constant 0 : i32
    return %arg0, %c0_i32 : i32, i32
  }
}

module attributes {stable_mosaic.version = 11 : i64} {
  func.func @_mm_bias_act_kernel(%arg0: i32, %arg1: memref<64x640xf32, #tpu.memory_space<vmem>>, %arg2: memref<640x128xf32, #tpu.memory_space<vmem>>, %arg3: memref<1x128xf32, #tpu.memory_space<vmem>>, %arg4: memref<64x128xf32, #tpu.memory_space<vmem>>) attributes {dimension_semantics = [#tpu.dimension_semantics<parallel>], iteration_bounds = array<i64: 2>, scalar_prefetch = 0 : i64, scratch_operands = 0 : i64, tpu.core_type = #tpu.core_type<tc>, window_params = [{transform_indices = @transform_0, window_bounds = array<i64: 64, 640>}, {pipeline_mode = #tpu.pipeline_mode<synchronous>, transform_indices = @transform_1, window_bounds = array<i64: 640, 128>}, {pipeline_mode = #tpu.pipeline_mode<synchronous>, transform_indices = @transform_2, window_bounds = array<i64: 1, 128>}, {transform_indices = @transform_3, window_bounds = array<i64: 64, 128>}]} {
    %c0 = arith.constant 0 : index
    %c0_0 = arith.constant 0 : index
    %0 = vector.load %arg1[%c0, %c0_0] : memref<64x640xf32, #tpu.memory_space<vmem>>, vector<64x640xf32>
    %c0_1 = arith.constant 0 : index
    %c0_2 = arith.constant 0 : index
    %1 = vector.load %arg2[%c0_1, %c0_2] : memref<640x128xf32, #tpu.memory_space<vmem>>, vector<640x128xf32>
    %cst = arith.constant dense<0.000000e+00> : vector<64x128xf32>
    %2 = tpu.matmul %0, %1, %cst {dimension_numbers = #tpu.dot_dimension_numbers<[1], [0], [0], [1], [0, 0, 1, 1], [], []>} : vector<64x640xf32>, vector<640x128xf32>, vector<64x128xf32> -> vector<64x128xf32>
    %c0_3 = arith.constant 0 : index
    %c0_4 = arith.constant 0 : index
    %3 = vector.load %arg3[%c0_3, %c0_4] : memref<1x128xf32, #tpu.memory_space<vmem>>, vector<1x128xf32>
    %4 = vector.broadcast %3 : vector<1x128xf32> to vector<64x128xf32>
    %5 = arith.addf %2, %4 : vector<64x128xf32>
    %cst_5 = arith.constant 0.000000e+00 : f32
    %6 = vector.broadcast %cst_5 : f32 to vector<64x128xf32>
    %7 = arith.maximumf %5, %6 : vector<64x128xf32>
    %c0_6 = arith.constant 0 : index
    %c0_7 = arith.constant 0 : index
    %8 = vector.load %arg4[%c0_6, %c0_7] : memref<64x128xf32, #tpu.memory_space<vmem>>, vector<64x128xf32>
    tpu.vector_store %arg4[%c0_6, %c0_7], %7 {strides = array<i32>} : memref<64x128xf32, #tpu.memory_space<vmem>>, vector<64x128xf32>,
    return
  }
  func.func @transform_0(%arg0: i32) -> (i32, i32) {
    %c0_i32 = arith.constant 0 : i32
    %c0_i32_0 = arith.constant 0 : i32
    return %arg0, %c0_i32 : i32, i32
  }
  func.func @transform_1(%arg0: i32) -> (i32, i32) {
    %c0_i32 = arith.constant 0 : i32
    %c0_i32_0 = arith.constant 0 : i32
    %c0_i32_1 = arith.constant 0 : i32
    return %c0_i32, %c0_i32_0 : i32, i32
  }
  func.func @transform_2(%arg0: i32) -> (i32, i32) {
    %c0_i32 = arith.constant 0 : i32
    %c0_i32_0 = arith.constant 0 : i32
    %c0_i32_1 = arith.constant 0 : i32
    return %c0_i32, %c0_i32_0 : i32, i32
  }
  func.func @transform_3(%arg0: i32) -> (i32, i32) {
    %c0_i32 = arith.constant 0 : i32
    %c0_i32_0 = arith.constant 0 : i32
    return %arg0, %c0_i32 : i32, i32
  }
}

module attributes {stable_mosaic.version = 11 : i64} {
  func.func @_fc_fused_kernel(%arg0: i32, %arg1: memref<8x3840xf32, #tpu.memory_space<vmem>>, %arg2: memref<3840x512xf32, #tpu.memory_space<vmem>>, %arg3: memref<1x512xf32, #tpu.memory_space<vmem>>, %arg4: memref<512x128xf32, #tpu.memory_space<vmem>>, %arg5: memref<1x128xf32, #tpu.memory_space<vmem>>, %arg6: memref<8x128xf32, #tpu.memory_space<vmem>>) attributes {dimension_semantics = [#tpu.dimension_semantics<parallel>], iteration_bounds = array<i64: 1>, scalar_prefetch = 0 : i64, scratch_operands = 0 : i64, tpu.core_type = #tpu.core_type<tc>, window_params = [{transform_indices = @transform_0, window_bounds = array<i64: 8, 3840>}, {pipeline_mode = #tpu.pipeline_mode<synchronous>, transform_indices = @transform_1, window_bounds = array<i64: 3840, 512>}, {pipeline_mode = #tpu.pipeline_mode<synchronous>, transform_indices = @transform_2, window_bounds = array<i64: 1, 512>}, {pipeline_mode = #tpu.pipeline_mode<synchronous>, transform_indices = @transform_3, window_bounds = array<i64: 512, 128>}, {pipeline_mode = #tpu.pipeline_mode<synchronous>, transform_indices = @transform_4, window_bounds = array<i64: 1, 128>}, {transform_indices = @transform_5, window_bounds = array<i64: 8, 128>}]} {
    %c0 = arith.constant 0 : index
    %c0_0 = arith.constant 0 : index
    %0 = vector.load %arg1[%c0, %c0_0] : memref<8x3840xf32, #tpu.memory_space<vmem>>, vector<8x3840xf32>
    %c0_1 = arith.constant 0 : index
    %c0_2 = arith.constant 0 : index
    %1 = vector.load %arg2[%c0_1, %c0_2] : memref<3840x512xf32, #tpu.memory_space<vmem>>, vector<3840x512xf32>
    %cst = arith.constant dense<0.000000e+00> : vector<8x512xf32>
    %2 = tpu.matmul %0, %1, %cst {dimension_numbers = #tpu.dot_dimension_numbers<[1], [0], [0], [1], [0, 0, 1, 1], [], []>} : vector<8x3840xf32>, vector<3840x512xf32>, vector<8x512xf32> -> vector<8x512xf32>
    %c0_3 = arith.constant 0 : index
    %c0_4 = arith.constant 0 : index
    %3 = vector.load %arg3[%c0_3, %c0_4] : memref<1x512xf32, #tpu.memory_space<vmem>>, vector<1x512xf32>
    %4 = vector.broadcast %3 : vector<1x512xf32> to vector<8x512xf32>
    %5 = arith.addf %2, %4 : vector<8x512xf32>
    %cst_5 = arith.constant 0.000000e+00 : f32
    %6 = vector.broadcast %cst_5 : f32 to vector<8x512xf32>
    %7 = arith.maximumf %5, %6 : vector<8x512xf32>
    %c0_6 = arith.constant 0 : index
    %c0_7 = arith.constant 0 : index
    %8 = vector.load %arg4[%c0_6, %c0_7] : memref<512x128xf32, #tpu.memory_space<vmem>>, vector<512x128xf32>
    %cst_8 = arith.constant dense<0.000000e+00> : vector<8x128xf32>
    %9 = tpu.matmul %7, %8, %cst_8 {dimension_numbers = #tpu.dot_dimension_numbers<[1], [0], [0], [1], [0, 0, 1, 1], [], []>} : vector<8x512xf32>, vector<512x128xf32>, vector<8x128xf32> -> vector<8x128xf32>
    %c0_9 = arith.constant 0 : index
    %c0_10 = arith.constant 0 : index
    %10 = vector.load %arg5[%c0_9, %c0_10] : memref<1x128xf32, #tpu.memory_space<vmem>>, vector<1x128xf32>
    %11 = vector.broadcast %10 : vector<1x128xf32> to vector<8x128xf32>
    %12 = arith.addf %9, %11 : vector<8x128xf32>
    %c0_11 = arith.constant 0 : index
    %c0_12 = arith.constant 0 : index
    %13 = vector.load %arg6[%c0_11, %c0_12] : memref<8x128xf32, #tpu.memory_space<vmem>>, vector<8x128xf32>
    tpu.vector_store %arg6[%c0_11, %c0_12], %12 {strides = array<i32>} : memref<8x128xf32, #tpu.memory_space<vmem>>, vector<8x128xf32>,
    return
  }
  func.func @transform_0(%arg0: i32) -> (i32, i32) {
    %c0_i32 = arith.constant 0 : i32
    %c0_i32_0 = arith.constant 0 : i32
    return %arg0, %c0_i32 : i32, i32
  }
  func.func @transform_1(%arg0: i32) -> (i32, i32) {
    %c0_i32 = arith.constant 0 : i32
    %c0_i32_0 = arith.constant 0 : i32
    %c0_i32_1 = arith.constant 0 : i32
    return %c0_i32, %c0_i32_0 : i32, i32
  }
  func.func @transform_2(%arg0: i32) -> (i32, i32) {
    %c0_i32 = arith.constant 0 : i32
    %c0_i32_0 = arith.constant 0 : i32
    %c0_i32_1 = arith.constant 0 : i32
    return %c0_i32, %c0_i32_0 : i32, i32
  }
  func.func @transform_3(%arg0: i32) -> (i32, i32) {
    %c0_i32 = arith.constant 0 : i32
    %c0_i32_0 = arith.constant 0 : i32
    %c0_i32_1 = arith.constant 0 : i32
    return %c0_i32, %c0_i32_0 : i32, i32
  }
  func.func @transform_4(%arg0: i32) -> (i32, i32) {
    %c0_i32 = arith.constant 0 : i32
    %c0_i32_0 = arith.constant 0 : i32
    %c0_i32_1 = arith.constant 0 : i32
    return %c0_i32, %c0_i32_0 : i32, i32
  }
  func.func @transform_5(%arg0: i32) -> (i32, i32) {
    %c0_i32 = arith.constant 0 : i32
    %c0_i32_0 = arith.constant 0 : i32
    return %arg0, %c0_i32 : i32, i32
  }
}

</mosaic_0001>

<llo_original>
// kernel: cnn_forward.4
$region0: #{cnn_forward.4}
  #allocation0 [shape = 'u32[]', space=smem, size = 0x4, offset = 0x4, fixed_abs, tag = 'smem constant byte address 0x4 - core index']
  #allocation1 [shape = 'u32[144,128]{1,0:T(1,128)}', space=vmem, size = 0x12000, scoped, tag = 'internal scratch']
  %s0 = inlined_call_operand.vmem [shape: f32[944,256], index: 0, kind: input, shape index: {}]
  %s1 = inlined_call_operand.vmem [shape: f32[256,128], index: 1, kind: input, shape index: {}]
  %s2 = inlined_call_operand.vmem [shape: f32[1,128], index: 2, kind: input, shape index: {}]
  %s3 = inlined_call_operand.vmem [shape: f32[944,128], index: 3, kind: output, shape index: {}]
  %s4 = sld [smem:[#allocation0]]
  $region45: #{cnn_forward.4} parent=0
    _
  %s6 = ssub.s32 1, %s4
  %s7 = scalar_select 0, %s6, %s4
  loop: start=0, step=1, limit=4
  $region2: #{cnn_forward.4} parent=0 // loop_pre_header
    _
  $region3: #{cnn_forward.4} parent=0 // loop_header
    %s9 = sphi 0, %s13
    %p10 = scmp.ge.s32.totalorder %s9, 4
    %s19 = sphi 0, %s21
    %s22 = sphi 0, %s19
    %s23 = sphi 0, %s22
    %s39 = sphi 0, %s23
    %s43 = sphi 0, %s43
    %s45 = sphi 0, %s43
    %s46 = sphi 0, %s45
    %s60 = sphi 0, %s46
    %s64 = sphi 0, %s64
    %s66 = sphi 0, %s64
    %s67 = sphi 0, %s66
    %s81 = sphi 0, %s67
    %s87 = sphi 0, %s89
    %s90 = sphi 0, %s87
    %s91 = sphi 0, %s90
    %s107 = sphi 0, %s91
  $region4: #{cnn_forward.4} parent=0 // loop_header_branch
    %12 = sbr.rel (%p10) target = $region8
  $region5: #{cnn_forward.4} parent=0 // loop_body
    %s14 = ssub.s32 %s9, 1
    %s15 = ssub.s32 %s9, 2
    %s16 = sadd.s32 %s9, 1
    %s17 = ssub.s32 %s9, %s16
    %p18 = scmp.eq.s32.totalorder %s17, 0
    %s20 = sadd.s32 %s19, 1
    %s21 = scalar_select %p18, %s19, %s20
    %p24 = pneg %p18
    %p25 = scmp.eq.s32.totalorder %s9, 1
    %p26 = por %p24, %p25
    %p27 = scmp.ne.s32.totalorder %s19, %s22
    %p28 = scmp.eq.s32.totalorder %s9, 0
    %p29 = por %p27, %p28
    %p30 = scmp.ne.s32.totalorder %s19, %s22
    %p31 = scmp.eq.s32.totalorder %s14, 1
    %p32 = por %p30, %p31
    %p33 = scmp.ne.s32.totalorder %s22, %s23
    %p34 = scmp.eq.s32.totalorder %s14, 0
    %p35 = por %p33, %p34
    %p36 = scmp.ne.s32.totalorder %s22, %s23
    %p37 = scmp.eq.s32.totalorder %s15, 1
    %p38 = por %p36, %p37
    %p40 = scmp.ne.s32.totalorder %s23, %s39
    %p41 = scmp.eq.s32.totalorder %s15, 0
    %p42 = por %p40, %p41
    %s44 = sadd.s32 %s43, 1
    %p47 = scmp.eq.s32.totalorder %s9, 1
    %p48 = scmp.ne.s32.totalorder %s43, %s45
    %p49 = scmp.eq.s32.totalorder %s9, 0
    %p50 = por %p48, %p49
    %p51 = scmp.ne.s32.totalorder %s43, %s45
    %p52 = scmp.eq.s32.totalorder %s14, 1
    %p53 = por %p51, %p52
    %p54 = scmp.ne.s32.totalorder %s45, %s46
    %p55 = scmp.eq.s32.totalorder %s14, 0
    %p56 = por %p54, %p55
    %p57 = scmp.ne.s32.totalorder %s45, %s46
    %p58 = scmp.eq.s32.totalorder %s15, 1
    %p59 = por %p57, %p58
    %p61 = scmp.ne.s32.totalorder %s46, %s60
    %p62 = scmp.eq.s32.totalorder %s15, 0
    %p63 = por %p61, %p62
    %s65 = sadd.s32 %s64, 1
    %p68 = scmp.eq.s32.totalorder %s9, 1
    %p69 = scmp.ne.s32.totalorder %s64, %s66
    %p70 = scmp.eq.s32.totalorder %s9, 0
    %p71 = por %p69, %p70
    %p72 = scmp.ne.s32.totalorder %s64, %s66
    %p73 = scmp.eq.s32.totalorder %s14, 1
    %p74 = por %p72, %p73
    %p75 = scmp.ne.s32.totalorder %s66, %s67
    %p76 = scmp.eq.s32.totalorder %s14, 0
    %p77 = por %p75, %p76
    %p78 = scmp.ne.s32.totalorder %s66, %s67
    %p79 = scmp.eq.s32.totalorder %s15, 1
    %p80 = por %p78, %p79
    %p82 = scmp.ne.s32.totalorder %s67, %s81
    %p83 = scmp.eq.s32.totalorder %s15, 0
    %p84 = por %p82, %p83
    %s85 = ssub.s32 %s9, %s16
    %p86 = scmp.eq.s32.totalorder %s85, 0
    %s88 = sadd.s32 %s87, 1
    %s89 = scalar_select %p86, %s87, %s88
    %p92 = pneg %p86
    %p93 = scmp.eq.s32.totalorder %s9, 1
    %p94 = por %p92, %p93
    %p95 = scmp.ne.s32.totalorder %s87, %s90
    %p96 = scmp.eq.s32.totalorder %s9, 0
    %p97 = por %p95, %p96
    %p98 = scmp.ne.s32.totalorder %s87, %s90
    %p99 = scmp.eq.s32.totalorder %s14, 1
    %p100 = por %p98, %p99
    %p101 = scmp.ne.s32.totalorder %s90, %s91
    %p102 = scmp.eq.s32.totalorder %s14, 0
    %p103 = por %p101, %p102
    %p104 = scmp.ne.s32.totalorder %s90, %s91
    %p105 = scmp.eq.s32.totalorder %s15, 1
    %p106 = por %p104, %p105
    %p108 = scmp.ne.s32.totalorder %s91, %s107
    %p109 = scmp.eq.s32.totalorder %s15, 0
    %p110 = por %p108, %p109
    %p111 = scmp.le.s32.totalorder 1, %s9
    %p112 = scmp.lt.s32.totalorder %s9, 3
    %p113 = pnand %p111, %p112
    %p114 = pneg %p113
    // Predicated region
    $region9: #{cnn_forward.4} parent=5 // pred_check
      _
    $region10: #{cnn_forward.4} parent=5 // pred_check_branch
      %116 = sbr.rel (%p113) target = $region12
    $region11: #{cnn_forward.4} parent=5 // pred_region
      %s117 = ssub.s32 %s9, 1
      // Predicated region
      $region13: #{cnn_forward.4} parent=11 // pred_check
        %p118 = pneg %p56
      $region14: #{cnn_forward.4} parent=11 // pred_check_branch
        %120 = sbr.rel (%p118) target = $region16
      $region15: #{cnn_forward.4} parent=11 // pred_region
        _
      $region16: #{cnn_forward.4} parent=11 // pred_fallthru
        _
      // Predicated region
      $region17: #{cnn_forward.4} parent=11 // pred_check
        %p121 = pneg %p77
      $region18: #{cnn_forward.4} parent=11 // pred_check_branch
        %123 = sbr.rel (%p121) target = $region20
      $region19: #{cnn_forward.4} parent=11 // pred_region
        _
      $region20: #{cnn_forward.4} parent=11 // pred_fallthru
        _
    $region12: #{cnn_forward.4} parent=5 // pred_fallthru
      _
    %p124 = scmp.lt.s32.totalorder %s9, 2
    // Predicated region
    $region21: #{cnn_forward.4} parent=5 // pred_check
      %p125 = pneg %p124
    $region22: #{cnn_forward.4} parent=5 // pred_check_branch
      %127 = sbr.rel (%p125) target = $region24
    $region23: #{cnn_forward.4} parent=5 // pred_region
      // Predicated region
      $region25: #{cnn_forward.4} parent=23 // pred_check
        %p128 = pneg %p29
      $region26: #{cnn_forward.4} parent=23 // pred_check_branch
        %130 = sbr.rel (%p128) target = $region28
      $region27: #{cnn_forward.4} parent=23 // pred_region
        %s131 = smul.u32 59, %s9
        %p132 = scmp.lt.s32.totalorder %s131, 117
        %s133 = scalar_select %p132, %s131, 117
        %s134 = smul.addr %s133, 2
        %s135 = smul.addr %s134, 8
        %s136 = scalar_lea.vmem %s0, %s135
        %s137 = smul.u32 59, %s9
      $region28: #{cnn_forward.4} parent=23 // pred_fallthru
        _
    $region24: #{cnn_forward.4} parent=5 // pred_fallthru
      _
    %p138 = scmp.le.s32.totalorder 1, %s9
    %p139 = scmp.lt.s32.totalorder %s9, 3
    %p140 = pnand %p138, %p139
    %p141 = pneg %p140
    // Predicated region
    $region29: #{cnn_forward.4} parent=5 // pred_check
      _
    $region30: #{cnn_forward.4} parent=5 // pred_check_branch
      %143 = sbr.rel (%p140) target = $region32
    $region31: #{cnn_forward.4} parent=5 // pred_region
      %s144 = ssub.s32 %s9, 1
      %s145 = smul.u32 59, %s14
      %p146 = scmp.lt.s32.totalorder %s145, 117
      %s147 = scalar_select %p146, %s145, 117
      %s148 = smul.addr %s147, 2
      %s149 = smul.addr %s148, 8
      %s150 = scalar_lea.vmem %s0, %s149
      %p151 = pneg %p35
      %p152 = pneg %p32
      %p153 = pneg %p56
      %p154 = pneg %p53
      %p155 = pneg %p77
      %p156 = pneg %p74
      %p157 = pneg %p103
      %p158 = pneg %p100
      %s159 = smul.u32 59, %s14
      %p160 = scmp.lt.s32.totalorder %s159, 117
      %s161 = scalar_select %p160, %s159, 117
      %s162 = smul.addr %s161, 8
      %s163 = scalar_lea.vmem %s3, %s162
      %s164 = smul.u32 59, %s14
      %p165 = scmp.lt.s32.totalorder %s164, 117
      %s166 = scalar_select %p165, %s164, 117
      %s167 = smul.addr %s166, 2
      %s168 = smul.addr %s167, 8
      %s169 = scalar_lea.vmem %s0, %s168
      %s170 = smul.u32 59, %s14
      %s171 = smul.u32 59, %s14
      %p172 = scmp.lt.s32.totalorder %s171, 117
      %s173 = scalar_select %p172, %s171, 117
      %s174 = smul.addr %s173, 8
      %s175 = scalar_lea.vmem %s3, %s174
      %s176 = smul.u32 59, %s14
      %v177 = vld [vmem:[%s169] sm:$0xff]
      %v178 = vld [vmem:[%s169 + $0x8] sm:$0xff]
      %v179 = vld [vmem:[%s169 + $0x10] sm:$0xff]
      %v180 = vld [vmem:[%s169 + $0x18] sm:$0xff]
      %v181 = vld [vmem:[%s169 + $0x20] sm:$0xff]
      %v182 = vld [vmem:[%s169 + $0x28] sm:$0xff]
      %v183 = vld [vmem:[%s169 + $0x30] sm:$0xff]
      %v184 = vld [vmem:[%s169 + $0x38] sm:$0xff]
      %v185 = vld [vmem:[%s169 + $0x40] sm:$0xff]
      %v186 = vld [vmem:[%s169 + $0x48] sm:$0xff]
      %v187 = vld [vmem:[%s169 + $0x50] sm:$0xff]
      %v188 = vld [vmem:[%s169 + $0x58] sm:$0xff]
      %v189 = vld [vmem:[%s169 + $0x60] sm:$0xff]
      %v190 = vld [vmem:[%s169 + $0x68] sm:$0xff]
      %v191 = vld [vmem:[%s169 + $0x70] sm:$0xff]
      %v192 = vld [vmem:[%s169 + $0x78] sm:$0xff]
      %v193 = vld [vmem:[%s169 + $0x80] sm:$0xff]
      %v194 = vld [vmem:[%s169 + $0x88] sm:$0xff]
      %v195 = vld [vmem:[%s169 + $0x90] sm:$0xff]
      %v196 = vld [vmem:[%s169 + $0x98] sm:$0xff]
      %v197 = vld [vmem:[%s169 + $0xa0] sm:$0xff]
      %v198 = vld [vmem:[%s169 + $0xa8] sm:$0xff]
      %v199 = vld [vmem:[%s169 + $0xb0] sm:$0xff]
      %v200 = vld [vmem:[%s169 + $0xb8] sm:$0xff]
      %v201 = vld [vmem:[%s169 + $0xc0] sm:$0xff]
      %v202 = vld [vmem:[%s169 + $0xc8] sm:$0xff]
      %v203 = vld [vmem:[%s169 + $0xd0] sm:$0xff]
      %v204 = vld [vmem:[%s169 + $0xd8] sm:$0xff]
      %v205 = vld [vmem:[%s169 + $0xe0] sm:$0xff]
      %v206 = vld [vmem:[%s169 + $0xe8] sm:$0xff]
      %v207 = vld [vmem:[%s169 + $0xf0] sm:$0xff]
      %v208 = vld [vmem:[%s169 + $0xf8] sm:$0xff]
      %v209 = vld [vmem:[%s169 + $0x100] sm:$0xff]
      %v210 = vld [vmem:[%s169 + $0x108] sm:$0xff]
      %v211 = vld [vmem:[%s169 + $0x110] sm:$0xff]
      %v212 = vld [vmem:[%s169 + $0x118] sm:$0xff]
      %v213 = vld [vmem:[%s169 + $0x120] sm:$0xff]
      %v214 = vld [vmem:[%s169 + $0x128] sm:$0xff]
      %v215 = vld [vmem:[%s169 + $0x130] sm:$0xff]
      %v216 = vld [vmem:[%s169 + $0x138] sm:$0xff]
      %v217 = vld [vmem:[%s169 + $0x140] sm:$0xff]
      %v218 = vld [vmem:[%s169 + $0x148] sm:$0xff]
      %v219 = vld [vmem:[%s169 + $0x150] sm:$0xff]
      %v220 = vld [vmem:[%s169 + $0x158] sm:$0xff]
      %v221 = vld [vmem:[%s169 + $0x160] sm:$0xff]
      %v222 = vld [vmem:[%s169 + $0x168] sm:$0xff]
      %v223 = vld [vmem:[%s169 + $0x170] sm:$0xff]
      %v224 = vld [vmem:[%s169 + $0x178] sm:$0xff]
      %v225 = vld [vmem:[%s169 + $0x180] sm:$0xff]
      %v226 = vld [vmem:[%s169 + $0x188] sm:$0xff]
      %v227 = vld [vmem:[%s169 + $0x190] sm:$0xff]
      %v228 = vld [vmem:[%s169 + $0x198] sm:$0xff]
      %v229 = vld [vmem:[%s169 + $0x1a0] sm:$0xff]
      %v230 = vld [vmem:[%s169 + $0x1a8] sm:$0xff]
      %v231 = vld [vmem:[%s169 + $0x1b0] sm:$0xff]
      %v232 = vld [vmem:[%s169 + $0x1b8] sm:$0xff]
      %v233 = vld [vmem:[%s169 + $0x1c0] sm:$0xff]
      %v234 = vld [vmem:[%s169 + $0x1c8] sm:$0xff]
      %v235 = vld [vmem:[%s169 + $0x1d0] sm:$0xff]
      %v236 = vld [vmem:[%s169 + $0x1d8] sm:$0xff]
      %v237 = vld [vmem:[%s169 + $0x1e0] sm:$0xff]
      %v238 = vld [vmem:[%s169 + $0x1e8] sm:$0xff]
      %v239 = vld [vmem:[%s169 + $0x1f0] sm:$0xff]
      %v240 = vld [vmem:[%s169 + $0x1f8] sm:$0xff]
      %v241 = vld [vmem:[%s169 + $0x200] sm:$0xff]
      %v242 = vld [vmem:[%s169 + $0x208] sm:$0xff]
      %v243 = vld [vmem:[%s169 + $0x210] sm:$0xff]
      %v244 = vld [vmem:[%s169 + $0x218] sm:$0xff]
      %v245 = vld [vmem:[%s169 + $0x220] sm:$0xff]
      %v246 = vld [vmem:[%s169 + $0x228] sm:$0xff]
      %v247 = vld [vmem:[%s169 + $0x230] sm:$0xff]
      %v248 = vld [vmem:[%s169 + $0x238] sm:$0xff]
      %v249 = vld [vmem:[%s169 + $0x240] sm:$0xff]
      %v250 = vld [vmem:[%s169 + $0x248] sm:$0xff]
      %v251 = vld [vmem:[%s169 + $0x250] sm:$0xff]
      %v252 = vld [vmem:[%s169 + $0x258] sm:$0xff]
      %v253 = vld [vmem:[%s169 + $0x260] sm:$0xff]
      %v254 = vld [vmem:[%s169 + $0x268] sm:$0xff]
      %v255 = vld [vmem:[%s169 + $0x270] sm:$0xff]
      %v256 = vld [vmem:[%s169 + $0x278] sm:$0xff]
      %v257 = vld [vmem:[%s169 + $0x280] sm:$0xff]
      %v258 = vld [vmem:[%s169 + $0x288] sm:$0xff]
      %v259 = vld [vmem:[%s169 + $0x290] sm:$0xff]
      %v260 = vld [vmem:[%s169 + $0x298] sm:$0xff]
      %v261 = vld [vmem:[%s169 + $0x2a0] sm:$0xff]
      %v262 = vld [vmem:[%s169 + $0x2a8] sm:$0xff]
      %v263 = vld [vmem:[%s169 + $0x2b0] sm:$0xff]
      %v264 = vld [vmem:[%s169 + $0x2b8] sm:$0xff]
      %v265 = vld [vmem:[%s169 + $0x2c0] sm:$0xff]
      %v266 = vld [vmem:[%s169 + $0x2c8] sm:$0xff]
      %v267 = vld [vmem:[%s169 + $0x2d0] sm:$0xff]
      %v268 = vld [vmem:[%s169 + $0x2d8] sm:$0xff]
      %v269 = vld [vmem:[%s169 + $0x2e0] sm:$0xff]
      %v270 = vld [vmem:[%s169 + $0x2e8] sm:$0xff]
      %v271 = vld [vmem:[%s169 + $0x2f0] sm:$0xff]
      %v272 = vld [vmem:[%s169 + $0x2f8] sm:$0xff]
      %v273 = vld [vmem:[%s169 + $0x300] sm:$0xff]
      %v274 = vld [vmem:[%s169 + $0x308] sm:$0xff]
      %v275 = vld [vmem:[%s169 + $0x310] sm:$0xff]
      %v276 = vld [vmem:[%s169 + $0x318] sm:$0xff]
      %v277 = vld [vmem:[%s169 + $0x320] sm:$0xff]
      %v278 = vld [vmem:[%s169 + $0x328] sm:$0xff]
      %v279 = vld [vmem:[%s169 + $0x330] sm:$0xff]
      %v280 = vld [vmem:[%s169 + $0x338] sm:$0xff]
      %v281 = vld [vmem:[%s169 + $0x340] sm:$0xff]
      %v282 = vld [vmem:[%s169 + $0x348] sm:$0xff]
      %v283 = vld [vmem:[%s169 + $0x350] sm:$0xff]
      %v284 = vld [vmem:[%s169 + $0x358] sm:$0xff]
      %v285 = vld [vmem:[%s169 + $0x360] sm:$0xff]
      %v286 = vld [vmem:[%s169 + $0x368] sm:$0xff]
      %v287 = vld [vmem:[%s169 + $0x370] sm:$0xff]
      %v288 = vld [vmem:[%s169 + $0x378] sm:$0xff]
      %v289 = vld [vmem:[%s169 + $0x380] sm:$0xff]
      %v290 = vld [vmem:[%s169 + $0x388] sm:$0xff]
      %v291 = vld [vmem:[%s169 + $0x390] sm:$0xff]
      %v292 = vld [vmem:[%s169 + $0x398] sm:$0xff]
      %v293 = vld [vmem:[%s169 + $0x3a0] sm:$0xff]
      %v294 = vld [vmem:[%s169 + $0x3a8] sm:$0xff]
      %v295 = vld [vmem:[%s1] sm:$0xff]
      %v296 = vld [vmem:[%s1 + $0x8] sm:$0xff]
      %v297 = vld [vmem:[%s1 + $0x10] sm:$0xff]
      %v298 = vld [vmem:[%s1 + $0x18] sm:$0xff]
      %v299 = vld [vmem:[%s1 + $0x20] sm:$0xff]
      %v300 = vld [vmem:[%s1 + $0x28] sm:$0xff]
      %v301 = vld [vmem:[%s1 + $0x30] sm:$0xff]
      %v302 = vld [vmem:[%s1 + $0x38] sm:$0xff]
      %v303 = vld [vmem:[%s1 + $0x40] sm:$0xff]
      %v304 = vld [vmem:[%s1 + $0x48] sm:$0xff]
      %v305 = vld [vmem:[%s1 + $0x50] sm:$0xff]
      %v306 = vld [vmem:[%s1 + $0x58] sm:$0xff]
      %v307 = vld [vmem:[%s1 + $0x60] sm:$0xff]
      %v308 = vld [vmem:[%s1 + $0x68] sm:$0xff]
      %v309 = vld [vmem:[%s1 + $0x70] sm:$0xff]
      %v310 = vld [vmem:[%s1 + $0x78] sm:$0xff]
      %v311 = vld [vmem:[%s1 + $0x80] sm:$0xff]
      %v312 = vld [vmem:[%s1 + $0x88] sm:$0xff]
      %v313 = vld [vmem:[%s1 + $0x90] sm:$0xff]
      %v314 = vld [vmem:[%s1 + $0x98] sm:$0xff]
      %v315 = vld [vmem:[%s1 + $0xa0] sm:$0xff]
      %v316 = vld [vmem:[%s1 + $0xa8] sm:$0xff]
      %v317 = vld [vmem:[%s1 + $0xb0] sm:$0xff]
      %v318 = vld [vmem:[%s1 + $0xb8] sm:$0xff]
      %v319 = vld [vmem:[%s1 + $0xc0] sm:$0xff]
      %v320 = vld [vmem:[%s1 + $0xc8] sm:$0xff]
      %v321 = vld [vmem:[%s1 + $0xd0] sm:$0xff]
      %v322 = vld [vmem:[%s1 + $0xd8] sm:$0xff]
      %v323 = vld [vmem:[%s1 + $0xe0] sm:$0xff]
      %v324 = vld [vmem:[%s1 + $0xe8] sm:$0xff]
      %v325 = vld [vmem:[%s1 + $0xf0] sm:$0xff]
      %v326 = vld [vmem:[%s1 + $0xf8] sm:$0xff]
      %v327 = vld [vmem:[%s2] sm:$0x1]
      %v329 = vlaneseq
      %v330 = vshrl.u32 %v329, 7
      %v331 = vsub.s32 0, %v330
      %v332 = vrot.slane %v327, %v331
      %334 = vmatprep.subr.mxu0 0.0
      %335 = vmatpush1.msra.mxu0 %v295
      %336 = vmatprep.subr.mxu0 0.0
      %337 = vmatpush1.msra.mxu0 %v296
      %338 = vmatprep.subr.mxu0 0.0
      %339 = vmatpush1.msra.mxu0 %v297
      %340 = vmatprep.subr.mxu0 0.0
      %341 = vmatpush1.msra.mxu0 %v298
      %342 = vmatprep.subr.mxu0 0.0
      %343 = vmatpush1.msra.mxu0 %v299
      %344 = vmatprep.subr.mxu0 0.0
      %345 = vmatpush1.msra.mxu0 %v300
      %346 = vmatprep.subr.mxu0 0.0
      %347 = vmatpush1.msra.mxu0 %v301
      %348 = vmatprep.subr.mxu0 0.0
      %349 = vmatpush1.msra.mxu0 %v302
      %350 = vmatprep.subr.mxu0 0.0
      %351 = vmatpush1.msra.mxu0 %v303
      %352 = vmatprep.subr.mxu0 0.0
      %353 = vmatpush1.msra.mxu0 %v304
      %354 = vmatprep.subr.mxu0 0.0
      %355 = vmatpush1.msra.mxu0 %v305
      %356 = vmatprep.subr.mxu0 0.0
      %357 = vmatpush1.msra.mxu0 %v306
      %358 = vmatprep.subr.mxu0 0.0
      %359 = vmatpush1.msra.mxu0 %v307
      %360 = vmatprep.subr.mxu0 0.0
      %361 = vmatpush1.msra.mxu0 %v308
      %362 = vmatprep.subr.mxu0 0.0
      %363 = vmatpush1.msra.mxu0 %v309
      %364 = vmatprep.subr.mxu0 0.0
      %365 = vmatpush1.msra.mxu0 %v310
      %366 = vmatprep.subr.mxu0 0.0
      %367 = vmatpush1.msra.mxu0 %v311
      %368 = vmatprep.subr.mxu0 0.0
      %369 = vmatpush1.msra.mxu0 %v312
      %370 = vmatprep.subr.mxu0 0.0
      %371 = vmatpush1.msra.mxu0 %v313
      %372 = vmatprep.subr.mxu0 0.0
      %373 = vmatpush1.msra.mxu0 %v314
      %374 = vmatprep.subr.mxu0 0.0
      %375 = vmatpush1.msra.mxu0 %v315
      %376 = vmatprep.subr.mxu0 0.0
      %377 = vmatpush1.msra.mxu0 %v316
      %378 = vmatprep.subr.mxu0 0.0
      %379 = vmatpush1.msra.mxu0 %v317
      %380 = vmatprep.subr.mxu0 0.0
      %381 = vmatpush1.msra.mxu0 %v318
      %382 = vmatprep.subr.mxu0 0.0
      %383 = vmatpush1.msra.mxu0 %v319
      %384 = vmatprep.subr.mxu0 0.0
      %385 = vmatpush1.msra.mxu0 %v320
      %386 = vmatprep.subr.mxu0 0.0
      %387 = vmatpush1.msra.mxu0 %v321
      %388 = vmatprep.subr.mxu0 0.0
      %389 = vmatpush1.msra.mxu0 %v322
      %390 = vmatprep.subr.mxu0 0.0
      %391 = vmatpush1.msra.mxu0 %v323
      %392 = vmatprep.subr.mxu0 0.0
      %393 = vmatpush1.msra.mxu0 %v324
      %394 = vmatprep.subr.mxu0 0.0
      %395 = vmatpush1.msra.mxu0 %v325
      %396 = vmatprep.subr.mxu0 0.0
      %397 = vmatpush1.msra.mxu0 %v326
      %398 = vmatprep.mubr.f32.mxu0 %v178
      %399 = vmatmul.mubr.f32.gmra.mrb[0].mxu0 %v177
      %v400 = vpop.f32.mrb[0].mxu0
      %v401 = vadd.f32 %v332, %v400
      %v402 = vpop.f32.mrb[0].mxu0
      %403 = vmatprep.mubr.f32.mxu0 %v180
      %404 = vmatmul.mubr.f32.gmra.mrb[0].mxu0 %v179
      %v405 = vpop.f32.mrb[0].mxu0
      %v406 = vadd.f32 %v332, %v405
      %v407 = vpop.f32.mrb[0].mxu0
      %408 = vmatprep.mubr.f32.mxu0 %v182
      %409 = vmatmul.mubr.f32.gmra.mrb[0].mxu0 %v181
      %v410 = vpop.f32.mrb[0].mxu0
      %v411 = vadd.f32 %v332, %v410
      %v412 = vpop.f32.mrb[0].mxu0
      %413 = vmatprep.mubr.f32.mxu0 %v184
      %414 = vmatmul.mubr.f32.gmra.mrb[0].mxu0 %v183
      %v415 = vpop.f32.mrb[0].mxu0
      %v416 = vadd.f32 %v332, %v415
      %v417 = vpop.f32.mrb[0].mxu0
      %418 = vmatprep.mubr.f32.mxu0 %v186
      %419 = vmatmul.mubr.f32.gmra.mrb[0].mxu0 %v185
      %v420 = vpop.f32.mrb[0].mxu0
      %v421 = vadd.f32 %v332, %v420
      %v422 = vpop.f32.mrb[0].mxu0
      %423 = vmatprep.mubr.f32.mxu0 %v188
      %424 = vmatmul.mubr.f32.gmra.mrb[0].mxu0 %v187
      %v425 = vpop.f32.mrb[0].mxu0
      %v426 = vadd.f32 %v332, %v425
      %v427 = vpop.f32.mrb[0].mxu0
      %428 = vmatprep.mubr.f32.mxu0 %v190
      %429 = vmatmul.mubr.f32.gmra.mrb[0].mxu0 %v189
      %v430 = vpop.f32.mrb[0].mxu0
      %v431 = vadd.f32 %v332, %v430
      %v432 = vpop.f32.mrb[0].mxu0
      %433 = vmatprep.mubr.f32.mxu0 %v192
      %434 = vmatmul.mubr.f32.gmra.mrb[0].mxu0 %v191
      %v435 = vpop.f32.mrb[0].mxu0
      %v436 = vadd.f32 %v332, %v435
      %v437 = vpop.f32.mrb[0].mxu0
      %438 = vmatprep.mubr.f32.mxu0 %v194
      %439 = vmatmul.mubr.f32.gmra.mrb[0].mxu0 %v193
      %v440 = vpop.f32.mrb[0].mxu0
      %v441 = vadd.f32 %v332, %v440
      %v442 = vpop.f32.mrb[0].mxu0
      %443 = vmatprep.mubr.f32.mxu0 %v196
      %444 = vmatmul.mubr.f32.gmra.mrb[0].mxu0 %v195
      %v445 = vpop.f32.mrb[0].mxu0
      %v446 = vadd.f32 %v332, %v445
      %v447 = vpop.f32.mrb[0].mxu0
      %448 = vmatprep.mubr.f32.mxu0 %v198
      %449 = vmatmul.mubr.f32.gmra.mrb[0].mxu0 %v197
      %v450 = vpop.f32.mrb[0].mxu0
      %v451 = vadd.f32 %v332, %v450
      %v452 = vpop.f32.mrb[0].mxu0
      %453 = vmatprep.mubr.f32.mxu0 %v200
      %454 = vmatmul.mubr.f32.gmra.mrb[0].mxu0 %v199
      %v455 = vpop.f32.mrb[0].mxu0
      %v456 = vadd.f32 %v332, %v455
      %v457 = vpop.f32.mrb[0].mxu0
      %458 = vmatprep.mubr.f32.mxu0 %v202
      %459 = vmatmul.mubr.f32.gmra.mrb[0].mxu0 %v201
      %v460 = vpop.f32.mrb[0].mxu0
      %v461 = vadd.f32 %v332, %v460
      %v462 = vpop.f32.mrb[0].mxu0
      %463 = vmatprep.mubr.f32.mxu0 %v204
      %464 = vmatmul.mubr.f32.gmra.mrb[0].mxu0 %v203
      %v465 = vpop.f32.mrb[0].mxu0
      %v466 = vadd.f32 %v332, %v465
      %v467 = vpop.f32.mrb[0].mxu0
      %468 = vmatprep.mubr.f32.mxu0 %v206
      %469 = vmatmul.mubr.f32.gmra.mrb[0].mxu0 %v205
      %v470 = vpop.f32.mrb[0].mxu0
      %v471 = vadd.f32 %v332, %v470
      %v472 = vpop.f32.mrb[0].mxu0
      %473 = vmatprep.mubr.f32.mxu0 %v208
      %474 = vmatmul.mubr.f32.gmra.mrb[0].mxu0 %v207
      %v475 = vpop.f32.mrb[0].mxu0
      %v476 = vadd.f32 %v332, %v475
      %v477 = vpop.f32.mrb[0].mxu0
      %478 = vmatprep.mubr.f32.mxu0 %v210
      %479 = vmatmul.mubr.f32.gmra.mrb[0].mxu0 %v209
      %v480 = vpop.f32.mrb[0].mxu0
      %v481 = vadd.f32 %v332, %v480
      %v482 = vpop.f32.mrb[0].mxu0
      %483 = vmatprep.mubr.f32.mxu0 %v212
      %484 = vmatmul.mubr.f32.gmra.mrb[0].mxu0 %v211
      %v485 = vpop.f32.mrb[0].mxu0
      %v486 = vadd.f32 %v332, %v485
      %v487 = vpop.f32.mrb[0].mxu0
      %488 = vmatprep.mubr.f32.mxu0 %v214
      %489 = vmatmul.mubr.f32.gmra.mrb[0].mxu0 %v213
      %v490 = vpop.f32.mrb[0].mxu0
      %v491 = vadd.f32 %v332, %v490
      %v492 = vpop.f32.mrb[0].mxu0
      %493 = vmatprep.mubr.f32.mxu0 %v216
      %494 = vmatmul.mubr.f32.gmra.mrb[0].mxu0 %v215
      %v495 = vpop.f32.mrb[0].mxu0
      %v496 = vadd.f32 %v332, %v495
      %v497 = vpop.f32.mrb[0].mxu0
      %498 = vmatprep.mubr.f32.mxu0 %v218
      %499 = vmatmul.mubr.f32.gmra.mrb[0].mxu0 %v217
      %v500 = vpop.f32.mrb[0].mxu0
      %v501 = vadd.f32 %v332, %v500
      %v502 = vpop.f32.mrb[0].mxu0
      %503 = vmatprep.mubr.f32.mxu0 %v220
      %504 = vmatmul.mubr.f32.gmra.mrb[0].mxu0 %v219
      %v505 = vpop.f32.mrb[0].mxu0
      %v506 = vadd.f32 %v332, %v505
      %v507 = vpop.f32.mrb[0].mxu0
      %508 = vmatprep.mubr.f32.mxu0 %v222
      %509 = vmatmul.mubr.f32.gmra.mrb[0].mxu0 %v221
      %v510 = vpop.f32.mrb[0].mxu0
      %v511 = vadd.f32 %v332, %v510
      %v512 = vpop.f32.mrb[0].mxu0
      %513 = vmatprep.mubr.f32.mxu0 %v224
      %514 = vmatmul.mubr.f32.gmra.mrb[0].mxu0 %v223
      %v515 = vpop.f32.mrb[0].mxu0
      %v516 = vadd.f32 %v332, %v515
      %v517 = vpop.f32.mrb[0].mxu0
      %518 = vmatprep.mubr.f32.mxu0 %v226
      %519 = vmatmul.mubr.f32.gmra.mrb[0].mxu0 %v225
      %v520 = vpop.f32.mrb[0].mxu0
      %v521 = vadd.f32 %v332, %v520
      %v522 = vpop.f32.mrb[0].mxu0
      %523 = vmatprep.mubr.f32.mxu0 %v228
      %524 = vmatmul.mubr.f32.gmra.mrb[0].mxu0 %v227
      %v525 = vpop.f32.mrb[0].mxu0
      %v526 = vadd.f32 %v332, %v525
      %v527 = vpop.f32.mrb[0].mxu0
      %528 = vmatprep.mubr.f32.mxu0 %v230
      %529 = vmatmul.mubr.f32.gmra.mrb[0].mxu0 %v229
      %v530 = vpop.f32.mrb[0].mxu0
      %v531 = vadd.f32 %v332, %v530
      %v532 = vpop.f32.mrb[0].mxu0
      %533 = vmatprep.mubr.f32.mxu0 %v232
      %534 = vmatmul.mubr.f32.gmra.mrb[0].mxu0 %v231
      %v535 = vpop.f32.mrb[0].mxu0
      %v536 = vadd.f32 %v332, %v535
      %v537 = vpop.f32.mrb[0].mxu0
      %538 = vmatprep.mubr.f32.mxu0 %v234
      %539 = vmatmul.mubr.f32.gmra.mrb[0].mxu0 %v233
      %v540 = vpop.f32.mrb[0].mxu0
      %v541 = vadd.f32 %v332, %v540
      %v542 = vpop.f32.mrb[0].mxu0
      %543 = vmatprep.mubr.f32.mxu0 %v236
      %544 = vmatmul.mubr.f32.gmra.mrb[0].mxu0 %v235
      %v545 = vpop.f32.mrb[0].mxu0
      %v546 = vadd.f32 %v332, %v545
      %v547 = vpop.f32.mrb[0].mxu0
      %548 = vmatprep.mubr.f32.mxu0 %v238
      %549 = vmatmul.mubr.f32.gmra.mrb[0].mxu0 %v237
      %v550 = vpop.f32.mrb[0].mxu0
      %v551 = vadd.f32 %v332, %v550
      %v552 = vpop.f32.mrb[0].mxu0
      %553 = vmatprep.mubr.f32.mxu0 %v240
      %554 = vmatmul.mubr.f32.gmra.mrb[0].mxu0 %v239
      %v555 = vpop.f32.mrb[0].mxu0
      %v556 = vadd.f32 %v332, %v555
      %v557 = vpop.f32.mrb[0].mxu0
      %558 = vmatprep.mubr.f32.mxu0 %v242
      %559 = vmatmul.mubr.f32.gmra.mrb[0].mxu0 %v241
      %v560 = vpop.f32.mrb[0].mxu0
      %v561 = vadd.f32 %v332, %v560
      %v562 = vpop.f32.mrb[0].mxu0
      %563 = vmatprep.mubr.f32.mxu0 %v244
      %564 = vmatmul.mubr.f32.gmra.mrb[0].mxu0 %v243
      %v565 = vpop.f32.mrb[0].mxu0
      %v566 = vadd.f32 %v332, %v565
      %v567 = vpop.f32.mrb[0].mxu0
      %568 = vmatprep.mubr.f32.mxu0 %v246
      %569 = vmatmul.mubr.f32.gmra.mrb[0].mxu0 %v245
      %v570 = vpop.f32.mrb[0].mxu0
      %v571 = vadd.f32 %v332, %v570
      %v572 = vpop.f32.mrb[0].mxu0
      %573 = vmatprep.mubr.f32.mxu0 %v248
      %574 = vmatmul.mubr.f32.gmra.mrb[0].mxu0 %v247
      %v575 = vpop.f32.mrb[0].mxu0
      %v576 = vadd.f32 %v332, %v575
      %v577 = vpop.f32.mrb[0].mxu0
      %578 = vmatprep.mubr.f32.mxu0 %v250
      %579 = vmatmul.mubr.f32.gmra.mrb[0].mxu0 %v249
      %v580 = vpop.f32.mrb[0].mxu0
      %v581 = vadd.f32 %v332, %v580
      %v582 = vpop.f32.mrb[0].mxu0
      %583 = vmatprep.mubr.f32.mxu0 %v252
      %584 = vmatmul.mubr.f32.gmra.mrb[0].mxu0 %v251
      %v585 = vpop.f32.mrb[0].mxu0
      %v586 = vadd.f32 %v332, %v585
      %v587 = vpop.f32.mrb[0].mxu0
      %588 = vmatprep.mubr.f32.mxu0 %v254
      %589 = vmatmul.mubr.f32.gmra.mrb[0].mxu0 %v253
      %v590 = vpop.f32.mrb[0].mxu0
      %v591 = vadd.f32 %v332, %v590
      %v592 = vpop.f32.mrb[0].mxu0
      %593 = vmatprep.mubr.f32.mxu0 %v256
      %594 = vmatmul.mubr.f32.gmra.mrb[0].mxu0 %v255
      %v595 = vpop.f32.mrb[0].mxu0
      %v596 = vadd.f32 %v332, %v595
      %v597 = vpop.f32.mrb[0].mxu0
      %598 = vmatprep.mubr.f32.mxu0 %v258
      %599 = vmatmul.mubr.f32.gmra.mrb[0].mxu0 %v257
      %v600 = vpop.f32.mrb[0].mxu0
      %v601 = vadd.f32 %v332, %v600
      %v602 = vpop.f32.mrb[0].mxu0
      %603 = vmatprep.mubr.f32.mxu0 %v260
      %604 = vmatmul.mubr.f32.gmra.mrb[0].mxu0 %v259
      %v605 = vpop.f32.mrb[0].mxu0
      %v606 = vadd.f32 %v332, %v605
      %v607 = vpop.f32.mrb[0].mxu0
      %608 = vmatprep.mubr.f32.mxu0 %v262
      %609 = vmatmul.mubr.f32.gmra.mrb[0].mxu0 %v261
      %v610 = vpop.f32.mrb[0].mxu0
      %v611 = vadd.f32 %v332, %v610
      %v612 = vpop.f32.mrb[0].mxu0
      %613 = vmatprep.mubr.f32.mxu0 %v264
      %614 = vmatmul.mubr.f32.gmra.mrb[0].mxu0 %v263
      %v615 = vpop.f32.mrb[0].mxu0
      %v616 = vadd.f32 %v332, %v615
      %v617 = vpop.f32.mrb[0].mxu0
      %618 = vmatprep.mubr.f32.mxu0 %v266
      %619 = vmatmul.mubr.f32.gmra.mrb[0].mxu0 %v265
      %v620 = vpop.f32.mrb[0].mxu0
      %v621 = vadd.f32 %v332, %v620
      %v622 = vpop.f32.mrb[0].mxu0
      %623 = vmatprep.mubr.f32.mxu0 %v268
      %624 = vmatmul.mubr.f32.gmra.mrb[0].mxu0 %v267
      %v625 = vpop.f32.mrb[0].mxu0
      %v626 = vadd.f32 %v332, %v625
      %v627 = vpop.f32.mrb[0].mxu0
      %628 = vmatprep.mubr.f32.mxu0 %v270
      %629 = vmatmul.mubr.f32.gmra.mrb[0].mxu0 %v269
      %v630 = vpop.f32.mrb[0].mxu0
      %v631 = vadd.f32 %v332, %v630
      %v632 = vpop.f32.mrb[0].mxu0
      %633 = vmatprep.mubr.f32.mxu0 %v272
      %634 = vmatmul.mubr.f32.gmra.mrb[0].mxu0 %v271
      %v635 = vpop.f32.mrb[0].mxu0
      %v636 = vadd.f32 %v332, %v635
      %v637 = vpop.f32.mrb[0].mxu0
      %638 = vmatprep.mubr.f32.mxu0 %v274
      %639 = vmatmul.mubr.f32.gmra.mrb[0].mxu0 %v273
      %v640 = vpop.f32.mrb[0].mxu0
      %v641 = vadd.f32 %v332, %v640
      %v642 = vpop.f32.mrb[0].mxu0
      %643 = vmatprep.mubr.f32.mxu0 %v276
      %644 = vmatmul.mubr.f32.gmra.mrb[0].mxu0 %v275
      %v645 = vpop.f32.mrb[0].mxu0
      %v646 = vadd.f32 %v332, %v645
      %v647 = vpop.f32.mrb[0].mxu0
      %648 = vmatprep.mubr.f32.mxu0 %v278
      %649 = vmatmul.mubr.f32.gmra.mrb[0].mxu0 %v277
      %v650 = vpop.f32.mrb[0].mxu0
      %v651 = vadd.f32 %v332, %v650
      %v652 = vpop.f32.mrb[0].mxu0
      %653 = vmatprep.mubr.f32.mxu0 %v280
      %654 = vmatmul.mubr.f32.gmra.mrb[0].mxu0 %v279
      %v655 = vpop.f32.mrb[0].mxu0
      %v656 = vadd.f32 %v332, %v655
      %v657 = vpop.f32.mrb[0].mxu0
      %658 = vmatprep.mubr.f32.mxu0 %v282
      %659 = vmatmul.mubr.f32.gmra.mrb[0].mxu0 %v281
      %v660 = vpop.f32.mrb[0].mxu0
      %v661 = vadd.f32 %v332, %v660
      %v662 = vpop.f32.mrb[0].mxu0
      %663 = vmatprep.mubr.f32.mxu0 %v284
      %664 = vmatmul.mubr.f32.gmra.mrb[0].mxu0 %v283
      %v665 = vpop.f32.mrb[0].mxu0
      %v666 = vadd.f32 %v332, %v665
      %v667 = vpop.f32.mrb[0].mxu0
      %668 = vmatprep.mubr.f32.mxu0 %v286
      %669 = vmatmul.mubr.f32.gmra.mrb[0].mxu0 %v285
      %v670 = vpop.f32.mrb[0].mxu0
      %v671 = vadd.f32 %v332, %v670
      %v672 = vpop.f32.mrb[0].mxu0
      %673 = vmatprep.mubr.f32.mxu0 %v288
      %674 = vmatmul.mubr.f32.gmra.mrb[0].mxu0 %v287
      %v675 = vpop.f32.mrb[0].mxu0
      %v676 = vadd.f32 %v332, %v675
      %v677 = vpop.f32.mrb[0].mxu0
      %678 = vmatprep.mubr.f32.mxu0 %v290
      %679 = vmatmul.mubr.f32.gmra.mrb[0].mxu0 %v289
      %v680 = vpop.f32.mrb[0].mxu0
      %v681 = vadd.f32 %v332, %v680
      %v682 = vpop.f32.mrb[0].mxu0
      %683 = vmatprep.mubr.f32.mxu0 %v292
      %684 = vmatmul.mubr.f32.gmra.mrb[0].mxu0 %v291
      %v685 = vpop.f32.mrb[0].mxu0
      %v686 = vadd.f32 %v332, %v685
      %v687 = vpop.f32.mrb[0].mxu0
      %688 = vmatprep.mubr.f32.mxu0 %v294
      %689 = vmatmul.mubr.f32.gmra.mrb[0].mxu0 %v293
      %v690 = vpop.f32.mrb[0].mxu0
      %v691 = vadd.f32 %v332, %v690
      %v692 = vpop.f32.mrb[0].mxu0
      %693 = vdwg.mxu0
      %v694 = vmax.f32 %v401, 0.0
      %v695 = vmax.f32 %v406, 0.0
      %v696 = vmax.f32 %v411, 0.0
      %v697 = vmax.f32 %v416, 0.0
      %v698 = vmax.f32 %v421, 0.0
      %v699 = vmax.f32 %v426, 0.0
      %v700 = vmax.f32 %v431, 0.0
      %v701 = vmax.f32 %v436, 0.0
      %v702 = vmax.f32 %v441, 0.0
      %v703 = vmax.f32 %v446, 0.0
      %v704 = vmax.f32 %v451, 0.0
      %v705 = vmax.f32 %v456, 0.0
      %v706 = vmax.f32 %v461, 0.0
      %v707 = vmax.f32 %v466, 0.0
      %v708 = vmax.f32 %v471, 0.0
      %v709 = vmax.f32 %v476, 0.0
      %v710 = vmax.f32 %v481, 0.0
      %v711 = vmax.f32 %v486, 0.0
      %v712 = vmax.f32 %v491, 0.0
      %v713 = vmax.f32 %v496, 0.0
      %v714 = vmax.f32 %v501, 0.0
      %v715 = vmax.f32 %v506, 0.0
      %v716 = vmax.f32 %v511, 0.0
      %v717 = vmax.f32 %v516, 0.0
      %v718 = vmax.f32 %v521, 0.0
      %v719 = vmax.f32 %v526, 0.0
      %v720 = vmax.f32 %v531, 0.0
      %v721 = vmax.f32 %v536, 0.0
      %v722 = vmax.f32 %v541, 0.0
      %v723 = vmax.f32 %v546, 0.0
      %v724 = vmax.f32 %v551, 0.0
      %v725 = vmax.f32 %v556, 0.0
      %v726 = vmax.f32 %v561, 0.0
      %v727 = vmax.f32 %v566, 0.0
      %v728 = vmax.f32 %v571, 0.0
      %v729 = vmax.f32 %v576, 0.0
      %v730 = vmax.f32 %v581, 0.0
      %v731 = vmax.f32 %v586, 0.0
      %v732 = vmax.f32 %v591, 0.0
      %v733 = vmax.f32 %v596, 0.0
      %v734 = vmax.f32 %v601, 0.0
      %v735 = vmax.f32 %v606, 0.0
      %v736 = vmax.f32 %v611, 0.0
      %v737 = vmax.f32 %v616, 0.0
      %v738 = vmax.f32 %v621, 0.0
      %v739 = vmax.f32 %v626, 0.0
      %v740 = vmax.f32 %v631, 0.0
      %v741 = vmax.f32 %v636, 0.0
      %v742 = vmax.f32 %v641, 0.0
      %v743 = vmax.f32 %v646, 0.0
      %v744 = vmax.f32 %v651, 0.0
      %v745 = vmax.f32 %v656, 0.0
      %v746 = vmax.f32 %v661, 0.0
      %v747 = vmax.f32 %v666, 0.0
      %v748 = vmax.f32 %v671, 0.0
      %v749 = vmax.f32 %v676, 0.0
      %v750 = vmax.f32 %v681, 0.0
      %v751 = vmax.f32 %v686, 0.0
      %v752 = vmax.f32 %v691, 0.0
      %753 = vst [vmem:[%s175] sm:$0xff] %v694
      %754 = vst [vmem:[%s175 + $0x8] sm:$0xff] %v695
      %755 = vst [vmem:[%s175 + $0x10] sm:$0xff] %v696
      %756 = vst [vmem:[%s175 + $0x18] sm:$0xff] %v697
      %757 = vst [vmem:[%s175 + $0x20] sm:$0xff] %v698
      %758 = vst [vmem:[%s175 + $0x28] sm:$0xff] %v699
      %759 = vst [vmem:[%s175 + $0x30] sm:$0xff] %v700
      %760 = vst [vmem:[%s175 + $0x38] sm:$0xff] %v701
      %761 = vst [vmem:[%s175 + $0x40] sm:$0xff] %v702
      %762 = vst [vmem:[%s175 + $0x48] sm:$0xff] %v703
      %763 = vst [vmem:[%s175 + $0x50] sm:$0xff] %v704
      %764 = vst [vmem:[%s175 + $0x58] sm:$0xff] %v705
      %765 = vst [vmem:[%s175 + $0x60] sm:$0xff] %v706
      %766 = vst [vmem:[%s175 + $0x68] sm:$0xff] %v707
      %767 = vst [vmem:[%s175 + $0x70] sm:$0xff] %v708
      %768 = vst [vmem:[%s175 + $0x78] sm:$0xff] %v709
      %769 = vst [vmem:[%s175 + $0x80] sm:$0xff] %v710
      %770 = vst [vmem:[%s175 + $0x88] sm:$0xff] %v711
      %771 = vst [vmem:[%s175 + $0x90] sm:$0xff] %v712
      %772 = vst [vmem:[%s175 + $0x98] sm:$0xff] %v713
      %773 = vst [vmem:[%s175 + $0xa0] sm:$0xff] %v714
      %774 = vst [vmem:[%s175 + $0xa8] sm:$0xff] %v715
      %775 = vst [vmem:[%s175 + $0xb0] sm:$0xff] %v716
      %776 = vst [vmem:[%s175 + $0xb8] sm:$0xff] %v717
      %777 = vst [vmem:[%s175 + $0xc0] sm:$0xff] %v718
      %778 = vst [vmem:[%s175 + $0xc8] sm:$0xff] %v719
      %779 = vst [vmem:[%s175 + $0xd0] sm:$0xff] %v720
      %780 = vst [vmem:[%s175 + $0xd8] sm:$0xff] %v721
      %781 = vst [vmem:[%s175 + $0xe0] sm:$0xff] %v722
      %782 = vst [vmem:[%s175 + $0xe8] sm:$0xff] %v723
      %783 = vst [vmem:[%s175 + $0xf0] sm:$0xff] %v724
      %784 = vst [vmem:[%s175 + $0xf8] sm:$0xff] %v725
      %785 = vst [vmem:[%s175 + $0x100] sm:$0xff] %v726
      %786 = vst [vmem:[%s175 + $0x108] sm:$0xff] %v727
      %787 = vst [vmem:[%s175 + $0x110] sm:$0xff] %v728
      %788 = vst [vmem:[%s175 + $0x118] sm:$0xff] %v729
      %789 = vst [vmem:[%s175 + $0x120] sm:$0xff] %v730
      %790 = vst [vmem:[%s175 + $0x128] sm:$0xff] %v731
      %791 = vst [vmem:[%s175 + $0x130] sm:$0xff] %v732
      %792 = vst [vmem:[%s175 + $0x138] sm:$0xff] %v733
      %793 = vst [vmem:[%s175 + $0x140] sm:$0xff] %v734
      %794 = vst [vmem:[%s175 + $0x148] sm:$0xff] %v735
      %795 = vst [vmem:[%s175 + $0x150] sm:$0xff] %v736
      %796 = vst [vmem:[%s175 + $0x158] sm:$0xff] %v737
      %797 = vst [vmem:[%s175 + $0x160] sm:$0xff] %v738
      %798 = vst [vmem:[%s175 + $0x168] sm:$0xff] %v739
      %799 = vst [vmem:[%s175 + $0x170] sm:$0xff] %v740
      %800 = vst [vmem:[%s175 + $0x178] sm:$0xff] %v741
      %801 = vst [vmem:[%s175 + $0x180] sm:$0xff] %v742
      %802 = vst [vmem:[%s175 + $0x188] sm:$0xff] %v743
      %803 = vst [vmem:[%s175 + $0x190] sm:$0xff] %v744
      %804 = vst [vmem:[%s175 + $0x198] sm:$0xff] %v745
      %805 = vst [vmem:[%s175 + $0x1a0] sm:$0xff] %v746
      %806 = vst [vmem:[%s175 + $0x1a8] sm:$0xff] %v747
      %807 = vst [vmem:[%s175 + $0x1b0] sm:$0xff] %v748
      %808 = vst [vmem:[%s175 + $0x1b8] sm:$0xff] %v749
      %809 = vst [vmem:[%s175 + $0x1c0] sm:$0xff] %v750
      %810 = vst [vmem:[%s175 + $0x1c8] sm:$0xff] %v751
      %811 = vst [vmem:[%s175 + $0x1d0] sm:$0xff] %v752
      %s812 = smul.u32 59, %s14
      %p813 = scmp.lt.s32.totalorder %s812, 117
      %s814 = scalar_select %p813, %s812, 117
      %s815 = smul.addr %s814, 8
      %s816 = scalar_lea.vmem %s3, %s815
      // Predicated region
      $region33: #{cnn_forward.4} parent=31 // pred_check
        %p817 = pneg %p100
      $region34: #{cnn_forward.4} parent=31 // pred_check_branch
        %819 = sbr.rel (%p817) target = $region36
      $region35: #{cnn_forward.4} parent=31 // pred_region
        %s820 = smul.u32 59, %s14
      $region36: #{cnn_forward.4} parent=31 // pred_fallthru
        _
    $region32: #{cnn_forward.4} parent=5 // pred_fallthru
      _
    %p821 = scmp.le.s32.totalorder 2, %s9
    // Predicated region
    $region37: #{cnn_forward.4} parent=5 // pred_check
      %p822 = pneg %p821
    $region38: #{cnn_forward.4} parent=5 // pred_check_branch
      %824 = sbr.rel (%p822) target = $region40
    $region39: #{cnn_forward.4} parent=5 // pred_region
      %s825 = ssub.s32 %s9, 2
      // Predicated region
      $region41: #{cnn_forward.4} parent=39 // pred_check
        %p826 = pneg %p106
      $region42: #{cnn_forward.4} parent=39 // pred_check_branch
        %828 = sbr.rel (%p826) target = $region44
      $region43: #{cnn_forward.4} parent=39 // pred_region
        %s829 = smul.u32 59, %s15
        %p830 = scmp.lt.s32.totalorder %s829, 117
        %s831 = scalar_select %p830, %s829, 117
        %s832 = smul.addr %s831, 8
        %s833 = scalar_lea.vmem %s3, %s832
      $region44: #{cnn_forward.4} parent=39 // pred_fallthru
        _
    $region40: #{cnn_forward.4} parent=5 // pred_fallthru
      _
  $region6: #{cnn_forward.4} parent=0 // loop_footer
    %s13 = sadd.s32 1, %s9
  $region7: #{cnn_forward.4} parent=0 // loop_footer_branch
    %8 = sbr.rel target = $region3
  $region8: #{cnn_forward.4} parent=0 // loop_exit
    _

// kernel: cnn_forward.5
$region0: #{cnn_forward.5}
  #allocation0 [shape = 'u32[]', space=smem, size = 0x4, offset = 0x4, fixed_abs, tag = 'smem constant byte address 0x4 - core index']
  #allocation1 [shape = 'u32[144,128]{1,0:T(1,128)}', space=vmem, size = 0x12000, scoped, tag = 'internal scratch']
  %s0 = inlined_call_operand.vmem [shape: f32[192,512], index: 0, kind: input, shape index: {}]
  %s1 = inlined_call_operand.vmem [shape: f32[512,128], index: 1, kind: input, shape index: {}]
  %s2 = inlined_call_operand.vmem [shape: f32[1,128], index: 2, kind: input, shape index: {}]
  %s3 = inlined_call_operand.vmem [shape: f32[192,128], index: 3, kind: output, shape index: {}]
  %s4 = sld [smem:[#allocation0]]
  $region45: #{cnn_forward.5} parent=0
    _
  %s6 = ssub.s32 1, %s4
  %s7 = scalar_select 0, %s6, %s4
  loop: start=0, step=1, limit=4
  $region2: #{cnn_forward.5} parent=0 // loop_pre_header
    _
  $region3: #{cnn_forward.5} parent=0 // loop_header
    %s9 = sphi 0, %s13
    %p10 = scmp.ge.s32.totalorder %s9, 4
    %s19 = sphi 0, %s21
    %s22 = sphi 0, %s19
    %s23 = sphi 0, %s22
    %s39 = sphi 0, %s23
    %s43 = sphi 0, %s43
    %s45 = sphi 0, %s43
    %s46 = sphi 0, %s45
    %s60 = sphi 0, %s46
    %s64 = sphi 0, %s64
    %s66 = sphi 0, %s64
    %s67 = sphi 0, %s66
    %s81 = sphi 0, %s67
    %s87 = sphi 0, %s89
    %s90 = sphi 0, %s87
    %s91 = sphi 0, %s90
    %s107 = sphi 0, %s91
  $region4: #{cnn_forward.5} parent=0 // loop_header_branch
    %12 = sbr.rel (%p10) target = $region8
  $region5: #{cnn_forward.5} parent=0 // loop_body
    %s14 = ssub.s32 %s9, 1
    %s15 = ssub.s32 %s9, 2
    %s16 = sadd.s32 %s9, 1
    %s17 = ssub.s32 %s9, %s16
    %p18 = scmp.eq.s32.totalorder %s17, 0
    %s20 = sadd.s32 %s19, 1
    %s21 = scalar_select %p18, %s19, %s20
    %p24 = pneg %p18
    %p25 = scmp.eq.s32.totalorder %s9, 1
    %p26 = por %p24, %p25
    %p27 = scmp.ne.s32.totalorder %s19, %s22
    %p28 = scmp.eq.s32.totalorder %s9, 0
    %p29 = por %p27, %p28
    %p30 = scmp.ne.s32.totalorder %s19, %s22
    %p31 = scmp.eq.s32.totalorder %s14, 1
    %p32 = por %p30, %p31
    %p33 = scmp.ne.s32.totalorder %s22, %s23
    %p34 = scmp.eq.s32.totalorder %s14, 0
    %p35 = por %p33, %p34
    %p36 = scmp.ne.s32.totalorder %s22, %s23
    %p37 = scmp.eq.s32.totalorder %s15, 1
    %p38 = por %p36, %p37
    %p40 = scmp.ne.s32.totalorder %s23, %s39
    %p41 = scmp.eq.s32.totalorder %s15, 0
    %p42 = por %p40, %p41
    %s44 = sadd.s32 %s43, 1
    %p47 = scmp.eq.s32.totalorder %s9, 1
    %p48 = scmp.ne.s32.totalorder %s43, %s45
    %p49 = scmp.eq.s32.totalorder %s9, 0
    %p50 = por %p48, %p49
    %p51 = scmp.ne.s32.totalorder %s43, %s45
    %p52 = scmp.eq.s32.totalorder %s14, 1
    %p53 = por %p51, %p52
    %p54 = scmp.ne.s32.totalorder %s45, %s46
    %p55 = scmp.eq.s32.totalorder %s14, 0
    %p56 = por %p54, %p55
    %p57 = scmp.ne.s32.totalorder %s45, %s46
    %p58 = scmp.eq.s32.totalorder %s15, 1
    %p59 = por %p57, %p58
    %p61 = scmp.ne.s32.totalorder %s46, %s60
    %p62 = scmp.eq.s32.totalorder %s15, 0
    %p63 = por %p61, %p62
    %s65 = sadd.s32 %s64, 1
    %p68 = scmp.eq.s32.totalorder %s9, 1
    %p69 = scmp.ne.s32.totalorder %s64, %s66
    %p70 = scmp.eq.s32.totalorder %s9, 0
    %p71 = por %p69, %p70
    %p72 = scmp.ne.s32.totalorder %s64, %s66
    %p73 = scmp.eq.s32.totalorder %s14, 1
    %p74 = por %p72, %p73
    %p75 = scmp.ne.s32.totalorder %s66, %s67
    %p76 = scmp.eq.s32.totalorder %s14, 0
    %p77 = por %p75, %p76
    %p78 = scmp.ne.s32.totalorder %s66, %s67
    %p79 = scmp.eq.s32.totalorder %s15, 1
    %p80 = por %p78, %p79
    %p82 = scmp.ne.s32.totalorder %s67, %s81
    %p83 = scmp.eq.s32.totalorder %s15, 0
    %p84 = por %p82, %p83
    %s85 = ssub.s32 %s9, %s16
    %p86 = scmp.eq.s32.totalorder %s85, 0
    %s88 = sadd.s32 %s87, 1
    %s89 = scalar_select %p86, %s87, %s88
    %p92 = pneg %p86
    %p93 = scmp.eq.s32.totalorder %s9, 1
    %p94 = por %p92, %p93
    %p95 = scmp.ne.s32.totalorder %s87, %s90
    %p96 = scmp.eq.s32.totalorder %s9, 0
    %p97 = por %p95, %p96
    %p98 = scmp.ne.s32.totalorder %s87, %s90
    %p99 = scmp.eq.s32.totalorder %s14, 1
    %p100 = por %p98, %p99
    %p101 = scmp.ne.s32.totalorder %s90, %s91
    %p102 = scmp.eq.s32.totalorder %s14, 0
    %p103 = por %p101, %p102
    %p104 = scmp.ne.s32.totalorder %s90, %s91
    %p105 = scmp.eq.s32.totalorder %s15, 1
    %p106 = por %p104, %p105
    %p108 = scmp.ne.s32.totalorder %s91, %s107
    %p109 = scmp.eq.s32.totalorder %s15, 0
    %p110 = por %p108, %p109
    %p111 = scmp.le.s32.totalorder 1, %s9
    %p112 = scmp.lt.s32.totalorder %s9, 3
    %p113 = pnand %p111, %p112
    %p114 = pneg %p113
    // Predicated region
    $region9: #{cnn_forward.5} parent=5 // pred_check
      _
    $region10: #{cnn_forward.5} parent=5 // pred_check_branch
      %116 = sbr.rel (%p113) target = $region12
    $region11: #{cnn_forward.5} parent=5 // pred_region
      %s117 = ssub.s32 %s9, 1
      // Predicated region
      $region13: #{cnn_forward.5} parent=11 // pred_check
        %p118 = pneg %p56
      $region14: #{cnn_forward.5} parent=11 // pred_check_branch
        %120 = sbr.rel (%p118) target = $region16
      $region15: #{cnn_forward.5} parent=11 // pred_region
        _
      $region16: #{cnn_forward.5} parent=11 // pred_fallthru
        _
      // Predicated region
      $region17: #{cnn_forward.5} parent=11 // pred_check
        %p121 = pneg %p77
      $region18: #{cnn_forward.5} parent=11 // pred_check_branch
        %123 = sbr.rel (%p121) target = $region20
      $region19: #{cnn_forward.5} parent=11 // pred_region
        _
      $region20: #{cnn_forward.5} parent=11 // pred_fallthru
        _
    $region12: #{cnn_forward.5} parent=5 // pred_fallthru
      _
    %p124 = scmp.lt.s32.totalorder %s9, 2
    // Predicated region
    $region21: #{cnn_forward.5} parent=5 // pred_check
      %p125 = pneg %p124
    $region22: #{cnn_forward.5} parent=5 // pred_check_branch
      %127 = sbr.rel (%p125) target = $region24
    $region23: #{cnn_forward.5} parent=5 // pred_region
      // Predicated region
      $region25: #{cnn_forward.5} parent=23 // pred_check
        %p128 = pneg %p29
      $region26: #{cnn_forward.5} parent=23 // pred_check_branch
        %130 = sbr.rel (%p128) target = $region28
      $region27: #{cnn_forward.5} parent=23 // pred_region
        %s131 = smul.u32 12, %s9
        %p132 = scmp.lt.s32.totalorder %s131, 23
        %s133 = scalar_select %p132, %s131, 23
        %s134 = smul.addr %s133, 4
        %s135 = smul.addr %s134, 8
        %s136 = scalar_lea.vmem %s0, %s135
        %s137 = smul.u32 12, %s9
      $region28: #{cnn_forward.5} parent=23 // pred_fallthru
        _
    $region24: #{cnn_forward.5} parent=5 // pred_fallthru
      _
    %p138 = scmp.le.s32.totalorder 1, %s9
    %p139 = scmp.lt.s32.totalorder %s9, 3
    %p140 = pnand %p138, %p139
    %p141 = pneg %p140
    // Predicated region
    $region29: #{cnn_forward.5} parent=5 // pred_check
      _
    $region30: #{cnn_forward.5} parent=5 // pred_check_branch
      %143 = sbr.rel (%p140) target = $region32
    $region31: #{cnn_forward.5} parent=5 // pred_region
      %s144 = ssub.s32 %s9, 1
      %s145 = smul.u32 12, %s14
      %p146 = scmp.lt.s32.totalorder %s145, 23
      %s147 = scalar_select %p146, %s145, 23
      %s148 = smul.addr %s147, 4
      %s149 = smul.addr %s148, 8
      %s150 = scalar_lea.vmem %s0, %s149
      %p151 = pneg %p35
      %p152 = pneg %p32
      %p153 = pneg %p56
      %p154 = pneg %p53
      %p155 = pneg %p77
      %p156 = pneg %p74
      %p157 = pneg %p103
      %p158 = pneg %p100
      %s159 = smul.u32 12, %s14
      %p160 = scmp.lt.s32.totalorder %s159, 23
      %s161 = scalar_select %p160, %s159, 23
      %s162 = smul.addr %s161, 8
      %s163 = scalar_lea.vmem %s3, %s162
      %s164 = smul.u32 12, %s14
      %p165 = scmp.lt.s32.totalorder %s164, 23
      %s166 = scalar_select %p165, %s164, 23
      %s167 = smul.addr %s166, 4
      %s168 = smul.addr %s167, 8
      %s169 = scalar_lea.vmem %s0, %s168
      %s170 = smul.u32 12, %s14
      %s171 = smul.u32 12, %s14
      %p172 = scmp.lt.s32.totalorder %s171, 23
      %s173 = scalar_select %p172, %s171, 23
      %s174 = smul.addr %s173, 8
      %s175 = scalar_lea.vmem %s3, %s174
      %s176 = smul.u32 12, %s14
      %v177 = vld [vmem:[%s169] sm:$0xff]
      %v178 = vld [vmem:[%s169 + $0x8] sm:$0xff]
      %v179 = vld [vmem:[%s169 + $0x10] sm:$0xff]
      %v180 = vld [vmem:[%s169 + $0x18] sm:$0xff]
      %v181 = vld [vmem:[%s169 + $0x20] sm:$0xff]
      %v182 = vld [vmem:[%s169 + $0x28] sm:$0xff]
      %v183 = vld [vmem:[%s169 + $0x30] sm:$0xff]
      %v184 = vld [vmem:[%s169 + $0x38] sm:$0xff]
      %v185 = vld [vmem:[%s169 + $0x40] sm:$0xff]
      %v186 = vld [vmem:[%s169 + $0x48] sm:$0xff]
      %v187 = vld [vmem:[%s169 + $0x50] sm:$0xff]
      %v188 = vld [vmem:[%s169 + $0x58] sm:$0xff]
      %v189 = vld [vmem:[%s169 + $0x60] sm:$0xff]
      %v190 = vld [vmem:[%s169 + $0x68] sm:$0xff]
      %v191 = vld [vmem:[%s169 + $0x70] sm:$0xff]
      %v192 = vld [vmem:[%s169 + $0x78] sm:$0xff]
      %v193 = vld [vmem:[%s169 + $0x80] sm:$0xff]
      %v194 = vld [vmem:[%s169 + $0x88] sm:$0xff]
      %v195 = vld [vmem:[%s169 + $0x90] sm:$0xff]
      %v196 = vld [vmem:[%s169 + $0x98] sm:$0xff]
      %v197 = vld [vmem:[%s169 + $0xa0] sm:$0xff]
      %v198 = vld [vmem:[%s169 + $0xa8] sm:$0xff]
      %v199 = vld [vmem:[%s169 + $0xb0] sm:$0xff]
      %v200 = vld [vmem:[%s169 + $0xb8] sm:$0xff]
      %v201 = vld [vmem:[%s169 + $0xc0] sm:$0xff]
      %v202 = vld [vmem:[%s169 + $0xc8] sm:$0xff]
      %v203 = vld [vmem:[%s169 + $0xd0] sm:$0xff]
      %v204 = vld [vmem:[%s169 + $0xd8] sm:$0xff]
      %v205 = vld [vmem:[%s169 + $0xe0] sm:$0xff]
      %v206 = vld [vmem:[%s169 + $0xe8] sm:$0xff]
      %v207 = vld [vmem:[%s169 + $0xf0] sm:$0xff]
      %v208 = vld [vmem:[%s169 + $0xf8] sm:$0xff]
      %v209 = vld [vmem:[%s169 + $0x100] sm:$0xff]
      %v210 = vld [vmem:[%s169 + $0x108] sm:$0xff]
      %v211 = vld [vmem:[%s169 + $0x110] sm:$0xff]
      %v212 = vld [vmem:[%s169 + $0x118] sm:$0xff]
      %v213 = vld [vmem:[%s169 + $0x120] sm:$0xff]
      %v214 = vld [vmem:[%s169 + $0x128] sm:$0xff]
      %v215 = vld [vmem:[%s169 + $0x130] sm:$0xff]
      %v216 = vld [vmem:[%s169 + $0x138] sm:$0xff]
      %v217 = vld [vmem:[%s169 + $0x140] sm:$0xff]
      %v218 = vld [vmem:[%s169 + $0x148] sm:$0xff]
      %v219 = vld [vmem:[%s169 + $0x150] sm:$0xff]
      %v220 = vld [vmem:[%s169 + $0x158] sm:$0xff]
      %v221 = vld [vmem:[%s169 + $0x160] sm:$0xff]
      %v222 = vld [vmem:[%s169 + $0x168] sm:$0xff]
      %v223 = vld [vmem:[%s169 + $0x170] sm:$0xff]
      %v224 = vld [vmem:[%s169 + $0x178] sm:$0xff]
      %v225 = vld [vmem:[%s1] sm:$0xff]
      %v226 = vld [vmem:[%s1 + $0x8] sm:$0xff]
      %v227 = vld [vmem:[%s1 + $0x10] sm:$0xff]
      %v228 = vld [vmem:[%s1 + $0x18] sm:$0xff]
      %v229 = vld [vmem:[%s1 + $0x20] sm:$0xff]
      %v230 = vld [vmem:[%s1 + $0x28] sm:$0xff]
      %v231 = vld [vmem:[%s1 + $0x30] sm:$0xff]
      %v232 = vld [vmem:[%s1 + $0x38] sm:$0xff]
      %v233 = vld [vmem:[%s1 + $0x40] sm:$0xff]
      %v234 = vld [vmem:[%s1 + $0x48] sm:$0xff]
      %v235 = vld [vmem:[%s1 + $0x50] sm:$0xff]
      %v236 = vld [vmem:[%s1 + $0x58] sm:$0xff]
      %v237 = vld [vmem:[%s1 + $0x60] sm:$0xff]
      %v238 = vld [vmem:[%s1 + $0x68] sm:$0xff]
      %v239 = vld [vmem:[%s1 + $0x70] sm:$0xff]
      %v240 = vld [vmem:[%s1 + $0x78] sm:$0xff]
      %v241 = vld [vmem:[%s1 + $0x80] sm:$0xff]
      %v242 = vld [vmem:[%s1 + $0x88] sm:$0xff]
      %v243 = vld [vmem:[%s1 + $0x90] sm:$0xff]
      %v244 = vld [vmem:[%s1 + $0x98] sm:$0xff]
      %v245 = vld [vmem:[%s1 + $0xa0] sm:$0xff]
      %v246 = vld [vmem:[%s1 + $0xa8] sm:$0xff]
      %v247 = vld [vmem:[%s1 + $0xb0] sm:$0xff]
      %v248 = vld [vmem:[%s1 + $0xb8] sm:$0xff]
      %v249 = vld [vmem:[%s1 + $0xc0] sm:$0xff]
      %v250 = vld [vmem:[%s1 + $0xc8] sm:$0xff]
      %v251 = vld [vmem:[%s1 + $0xd0] sm:$0xff]
      %v252 = vld [vmem:[%s1 + $0xd8] sm:$0xff]
      %v253 = vld [vmem:[%s1 + $0xe0] sm:$0xff]
      %v254 = vld [vmem:[%s1 + $0xe8] sm:$0xff]
      %v255 = vld [vmem:[%s1 + $0xf0] sm:$0xff]
      %v256 = vld [vmem:[%s1 + $0xf8] sm:$0xff]
      %v257 = vld [vmem:[%s1 + $0x100] sm:$0xff]
      %v258 = vld [vmem:[%s1 + $0x108] sm:$0xff]
      %v259 = vld [vmem:[%s1 + $0x110] sm:$0xff]
      %v260 = vld [vmem:[%s1 + $0x118] sm:$0xff]
      %v261 = vld [vmem:[%s1 + $0x120] sm:$0xff]
      %v262 = vld [vmem:[%s1 + $0x128] sm:$0xff]
      %v263 = vld [vmem:[%s1 + $0x130] sm:$0xff]
      %v264 = vld [vmem:[%s1 + $0x138] sm:$0xff]
      %v265 = vld [vmem:[%s1 + $0x140] sm:$0xff]
      %v266 = vld [vmem:[%s1 + $0x148] sm:$0xff]
      %v267 = vld [vmem:[%s1 + $0x150] sm:$0xff]
      %v268 = vld [vmem:[%s1 + $0x158] sm:$0xff]
      %v269 = vld [vmem:[%s1 + $0x160] sm:$0xff]
      %v270 = vld [vmem:[%s1 + $0x168] sm:$0xff]
      %v271 = vld [vmem:[%s1 + $0x170] sm:$0xff]
      %v272 = vld [vmem:[%s1 + $0x178] sm:$0xff]
      %v273 = vld [vmem:[%s1 + $0x180] sm:$0xff]
      %v274 = vld [vmem:[%s1 + $0x188] sm:$0xff]
      %v275 = vld [vmem:[%s1 + $0x190] sm:$0xff]
      %v276 = vld [vmem:[%s1 + $0x198] sm:$0xff]
      %v277 = vld [vmem:[%s1 + $0x1a0] sm:$0xff]
      %v278 = vld [vmem:[%s1 + $0x1a8] sm:$0xff]
      %v279 = vld [vmem:[%s1 + $0x1b0] sm:$0xff]
      %v280 = vld [vmem:[%s1 + $0x1b8] sm:$0xff]
      %v281 = vld [vmem:[%s1 + $0x1c0] sm:$0xff]
      %v282 = vld [vmem:[%s1 + $0x1c8] sm:$0xff]
      %v283 = vld [vmem:[%s1 + $0x1d0] sm:$0xff]
      %v284 = vld [vmem:[%s1 + $0x1d8] sm:$0xff]
      %v285 = vld [vmem:[%s1 + $0x1e0] sm:$0xff]
      %v286 = vld [vmem:[%s1 + $0x1e8] sm:$0xff]
      %v287 = vld [vmem:[%s1 + $0x1f0] sm:$0xff]
      %v288 = vld [vmem:[%s1 + $0x1f8] sm:$0xff]
      %v289 = vld [vmem:[%s2] sm:$0x1]
      %v291 = vlaneseq
      %v292 = vshrl.u32 %v291, 7
      %v293 = vsub.s32 0, %v292
      %v294 = vrot.slane %v289, %v293
      %296 = vmatprep.subr.mxu0 0.0
      %297 = vmatpush1.msra.mxu0 %v225
      %298 = vmatprep.subr.mxu0 0.0
      %299 = vmatpush1.msra.mxu0 %v226
      %300 = vmatprep.subr.mxu0 0.0
      %301 = vmatpush1.msra.mxu0 %v227
      %302 = vmatprep.subr.mxu0 0.0
      %303 = vmatpush1.msra.mxu0 %v228
      %304 = vmatprep.subr.mxu0 0.0
      %305 = vmatpush1.msra.mxu0 %v229
      %306 = vmatprep.subr.mxu0 0.0
      %307 = vmatpush1.msra.mxu0 %v230
      %308 = vmatprep.subr.mxu0 0.0
      %309 = vmatpush1.msra.mxu0 %v231
      %310 = vmatprep.subr.mxu0 0.0
      %311 = vmatpush1.msra.mxu0 %v232
      %312 = vmatprep.subr.mxu0 0.0
      %313 = vmatpush1.msra.mxu0 %v233
      %314 = vmatprep.subr.mxu0 0.0
      %315 = vmatpush1.msra.mxu0 %v234
      %316 = vmatprep.subr.mxu0 0.0
      %317 = vmatpush1.msra.mxu0 %v235
      %318 = vmatprep.subr.mxu0 0.0
      %319 = vmatpush1.msra.mxu0 %v236
      %320 = vmatprep.subr.mxu0 0.0
      %321 = vmatpush1.msra.mxu0 %v237
      %322 = vmatprep.subr.mxu0 0.0
      %323 = vmatpush1.msra.mxu0 %v238
      %324 = vmatprep.subr.mxu0 0.0
      %325 = vmatpush1.msra.mxu0 %v239
      %326 = vmatprep.subr.mxu0 0.0
      %327 = vmatpush1.msra.mxu0 %v240
      %328 = vmatprep.subr.mxu0 0.0
      %329 = vmatpush1.msra.mxu0 %v241
      %330 = vmatprep.subr.mxu0 0.0
      %331 = vmatpush1.msra.mxu0 %v242
      %332 = vmatprep.subr.mxu0 0.0
      %333 = vmatpush1.msra.mxu0 %v243
      %334 = vmatprep.subr.mxu0 0.0
      %335 = vmatpush1.msra.mxu0 %v244
      %336 = vmatprep.subr.mxu0 0.0
      %337 = vmatpush1.msra.mxu0 %v245
      %338 = vmatprep.subr.mxu0 0.0
      %339 = vmatpush1.msra.mxu0 %v246
      %340 = vmatprep.subr.mxu0 0.0
      %341 = vmatpush1.msra.mxu0 %v247
      %342 = vmatprep.subr.mxu0 0.0
      %343 = vmatpush1.msra.mxu0 %v248
      %344 = vmatprep.subr.mxu0 0.0
      %345 = vmatpush1.msra.mxu0 %v249
      %346 = vmatprep.subr.mxu0 0.0
      %347 = vmatpush1.msra.mxu0 %v250
      %348 = vmatprep.subr.mxu0 0.0
      %349 = vmatpush1.msra.mxu0 %v251
      %350 = vmatprep.subr.mxu0 0.0
      %351 = vmatpush1.msra.mxu0 %v252
      %352 = vmatprep.subr.mxu0 0.0
      %353 = vmatpush1.msra.mxu0 %v253
      %354 = vmatprep.subr.mxu0 0.0
      %355 = vmatpush1.msra.mxu0 %v254
      %356 = vmatprep.subr.mxu0 0.0
      %357 = vmatpush1.msra.mxu0 %v255
      %358 = vmatprep.subr.mxu0 0.0
      %359 = vmatpush1.msra.mxu0 %v256
      %360 = vmatprep.mubr.f32.mxu0 %v178
      %361 = vmatmul.mubr.f32.gmra.mrb[0].mxu0 %v177
      %v362 = vpop.f32.mrb[0].mxu0
      %v363 = vadd.f32 %v294, %v362
      %v364 = vpop.f32.mrb[0].mxu0
      %365 = vmatprep.mubr.f32.mxu0 %v182
      %366 = vmatmul.mubr.f32.gmra.mrb[0].mxu0 %v181
      %v367 = vpop.f32.mrb[0].mxu0
      %v368 = vadd.f32 %v294, %v367
      %v369 = vpop.f32.mrb[0].mxu0
      %370 = vmatprep.mubr.f32.mxu0 %v186
      %371 = vmatmul.mubr.f32.gmra.mrb[0].mxu0 %v185
      %v372 = vpop.f32.mrb[0].mxu0
      %v373 = vadd.f32 %v294, %v372
      %v374 = vpop.f32.mrb[0].mxu0
      %375 = vmatprep.mubr.f32.mxu0 %v190
      %376 = vmatmul.mubr.f32.gmra.mrb[0].mxu0 %v189
      %v377 = vpop.f32.mrb[0].mxu0
      %v378 = vadd.f32 %v294, %v377
      %v379 = vpop.f32.mrb[0].mxu0
      %380 = vmatprep.mubr.f32.mxu0 %v194
      %381 = vmatmul.mubr.f32.gmra.mrb[0].mxu0 %v193
      %v382 = vpop.f32.mrb[0].mxu0
      %v383 = vadd.f32 %v294, %v382
      %v384 = vpop.f32.mrb[0].mxu0
      %385 = vmatprep.mubr.f32.mxu0 %v198
      %386 = vmatmul.mubr.f32.gmra.mrb[0].mxu0 %v197
      %v387 = vpop.f32.mrb[0].mxu0
      %v388 = vadd.f32 %v294, %v387
      %v389 = vpop.f32.mrb[0].mxu0
      %390 = vmatprep.mubr.f32.mxu0 %v202
      %391 = vmatmul.mubr.f32.gmra.mrb[0].mxu0 %v201
      %v392 = vpop.f32.mrb[0].mxu0
      %v393 = vadd.f32 %v294, %v392
      %v394 = vpop.f32.mrb[0].mxu0
      %395 = vmatprep.mubr.f32.mxu0 %v206
      %396 = vmatmul.mubr.f32.gmra.mrb[0].mxu0 %v205
      %v397 = vpop.f32.mrb[0].mxu0
      %v398 = vadd.f32 %v294, %v397
      %v399 = vpop.f32.mrb[0].mxu0
      %400 = vmatprep.mubr.f32.mxu0 %v210
      %401 = vmatmul.mubr.f32.gmra.mrb[0].mxu0 %v209
      %v402 = vpop.f32.mrb[0].mxu0
      %v403 = vadd.f32 %v294, %v402
      %v404 = vpop.f32.mrb[0].mxu0
      %405 = vmatprep.mubr.f32.mxu0 %v214
      %406 = vmatmul.mubr.f32.gmra.mrb[0].mxu0 %v213
      %v407 = vpop.f32.mrb[0].mxu0
      %v408 = vadd.f32 %v294, %v407
      %v409 = vpop.f32.mrb[0].mxu0
      %410 = vmatprep.mubr.f32.mxu0 %v218
      %411 = vmatmul.mubr.f32.gmra.mrb[0].mxu0 %v217
      %v412 = vpop.f32.mrb[0].mxu0
      %v413 = vadd.f32 %v294, %v412
      %v414 = vpop.f32.mrb[0].mxu0
      %415 = vmatprep.mubr.f32.mxu0 %v222
      %416 = vmatmul.mubr.f32.gmra.mrb[0].mxu0 %v221
      %v417 = vpop.f32.mrb[0].mxu0
      %v418 = vadd.f32 %v294, %v417
      %v419 = vpop.f32.mrb[0].mxu0
      %420 = vdwg.mxu0
      %421 = vmatprep.subr.mxu0 0.0
      %422 = vmatpush1.msra.mxu0 %v257
      %423 = vmatprep.subr.mxu0 0.0
      %424 = vmatpush1.msra.mxu0 %v258
      %425 = vmatprep.subr.mxu0 0.0
      %426 = vmatpush1.msra.mxu0 %v259
      %427 = vmatprep.subr.mxu0 0.0
      %428 = vmatpush1.msra.mxu0 %v260
      %429 = vmatprep.subr.mxu0 0.0
      %430 = vmatpush1.msra.mxu0 %v261
      %431 = vmatprep.subr.mxu0 0.0
      %432 = vmatpush1.msra.mxu0 %v262
      %433 = vmatprep.subr.mxu0 0.0
      %434 = vmatpush1.msra.mxu0 %v263
      %435 = vmatprep.subr.mxu0 0.0
      %436 = vmatpush1.msra.mxu0 %v264
      %437 = vmatprep.subr.mxu0 0.0
      %438 = vmatpush1.msra.mxu0 %v265
      %439 = vmatprep.subr.mxu0 0.0
      %440 = vmatpush1.msra.mxu0 %v266
      %441 = vmatprep.subr.mxu0 0.0
      %442 = vmatpush1.msra.mxu0 %v267
      %443 = vmatprep.subr.mxu0 0.0
      %444 = vmatpush1.msra.mxu0 %v268
      %445 = vmatprep.subr.mxu0 0.0
      %446 = vmatpush1.msra.mxu0 %v269
      %447 = vmatprep.subr.mxu0 0.0
      %448 = vmatpush1.msra.mxu0 %v270
      %449 = vmatprep.subr.mxu0 0.0
      %450 = vmatpush1.msra.mxu0 %v271
      %451 = vmatprep.subr.mxu0 0.0
      %452 = vmatpush1.msra.mxu0 %v272
      %453 = vmatprep.subr.mxu0 0.0
      %454 = vmatpush1.msra.mxu0 %v273
      %455 = vmatprep.subr.mxu0 0.0
      %456 = vmatpush1.msra.mxu0 %v274
      %457 = vmatprep.subr.mxu0 0.0
      %458 = vmatpush1.msra.mxu0 %v275
      %459 = vmatprep.subr.mxu0 0.0
      %460 = vmatpush1.msra.mxu0 %v276
      %461 = vmatprep.subr.mxu0 0.0
      %462 = vmatpush1.msra.mxu0 %v277
      %463 = vmatprep.subr.mxu0 0.0
      %464 = vmatpush1.msra.mxu0 %v278
      %465 = vmatprep.subr.mxu0 0.0
      %466 = vmatpush1.msra.mxu0 %v279
      %467 = vmatprep.subr.mxu0 0.0
      %468 = vmatpush1.msra.mxu0 %v280
      %469 = vmatprep.subr.mxu0 0.0
      %470 = vmatpush1.msra.mxu0 %v281
      %471 = vmatprep.subr.mxu0 0.0
      %472 = vmatpush1.msra.mxu0 %v282
      %473 = vmatprep.subr.mxu0 0.0
      %474 = vmatpush1.msra.mxu0 %v283
      %475 = vmatprep.subr.mxu0 0.0
      %476 = vmatpush1.msra.mxu0 %v284
      %477 = vmatprep.subr.mxu0 0.0
      %478 = vmatpush1.msra.mxu0 %v285
      %479 = vmatprep.subr.mxu0 0.0
      %480 = vmatpush1.msra.mxu0 %v286
      %481 = vmatprep.subr.mxu0 0.0
      %482 = vmatpush1.msra.mxu0 %v287
      %483 = vmatprep.subr.mxu0 0.0
      %484 = vmatpush1.msra.mxu0 %v288
      %485 = vmatprep.mubr.f32.mxu0 %v180
      %486 = vmatmul.mubr.f32.gmra.mrb[0].mxu0 %v179
      %v487 = vpop.f32.mrb[0].mxu0
      %v488 = vadd.f32 %v363, %v487
      %v489 = vpop.f32.mrb[0].mxu0
      %490 = vmatprep.mubr.f32.mxu0 %v184
      %491 = vmatmul.mubr.f32.gmra.mrb[0].mxu0 %v183
      %v492 = vpop.f32.mrb[0].mxu0
      %v493 = vadd.f32 %v368, %v492
      %v494 = vpop.f32.mrb[0].mxu0
      %495 = vmatprep.mubr.f32.mxu0 %v188
      %496 = vmatmul.mubr.f32.gmra.mrb[0].mxu0 %v187
      %v497 = vpop.f32.mrb[0].mxu0
      %v498 = vadd.f32 %v373, %v497
      %v499 = vpop.f32.mrb[0].mxu0
      %500 = vmatprep.mubr.f32.mxu0 %v192
      %501 = vmatmul.mubr.f32.gmra.mrb[0].mxu0 %v191
      %v502 = vpop.f32.mrb[0].mxu0
      %v503 = vadd.f32 %v378, %v502
      %v504 = vpop.f32.mrb[0].mxu0
      %505 = vmatprep.mubr.f32.mxu0 %v196
      %506 = vmatmul.mubr.f32.gmra.mrb[0].mxu0 %v195
      %v507 = vpop.f32.mrb[0].mxu0
      %v508 = vadd.f32 %v383, %v507
      %v509 = vpop.f32.mrb[0].mxu0
      %510 = vmatprep.mubr.f32.mxu0 %v200
      %511 = vmatmul.mubr.f32.gmra.mrb[0].mxu0 %v199
      %v512 = vpop.f32.mrb[0].mxu0
      %v513 = vadd.f32 %v388, %v512
      %v514 = vpop.f32.mrb[0].mxu0
      %515 = vmatprep.mubr.f32.mxu0 %v204
      %516 = vmatmul.mubr.f32.gmra.mrb[0].mxu0 %v203
      %v517 = vpop.f32.mrb[0].mxu0
      %v518 = vadd.f32 %v393, %v517
      %v519 = vpop.f32.mrb[0].mxu0
      %520 = vmatprep.mubr.f32.mxu0 %v208
      %521 = vmatmul.mubr.f32.gmra.mrb[0].mxu0 %v207
      %v522 = vpop.f32.mrb[0].mxu0
      %v523 = vadd.f32 %v398, %v522
      %v524 = vpop.f32.mrb[0].mxu0
      %525 = vmatprep.mubr.f32.mxu0 %v212
      %526 = vmatmul.mubr.f32.gmra.mrb[0].mxu0 %v211
      %v527 = vpop.f32.mrb[0].mxu0
      %v528 = vadd.f32 %v403, %v527
      %v529 = vpop.f32.mrb[0].mxu0
      %530 = vmatprep.mubr.f32.mxu0 %v216
      %531 = vmatmul.mubr.f32.gmra.mrb[0].mxu0 %v215
      %v532 = vpop.f32.mrb[0].mxu0
      %v533 = vadd.f32 %v408, %v532
      %v534 = vpop.f32.mrb[0].mxu0
      %535 = vmatprep.mubr.f32.mxu0 %v220
      %536 = vmatmul.mubr.f32.gmra.mrb[0].mxu0 %v219
      %v537 = vpop.f32.mrb[0].mxu0
      %v538 = vadd.f32 %v413, %v537
      %v539 = vpop.f32.mrb[0].mxu0
      %540 = vmatprep.mubr.f32.mxu0 %v224
      %541 = vmatmul.mubr.f32.gmra.mrb[0].mxu0 %v223
      %v542 = vpop.f32.mrb[0].mxu0
      %v543 = vadd.f32 %v418, %v542
      %v544 = vpop.f32.mrb[0].mxu0
      %545 = vdwg.mxu0
      %v546 = vmax.f32 %v488, 0.0
      %v547 = vmax.f32 %v493, 0.0
      %v548 = vmax.f32 %v498, 0.0
      %v549 = vmax.f32 %v503, 0.0
      %v550 = vmax.f32 %v508, 0.0
      %v551 = vmax.f32 %v513, 0.0
      %v552 = vmax.f32 %v518, 0.0
      %v553 = vmax.f32 %v523, 0.0
      %v554 = vmax.f32 %v528, 0.0
      %v555 = vmax.f32 %v533, 0.0
      %v556 = vmax.f32 %v538, 0.0
      %v557 = vmax.f32 %v543, 0.0
      %558 = vst [vmem:[%s175] sm:$0xff] %v546
      %559 = vst [vmem:[%s175 + $0x8] sm:$0xff] %v547
      %560 = vst [vmem:[%s175 + $0x10] sm:$0xff] %v548
      %561 = vst [vmem:[%s175 + $0x18] sm:$0xff] %v549
      %562 = vst [vmem:[%s175 + $0x20] sm:$0xff] %v550
      %563 = vst [vmem:[%s175 + $0x28] sm:$0xff] %v551
      %564 = vst [vmem:[%s175 + $0x30] sm:$0xff] %v552
      %565 = vst [vmem:[%s175 + $0x38] sm:$0xff] %v553
      %566 = vst [vmem:[%s175 + $0x40] sm:$0xff] %v554
      %567 = vst [vmem:[%s175 + $0x48] sm:$0xff] %v555
      %568 = vst [vmem:[%s175 + $0x50] sm:$0xff] %v556
      %569 = vst [vmem:[%s175 + $0x58] sm:$0xff] %v557
      %s570 = smul.u32 12, %s14
      %p571 = scmp.lt.s32.totalorder %s570, 23
      %s572 = scalar_select %p571, %s570, 23
      %s573 = smul.addr %s572, 8
      %s574 = scalar_lea.vmem %s3, %s573
      // Predicated region
      $region33: #{cnn_forward.5} parent=31 // pred_check
        %p575 = pneg %p100
      $region34: #{cnn_forward.5} parent=31 // pred_check_branch
        %577 = sbr.rel (%p575) target = $region36
      $region35: #{cnn_forward.5} parent=31 // pred_region
        %s578 = smul.u32 12, %s14
      $region36: #{cnn_forward.5} parent=31 // pred_fallthru
        _
    $region32: #{cnn_forward.5} parent=5 // pred_fallthru
      _
    %p579 = scmp.le.s32.totalorder 2, %s9
    // Predicated region
    $region37: #{cnn_forward.5} parent=5 // pred_check
      %p580 = pneg %p579
    $region38: #{cnn_forward.5} parent=5 // pred_check_branch
      %582 = sbr.rel (%p580) target = $region40
    $region39: #{cnn_forward.5} parent=5 // pred_region
      %s583 = ssub.s32 %s9, 2
      // Predicated region
      $region41: #{cnn_forward.5} parent=39 // pred_check
        %p584 = pneg %p106
      $region42: #{cnn_forward.5} parent=39 // pred_check_branch
        %586 = sbr.rel (%p584) target = $region44
      $region43: #{cnn_forward.5} parent=39 // pred_region
        %s587 = smul.u32 12, %s15
        %p588 = scmp.lt.s32.totalorder %s587, 23
        %s589 = scalar_select %p588, %s587, 23
        %s590 = smul.addr %s589, 8
        %s591 = scalar_lea.vmem %s3, %s590
      $region44: #{cnn_forward.5} parent=39 // pred_fallthru
        _
    $region40: #{cnn_forward.5} parent=5 // pred_fallthru
      _
  $region6: #{cnn_forward.5} parent=0 // loop_footer
    %s13 = sadd.s32 1, %s9
  $region7: #{cnn_forward.5} parent=0 // loop_footer_branch
    %8 = sbr.rel target = $region3
  $region8: #{cnn_forward.5} parent=0 // loop_exit
    _

// kernel: cnn_forward.6
$region0: #{cnn_forward.6}
  #allocation0 [shape = 'u32[]', space=smem, size = 0x4, offset = 0x4, fixed_abs, tag = 'smem constant byte address 0x4 - core index']
  #allocation1 [shape = 'u32[144,128]{1,0:T(1,128)}', space=vmem, size = 0x12000, scoped, tag = 'internal scratch']
  %s0 = inlined_call_operand.vmem [shape: f32[128,640], index: 0, kind: input, shape index: {}]
  %s1 = inlined_call_operand.vmem [shape: f32[640,128], index: 1, kind: input, shape index: {}]
  %s2 = inlined_call_operand.vmem [shape: f32[1,128], index: 2, kind: input, shape index: {}]
  %s3 = inlined_call_operand.vmem [shape: f32[128,128], index: 3, kind: output, shape index: {}]
  %s4 = sld [smem:[#allocation0]]
  $region45: #{cnn_forward.6} parent=0
    _
  %s6 = ssub.s32 1, %s4
  %s7 = scalar_select 0, %s6, %s4
  loop: start=0, step=1, limit=4
  $region2: #{cnn_forward.6} parent=0 // loop_pre_header
    _
  $region3: #{cnn_forward.6} parent=0 // loop_header
    %s9 = sphi 0, %s13
    %p10 = scmp.ge.s32.totalorder %s9, 4
    %s19 = sphi 0, %s21
    %s22 = sphi 0, %s19
    %s23 = sphi 0, %s22
    %s39 = sphi 0, %s23
    %s43 = sphi 0, %s43
    %s45 = sphi 0, %s43
    %s46 = sphi 0, %s45
    %s60 = sphi 0, %s46
    %s64 = sphi 0, %s64
    %s66 = sphi 0, %s64
    %s67 = sphi 0, %s66
    %s81 = sphi 0, %s67
    %s87 = sphi 0, %s89
    %s90 = sphi 0, %s87
    %s91 = sphi 0, %s90
    %s107 = sphi 0, %s91
  $region4: #{cnn_forward.6} parent=0 // loop_header_branch
    %12 = sbr.rel (%p10) target = $region8
  $region5: #{cnn_forward.6} parent=0 // loop_body
    %s14 = ssub.s32 %s9, 1
    %s15 = ssub.s32 %s9, 2
    %s16 = sadd.s32 %s9, 1
    %s17 = ssub.s32 %s9, %s16
    %p18 = scmp.eq.s32.totalorder %s17, 0
    %s20 = sadd.s32 %s19, 1
    %s21 = scalar_select %p18, %s19, %s20
    %p24 = pneg %p18
    %p25 = scmp.eq.s32.totalorder %s9, 1
    %p26 = por %p24, %p25
    %p27 = scmp.ne.s32.totalorder %s19, %s22
    %p28 = scmp.eq.s32.totalorder %s9, 0
    %p29 = por %p27, %p28
    %p30 = scmp.ne.s32.totalorder %s19, %s22
    %p31 = scmp.eq.s32.totalorder %s14, 1
    %p32 = por %p30, %p31
    %p33 = scmp.ne.s32.totalorder %s22, %s23
    %p34 = scmp.eq.s32.totalorder %s14, 0
    %p35 = por %p33, %p34
    %p36 = scmp.ne.s32.totalorder %s22, %s23
    %p37 = scmp.eq.s32.totalorder %s15, 1
    %p38 = por %p36, %p37
    %p40 = scmp.ne.s32.totalorder %s23, %s39
    %p41 = scmp.eq.s32.totalorder %s15, 0
    %p42 = por %p40, %p41
    %s44 = sadd.s32 %s43, 1
    %p47 = scmp.eq.s32.totalorder %s9, 1
    %p48 = scmp.ne.s32.totalorder %s43, %s45
    %p49 = scmp.eq.s32.totalorder %s9, 0
    %p50 = por %p48, %p49
    %p51 = scmp.ne.s32.totalorder %s43, %s45
    %p52 = scmp.eq.s32.totalorder %s14, 1
    %p53 = por %p51, %p52
    %p54 = scmp.ne.s32.totalorder %s45, %s46
    %p55 = scmp.eq.s32.totalorder %s14, 0
    %p56 = por %p54, %p55
    %p57 = scmp.ne.s32.totalorder %s45, %s46
    %p58 = scmp.eq.s32.totalorder %s15, 1
    %p59 = por %p57, %p58
    %p61 = scmp.ne.s32.totalorder %s46, %s60
    %p62 = scmp.eq.s32.totalorder %s15, 0
    %p63 = por %p61, %p62
    %s65 = sadd.s32 %s64, 1
    %p68 = scmp.eq.s32.totalorder %s9, 1
    %p69 = scmp.ne.s32.totalorder %s64, %s66
    %p70 = scmp.eq.s32.totalorder %s9, 0
    %p71 = por %p69, %p70
    %p72 = scmp.ne.s32.totalorder %s64, %s66
    %p73 = scmp.eq.s32.totalorder %s14, 1
    %p74 = por %p72, %p73
    %p75 = scmp.ne.s32.totalorder %s66, %s67
    %p76 = scmp.eq.s32.totalorder %s14, 0
    %p77 = por %p75, %p76
    %p78 = scmp.ne.s32.totalorder %s66, %s67
    %p79 = scmp.eq.s32.totalorder %s15, 1
    %p80 = por %p78, %p79
    %p82 = scmp.ne.s32.totalorder %s67, %s81
    %p83 = scmp.eq.s32.totalorder %s15, 0
    %p84 = por %p82, %p83
    %s85 = ssub.s32 %s9, %s16
    %p86 = scmp.eq.s32.totalorder %s85, 0
    %s88 = sadd.s32 %s87, 1
    %s89 = scalar_select %p86, %s87, %s88
    %p92 = pneg %p86
    %p93 = scmp.eq.s32.totalorder %s9, 1
    %p94 = por %p92, %p93
    %p95 = scmp.ne.s32.totalorder %s87, %s90
    %p96 = scmp.eq.s32.totalorder %s9, 0
    %p97 = por %p95, %p96
    %p98 = scmp.ne.s32.totalorder %s87, %s90
    %p99 = scmp.eq.s32.totalorder %s14, 1
    %p100 = por %p98, %p99
    %p101 = scmp.ne.s32.totalorder %s90, %s91
    %p102 = scmp.eq.s32.totalorder %s14, 0
    %p103 = por %p101, %p102
    %p104 = scmp.ne.s32.totalorder %s90, %s91
    %p105 = scmp.eq.s32.totalorder %s15, 1
    %p106 = por %p104, %p105
    %p108 = scmp.ne.s32.totalorder %s91, %s107
    %p109 = scmp.eq.s32.totalorder %s15, 0
    %p110 = por %p108, %p109
    %p111 = scmp.le.s32.totalorder 1, %s9
    %p112 = scmp.lt.s32.totalorder %s9, 3
    %p113 = pnand %p111, %p112
    %p114 = pneg %p113
    // Predicated region
    $region9: #{cnn_forward.6} parent=5 // pred_check
      _
    $region10: #{cnn_forward.6} parent=5 // pred_check_branch
      %116 = sbr.rel (%p113) target = $region12
    $region11: #{cnn_forward.6} parent=5 // pred_region
      %s117 = ssub.s32 %s9, 1
      // Predicated region
      $region13: #{cnn_forward.6} parent=11 // pred_check
        %p118 = pneg %p56
      $region14: #{cnn_forward.6} parent=11 // pred_check_branch
        %120 = sbr.rel (%p118) target = $region16
      $region15: #{cnn_forward.6} parent=11 // pred_region
        _
      $region16: #{cnn_forward.6} parent=11 // pred_fallthru
        _
      // Predicated region
      $region17: #{cnn_forward.6} parent=11 // pred_check
        %p121 = pneg %p77
      $region18: #{cnn_forward.6} parent=11 // pred_check_branch
        %123 = sbr.rel (%p121) target = $region20
      $region19: #{cnn_forward.6} parent=11 // pred_region
        _
      $region20: #{cnn_forward.6} parent=11 // pred_fallthru
        _
    $region12: #{cnn_forward.6} parent=5 // pred_fallthru
      _
    %p124 = scmp.lt.s32.totalorder %s9, 2
    // Predicated region
    $region21: #{cnn_forward.6} parent=5 // pred_check
      %p125 = pneg %p124
    $region22: #{cnn_forward.6} parent=5 // pred_check_branch
      %127 = sbr.rel (%p125) target = $region24
    $region23: #{cnn_forward.6} parent=5 // pred_region
      // Predicated region
      $region25: #{cnn_forward.6} parent=23 // pred_check
        %p128 = pneg %p29
      $region26: #{cnn_forward.6} parent=23 // pred_check_branch
        %130 = sbr.rel (%p128) target = $region28
      $region27: #{cnn_forward.6} parent=23 // pred_region
        %s131 = smul.u32 8, %s9
        %p132 = scmp.lt.s32.totalorder %s131, 15
        %s133 = scalar_select %p132, %s131, 15
        %s134 = smul.addr %s133, 5
        %s135 = smul.addr %s134, 8
        %s136 = scalar_lea.vmem %s0, %s135
        %s137 = smul.u32 8, %s9
      $region28: #{cnn_forward.6} parent=23 // pred_fallthru
        _
    $region24: #{cnn_forward.6} parent=5 // pred_fallthru
      _
    %p138 = scmp.le.s32.totalorder 1, %s9
    %p139 = scmp.lt.s32.totalorder %s9, 3
    %p140 = pnand %p138, %p139
    %p141 = pneg %p140
    // Predicated region
    $region29: #{cnn_forward.6} parent=5 // pred_check
      _
    $region30: #{cnn_forward.6} parent=5 // pred_check_branch
      %143 = sbr.rel (%p140) target = $region32
    $region31: #{cnn_forward.6} parent=5 // pred_region
      %s144 = ssub.s32 %s9, 1
      %s145 = smul.u32 8, %s14
      %p146 = scmp.lt.s32.totalorder %s145, 15
      %s147 = scalar_select %p146, %s145, 15
      %s148 = smul.addr %s147, 5
      %s149 = smul.addr %s148, 8
      %s150 = scalar_lea.vmem %s0, %s149
      %p151 = pneg %p35
      %p152 = pneg %p32
      %p153 = pneg %p56
      %p154 = pneg %p53
      %p155 = pneg %p77
      %p156 = pneg %p74
      %p157 = pneg %p103
      %p158 = pneg %p100
      %s159 = smul.u32 8, %s14
      %p160 = scmp.lt.s32.totalorder %s159, 15
      %s161 = scalar_select %p160, %s159, 15
      %s162 = smul.addr %s161, 8
      %s163 = scalar_lea.vmem %s3, %s162
      %s164 = smul.u32 8, %s14
      %p165 = scmp.lt.s32.totalorder %s164, 15
      %s166 = scalar_select %p165, %s164, 15
      %s167 = smul.addr %s166, 5
      %s168 = smul.addr %s167, 8
      %s169 = scalar_lea.vmem %s0, %s168
      %s170 = smul.u32 8, %s14
      %s171 = smul.u32 8, %s14
      %p172 = scmp.lt.s32.totalorder %s171, 15
      %s173 = scalar_select %p172, %s171, 15
      %s174 = smul.addr %s173, 8
      %s175 = scalar_lea.vmem %s3, %s174
      %s176 = smul.u32 8, %s14
      %v177 = vld [vmem:[%s169] sm:$0xff]
      %v178 = vld [vmem:[%s169 + $0x8] sm:$0xff]
      %v179 = vld [vmem:[%s169 + $0x10] sm:$0xff]
      %v180 = vld [vmem:[%s169 + $0x18] sm:$0xff]
      %v181 = vld [vmem:[%s169 + $0x20] sm:$0xff]
      %v182 = vld [vmem:[%s169 + $0x28] sm:$0xff]
      %v183 = vld [vmem:[%s169 + $0x30] sm:$0xff]
      %v184 = vld [vmem:[%s169 + $0x38] sm:$0xff]
      %v185 = vld [vmem:[%s169 + $0x40] sm:$0xff]
      %v186 = vld [vmem:[%s169 + $0x48] sm:$0xff]
      %v187 = vld [vmem:[%s169 + $0x50] sm:$0xff]
      %v188 = vld [vmem:[%s169 + $0x58] sm:$0xff]
      %v189 = vld [vmem:[%s169 + $0x60] sm:$0xff]
      %v190 = vld [vmem:[%s169 + $0x68] sm:$0xff]
      %v191 = vld [vmem:[%s169 + $0x70] sm:$0xff]
      %v192 = vld [vmem:[%s169 + $0x78] sm:$0xff]
      %v193 = vld [vmem:[%s169 + $0x80] sm:$0xff]
      %v194 = vld [vmem:[%s169 + $0x88] sm:$0xff]
      %v195 = vld [vmem:[%s169 + $0x90] sm:$0xff]
      %v196 = vld [vmem:[%s169 + $0x98] sm:$0xff]
      %v197 = vld [vmem:[%s169 + $0xa0] sm:$0xff]
      %v198 = vld [vmem:[%s169 + $0xa8] sm:$0xff]
      %v199 = vld [vmem:[%s169 + $0xb0] sm:$0xff]
      %v200 = vld [vmem:[%s169 + $0xb8] sm:$0xff]
      %v201 = vld [vmem:[%s169 + $0xc0] sm:$0xff]
      %v202 = vld [vmem:[%s169 + $0xc8] sm:$0xff]
      %v203 = vld [vmem:[%s169 + $0xd0] sm:$0xff]
      %v204 = vld [vmem:[%s169 + $0xd8] sm:$0xff]
      %v205 = vld [vmem:[%s169 + $0xe0] sm:$0xff]
      %v206 = vld [vmem:[%s169 + $0xe8] sm:$0xff]
      %v207 = vld [vmem:[%s169 + $0xf0] sm:$0xff]
      %v208 = vld [vmem:[%s169 + $0xf8] sm:$0xff]
      %v209 = vld [vmem:[%s169 + $0x100] sm:$0xff]
      %v210 = vld [vmem:[%s169 + $0x108] sm:$0xff]
      %v211 = vld [vmem:[%s169 + $0x110] sm:$0xff]
      %v212 = vld [vmem:[%s169 + $0x118] sm:$0xff]
      %v213 = vld [vmem:[%s169 + $0x120] sm:$0xff]
      %v214 = vld [vmem:[%s169 + $0x128] sm:$0xff]
      %v215 = vld [vmem:[%s169 + $0x130] sm:$0xff]
      %v216 = vld [vmem:[%s169 + $0x138] sm:$0xff]
      %v217 = vld [vmem:[%s1] sm:$0xff]
      %v218 = vld [vmem:[%s1 + $0x8] sm:$0xff]
      %v219 = vld [vmem:[%s1 + $0x10] sm:$0xff]
      %v220 = vld [vmem:[%s1 + $0x18] sm:$0xff]
      %v221 = vld [vmem:[%s1 + $0x20] sm:$0xff]
      %v222 = vld [vmem:[%s1 + $0x28] sm:$0xff]
      %v223 = vld [vmem:[%s1 + $0x30] sm:$0xff]
      %v224 = vld [vmem:[%s1 + $0x38] sm:$0xff]
      %v225 = vld [vmem:[%s1 + $0x40] sm:$0xff]
      %v226 = vld [vmem:[%s1 + $0x48] sm:$0xff]
      %v227 = vld [vmem:[%s1 + $0x50] sm:$0xff]
      %v228 = vld [vmem:[%s1 + $0x58] sm:$0xff]
      %v229 = vld [vmem:[%s1 + $0x60] sm:$0xff]
      %v230 = vld [vmem:[%s1 + $0x68] sm:$0xff]
      %v231 = vld [vmem:[%s1 + $0x70] sm:$0xff]
      %v232 = vld [vmem:[%s1 + $0x78] sm:$0xff]
      %v233 = vld [vmem:[%s1 + $0x80] sm:$0xff]
      %v234 = vld [vmem:[%s1 + $0x88] sm:$0xff]
      %v235 = vld [vmem:[%s1 + $0x90] sm:$0xff]
      %v236 = vld [vmem:[%s1 + $0x98] sm:$0xff]
      %v237 = vld [vmem:[%s1 + $0xa0] sm:$0xff]
      %v238 = vld [vmem:[%s1 + $0xa8] sm:$0xff]
      %v239 = vld [vmem:[%s1 + $0xb0] sm:$0xff]
      %v240 = vld [vmem:[%s1 + $0xb8] sm:$0xff]
      %v241 = vld [vmem:[%s1 + $0xc0] sm:$0xff]
      %v242 = vld [vmem:[%s1 + $0xc8] sm:$0xff]
      %v243 = vld [vmem:[%s1 + $0xd0] sm:$0xff]
      %v244 = vld [vmem:[%s1 + $0xd8] sm:$0xff]
      %v245 = vld [vmem:[%s1 + $0xe0] sm:$0xff]
      %v246 = vld [vmem:[%s1 + $0xe8] sm:$0xff]
      %v247 = vld [vmem:[%s1 + $0xf0] sm:$0xff]
      %v248 = vld [vmem:[%s1 + $0xf8] sm:$0xff]
      %v249 = vld [vmem:[%s1 + $0x100] sm:$0xff]
      %v250 = vld [vmem:[%s1 + $0x108] sm:$0xff]
      %v251 = vld [vmem:[%s1 + $0x110] sm:$0xff]
      %v252 = vld [vmem:[%s1 + $0x118] sm:$0xff]
      %v253 = vld [vmem:[%s1 + $0x120] sm:$0xff]
      %v254 = vld [vmem:[%s1 + $0x128] sm:$0xff]
      %v255 = vld [vmem:[%s1 + $0x130] sm:$0xff]
      %v256 = vld [vmem:[%s1 + $0x138] sm:$0xff]
      %v257 = vld [vmem:[%s1 + $0x140] sm:$0xff]
      %v258 = vld [vmem:[%s1 + $0x148] sm:$0xff]
      %v259 = vld [vmem:[%s1 + $0x150] sm:$0xff]
      %v260 = vld [vmem:[%s1 + $0x158] sm:$0xff]
      %v261 = vld [vmem:[%s1 + $0x160] sm:$0xff]
      %v262 = vld [vmem:[%s1 + $0x168] sm:$0xff]
      %v263 = vld [vmem:[%s1 + $0x170] sm:$0xff]
      %v264 = vld [vmem:[%s1 + $0x178] sm:$0xff]
      %v265 = vld [vmem:[%s1 + $0x180] sm:$0xff]
      %v266 = vld [vmem:[%s1 + $0x188] sm:$0xff]
      %v267 = vld [vmem:[%s1 + $0x190] sm:$0xff]
      %v268 = vld [vmem:[%s1 + $0x198] sm:$0xff]
      %v269 = vld [vmem:[%s1 + $0x1a0] sm:$0xff]
      %v270 = vld [vmem:[%s1 + $0x1a8] sm:$0xff]
      %v271 = vld [vmem:[%s1 + $0x1b0] sm:$0xff]
      %v272 = vld [vmem:[%s1 + $0x1b8] sm:$0xff]
      %v273 = vld [vmem:[%s1 + $0x1c0] sm:$0xff]
      %v274 = vld [vmem:[%s1 + $0x1c8] sm:$0xff]
      %v275 = vld [vmem:[%s1 + $0x1d0] sm:$0xff]
      %v276 = vld [vmem:[%s1 + $0x1d8] sm:$0xff]
      %v277 = vld [vmem:[%s1 + $0x1e0] sm:$0xff]
      %v278 = vld [vmem:[%s1 + $0x1e8] sm:$0xff]
      %v279 = vld [vmem:[%s1 + $0x1f0] sm:$0xff]
      %v280 = vld [vmem:[%s1 + $0x1f8] sm:$0xff]
      %v281 = vld [vmem:[%s1 + $0x200] sm:$0xff]
      %v282 = vld [vmem:[%s1 + $0x208] sm:$0xff]
      %v283 = vld [vmem:[%s1 + $0x210] sm:$0xff]
      %v284 = vld [vmem:[%s1 + $0x218] sm:$0xff]
      %v285 = vld [vmem:[%s1 + $0x220] sm:$0xff]
      %v286 = vld [vmem:[%s1 + $0x228] sm:$0xff]
      %v287 = vld [vmem:[%s1 + $0x230] sm:$0xff]
      %v288 = vld [vmem:[%s1 + $0x238] sm:$0xff]
      %v289 = vld [vmem:[%s1 + $0x240] sm:$0xff]
      %v290 = vld [vmem:[%s1 + $0x248] sm:$0xff]
      %v291 = vld [vmem:[%s1 + $0x250] sm:$0xff]
      %v292 = vld [vmem:[%s1 + $0x258] sm:$0xff]
      %v293 = vld [vmem:[%s1 + $0x260] sm:$0xff]
      %v294 = vld [vmem:[%s1 + $0x268] sm:$0xff]
      %v295 = vld [vmem:[%s1 + $0x270] sm:$0xff]
      %v296 = vld [vmem:[%s1 + $0x278] sm:$0xff]
      %v297 = vld [vmem:[%s2] sm:$0x1]
      %v299 = vlaneseq
      %v300 = vshrl.u32 %v299, 7
      %v301 = vsub.s32 0, %v300
      %v302 = vrot.slane %v297, %v301
      %304 = vmatprep.subr.mxu0 0.0
      %305 = vmatpush1.msra.mxu0 %v217
      %306 = vmatprep.subr.mxu0 0.0
      %307 = vmatpush1.msra.mxu0 %v218
      %308 = vmatprep.subr.mxu0 0.0
      %309 = vmatpush1.msra.mxu0 %v219
      %310 = vmatprep.subr.mxu0 0.0
      %311 = vmatpush1.msra.mxu0 %v220
      %312 = vmatprep.subr.mxu0 0.0
      %313 = vmatpush1.msra.mxu0 %v221
      %314 = vmatprep.subr.mxu0 0.0
      %315 = vmatpush1.msra.mxu0 %v222
      %316 = vmatprep.subr.mxu0 0.0
      %317 = vmatpush1.msra.mxu0 %v223
      %318 = vmatprep.subr.mxu0 0.0
      %319 = vmatpush1.msra.mxu0 %v224
      %320 = vmatprep.subr.mxu0 0.0
      %321 = vmatpush1.msra.mxu0 %v225
      %322 = vmatprep.subr.mxu0 0.0
      %323 = vmatpush1.msra.mxu0 %v226
      %324 = vmatprep.subr.mxu0 0.0
      %325 = vmatpush1.msra.mxu0 %v227
      %326 = vmatprep.subr.mxu0 0.0
      %327 = vmatpush1.msra.mxu0 %v228
      %328 = vmatprep.subr.mxu0 0.0
      %329 = vmatpush1.msra.mxu0 %v229
      %330 = vmatprep.subr.mxu0 0.0
      %331 = vmatpush1.msra.mxu0 %v230
      %332 = vmatprep.subr.mxu0 0.0
      %333 = vmatpush1.msra.mxu0 %v231
      %334 = vmatprep.subr.mxu0 0.0
      %335 = vmatpush1.msra.mxu0 %v232
      %336 = vmatprep.subr.mxu0 0.0
      %337 = vmatpush1.msra.mxu0 %v233
      %338 = vmatprep.subr.mxu0 0.0
      %339 = vmatpush1.msra.mxu0 %v234
      %340 = vmatprep.subr.mxu0 0.0
      %341 = vmatpush1.msra.mxu0 %v235
      %342 = vmatprep.subr.mxu0 0.0
      %343 = vmatpush1.msra.mxu0 %v236
      %344 = vmatprep.subr.mxu0 0.0
      %345 = vmatpush1.msra.mxu0 %v237
      %346 = vmatprep.subr.mxu0 0.0
      %347 = vmatpush1.msra.mxu0 %v238
      %348 = vmatprep.subr.mxu0 0.0
      %349 = vmatpush1.msra.mxu0 %v239
      %350 = vmatprep.subr.mxu0 0.0
      %351 = vmatpush1.msra.mxu0 %v240
      %352 = vmatprep.subr.mxu0 0.0
      %353 = vmatpush1.msra.mxu0 %v241
      %354 = vmatprep.subr.mxu0 0.0
      %355 = vmatpush1.msra.mxu0 %v242
      %356 = vmatprep.subr.mxu0 0.0
      %357 = vmatpush1.msra.mxu0 %v243
      %358 = vmatprep.subr.mxu0 0.0
      %359 = vmatpush1.msra.mxu0 %v244
      %360 = vmatprep.subr.mxu0 0.0
      %361 = vmatpush1.msra.mxu0 %v245
      %362 = vmatprep.subr.mxu0 0.0
      %363 = vmatpush1.msra.mxu0 %v246
      %364 = vmatprep.subr.mxu0 0.0
      %365 = vmatpush1.msra.mxu0 %v247
      %366 = vmatprep.subr.mxu0 0.0
      %367 = vmatpush1.msra.mxu0 %v248
      %368 = vmatprep.mubr.f32.mxu0 %v178
      %369 = vmatmul.mubr.f32.gmra.mrb[0].mxu0 %v177
      %v370 = vpop.f32.mrb[0].mxu0
      %v371 = vadd.f32 %v302, %v370
      %v372 = vpop.f32.mrb[0].mxu0
      %373 = vmatprep.mubr.f32.mxu0 %v183
      %374 = vmatmul.mubr.f32.gmra.mrb[0].mxu0 %v182
      %v375 = vpop.f32.mrb[0].mxu0
      %v376 = vadd.f32 %v302, %v375
      %v377 = vpop.f32.mrb[0].mxu0
      %378 = vmatprep.mubr.f32.mxu0 %v188
      %379 = vmatmul.mubr.f32.gmra.mrb[0].mxu0 %v187
      %v380 = vpop.f32.mrb[0].mxu0
      %v381 = vadd.f32 %v302, %v380
      %v382 = vpop.f32.mrb[0].mxu0
      %383 = vmatprep.mubr.f32.mxu0 %v193
      %384 = vmatmul.mubr.f32.gmra.mrb[0].mxu0 %v192
      %v385 = vpop.f32.mrb[0].mxu0
      %v386 = vadd.f32 %v302, %v385
      %v387 = vpop.f32.mrb[0].mxu0
      %388 = vmatprep.mubr.f32.mxu0 %v198
      %389 = vmatmul.mubr.f32.gmra.mrb[0].mxu0 %v197
      %v390 = vpop.f32.mrb[0].mxu0
      %v391 = vadd.f32 %v302, %v390
      %v392 = vpop.f32.mrb[0].mxu0
      %393 = vmatprep.mubr.f32.mxu0 %v203
      %394 = vmatmul.mubr.f32.gmra.mrb[0].mxu0 %v202
      %v395 = vpop.f32.mrb[0].mxu0
      %v396 = vadd.f32 %v302, %v395
      %v397 = vpop.f32.mrb[0].mxu0
      %398 = vmatprep.mubr.f32.mxu0 %v208
      %399 = vmatmul.mubr.f32.gmra.mrb[0].mxu0 %v207
      %v400 = vpop.f32.mrb[0].mxu0
      %v401 = vadd.f32 %v302, %v400
      %v402 = vpop.f32.mrb[0].mxu0
      %403 = vmatprep.mubr.f32.mxu0 %v213
      %404 = vmatmul.mubr.f32.gmra.mrb[0].mxu0 %v212
      %v405 = vpop.f32.mrb[0].mxu0
      %v406 = vadd.f32 %v302, %v405
      %v407 = vpop.f32.mrb[0].mxu0
      %408 = vdwg.mxu0
      %409 = vmatprep.subr.mxu0 0.0
      %410 = vmatpush1.msra.mxu0 %v249
      %411 = vmatprep.subr.mxu0 0.0
      %412 = vmatpush1.msra.mxu0 %v250
      %413 = vmatprep.subr.mxu0 0.0
      %414 = vmatpush1.msra.mxu0 %v251
      %415 = vmatprep.subr.mxu0 0.0
      %416 = vmatpush1.msra.mxu0 %v252
      %417 = vmatprep.subr.mxu0 0.0
      %418 = vmatpush1.msra.mxu0 %v253
      %419 = vmatprep.subr.mxu0 0.0
      %420 = vmatpush1.msra.mxu0 %v254
      %421 = vmatprep.subr.mxu0 0.0
      %422 = vmatpush1.msra.mxu0 %v255
      %423 = vmatprep.subr.mxu0 0.0
      %424 = vmatpush1.msra.mxu0 %v256
      %425 = vmatprep.subr.mxu0 0.0
      %426 = vmatpush1.msra.mxu0 %v257
      %427 = vmatprep.subr.mxu0 0.0
      %428 = vmatpush1.msra.mxu0 %v258
      %429 = vmatprep.subr.mxu0 0.0
      %430 = vmatpush1.msra.mxu0 %v259
      %431 = vmatprep.subr.mxu0 0.0
      %432 = vmatpush1.msra.mxu0 %v260
      %433 = vmatprep.subr.mxu0 0.0
      %434 = vmatpush1.msra.mxu0 %v261
      %435 = vmatprep.subr.mxu0 0.0
      %436 = vmatpush1.msra.mxu0 %v262
      %437 = vmatprep.subr.mxu0 0.0
      %438 = vmatpush1.msra.mxu0 %v263
      %439 = vmatprep.subr.mxu0 0.0
      %440 = vmatpush1.msra.mxu0 %v264
      %441 = vmatprep.subr.mxu0 0.0
      %442 = vmatpush1.msra.mxu0 %v265
      %443 = vmatprep.subr.mxu0 0.0
      %444 = vmatpush1.msra.mxu0 %v266
      %445 = vmatprep.subr.mxu0 0.0
      %446 = vmatpush1.msra.mxu0 %v267
      %447 = vmatprep.subr.mxu0 0.0
      %448 = vmatpush1.msra.mxu0 %v268
      %449 = vmatprep.subr.mxu0 0.0
      %450 = vmatpush1.msra.mxu0 %v269
      %451 = vmatprep.subr.mxu0 0.0
      %452 = vmatpush1.msra.mxu0 %v270
      %453 = vmatprep.subr.mxu0 0.0
      %454 = vmatpush1.msra.mxu0 %v271
      %455 = vmatprep.subr.mxu0 0.0
      %456 = vmatpush1.msra.mxu0 %v272
      %457 = vmatprep.subr.mxu0 0.0
      %458 = vmatpush1.msra.mxu0 %v273
      %459 = vmatprep.subr.mxu0 0.0
      %460 = vmatpush1.msra.mxu0 %v274
      %461 = vmatprep.subr.mxu0 0.0
      %462 = vmatpush1.msra.mxu0 %v275
      %463 = vmatprep.subr.mxu0 0.0
      %464 = vmatpush1.msra.mxu0 %v276
      %465 = vmatprep.subr.mxu0 0.0
      %466 = vmatpush1.msra.mxu0 %v277
      %467 = vmatprep.subr.mxu0 0.0
      %468 = vmatpush1.msra.mxu0 %v278
      %469 = vmatprep.subr.mxu0 0.0
      %470 = vmatpush1.msra.mxu0 %v279
      %471 = vmatprep.subr.mxu0 0.0
      %472 = vmatpush1.msra.mxu0 %v280
      %473 = vmatprep.mubr.f32.mxu0 %v180
      %474 = vmatmul.mubr.f32.gmra.mrb[0].mxu0 %v179
      %v475 = vpop.f32.mrb[0].mxu0
      %v476 = vadd.f32 %v371, %v475
      %v477 = vpop.f32.mrb[0].mxu0
      %478 = vmatprep.mubr.f32.mxu0 %v185
      %479 = vmatmul.mubr.f32.gmra.mrb[0].mxu0 %v184
      %v480 = vpop.f32.mrb[0].mxu0
      %v481 = vadd.f32 %v376, %v480
      %v482 = vpop.f32.mrb[0].mxu0
      %483 = vmatprep.mubr.f32.mxu0 %v190
      %484 = vmatmul.mubr.f32.gmra.mrb[0].mxu0 %v189
      %v485 = vpop.f32.mrb[0].mxu0
      %v486 = vadd.f32 %v381, %v485
      %v487 = vpop.f32.mrb[0].mxu0
      %488 = vmatprep.mubr.f32.mxu0 %v195
      %489 = vmatmul.mubr.f32.gmra.mrb[0].mxu0 %v194
      %v490 = vpop.f32.mrb[0].mxu0
      %v491 = vadd.f32 %v386, %v490
      %v492 = vpop.f32.mrb[0].mxu0
      %493 = vmatprep.mubr.f32.mxu0 %v200
      %494 = vmatmul.mubr.f32.gmra.mrb[0].mxu0 %v199
      %v495 = vpop.f32.mrb[0].mxu0
      %v496 = vadd.f32 %v391, %v495
      %v497 = vpop.f32.mrb[0].mxu0
      %498 = vmatprep.mubr.f32.mxu0 %v205
      %499 = vmatmul.mubr.f32.gmra.mrb[0].mxu0 %v204
      %v500 = vpop.f32.mrb[0].mxu0
      %v501 = vadd.f32 %v396, %v500
      %v502 = vpop.f32.mrb[0].mxu0
      %503 = vmatprep.mubr.f32.mxu0 %v210
      %504 = vmatmul.mubr.f32.gmra.mrb[0].mxu0 %v209
      %v505 = vpop.f32.mrb[0].mxu0
      %v506 = vadd.f32 %v401, %v505
      %v507 = vpop.f32.mrb[0].mxu0
      %508 = vmatprep.mubr.f32.mxu0 %v215
      %509 = vmatmul.mubr.f32.gmra.mrb[0].mxu0 %v214
      %v510 = vpop.f32.mrb[0].mxu0
      %v511 = vadd.f32 %v406, %v510
      %v512 = vpop.f32.mrb[0].mxu0
      %513 = vdwg.mxu0
      %514 = vmatprep.subr.mxu0 0.0
      %515 = vmatpush1.msra.mxu0 %v281
      %516 = vmatprep.subr.mxu0 0.0
      %517 = vmatpush1.msra.mxu0 %v282
      %518 = vmatprep.subr.mxu0 0.0
      %519 = vmatpush1.msra.mxu0 %v283
      %520 = vmatprep.subr.mxu0 0.0
      %521 = vmatpush1.msra.mxu0 %v284
      %522 = vmatprep.subr.mxu0 0.0
      %523 = vmatpush1.msra.mxu0 %v285
      %524 = vmatprep.subr.mxu0 0.0
      %525 = vmatpush1.msra.mxu0 %v286
      %526 = vmatprep.subr.mxu0 0.0
      %527 = vmatpush1.msra.mxu0 %v287
      %528 = vmatprep.subr.mxu0 0.0
      %529 = vmatpush1.msra.mxu0 %v288
      %530 = vmatprep.subr.mxu0 0.0
      %531 = vmatpush1.msra.mxu0 %v289
      %532 = vmatprep.subr.mxu0 0.0
      %533 = vmatpush1.msra.mxu0 %v290
      %534 = vmatprep.subr.mxu0 0.0
      %535 = vmatpush1.msra.mxu0 %v291
      %536 = vmatprep.subr.mxu0 0.0
      %537 = vmatpush1.msra.mxu0 %v292
      %538 = vmatprep.subr.mxu0 0.0
      %539 = vmatpush1.msra.mxu0 %v293
      %540 = vmatprep.subr.mxu0 0.0
      %541 = vmatpush1.msra.mxu0 %v294
      %542 = vmatprep.subr.mxu0 0.0
      %543 = vmatpush1.msra.mxu0 %v295
      %544 = vmatprep.subr.mxu0 0.0
      %545 = vmatpush1.msra.mxu0 %v296
      %546 = vmatprep.subr.mxu0 0.0
      %547 = vmatpush1.msra.mxu0 0.0
      %548 = vmatprep.subr.mxu0 0.0
      %549 = vmatpush1.msra.mxu0 0.0
      %550 = vmatprep.subr.mxu0 0.0
      %551 = vmatpush1.msra.mxu0 0.0
      %552 = vmatprep.subr.mxu0 0.0
      %553 = vmatpush1.msra.mxu0 0.0
      %554 = vmatprep.subr.mxu0 0.0
      %555 = vmatpush1.msra.mxu0 0.0
      %556 = vmatprep.subr.mxu0 0.0
      %557 = vmatpush1.msra.mxu0 0.0
      %558 = vmatprep.subr.mxu0 0.0
      %559 = vmatpush1.msra.mxu0 0.0
      %560 = vmatprep.subr.mxu0 0.0
      %561 = vmatpush1.msra.mxu0 0.0
      %562 = vmatprep.subr.mxu0 0.0
      %563 = vmatpush1.msra.mxu0 0.0
      %564 = vmatprep.subr.mxu0 0.0
      %565 = vmatpush1.msra.mxu0 0.0
      %566 = vmatprep.subr.mxu0 0.0
      %567 = vmatpush1.msra.mxu0 0.0
      %568 = vmatprep.subr.mxu0 0.0
      %569 = vmatpush1.msra.mxu0 0.0
      %570 = vmatprep.subr.mxu0 0.0
      %571 = vmatpush1.msra.mxu0 0.0
      %572 = vmatprep.subr.mxu0 0.0
      %573 = vmatpush1.msra.mxu0 0.0
      %574 = vmatprep.subr.mxu0 0.0
      %575 = vmatpush1.msra.mxu0 0.0
      %576 = vmatprep.subr.mxu0 0.0
      %577 = vmatpush1.msra.mxu0 0.0
      %578 = vmatprep.mubr.f32.mxu0 0.0
      %579 = vmatmul.mubr.f32.gmra.mrb[0].mxu0 %v181
      %v580 = vpop.f32.mrb[0].mxu0
      %v581 = vadd.f32 %v476, %v580
      %v582 = vpop.f32.mrb[0].mxu0
      %583 = vmatprep.mubr.f32.mxu0 0.0
      %584 = vmatmul.mubr.f32.gmra.mrb[0].mxu0 %v186
      %v585 = vpop.f32.mrb[0].mxu0
      %v586 = vadd.f32 %v481, %v585
      %v587 = vpop.f32.mrb[0].mxu0
      %588 = vmatprep.mubr.f32.mxu0 0.0
      %589 = vmatmul.mubr.f32.gmra.mrb[0].mxu0 %v191
      %v590 = vpop.f32.mrb[0].mxu0
      %v591 = vadd.f32 %v486, %v590
      %v592 = vpop.f32.mrb[0].mxu0
      %593 = vmatprep.mubr.f32.mxu0 0.0
      %594 = vmatmul.mubr.f32.gmra.mrb[0].mxu0 %v196
      %v595 = vpop.f32.mrb[0].mxu0
      %v596 = vadd.f32 %v491, %v595
      %v597 = vpop.f32.mrb[0].mxu0
      %598 = vmatprep.mubr.f32.mxu0 0.0
      %599 = vmatmul.mubr.f32.gmra.mrb[0].mxu0 %v201
      %v600 = vpop.f32.mrb[0].mxu0
      %v601 = vadd.f32 %v496, %v600
      %v602 = vpop.f32.mrb[0].mxu0
      %603 = vmatprep.mubr.f32.mxu0 0.0
      %604 = vmatmul.mubr.f32.gmra.mrb[0].mxu0 %v206
      %v605 = vpop.f32.mrb[0].mxu0
      %v606 = vadd.f32 %v501, %v605
      %v607 = vpop.f32.mrb[0].mxu0
      %608 = vmatprep.mubr.f32.mxu0 0.0
      %609 = vmatmul.mubr.f32.gmra.mrb[0].mxu0 %v211
      %v610 = vpop.f32.mrb[0].mxu0
      %v611 = vadd.f32 %v506, %v610
      %v612 = vpop.f32.mrb[0].mxu0
      %613 = vmatprep.mubr.f32.mxu0 0.0
      %614 = vmatmul.mubr.f32.gmra.mrb[0].mxu0 %v216
      %v615 = vpop.f32.mrb[0].mxu0
      %v616 = vadd.f32 %v511, %v615
      %v617 = vpop.f32.mrb[0].mxu0
      %618 = vdwg.mxu0
      %v619 = vmax.f32 %v581, 0.0
      %v620 = vmax.f32 %v586, 0.0
      %v621 = vmax.f32 %v591, 0.0
      %v622 = vmax.f32 %v596, 0.0
      %v623 = vmax.f32 %v601, 0.0
      %v624 = vmax.f32 %v606, 0.0
      %v625 = vmax.f32 %v611, 0.0
      %v626 = vmax.f32 %v616, 0.0
      %627 = vst [vmem:[%s175] sm:$0xff] %v619
      %628 = vst [vmem:[%s175 + $0x8] sm:$0xff] %v620
      %629 = vst [vmem:[%s175 + $0x10] sm:$0xff] %v621
      %630 = vst [vmem:[%s175 + $0x18] sm:$0xff] %v622
      %631 = vst [vmem:[%s175 + $0x20] sm:$0xff] %v623
      %632 = vst [vmem:[%s175 + $0x28] sm:$0xff] %v624
      %633 = vst [vmem:[%s175 + $0x30] sm:$0xff] %v625
      %634 = vst [vmem:[%s175 + $0x38] sm:$0xff] %v626
      %s635 = smul.u32 8, %s14
      %p636 = scmp.lt.s32.totalorder %s635, 15
      %s637 = scalar_select %p636, %s635, 15
      %s638 = smul.addr %s637, 8
      %s639 = scalar_lea.vmem %s3, %s638
      // Predicated region
      $region33: #{cnn_forward.6} parent=31 // pred_check
        %p640 = pneg %p100
      $region34: #{cnn_forward.6} parent=31 // pred_check_branch
        %642 = sbr.rel (%p640) target = $region36
      $region35: #{cnn_forward.6} parent=31 // pred_region
        %s643 = smul.u32 8, %s14
      $region36: #{cnn_forward.6} parent=31 // pred_fallthru
        _
    $region32: #{cnn_forward.6} parent=5 // pred_fallthru
      _
    %p644 = scmp.le.s32.totalorder 2, %s9
    // Predicated region
    $region37: #{cnn_forward.6} parent=5 // pred_check
      %p645 = pneg %p644
    $region38: #{cnn_forward.6} parent=5 // pred_check_branch
      %647 = sbr.rel (%p645) target = $region40
    $region39: #{cnn_forward.6} parent=5 // pred_region
      %s648 = ssub.s32 %s9, 2
      // Predicated region
      $region41: #{cnn_forward.6} parent=39 // pred_check
        %p649 = pneg %p106
      $region42: #{cnn_forward.6} parent=39 // pred_check_branch
        %651 = sbr.rel (%p649) target = $region44
      $region43: #{cnn_forward.6} parent=39 // pred_region
        %s652 = smul.u32 8, %s15
        %p653 = scmp.lt.s32.totalorder %s652, 15
        %s654 = scalar_select %p653, %s652, 15
        %s655 = smul.addr %s654, 8
        %s656 = scalar_lea.vmem %s3, %s655
      $region44: #{cnn_forward.6} parent=39 // pred_fallthru
        _
    $region40: #{cnn_forward.6} parent=5 // pred_fallthru
      _
  $region6: #{cnn_forward.6} parent=0 // loop_footer
    %s13 = sadd.s32 1, %s9
  $region7: #{cnn_forward.6} parent=0 // loop_footer_branch
    %8 = sbr.rel target = $region3
  $region8: #{cnn_forward.6} parent=0 // loop_exit
    _

// kernel: cnn_forward.7
$region0: #{cnn_forward.7}
  #allocation0 [shape = 'u32[]', space=smem, size = 0x4, offset = 0x4, fixed_abs, tag = 'smem constant byte address 0x4 - core index']
  #allocation1 [shape = 'u32[144,128]{1,0:T(1,128)}', space=vmem, size = 0x12000, scoped, tag = 'internal scratch']
  %s0 = inlined_call_operand.vmem [shape: f32[8,3840], index: 0, kind: input, shape index: {}]
  %s1 = inlined_call_operand.vmem [shape: f32[3840,512], index: 1, kind: input, shape index: {}]
  %s2 = inlined_call_operand.vmem [shape: f32[1,512], index: 2, kind: input, shape index: {}]
  %s3 = inlined_call_operand.vmem [shape: f32[512,128], index: 3, kind: input, shape index: {}]
  %s4 = inlined_call_operand.vmem [shape: f32[1,128], index: 4, kind: input, shape index: {}]
  %s5 = inlined_call_operand.vmem [shape: f32[8,128], index: 5, kind: output, shape index: {}]
  %s6 = sld [smem:[#allocation0]]
  $region30: #{cnn_forward.7} parent=0
    _
  %s8 = ssub.s32 1, %s6
  %s9 = scalar_select 0, %s8, %s6
  // Predicated region
  $region2: #{cnn_forward.7} parent=0 // pred_check
    _
  $region3: #{cnn_forward.7} parent=0 // pred_check_branch
    %11 = sbr.rel (0) target = $region5
  $region4: #{cnn_forward.7} parent=0 // pred_region
    _
  $region5: #{cnn_forward.7} parent=0 // pred_fallthru
    _
  // Predicated region
  $region6: #{cnn_forward.7} parent=0 // pred_check
    _
  $region7: #{cnn_forward.7} parent=0 // pred_check_branch
    %13 = sbr.rel (0) target = $region9
  $region8: #{cnn_forward.7} parent=0 // pred_region
    _
  $region9: #{cnn_forward.7} parent=0 // pred_fallthru
    _
  // Predicated region
  $region10: #{cnn_forward.7} parent=0 // pred_check
    _
  $region11: #{cnn_forward.7} parent=0 // pred_check_branch
    %15 = sbr.rel (0) target = $region13
  $region12: #{cnn_forward.7} parent=0 // pred_region
    _
  $region13: #{cnn_forward.7} parent=0 // pred_fallthru
    _
  // Predicated region
  $region14: #{cnn_forward.7} parent=0 // pred_check
    _
  $region15: #{cnn_forward.7} parent=0 // pred_check_branch
    %17 = sbr.rel (0) target = $region17
  $region16: #{cnn_forward.7} parent=0 // pred_region
    _
  $region17: #{cnn_forward.7} parent=0 // pred_fallthru
    _
  // Predicated region
  $region18: #{cnn_forward.7} parent=0 // pred_check
    _
  $region19: #{cnn_forward.7} parent=0 // pred_check_branch
    %19 = sbr.rel (0) target = $region21
  $region20: #{cnn_forward.7} parent=0 // pred_region
    _
  $region21: #{cnn_forward.7} parent=0 // pred_fallthru
    _
  %v20 = vld [vmem:[%s0] sm:$0xff]
  %v21 = vld [vmem:[%s0 + $0x8] sm:$0xff]
  %v22 = vld [vmem:[%s0 + $0x10] sm:$0xff]
  %v23 = vld [vmem:[%s0 + $0x18] sm:$0xff]
  %v24 = vld [vmem:[%s0 + $0x20] sm:$0xff]
  %v25 = vld [vmem:[%s0 + $0x28] sm:$0xff]
  %v26 = vld [vmem:[%s0 + $0x30] sm:$0xff]
  %v27 = vld [vmem:[%s0 + $0x38] sm:$0xff]
  %v28 = vld [vmem:[%s0 + $0x40] sm:$0xff]
  %v29 = vld [vmem:[%s0 + $0x48] sm:$0xff]
  %v30 = vld [vmem:[%s0 + $0x50] sm:$0xff]
  %v31 = vld [vmem:[%s0 + $0x58] sm:$0xff]
  %v32 = vld [vmem:[%s0 + $0x60] sm:$0xff]
  %v33 = vld [vmem:[%s0 + $0x68] sm:$0xff]
  %v34 = vld [vmem:[%s0 + $0x70] sm:$0xff]
  %v35 = vld [vmem:[%s0 + $0x78] sm:$0xff]
  %v36 = vld [vmem:[%s0 + $0x80] sm:$0xff]
  %v37 = vld [vmem:[%s0 + $0x88] sm:$0xff]
  %v38 = vld [vmem:[%s0 + $0x90] sm:$0xff]
  %v39 = vld [vmem:[%s0 + $0x98] sm:$0xff]
  %v40 = vld [vmem:[%s0 + $0xa0] sm:$0xff]
  %v41 = vld [vmem:[%s0 + $0xa8] sm:$0xff]
  %v42 = vld [vmem:[%s0 + $0xb0] sm:$0xff]
  %v43 = vld [vmem:[%s0 + $0xb8] sm:$0xff]
  %v44 = vld [vmem:[%s0 + $0xc0] sm:$0xff]
  %v45 = vld [vmem:[%s0 + $0xc8] sm:$0xff]
  %v46 = vld [vmem:[%s0 + $0xd0] sm:$0xff]
  %v47 = vld [vmem:[%s0 + $0xd8] sm:$0xff]
  %v48 = vld [vmem:[%s0 + $0xe0] sm:$0xff]
  %v49 = vld [vmem:[%s0 + $0xe8] sm:$0xff]
  %v50 = vld [vmem:[%s1] sm:$0xff]
  %v51 = vld [vmem:[%s1 + $0x8] sm:$0xff]
  %v52 = vld [vmem:[%s1 + $0x10] sm:$0xff]
  %v53 = vld [vmem:[%s1 + $0x18] sm:$0xff]
  %v54 = vld [vmem:[%s1 + $0x20] sm:$0xff]
  %v55 = vld [vmem:[%s1 + $0x28] sm:$0xff]
  %v56 = vld [vmem:[%s1 + $0x30] sm:$0xff]
  %v57 = vld [vmem:[%s1 + $0x38] sm:$0xff]
  %v58 = vld [vmem:[%s1 + $0x40] sm:$0xff]
  %v59 = vld [vmem:[%s1 + $0x48] sm:$0xff]
  %v60 = vld [vmem:[%s1 + $0x50] sm:$0xff]
  %v61 = vld [vmem:[%s1 + $0x58] sm:$0xff]
  %v62 = vld [vmem:[%s1 + $0x60] sm:$0xff]
  %v63 = vld [vmem:[%s1 + $0x68] sm:$0xff]
  %v64 = vld [vmem:[%s1 + $0x70] sm:$0xff]
  %v65 = vld [vmem:[%s1 + $0x78] sm:$0xff]
  %v66 = vld [vmem:[%s1 + $0x80] sm:$0xff]
  %v67 = vld [vmem:[%s1 + $0x88] sm:$0xff]
  %v68 = vld [vmem:[%s1 + $0x90] sm:$0xff]
  %v69 = vld [vmem:[%s1 + $0x98] sm:$0xff]
  %v70 = vld [vmem:[%s1 + $0xa0] sm:$0xff]
  %v71 = vld [vmem:[%s1 + $0xa8] sm:$0xff]
  %v72 = vld [vmem:[%s1 + $0xb0] sm:$0xff]
  %v73 = vld [vmem:[%s1 + $0xb8] sm:$0xff]
  %v74 = vld [vmem:[%s1 + $0xc0] sm:$0xff]
  %v75 = vld [vmem:[%s1 + $0xc8] sm:$0xff]
  %v76 = vld [vmem:[%s1 + $0xd0] sm:$0xff]
  %v77 = vld [vmem:[%s1 + $0xd8] sm:$0xff]
  %v78 = vld [vmem:[%s1 + $0xe0] sm:$0xff]
  %v79 = vld [vmem:[%s1 + $0xe8] sm:$0xff]
  %v80 = vld [vmem:[%s1 + $0xf0] sm:$0xff]
  %v81 = vld [vmem:[%s1 + $0xf8] sm:$0xff]
  %v82 = vld [vmem:[%s1 + $0x100] sm:$0xff]
  %v83 = vld [vmem:[%s1 + $0x108] sm:$0xff]
  %v84 = vld [vmem:[%s1 + $0x110] sm:$0xff]
  %v85 = vld [vmem:[%s1 + $0x118] sm:$0xff]
  %v86 = vld [vmem:[%s1 + $0x120] sm:$0xff]
  %v87 = vld [vmem:[%s1 + $0x128] sm:$0xff]
  %v88 = vld [vmem:[%s1 + $0x130] sm:$0xff]
  %v89 = vld [vmem:[%s1 + $0x138] sm:$0xff]
  %v90 = vld [vmem:[%s1 + $0x140] sm:$0xff]
  %v91 = vld [vmem:[%s1 + $0x148] sm:$0xff]
  %v92 = vld [vmem:[%s1 + $0x150] sm:$0xff]
  %v93 = vld [vmem:[%s1 + $0x158] sm:$0xff]
  %v94 = vld [vmem:[%s1 + $0x160] sm:$0xff]
  %v95 = vld [vmem:[%s1 + $0x168] sm:$0xff]
  %v96 = vld [vmem:[%s1 + $0x170] sm:$0xff]
  %v97 = vld [vmem:[%s1 + $0x178] sm:$0xff]
  %v98 = vld [vmem:[%s1 + $0x180] sm:$0xff]
  %v99 = vld [vmem:[%s1 + $0x188] sm:$0xff]
  %v100 = vld [vmem:[%s1 + $0x190] sm:$0xff]
  %v101 = vld [vmem:[%s1 + $0x198] sm:$0xff]
  %v102 = vld [vmem:[%s1 + $0x1a0] sm:$0xff]
  %v103 = vld [vmem:[%s1 + $0x1a8] sm:$0xff]
  %v104 = vld [vmem:[%s1 + $0x1b0] sm:$0xff]
  %v105 = vld [vmem:[%s1 + $0x1b8] sm:$0xff]
  %v106 = vld [vmem:[%s1 + $0x1c0] sm:$0xff]
  %v107 = vld [vmem:[%s1 + $0x1c8] sm:$0xff]
  %v108 = vld [vmem:[%s1 + $0x1d0] sm:$0xff]
  %v109 = vld [vmem:[%s1 + $0x1d8] sm:$0xff]
  %v110 = vld [vmem:[%s1 + $0x1e0] sm:$0xff]
  %v111 = vld [vmem:[%s1 + $0x1e8] sm:$0xff]
  %v112 = vld [vmem:[%s1 + $0x1f0] sm:$0xff]
  %v113 = vld [vmem:[%s1 + $0x1f8] sm:$0xff]
  %v114 = vld [vmem:[%s1 + $0x200] sm:$0xff]
  %v115 = vld [vmem:[%s1 + $0x208] sm:$0xff]
  %v116 = vld [vmem:[%s1 + $0x210] sm:$0xff]
  %v117 = vld [vmem:[%s1 + $0x218] sm:$0xff]
  %v118 = vld [vmem:[%s1 + $0x220] sm:$0xff]
  %v119 = vld [vmem:[%s1 + $0x228] sm:$0xff]
  %v120 = vld [vmem:[%s1 + $0x230] sm:$0xff]
  %v121 = vld [vmem:[%s1 + $0x238] sm:$0xff]
  %v122 = vld [vmem:[%s1 + $0x240] sm:$0xff]
  %v123 = vld [vmem:[%s1 + $0x248] sm:$0xff]
  %v124 = vld [vmem:[%s1 + $0x250] sm:$0xff]
  %v125 = vld [vmem:[%s1 + $0x258] sm:$0xff]
  %v126 = vld [vmem:[%s1 + $0x260] sm:$0xff]
  %v127 = vld [vmem:[%s1 + $0x268] sm:$0xff]
  %v128 = vld [vmem:[%s1 + $0x270] sm:$0xff]
  %v129 = vld [vmem:[%s1 + $0x278] sm:$0xff]
  %v130 = vld [vmem:[%s1 + $0x280] sm:$0xff]
  %v131 = vld [vmem:[%s1 + $0x288] sm:$0xff]
  %v132 = vld [vmem:[%s1 + $0x290] sm:$0xff]
  %v133 = vld [vmem:[%s1 + $0x298] sm:$0xff]
  %v134 = vld [vmem:[%s1 + $0x2a0] sm:$0xff]
  %v135 = vld [vmem:[%s1 + $0x2a8] sm:$0xff]
  %v136 = vld [vmem:[%s1 + $0x2b0] sm:$0xff]
  %v137 = vld [vmem:[%s1 + $0x2b8] sm:$0xff]
  %v138 = vld [vmem:[%s1 + $0x2c0] sm:$0xff]
  %v139 = vld [vmem:[%s1 + $0x2c8] sm:$0xff]
  %v140 = vld [vmem:[%s1 + $0x2d0] sm:$0xff]
  %v141 = vld [vmem:[%s1 + $0x2d8] sm:$0xff]
  %v142 = vld [vmem:[%s1 + $0x2e0] sm:$0xff]
  %v143 = vld [vmem:[%s1 + $0x2e8] sm:$0xff]
  %v144 = vld [vmem:[%s1 + $0x2f0] sm:$0xff]
  %v145 = vld [vmem:[%s1 + $0x2f8] sm:$0xff]
  %v146 = vld [vmem:[%s1 + $0x300] sm:$0xff]
  %v147 = vld [vmem:[%s1 + $0x308] sm:$0xff]
  %v148 = vld [vmem:[%s1 + $0x310] sm:$0xff]
  %v149 = vld [vmem:[%s1 + $0x318] sm:$0xff]
  %v150 = vld [vmem:[%s1 + $0x320] sm:$0xff]
  %v151 = vld [vmem:[%s1 + $0x328] sm:$0xff]
  %v152 = vld [vmem:[%s1 + $0x330] sm:$0xff]
  %v153 = vld [vmem:[%s1 + $0x338] sm:$0xff]
  %v154 = vld [vmem:[%s1 + $0x340] sm:$0xff]
  %v155 = vld [vmem:[%s1 + $0x348] sm:$0xff]
  %v156 = vld [vmem:[%s1 + $0x350] sm:$0xff]
  %v157 = vld [vmem:[%s1 + $0x358] sm:$0xff]
  %v158 = vld [vmem:[%s1 + $0x360] sm:$0xff]
  %v159 = vld [vmem:[%s1 + $0x368] sm:$0xff]
  %v160 = vld [vmem:[%s1 + $0x370] sm:$0xff]
  %v161 = vld [vmem:[%s1 + $0x378] sm:$0xff]
  %v162 = vld [vmem:[%s1 + $0x380] sm:$0xff]
  %v163 = vld [vmem:[%s1 + $0x388] sm:$0xff]
  %v164 = vld [vmem:[%s1 + $0x390] sm:$0xff]
  %v165 = vld [vmem:[%s1 + $0x398] sm:$0xff]
  %v166 = vld [vmem:[%s1 + $0x3a0] sm:$0xff]
  %v167 = vld [vmem:[%s1 + $0x3a8] sm:$0xff]
  %v168 = vld [vmem:[%s1 + $0x3b0] sm:$0xff]
  %v169 = vld [vmem:[%s1 + $0x3b8] sm:$0xff]
  %v170 = vld [vmem:[%s1 + $0x3c0] sm:$0xff]
  %v171 = vld [vmem:[%s1 + $0x3c8] sm:$0xff]
  %v172 = vld [vmem:[%s1 + $0x3d0] sm:$0xff]
  %v173 = vld [vmem:[%s1 + $0x3d8] sm:$0xff]
  %v174 = vld [vmem:[%s1 + $0x3e0] sm:$0xff]
  %v175 = vld [vmem:[%s1 + $0x3e8] sm:$0xff]
  %v176 = vld [vmem:[%s1 + $0x3f0] sm:$0xff]
  %v177 = vld [vmem:[%s1 + $0x3f8] sm:$0xff]
  %v178 = vld [vmem:[%s1 + $0x400] sm:$0xff]
  %v179 = vld [vmem:[%s1 + $0x408] sm:$0xff]
  %v180 = vld [vmem:[%s1 + $0x410] sm:$0xff]
  %v181 = vld [vmem:[%s1 + $0x418] sm:$0xff]
  %v182 = vld [vmem:[%s1 + $0x420] sm:$0xff]
  %v183 = vld [vmem:[%s1 + $0x428] sm:$0xff]
  %v184 = vld [vmem:[%s1 + $0x430] sm:$0xff]
  %v185 = vld [vmem:[%s1 + $0x438] sm:$0xff]
  %v186 = vld [vmem:[%s1 + $0x440] sm:$0xff]
  %v187 = vld [vmem:[%s1 + $0x448] sm:$0xff]
  %v188 = vld [vmem:[%s1 + $0x450] sm:$0xff]
  %v189 = vld [vmem:[%s1 + $0x458] sm:$0xff]
  %v190 = vld [vmem:[%s1 + $0x460] sm:$0xff]
  %v191 = vld [vmem:[%s1 + $0x468] sm:$0xff]
  %v192 = vld [vmem:[%s1 + $0x470] sm:$0xff]
  %v193 = vld [vmem:[%s1 + $0x478] sm:$0xff]
  %v194 = vld [vmem:[%s1 + $0x480] sm:$0xff]
  %v195 = vld [vmem:[%s1 + $0x488] sm:$0xff]
  %v196 = vld [vmem:[%s1 + $0x490] sm:$0xff]
  %v197 = vld [vmem:[%s1 + $0x498] sm:$0xff]
  %v198 = vld [vmem:[%s1 + $0x4a0] sm:$0xff]
  %v199 = vld [vmem:[%s1 + $0x4a8] sm:$0xff]
  %v200 = vld [vmem:[%s1 + $0x4b0] sm:$0xff]
  %v201 = vld [vmem:[%s1 + $0x4b8] sm:$0xff]
  %v202 = vld [vmem:[%s1 + $0x4c0] sm:$0xff]
  %v203 = vld [vmem:[%s1 + $0x4c8] sm:$0xff]
  %v204 = vld [vmem:[%s1 + $0x4d0] sm:$0xff]
  %v205 = vld [vmem:[%s1 + $0x4d8] sm:$0xff]
  %v206 = vld [vmem:[%s1 + $0x4e0] sm:$0xff]
  %v207 = vld [vmem:[%s1 + $0x4e8] sm:$0xff]
  %v208 = vld [vmem:[%s1 + $0x4f0] sm:$0xff]
  %v209 = vld [vmem:[%s1 + $0x4f8] sm:$0xff]
  %v210 = vld [vmem:[%s1 + $0x500] sm:$0xff]
  %v211 = vld [vmem:[%s1 + $0x508] sm:$0xff]
  %v212 = vld [vmem:[%s1 + $0x510] sm:$0xff]
  %v213 = vld [vmem:[%s1 + $0x518] sm:$0xff]
  %v214 = vld [vmem:[%s1 + $0x520] sm:$0xff]
  %v215 = vld [vmem:[%s1 + $0x528] sm:$0xff]
  %v216 = vld [vmem:[%s1 + $0x530] sm:$0xff]
  %v217 = vld [vmem:[%s1 + $0x538] sm:$0xff]
  %v218 = vld [vmem:[%s1 + $0x540] sm:$0xff]
  %v219 = vld [vmem:[%s1 + $0x548] sm:$0xff]
  %v220 = vld [vmem:[%s1 + $0x550] sm:$0xff]
  %v221 = vld [vmem:[%s1 + $0x558] sm:$0xff]
  %v222 = vld [vmem:[%s1 + $0x560] sm:$0xff]
  %v223 = vld [vmem:[%s1 + $0x568] sm:$0xff]
  %v224 = vld [vmem:[%s1 + $0x570] sm:$0xff]
  %v225 = vld [vmem:[%s1 + $0x578] sm:$0xff]
  %v226 = vld [vmem:[%s1 + $0x580] sm:$0xff]
  %v227 = vld [vmem:[%s1 + $0x588] sm:$0xff]
  %v228 = vld [vmem:[%s1 + $0x590] sm:$0xff]
  %v229 = vld [vmem:[%s1 + $0x598] sm:$0xff]
  %v230 = vld [vmem:[%s1 + $0x5a0] sm:$0xff]
  %v231 = vld [vmem:[%s1 + $0x5a8] sm:$0xff]
  %v232 = vld [vmem:[%s1 + $0x5b0] sm:$0xff]
  %v233 = vld [vmem:[%s1 + $0x5b8] sm:$0xff]
  %v234 = vld [vmem:[%s1 + $0x5c0] sm:$0xff]
  %v235 = vld [vmem:[%s1 + $0x5c8] sm:$0xff]
  %v236 = vld [vmem:[%s1 + $0x5d0] sm:$0xff]
  %v237 = vld [vmem:[%s1 + $0x5d8] sm:$0xff]
  %v238 = vld [vmem:[%s1 + $0x5e0] sm:$0xff]
  %v239 = vld [vmem:[%s1 + $0x5e8] sm:$0xff]
  %v240 = vld [vmem:[%s1 + $0x5f0] sm:$0xff]
  %v241 = vld [vmem:[%s1 + $0x5f8] sm:$0xff]
  %v242 = vld [vmem:[%s1 + $0x600] sm:$0xff]
  %v243 = vld [vmem:[%s1 + $0x608] sm:$0xff]
  %v244 = vld [vmem:[%s1 + $0x610] sm:$0xff]
  %v245 = vld [vmem:[%s1 + $0x618] sm:$0xff]
  %v246 = vld [vmem:[%s1 + $0x620] sm:$0xff]
  %v247 = vld [vmem:[%s1 + $0x628] sm:$0xff]
  %v248 = vld [vmem:[%s1 + $0x630] sm:$0xff]
  %v249 = vld [vmem:[%s1 + $0x638] sm:$0xff]
  %v250 = vld [vmem:[%s1 + $0x640] sm:$0xff]
  %v251 = vld [vmem:[%s1 + $0x648] sm:$0xff]
  %v252 = vld [vmem:[%s1 + $0x650] sm:$0xff]
  %v253 = vld [vmem:[%s1 + $0x658] sm:$0xff]
  %v254 = vld [vmem:[%s1 + $0x660] sm:$0xff]
  %v255 = vld [vmem:[%s1 + $0x668] sm:$0xff]
  %v256 = vld [vmem:[%s1 + $0x670] sm:$0xff]
  %v257 = vld [vmem:[%s1 + $0x678] sm:$0xff]
  %v258 = vld [vmem:[%s1 + $0x680] sm:$0xff]
  %v259 = vld [vmem:[%s1 + $0x688] sm:$0xff]
  %v260 = vld [vmem:[%s1 + $0x690] sm:$0xff]
  %v261 = vld [vmem:[%s1 + $0x698] sm:$0xff]
  %v262 = vld [vmem:[%s1 + $0x6a0] sm:$0xff]
  %v263 = vld [vmem:[%s1 + $0x6a8] sm:$0xff]
  %v264 = vld [vmem:[%s1 + $0x6b0] sm:$0xff]
  %v265 = vld [vmem:[%s1 + $0x6b8] sm:$0xff]
  %v266 = vld [vmem:[%s1 + $0x6c0] sm:$0xff]
  %v267 = vld [vmem:[%s1 + $0x6c8] sm:$0xff]
  %v268 = vld [vmem:[%s1 + $0x6d0] sm:$0xff]
  %v269 = vld [vmem:[%s1 + $0x6d8] sm:$0xff]
  %v270 = vld [vmem:[%s1 + $0x6e0] sm:$0xff]
  %v271 = vld [vmem:[%s1 + $0x6e8] sm:$0xff]
  %v272 = vld [vmem:[%s1 + $0x6f0] sm:$0xff]
  %v273 = vld [vmem:[%s1 + $0x6f8] sm:$0xff]
  %v274 = vld [vmem:[%s1 + $0x700] sm:$0xff]
  %v275 = vld [vmem:[%s1 + $0x708] sm:$0xff]
  %v276 = vld [vmem:[%s1 + $0x710] sm:$0xff]
  %v277 = vld [vmem:[%s1 + $0x718] sm:$0xff]
  %v278 = vld [vmem:[%s1 + $0x720] sm:$0xff]
  %v279 = vld [vmem:[%s1 + $0x728] sm:$0xff]
  %v280 = vld [vmem:[%s1 + $0x730] sm:$0xff]
  %v281 = vld [vmem:[%s1 + $0x738] sm:$0xff]
  %v282 = vld [vmem:[%s1 + $0x740] sm:$0xff]
  %v283 = vld [vmem:[%s1 + $0x748] sm:$0xff]
  %v284 = vld [vmem:[%s1 + $0x750] sm:$0xff]
  %v285 = vld [vmem:[%s1 + $0x758] sm:$0xff]
  %v286 = vld [vmem:[%s1 + $0x760] sm:$0xff]
  %v287 = vld [vmem:[%s1 + $0x768] sm:$0xff]
  %v288 = vld [vmem:[%s1 + $0x770] sm:$0xff]
  %v289 = vld [vmem:[%s1 + $0x778] sm:$0xff]
  %v290 = vld [vmem:[%s1 + $0x780] sm:$0xff]
  %v291 = vld [vmem:[%s1 + $0x788] sm:$0xff]
  %v292 = vld [vmem:[%s1 + $0x790] sm:$0xff]
  %v293 = vld [vmem:[%s1 + $0x798] sm:$0xff]
  %v294 = vld [vmem:[%s1 + $0x7a0] sm:$0xff]
  %v295 = vld [vmem:[%s1 + $0x7a8] sm:$0xff]
  %v296 = vld [vmem:[%s1 + $0x7b0] sm:$0xff]
  %v297 = vld [vmem:[%s1 + $0x7b8] sm:$0xff]
  %v298 = vld [vmem:[%s1 + $0x7c0] sm:$0xff]
  %v299 = vld [vmem:[%s1 + $0x7c8] sm:$0xff]
  %v300 = vld [vmem:[%s1 + $0x7d0] sm:$0xff]
  %v301 = vld [vmem:[%s1 + $0x7d8] sm:$0xff]
  %v302 = vld [vmem:[%s1 + $0x7e0] sm:$0xff]
  %v303 = vld [vmem:[%s1 + $0x7e8] sm:$0xff]
  %v304 = vld [vmem:[%s1 + $0x7f0] sm:$0xff]
  %v305 = vld [vmem:[%s1 + $0x7f8] sm:$0xff]
  %v306 = vld [vmem:[%s1 + $0x800] sm:$0xff]
  %v307 = vld [vmem:[%s1 + $0x808] sm:$0xff]
  %v308 = vld [vmem:[%s1 + $0x810] sm:$0xff]
  %v309 = vld [vmem:[%s1 + $0x818] sm:$0xff]
  %v310 = vld [vmem:[%s1 + $0x820] sm:$0xff]
  %v311 = vld [vmem:[%s1 + $0x828] sm:$0xff]
  %v312 = vld [vmem:[%s1 + $0x830] sm:$0xff]
  %v313 = vld [vmem:[%s1 + $0x838] sm:$0xff]
  %v314 = vld [vmem:[%s1 + $0x840] sm:$0xff]
  %v315 = vld [vmem:[%s1 + $0x848] sm:$0xff]
  %v316 = vld [vmem:[%s1 + $0x850] sm:$0xff]
  %v317 = vld [vmem:[%s1 + $0x858] sm:$0xff]
  %v318 = vld [vmem:[%s1 + $0x860] sm:$0xff]
  %v319 = vld [vmem:[%s1 + $0x868] sm:$0xff]
  %v320 = vld [vmem:[%s1 + $0x870] sm:$0xff]
  %v321 = vld [vmem:[%s1 + $0x878] sm:$0xff]
  %v322 = vld [vmem:[%s1 + $0x880] sm:$0xff]
  %v323 = vld [vmem:[%s1 + $0x888] sm:$0xff]
  %v324 = vld [vmem:[%s1 + $0x890] sm:$0xff]
  %v325 = vld [vmem:[%s1 + $0x898] sm:$0xff]
  %v326 = vld [vmem:[%s1 + $0x8a0] sm:$0xff]
  %v327 = vld [vmem:[%s1 + $0x8a8] sm:$0xff]
  %v328 = vld [vmem:[%s1 + $0x8b0] sm:$0xff]
  %v329 = vld [vmem:[%s1 + $0x8b8] sm:$0xff]
  %v330 = vld [vmem:[%s1 + $0x8c0] sm:$0xff]
  %v331 = vld [vmem:[%s1 + $0x8c8] sm:$0xff]
  %v332 = vld [vmem:[%s1 + $0x8d0] sm:$0xff]
  %v333 = vld [vmem:[%s1 + $0x8d8] sm:$0xff]
  %v334 = vld [vmem:[%s1 + $0x8e0] sm:$0xff]
  %v335 = vld [vmem:[%s1 + $0x8e8] sm:$0xff]
  %v336 = vld [vmem:[%s1 + $0x8f0] sm:$0xff]
  %v337 = vld [vmem:[%s1 + $0x8f8] sm:$0xff]
  %v338 = vld [vmem:[%s1 + $0x900] sm:$0xff]
  %v339 = vld [vmem:[%s1 + $0x908] sm:$0xff]
  %v340 = vld [vmem:[%s1 + $0x910] sm:$0xff]
  %v341 = vld [vmem:[%s1 + $0x918] sm:$0xff]
  %v342 = vld [vmem:[%s1 + $0x920] sm:$0xff]
  %v343 = vld [vmem:[%s1 + $0x928] sm:$0xff]
  %v344 = vld [vmem:[%s1 + $0x930] sm:$0xff]
  %v345 = vld [vmem:[%s1 + $0x938] sm:$0xff]
  %v346 = vld [vmem:[%s1 + $0x940] sm:$0xff]
  %v347 = vld [vmem:[%s1 + $0x948] sm:$0xff]
  %v348 = vld [vmem:[%s1 + $0x950] sm:$0xff]
  %v349 = vld [vmem:[%s1 + $0x958] sm:$0xff]
  %v350 = vld [vmem:[%s1 + $0x960] sm:$0xff]
  %v351 = vld [vmem:[%s1 + $0x968] sm:$0xff]
  %v352 = vld [vmem:[%s1 + $0x970] sm:$0xff]
  %v353 = vld [vmem:[%s1 + $0x978] sm:$0xff]
  %v354 = vld [vmem:[%s1 + $0x980] sm:$0xff]
  %v355 = vld [vmem:[%s1 + $0x988] sm:$0xff]
  %v356 = vld [vmem:[%s1 + $0x990] sm:$0xff]
  %v357 = vld [vmem:[%s1 + $0x998] sm:$0xff]
  %v358 = vld [vmem:[%s1 + $0x9a0] sm:$0xff]
  %v359 = vld [vmem:[%s1 + $0x9a8] sm:$0xff]
  %v360 = vld [vmem:[%s1 + $0x9b0] sm:$0xff]
  %v361 = vld [vmem:[%s1 + $0x9b8] sm:$0xff]
  %v362 = vld [vmem:[%s1 + $0x9c0] sm:$0xff]
  %v363 = vld [vmem:[%s1 + $0x9c8] sm:$0xff]
  %v364 = vld [vmem:[%s1 + $0x9d0] sm:$0xff]
  %v365 = vld [vmem:[%s1 + $0x9d8] sm:$0xff]
  %v366 = vld [vmem:[%s1 + $0x9e0] sm:$0xff]
  %v367 = vld [vmem:[%s1 + $0x9e8] sm:$0xff]
  %v368 = vld [vmem:[%s1 + $0x9f0] sm:$0xff]
  %v369 = vld [vmem:[%s1 + $0x9f8] sm:$0xff]
  %v370 = vld [vmem:[%s1 + $0xa00] sm:$0xff]
  %v371 = vld [vmem:[%s1 + $0xa08] sm:$0xff]
  %v372 = vld [vmem:[%s1 + $0xa10] sm:$0xff]
  %v373 = vld [vmem:[%s1 + $0xa18] sm:$0xff]
  %v374 = vld [vmem:[%s1 + $0xa20] sm:$0xff]
  %v375 = vld [vmem:[%s1 + $0xa28] sm:$0xff]
  %v376 = vld [vmem:[%s1 + $0xa30] sm:$0xff]
  %v377 = vld [vmem:[%s1 + $0xa38] sm:$0xff]
  %v378 = vld [vmem:[%s1 + $0xa40] sm:$0xff]
  %v379 = vld [vmem:[%s1 + $0xa48] sm:$0xff]
  %v380 = vld [vmem:[%s1 + $0xa50] sm:$0xff]
  %v381 = vld [vmem:[%s1 + $0xa58] sm:$0xff]
  %v382 = vld [vmem:[%s1 + $0xa60] sm:$0xff]
  %v383 = vld [vmem:[%s1 + $0xa68] sm:$0xff]
  %v384 = vld [vmem:[%s1 + $0xa70] sm:$0xff]
  %v385 = vld [vmem:[%s1 + $0xa78] sm:$0xff]
  %v386 = vld [vmem:[%s1 + $0xa80] sm:$0xff]
  %v387 = vld [vmem:[%s1 + $0xa88] sm:$0xff]
  %v388 = vld [vmem:[%s1 + $0xa90] sm:$0xff]
  %v389 = vld [vmem:[%s1 + $0xa98] sm:$0xff]
  %v390 = vld [vmem:[%s1 + $0xaa0] sm:$0xff]
  %v391 = vld [vmem:[%s1 + $0xaa8] sm:$0xff]
  %v392 = vld [vmem:[%s1 + $0xab0] sm:$0xff]
  %v393 = vld [vmem:[%s1 + $0xab8] sm:$0xff]
  %v394 = vld [vmem:[%s1 + $0xac0] sm:$0xff]
  %v395 = vld [vmem:[%s1 + $0xac8] sm:$0xff]
  %v396 = vld [vmem:[%s1 + $0xad0] sm:$0xff]
  %v397 = vld [vmem:[%s1 + $0xad8] sm:$0xff]
  %v398 = vld [vmem:[%s1 + $0xae0] sm:$0xff]
  %v399 = vld [vmem:[%s1 + $0xae8] sm:$0xff]
  %v400 = vld [vmem:[%s1 + $0xaf0] sm:$0xff]
  %v401 = vld [vmem:[%s1 + $0xaf8] sm:$0xff]
  %v402 = vld [vmem:[%s1 + $0xb00] sm:$0xff]
  %v403 = vld [vmem:[%s1 + $0xb08] sm:$0xff]
  %v404 = vld [vmem:[%s1 + $0xb10] sm:$0xff]
  %v405 = vld [vmem:[%s1 + $0xb18] sm:$0xff]
  %v406 = vld [vmem:[%s1 + $0xb20] sm:$0xff]
  %v407 = vld [vmem:[%s1 + $0xb28] sm:$0xff]
  %v408 = vld [vmem:[%s1 + $0xb30] sm:$0xff]
  %v409 = vld [vmem:[%s1 + $0xb38] sm:$0xff]
  %v410 = vld [vmem:[%s1 + $0xb40] sm:$0xff]
  %v411 = vld [vmem:[%s1 + $0xb48] sm:$0xff]
  %v412 = vld [vmem:[%s1 + $0xb50] sm:$0xff]
  %v413 = vld [vmem:[%s1 + $0xb58] sm:$0xff]
  %v414 = vld [vmem:[%s1 + $0xb60] sm:$0xff]
  %v415 = vld [vmem:[%s1 + $0xb68] sm:$0xff]
  %v416 = vld [vmem:[%s1 + $0xb70] sm:$0xff]
  %v417 = vld [vmem:[%s1 + $0xb78] sm:$0xff]
  %v418 = vld [vmem:[%s1 + $0xb80] sm:$0xff]
  %v419 = vld [vmem:[%s1 + $0xb88] sm:$0xff]
  %v420 = vld [vmem:[%s1 + $0xb90] sm:$0xff]
  %v421 = vld [vmem:[%s1 + $0xb98] sm:$0xff]
  %v422 = vld [vmem:[%s1 + $0xba0] sm:$0xff]
  %v423 = vld [vmem:[%s1 + $0xba8] sm:$0xff]
  %v424 = vld [vmem:[%s1 + $0xbb0] sm:$0xff]
  %v425 = vld [vmem:[%s1 + $0xbb8] sm:$0xff]
  %v426 = vld [vmem:[%s1 + $0xbc0] sm:$0xff]
  %v427 = vld [vmem:[%s1 + $0xbc8] sm:$0xff]
  %v428 = vld [vmem:[%s1 + $0xbd0] sm:$0xff]
  %v429 = vld [vmem:[%s1 + $0xbd8] sm:$0xff]
  %v430 = vld [vmem:[%s1 + $0xbe0] sm:$0xff]
  %v431 = vld [vmem:[%s1 + $0xbe8] sm:$0xff]
  %v432 = vld [vmem:[%s1 + $0xbf0] sm:$0xff]
  %v433 = vld [vmem:[%s1 + $0xbf8] sm:$0xff]
  %v434 = vld [vmem:[%s1 + $0xc00] sm:$0xff]
  %v435 = vld [vmem:[%s1 + $0xc08] sm:$0xff]
  %v436 = vld [vmem:[%s1 + $0xc10] sm:$0xff]
  %v437 = vld [vmem:[%s1 + $0xc18] sm:$0xff]
  %v438 = vld [vmem:[%s1 + $0xc20] sm:$0xff]
  %v439 = vld [vmem:[%s1 + $0xc28] sm:$0xff]
  %v440 = vld [vmem:[%s1 + $0xc30] sm:$0xff]
  %v441 = vld [vmem:[%s1 + $0xc38] sm:$0xff]
  %v442 = vld [vmem:[%s1 + $0xc40] sm:$0xff]
  %v443 = vld [vmem:[%s1 + $0xc48] sm:$0xff]
  %v444 = vld [vmem:[%s1 + $0xc50] sm:$0xff]
  %v445 = vld [vmem:[%s1 + $0xc58] sm:$0xff]
  %v446 = vld [vmem:[%s1 + $0xc60] sm:$0xff]
  %v447 = vld [vmem:[%s1 + $0xc68] sm:$0xff]
  %v448 = vld [vmem:[%s1 + $0xc70] sm:$0xff]
  %v449 = vld [vmem:[%s1 + $0xc78] sm:$0xff]
  %v450 = vld [vmem:[%s1 + $0xc80] sm:$0xff]
  %v451 = vld [vmem:[%s1 + $0xc88] sm:$0xff]
  %v452 = vld [vmem:[%s1 + $0xc90] sm:$0xff]
  %v453 = vld [vmem:[%s1 + $0xc98] sm:$0xff]
  %v454 = vld [vmem:[%s1 + $0xca0] sm:$0xff]
  %v455 = vld [vmem:[%s1 + $0xca8] sm:$0xff]
  %v456 = vld [vmem:[%s1 + $0xcb0] sm:$0xff]
  %v457 = vld [vmem:[%s1 + $0xcb8] sm:$0xff]
  %v458 = vld [vmem:[%s1 + $0xcc0] sm:$0xff]
  %v459 = vld [vmem:[%s1 + $0xcc8] sm:$0xff]
  %v460 = vld [vmem:[%s1 + $0xcd0] sm:$0xff]
  %v461 = vld [vmem:[%s1 + $0xcd8] sm:$0xff]
  %v462 = vld [vmem:[%s1 + $0xce0] sm:$0xff]
  %v463 = vld [vmem:[%s1 + $0xce8] sm:$0xff]
  %v464 = vld [vmem:[%s1 + $0xcf0] sm:$0xff]
  %v465 = vld [vmem:[%s1 + $0xcf8] sm:$0xff]
  %v466 = vld [vmem:[%s1 + $0xd00] sm:$0xff]
  %v467 = vld [vmem:[%s1 + $0xd08] sm:$0xff]
  %v468 = vld [vmem:[%s1 + $0xd10] sm:$0xff]
  %v469 = vld [vmem:[%s1 + $0xd18] sm:$0xff]
  %v470 = vld [vmem:[%s1 + $0xd20] sm:$0xff]
  %v471 = vld [vmem:[%s1 + $0xd28] sm:$0xff]
  %v472 = vld [vmem:[%s1 + $0xd30] sm:$0xff]
  %v473 = vld [vmem:[%s1 + $0xd38] sm:$0xff]
  %v474 = vld [vmem:[%s1 + $0xd40] sm:$0xff]
  %v475 = vld [vmem:[%s1 + $0xd48] sm:$0xff]
  %v476 = vld [vmem:[%s1 + $0xd50] sm:$0xff]
  %v477 = vld [vmem:[%s1 + $0xd58] sm:$0xff]
  %v478 = vld [vmem:[%s1 + $0xd60] sm:$0xff]
  %v479 = vld [vmem:[%s1 + $0xd68] sm:$0xff]
  %v480 = vld [vmem:[%s1 + $0xd70] sm:$0xff]
  %v481 = vld [vmem:[%s1 + $0xd78] sm:$0xff]
  %v482 = vld [vmem:[%s1 + $0xd80] sm:$0xff]
  %v483 = vld [vmem:[%s1 + $0xd88] sm:$0xff]
  %v484 = vld [vmem:[%s1 + $0xd90] sm:$0xff]
  %v485 = vld [vmem:[%s1 + $0xd98] sm:$0xff]
  %v486 = vld [vmem:[%s1 + $0xda0] sm:$0xff]
  %v487 = vld [vmem:[%s1 + $0xda8] sm:$0xff]
  %v488 = vld [vmem:[%s1 + $0xdb0] sm:$0xff]
  %v489 = vld [vmem:[%s1 + $0xdb8] sm:$0xff]
  %v490 = vld [vmem:[%s1 + $0xdc0] sm:$0xff]
  %v491 = vld [vmem:[%s1 + $0xdc8] sm:$0xff]
  %v492 = vld [vmem:[%s1 + $0xdd0] sm:$0xff]
  %v493 = vld [vmem:[%s1 + $0xdd8] sm:$0xff]
  %v494 = vld [vmem:[%s1 + $0xde0] sm:$0xff]
  %v495 = vld [vmem:[%s1 + $0xde8] sm:$0xff]
  %v496 = vld [vmem:[%s1 + $0xdf0] sm:$0xff]
  %v497 = vld [vmem:[%s1 + $0xdf8] sm:$0xff]
  %v498 = vld [vmem:[%s1 + $0xe00] sm:$0xff]
  %v499 = vld [vmem:[%s1 + $0xe08] sm:$0xff]
  %v500 = vld [vmem:[%s1 + $0xe10] sm:$0xff]
  %v501 = vld [vmem:[%s1 + $0xe18] sm:$0xff]
  %v502 = vld [vmem:[%s1 + $0xe20] sm:$0xff]
  %v503 = vld [vmem:[%s1 + $0xe28] sm:$0xff]
  %v504 = vld [vmem:[%s1 + $0xe30] sm:$0xff]
  %v505 = vld [vmem:[%s1 + $0xe38] sm:$0xff]
  %v506 = vld [vmem:[%s1 + $0xe40] sm:$0xff]
  %v507 = vld [vmem:[%s1 + $0xe48] sm:$0xff]
  %v508 = vld [vmem:[%s1 + $0xe50] sm:$0xff]
  %v509 = vld [vmem:[%s1 + $0xe58] sm:$0xff]
  %v510 = vld [vmem:[%s1 + $0xe60] sm:$0xff]
  %v511 = vld [vmem:[%s1 + $0xe68] sm:$0xff]
  %v512 = vld [vmem:[%s1 + $0xe70] sm:$0xff]
  %v513 = vld [vmem:[%s1 + $0xe78] sm:$0xff]
  %v514 = vld [vmem:[%s1 + $0xe80] sm:$0xff]
  %v515 = vld [vmem:[%s1 + $0xe88] sm:$0xff]
  %v516 = vld [vmem:[%s1 + $0xe90] sm:$0xff]
  %v517 = vld [vmem:[%s1 + $0xe98] sm:$0xff]
  %v518 = vld [vmem:[%s1 + $0xea0] sm:$0xff]
  %v519 = vld [vmem:[%s1 + $0xea8] sm:$0xff]
  %v520 = vld [vmem:[%s1 + $0xeb0] sm:$0xff]
  %v521 = vld [vmem:[%s1 + $0xeb8] sm:$0xff]
  %v522 = vld [vmem:[%s1 + $0xec0] sm:$0xff]
  %v523 = vld [vmem:[%s1 + $0xec8] sm:$0xff]
  %v524 = vld [vmem:[%s1 + $0xed0] sm:$0xff]
  %v525 = vld [vmem:[%s1 + $0xed8] sm:$0xff]
  %v526 = vld [vmem:[%s1 + $0xee0] sm:$0xff]
  %v527 = vld [vmem:[%s1 + $0xee8] sm:$0xff]
  %v528 = vld [vmem:[%s1 + $0xef0] sm:$0xff]
  %v529 = vld [vmem:[%s1 + $0xef8] sm:$0xff]
  %v530 = vld [vmem:[%s1 + $0xf00] sm:$0xff]
  %v531 = vld [vmem:[%s1 + $0xf08] sm:$0xff]
  %v532 = vld [vmem:[%s1 + $0xf10] sm:$0xff]
  %v533 = vld [vmem:[%s1 + $0xf18] sm:$0xff]
  %v534 = vld [vmem:[%s1 + $0xf20] sm:$0xff]
  %v535 = vld [vmem:[%s1 + $0xf28] sm:$0xff]
  %v536 = vld [vmem:[%s1 + $0xf30] sm:$0xff]
  %v537 = vld [vmem:[%s1 + $0xf38] sm:$0xff]
  %v538 = vld [vmem:[%s1 + $0xf40] sm:$0xff]
  %v539 = vld [vmem:[%s1 + $0xf48] sm:$0xff]
  %v540 = vld [vmem:[%s1 + $0xf50] sm:$0xff]
  %v541 = vld [vmem:[%s1 + $0xf58] sm:$0xff]
  %v542 = vld [vmem:[%s1 + $0xf60] sm:$0xff]
  %v543 = vld [vmem:[%s1 + $0xf68] sm:$0xff]
  %v544 = vld [vmem:[%s1 + $0xf70] sm:$0xff]
  %v545 = vld [vmem:[%s1 + $0xf78] sm:$0xff]
  %v546 = vld [vmem:[%s1 + $0xf80] sm:$0xff]
  %v547 = vld [vmem:[%s1 + $0xf88] sm:$0xff]
  %v548 = vld [vmem:[%s1 + $0xf90] sm:$0xff]
  %v549 = vld [vmem:[%s1 + $0xf98] sm:$0xff]
  %v550 = vld [vmem:[%s1 + $0xfa0] sm:$0xff]
  %v551 = vld [vmem:[%s1 + $0xfa8] sm:$0xff]
  %v552 = vld [vmem:[%s1 + $0xfb0] sm:$0xff]
  %v553 = vld [vmem:[%s1 + $0xfb8] sm:$0xff]
  %v554 = vld [vmem:[%s1 + $0xfc0] sm:$0xff]
  %v555 = vld [vmem:[%s1 + $0xfc8] sm:$0xff]
  %v556 = vld [vmem:[%s1 + $0xfd0] sm:$0xff]
  %v557 = vld [vmem:[%s1 + $0xfd8] sm:$0xff]
  %v558 = vld [vmem:[%s1 + $0xfe0] sm:$0xff]
  %v559 = vld [vmem:[%s1 + $0xfe8] sm:$0xff]
  %v560 = vld [vmem:[%s1 + $0xff0] sm:$0xff]
  %v561 = vld [vmem:[%s1 + $0xff8] sm:$0xff]
  %v562 = vld [vmem:[%s1 + $0x1000] sm:$0xff]
  %v563 = vld [vmem:[%s1 + $0x1008] sm:$0xff]
  %v564 = vld [vmem:[%s1 + $0x1010] sm:$0xff]
  %v565 = vld [vmem:[%s1 + $0x1018] sm:$0xff]
  %v566 = vld [vmem:[%s1 + $0x1020] sm:$0xff]
  %v567 = vld [vmem:[%s1 + $0x1028] sm:$0xff]
  %v568 = vld [vmem:[%s1 + $0x1030] sm:$0xff]
  %v569 = vld [vmem:[%s1 + $0x1038] sm:$0xff]
  %v570 = vld [vmem:[%s1 + $0x1040] sm:$0xff]
  %v571 = vld [vmem:[%s1 + $0x1048] sm:$0xff]
  %v572 = vld [vmem:[%s1 + $0x1050] sm:$0xff]
  %v573 = vld [vmem:[%s1 + $0x1058] sm:$0xff]
  %v574 = vld [vmem:[%s1 + $0x1060] sm:$0xff]
  %v575 = vld [vmem:[%s1 + $0x1068] sm:$0xff]
  %v576 = vld [vmem:[%s1 + $0x1070] sm:$0xff]
  %v577 = vld [vmem:[%s1 + $0x1078] sm:$0xff]
  %v578 = vld [vmem:[%s1 + $0x1080] sm:$0xff]
  %v579 = vld [vmem:[%s1 + $0x1088] sm:$0xff]
  %v580 = vld [vmem:[%s1 + $0x1090] sm:$0xff]
  %v581 = vld [vmem:[%s1 + $0x1098] sm:$0xff]
  %v582 = vld [vmem:[%s1 + $0x10a0] sm:$0xff]
  %v583 = vld [vmem:[%s1 + $0x10a8] sm:$0xff]
  %v584 = vld [vmem:[%s1 + $0x10b0] sm:$0xff]
  %v585 = vld [vmem:[%s1 + $0x10b8] sm:$0xff]
  %v586 = vld [vmem:[%s1 + $0x10c0] sm:$0xff]
  %v587 = vld [vmem:[%s1 + $0x10c8] sm:$0xff]
  %v588 = vld [vmem:[%s1 + $0x10d0] sm:$0xff]
  %v589 = vld [vmem:[%s1 + $0x10d8] sm:$0xff]
  %v590 = vld [vmem:[%s1 + $0x10e0] sm:$0xff]
  %v591 = vld [vmem:[%s1 + $0x10e8] sm:$0xff]
  %v592 = vld [vmem:[%s1 + $0x10f0] sm:$0xff]
  %v593 = vld [vmem:[%s1 + $0x10f8] sm:$0xff]
  %v594 = vld [vmem:[%s1 + $0x1100] sm:$0xff]
  %v595 = vld [vmem:[%s1 + $0x1108] sm:$0xff]
  %v596 = vld [vmem:[%s1 + $0x1110] sm:$0xff]
  %v597 = vld [vmem:[%s1 + $0x1118] sm:$0xff]
  %v598 = vld [vmem:[%s1 + $0x1120] sm:$0xff]
  %v599 = vld [vmem:[%s1 + $0x1128] sm:$0xff]
  %v600 = vld [vmem:[%s1 + $0x1130] sm:$0xff]
  %v601 = vld [vmem:[%s1 + $0x1138] sm:$0xff]
  %v602 = vld [vmem:[%s1 + $0x1140] sm:$0xff]
  %v603 = vld [vmem:[%s1 + $0x1148] sm:$0xff]
  %v604 = vld [vmem:[%s1 + $0x1150] sm:$0xff]
  %v605 = vld [vmem:[%s1 + $0x1158] sm:$0xff]
  %v606 = vld [vmem:[%s1 + $0x1160] sm:$0xff]
  %v607 = vld [vmem:[%s1 + $0x1168] sm:$0xff]
  %v608 = vld [vmem:[%s1 + $0x1170] sm:$0xff]
  %v609 = vld [vmem:[%s1 + $0x1178] sm:$0xff]
  %v610 = vld [vmem:[%s1 + $0x1180] sm:$0xff]
  %v611 = vld [vmem:[%s1 + $0x1188] sm:$0xff]
  %v612 = vld [vmem:[%s1 + $0x1190] sm:$0xff]
  %v613 = vld [vmem:[%s1 + $0x1198] sm:$0xff]
  %v614 = vld [vmem:[%s1 + $0x11a0] sm:$0xff]
  %v615 = vld [vmem:[%s1 + $0x11a8] sm:$0xff]
  %v616 = vld [vmem:[%s1 + $0x11b0] sm:$0xff]
  %v617 = vld [vmem:[%s1 + $0x11b8] sm:$0xff]
  %v618 = vld [vmem:[%s1 + $0x11c0] sm:$0xff]
  %v619 = vld [vmem:[%s1 + $0x11c8] sm:$0xff]
  %v620 = vld [vmem:[%s1 + $0x11d0] sm:$0xff]
  %v621 = vld [vmem:[%s1 + $0x11d8] sm:$0xff]
  %v622 = vld [vmem:[%s1 + $0x11e0] sm:$0xff]
  %v623 = vld [vmem:[%s1 + $0x11e8] sm:$0xff]
  %v624 = vld [vmem:[%s1 + $0x11f0] sm:$0xff]
  %v625 = vld [vmem:[%s1 + $0x11f8] sm:$0xff]
  %v626 = vld [vmem:[%s1 + $0x1200] sm:$0xff]
  %v627 = vld [vmem:[%s1 + $0x1208] sm:$0xff]
  %v628 = vld [vmem:[%s1 + $0x1210] sm:$0xff]
  %v629 = vld [vmem:[%s1 + $0x1218] sm:$0xff]
  %v630 = vld [vmem:[%s1 + $0x1220] sm:$0xff]
  %v631 = vld [vmem:[%s1 + $0x1228] sm:$0xff]
  %v632 = vld [vmem:[%s1 + $0x1230] sm:$0xff]
  %v633 = vld [vmem:[%s1 + $0x1238] sm:$0xff]
  %v634 = vld [vmem:[%s1 + $0x1240] sm:$0xff]
  %v635 = vld [vmem:[%s1 + $0x1248] sm:$0xff]
  %v636 = vld [vmem:[%s1 + $0x1250] sm:$0xff]
  %v637 = vld [vmem:[%s1 + $0x1258] sm:$0xff]
  %v638 = vld [vmem:[%s1 + $0x1260] sm:$0xff]
  %v639 = vld [vmem:[%s1 + $0x1268] sm:$0xff]
  %v640 = vld [vmem:[%s1 + $0x1270] sm:$0xff]
  %v641 = vld [vmem:[%s1 + $0x1278] sm:$0xff]
  %v642 = vld [vmem:[%s1 + $0x1280] sm:$0xff]
  %v643 = vld [vmem:[%s1 + $0x1288] sm:$0xff]
  %v644 = vld [vmem:[%s1 + $0x1290] sm:$0xff]
  %v645 = vld [vmem:[%s1 + $0x1298] sm:$0xff]
  %v646 = vld [vmem:[%s1 + $0x12a0] sm:$0xff]
  %v647 = vld [vmem:[%s1 + $0x12a8] sm:$0xff]
  %v648 = vld [vmem:[%s1 + $0x12b0] sm:$0xff]
  %v649 = vld [vmem:[%s1 + $0x12b8] sm:$0xff]
  %v650 = vld [vmem:[%s1 + $0x12c0] sm:$0xff]
  %v651 = vld [vmem:[%s1 + $0x12c8] sm:$0xff]
  %v652 = vld [vmem:[%s1 + $0x12d0] sm:$0xff]
  %v653 = vld [vmem:[%s1 + $0x12d8] sm:$0xff]
  %v654 = vld [vmem:[%s1 + $0x12e0] sm:$0xff]
  %v655 = vld [vmem:[%s1 + $0x12e8] sm:$0xff]
  %v656 = vld [vmem:[%s1 + $0x12f0] sm:$0xff]
  %v657 = vld [vmem:[%s1 + $0x12f8] sm:$0xff]
  %v658 = vld [vmem:[%s1 + $0x1300] sm:$0xff]
  %v659 = vld [vmem:[%s1 + $0x1308] sm:$0xff]
  %v660 = vld [vmem:[%s1 + $0x1310] sm:$0xff]
  %v661 = vld [vmem:[%s1 + $0x1318] sm:$0xff]
  %v662 = vld [vmem:[%s1 + $0x1320] sm:$0xff]
  %v663 = vld [vmem:[%s1 + $0x1328] sm:$0xff]
  %v664 = vld [vmem:[%s1 + $0x1330] sm:$0xff]
  %v665 = vld [vmem:[%s1 + $0x1338] sm:$0xff]
  %v666 = vld [vmem:[%s1 + $0x1340] sm:$0xff]
  %v667 = vld [vmem:[%s1 + $0x1348] sm:$0xff]
  %v668 = vld [vmem:[%s1 + $0x1350] sm:$0xff]
  %v669 = vld [vmem:[%s1 + $0x1358] sm:$0xff]
  %v670 = vld [vmem:[%s1 + $0x1360] sm:$0xff]
  %v671 = vld [vmem:[%s1 + $0x1368] sm:$0xff]
  %v672 = vld [vmem:[%s1 + $0x1370] sm:$0xff]
  %v673 = vld [vmem:[%s1 + $0x1378] sm:$0xff]
  %v674 = vld [vmem:[%s1 + $0x1380] sm:$0xff]
  %v675 = vld [vmem:[%s1 + $0x1388] sm:$0xff]
  %v676 = vld [vmem:[%s1 + $0x1390] sm:$0xff]
  %v677 = vld [vmem:[%s1 + $0x1398] sm:$0xff]
  %v678 = vld [vmem:[%s1 + $0x13a0] sm:$0xff]
  %v679 = vld [vmem:[%s1 + $0x13a8] sm:$0xff]
  %v680 = vld [vmem:[%s1 + $0x13b0] sm:$0xff]
  %v681 = vld [vmem:[%s1 + $0x13b8] sm:$0xff]
  %v682 = vld [vmem:[%s1 + $0x13c0] sm:$0xff]
  %v683 = vld [vmem:[%s1 + $0x13c8] sm:$0xff]
  %v684 = vld [vmem:[%s1 + $0x13d0] sm:$0xff]
  %v685 = vld [vmem:[%s1 + $0x13d8] sm:$0xff]
  %v686 = vld [vmem:[%s1 + $0x13e0] sm:$0xff]
  %v687 = vld [vmem:[%s1 + $0x13e8] sm:$0xff]
  %v688 = vld [vmem:[%s1 + $0x13f0] sm:$0xff]
  %v689 = vld [vmem:[%s1 + $0x13f8] sm:$0xff]
  %v690 = vld [vmem:[%s1 + $0x1400] sm:$0xff]
  %v691 = vld [vmem:[%s1 + $0x1408] sm:$0xff]
  %v692 = vld [vmem:[%s1 + $0x1410] sm:$0xff]
  %v693 = vld [vmem:[%s1 + $0x1418] sm:$0xff]
  %v694 = vld [vmem:[%s1 + $0x1420] sm:$0xff]
  %v695 = vld [vmem:[%s1 + $0x1428] sm:$0xff]
  %v696 = vld [vmem:[%s1 + $0x1430] sm:$0xff]
  %v697 = vld [vmem:[%s1 + $0x1438] sm:$0xff]
  %v698 = vld [vmem:[%s1 + $0x1440] sm:$0xff]
  %v699 = vld [vmem:[%s1 + $0x1448] sm:$0xff]
  %v700 = vld [vmem:[%s1 + $0x1450] sm:$0xff]
  %v701 = vld [vmem:[%s1 + $0x1458] sm:$0xff]
  %v702 = vld [vmem:[%s1 + $0x1460] sm:$0xff]
  %v703 = vld [vmem:[%s1 + $0x1468] sm:$0xff]
  %v704 = vld [vmem:[%s1 + $0x1470] sm:$0xff]
  %v705 = vld [vmem:[%s1 + $0x1478] sm:$0xff]
  %v706 = vld [vmem:[%s1 + $0x1480] sm:$0xff]
  %v707 = vld [vmem:[%s1 + $0x1488] sm:$0xff]
  %v708 = vld [vmem:[%s1 + $0x1490] sm:$0xff]
  %v709 = vld [vmem:[%s1 + $0x1498] sm:$0xff]
  %v710 = vld [vmem:[%s1 + $0x14a0] sm:$0xff]
  %v711 = vld [vmem:[%s1 + $0x14a8] sm:$0xff]
  %v712 = vld [vmem:[%s1 + $0x14b0] sm:$0xff]
  %v713 = vld [vmem:[%s1 + $0x14b8] sm:$0xff]
  %v714 = vld [vmem:[%s1 + $0x14c0] sm:$0xff]
  %v715 = vld [vmem:[%s1 + $0x14c8] sm:$0xff]
  %v716 = vld [vmem:[%s1 + $0x14d0] sm:$0xff]
  %v717 = vld [vmem:[%s1 + $0x14d8] sm:$0xff]
  %v718 = vld [vmem:[%s1 + $0x14e0] sm:$0xff]
  %v719 = vld [vmem:[%s1 + $0x14e8] sm:$0xff]
  %v720 = vld [vmem:[%s1 + $0x14f0] sm:$0xff]
  %v721 = vld [vmem:[%s1 + $0x14f8] sm:$0xff]
  %v722 = vld [vmem:[%s1 + $0x1500] sm:$0xff]
  %v723 = vld [vmem:[%s1 + $0x1508] sm:$0xff]
  %v724 = vld [vmem:[%s1 + $0x1510] sm:$0xff]
  %v725 = vld [vmem:[%s1 + $0x1518] sm:$0xff]
  %v726 = vld [vmem:[%s1 + $0x1520] sm:$0xff]
  %v727 = vld [vmem:[%s1 + $0x1528] sm:$0xff]
  %v728 = vld [vmem:[%s1 + $0x1530] sm:$0xff]
  %v729 = vld [vmem:[%s1 + $0x1538] sm:$0xff]
  %v730 = vld [vmem:[%s1 + $0x1540] sm:$0xff]
  %v731 = vld [vmem:[%s1 + $0x1548] sm:$0xff]
  %v732 = vld [vmem:[%s1 + $0x1550] sm:$0xff]
  %v733 = vld [vmem:[%s1 + $0x1558] sm:$0xff]
  %v734 = vld [vmem:[%s1 + $0x1560] sm:$0xff]
  %v735 = vld [vmem:[%s1 + $0x1568] sm:$0xff]
  %v736 = vld [vmem:[%s1 + $0x1570] sm:$0xff]
  %v737 = vld [vmem:[%s1 + $0x1578] sm:$0xff]
  %v738 = vld [vmem:[%s1 + $0x1580] sm:$0xff]
  %v739 = vld [vmem:[%s1 + $0x1588] sm:$0xff]
  %v740 = vld [vmem:[%s1 + $0x1590] sm:$0xff]
  %v741 = vld [vmem:[%s1 + $0x1598] sm:$0xff]
  %v742 = vld [vmem:[%s1 + $0x15a0] sm:$0xff]
  %v743 = vld [vmem:[%s1 + $0x15a8] sm:$0xff]
  %v744 = vld [vmem:[%s1 + $0x15b0] sm:$0xff]
  %v745 = vld [vmem:[%s1 + $0x15b8] sm:$0xff]
  %v746 = vld [vmem:[%s1 + $0x15c0] sm:$0xff]
  %v747 = vld [vmem:[%s1 + $0x15c8] sm:$0xff]
  %v748 = vld [vmem:[%s1 + $0x15d0] sm:$0xff]
  %v749 = vld [vmem:[%s1 + $0x15d8] sm:$0xff]
  %v750 = vld [vmem:[%s1 + $0x15e0] sm:$0xff]
  %v751 = vld [vmem:[%s1 + $0x15e8] sm:$0xff]
  %v752 = vld [vmem:[%s1 + $0x15f0] sm:$0xff]
  %v753 = vld [vmem:[%s1 + $0x15f8] sm:$0xff]
  %v754 = vld [vmem:[%s1 + $0x1600] sm:$0xff]
  %v755 = vld [vmem:[%s1 + $0x1608] sm:$0xff]
  %v756 = vld [vmem:[%s1 + $0x1610] sm:$0xff]
  %v757 = vld [vmem:[%s1 + $0x1618] sm:$0xff]
  %v758 = vld [vmem:[%s1 + $0x1620] sm:$0xff]
  %v759 = vld [vmem:[%s1 + $0x1628] sm:$0xff]
  %v760 = vld [vmem:[%s1 + $0x1630] sm:$0xff]
  %v761 = vld [vmem:[%s1 + $0x1638] sm:$0xff]
  %v762 = vld [vmem:[%s1 + $0x1640] sm:$0xff]
  %v763 = vld [vmem:[%s1 + $0x1648] sm:$0xff]
  %v764 = vld [vmem:[%s1 + $0x1650] sm:$0xff]
  %v765 = vld [vmem:[%s1 + $0x1658] sm:$0xff]
  %v766 = vld [vmem:[%s1 + $0x1660] sm:$0xff]
  %v767 = vld [vmem:[%s1 + $0x1668] sm:$0xff]
  %v768 = vld [vmem:[%s1 + $0x1670] sm:$0xff]
  %v769 = vld [vmem:[%s1 + $0x1678] sm:$0xff]
  %v770 = vld [vmem:[%s1 + $0x1680] sm:$0xff]
  %v771 = vld [vmem:[%s1 + $0x1688] sm:$0xff]
  %v772 = vld [vmem:[%s1 + $0x1690] sm:$0xff]
  %v773 = vld [vmem:[%s1 + $0x1698] sm:$0xff]
  %v774 = vld [vmem:[%s1 + $0x16a0] sm:$0xff]
  %v775 = vld [vmem:[%s1 + $0x16a8] sm:$0xff]
  %v776 = vld [vmem:[%s1 + $0x16b0] sm:$0xff]
  %v777 = vld [vmem:[%s1 + $0x16b8] sm:$0xff]
  %v778 = vld [vmem:[%s1 + $0x16c0] sm:$0xff]
  %v779 = vld [vmem:[%s1 + $0x16c8] sm:$0xff]
  %v780 = vld [vmem:[%s1 + $0x16d0] sm:$0xff]
  %v781 = vld [vmem:[%s1 + $0x16d8] sm:$0xff]
  %v782 = vld [vmem:[%s1 + $0x16e0] sm:$0xff]
  %v783 = vld [vmem:[%s1 + $0x16e8] sm:$0xff]
  %v784 = vld [vmem:[%s1 + $0x16f0] sm:$0xff]
  %v785 = vld [vmem:[%s1 + $0x16f8] sm:$0xff]
  %v786 = vld [vmem:[%s1 + $0x1700] sm:$0xff]
  %v787 = vld [vmem:[%s1 + $0x1708] sm:$0xff]
  %v788 = vld [vmem:[%s1 + $0x1710] sm:$0xff]
  %v789 = vld [vmem:[%s1 + $0x1718] sm:$0xff]
  %v790 = vld [vmem:[%s1 + $0x1720] sm:$0xff]
  %v791 = vld [vmem:[%s1 + $0x1728] sm:$0xff]
  %v792 = vld [vmem:[%s1 + $0x1730] sm:$0xff]
  %v793 = vld [vmem:[%s1 + $0x1738] sm:$0xff]
  %v794 = vld [vmem:[%s1 + $0x1740] sm:$0xff]
  %v795 = vld [vmem:[%s1 + $0x1748] sm:$0xff]
  %v796 = vld [vmem:[%s1 + $0x1750] sm:$0xff]
  %v797 = vld [vmem:[%s1 + $0x1758] sm:$0xff]
  %v798 = vld [vmem:[%s1 + $0x1760] sm:$0xff]
  %v799 = vld [vmem:[%s1 + $0x1768] sm:$0xff]
  %v800 = vld [vmem:[%s1 + $0x1770] sm:$0xff]
  %v801 = vld [vmem:[%s1 + $0x1778] sm:$0xff]
  %v802 = vld [vmem:[%s1 + $0x1780] sm:$0xff]
  %v803 = vld [vmem:[%s1 + $0x1788] sm:$0xff]
  %v804 = vld [vmem:[%s1 + $0x1790] sm:$0xff]
  %v805 = vld [vmem:[%s1 + $0x1798] sm:$0xff]
  %v806 = vld [vmem:[%s1 + $0x17a0] sm:$0xff]
  %v807 = vld [vmem:[%s1 + $0x17a8] sm:$0xff]
  %v808 = vld [vmem:[%s1 + $0x17b0] sm:$0xff]
  %v809 = vld [vmem:[%s1 + $0x17b8] sm:$0xff]
  %v810 = vld [vmem:[%s1 + $0x17c0] sm:$0xff]
  %v811 = vld [vmem:[%s1 + $0x17c8] sm:$0xff]
  %v812 = vld [vmem:[%s1 + $0x17d0] sm:$0xff]
  %v813 = vld [vmem:[%s1 + $0x17d8] sm:$0xff]
  %v814 = vld [vmem:[%s1 + $0x17e0] sm:$0xff]
  %v815 = vld [vmem:[%s1 + $0x17e8] sm:$0xff]
  %v816 = vld [vmem:[%s1 + $0x17f0] sm:$0xff]
  %v817 = vld [vmem:[%s1 + $0x17f8] sm:$0xff]
  %v818 = vld [vmem:[%s1 + $0x1800] sm:$0xff]
  %v819 = vld [vmem:[%s1 + $0x1808] sm:$0xff]
  %v820 = vld [vmem:[%s1 + $0x1810] sm:$0xff]
  %v821 = vld [vmem:[%s1 + $0x1818] sm:$0xff]
  %v822 = vld [vmem:[%s1 + $0x1820] sm:$0xff]
  %v823 = vld [vmem:[%s1 + $0x1828] sm:$0xff]
  %v824 = vld [vmem:[%s1 + $0x1830] sm:$0xff]
  %v825 = vld [vmem:[%s1 + $0x1838] sm:$0xff]
  %v826 = vld [vmem:[%s1 + $0x1840] sm:$0xff]
  %v827 = vld [vmem:[%s1 + $0x1848] sm:$0xff]
  %v828 = vld [vmem:[%s1 + $0x1850] sm:$0xff]
  %v829 = vld [vmem:[%s1 + $0x1858] sm:$0xff]
  %v830 = vld [vmem:[%s1 + $0x1860] sm:$0xff]
  %v831 = vld [vmem:[%s1 + $0x1868] sm:$0xff]
  %v832 = vld [vmem:[%s1 + $0x1870] sm:$0xff]
  %v833 = vld [vmem:[%s1 + $0x1878] sm:$0xff]
  %v834 = vld [vmem:[%s1 + $0x1880] sm:$0xff]
  %v835 = vld [vmem:[%s1 + $0x1888] sm:$0xff]
  %v836 = vld [vmem:[%s1 + $0x1890] sm:$0xff]
  %v837 = vld [vmem:[%s1 + $0x1898] sm:$0xff]
  %v838 = vld [vmem:[%s1 + $0x18a0] sm:$0xff]
  %v839 = vld [vmem:[%s1 + $0x18a8] sm:$0xff]
  %v840 = vld [vmem:[%s1 + $0x18b0] sm:$0xff]
  %v841 = vld [vmem:[%s1 + $0x18b8] sm:$0xff]
  %v842 = vld [vmem:[%s1 + $0x18c0] sm:$0xff]
  %v843 = vld [vmem:[%s1 + $0x18c8] sm:$0xff]
  %v844 = vld [vmem:[%s1 + $0x18d0] sm:$0xff]
  %v845 = vld [vmem:[%s1 + $0x18d8] sm:$0xff]
  %v846 = vld [vmem:[%s1 + $0x18e0] sm:$0xff]
  %v847 = vld [vmem:[%s1 + $0x18e8] sm:$0xff]
  %v848 = vld [vmem:[%s1 + $0x18f0] sm:$0xff]
  %v849 = vld [vmem:[%s1 + $0x18f8] sm:$0xff]
  %v850 = vld [vmem:[%s1 + $0x1900] sm:$0xff]
  %v851 = vld [vmem:[%s1 + $0x1908] sm:$0xff]
  %v852 = vld [vmem:[%s1 + $0x1910] sm:$0xff]
  %v853 = vld [vmem:[%s1 + $0x1918] sm:$0xff]
  %v854 = vld [vmem:[%s1 + $0x1920] sm:$0xff]
  %v855 = vld [vmem:[%s1 + $0x1928] sm:$0xff]
  %v856 = vld [vmem:[%s1 + $0x1930] sm:$0xff]
  %v857 = vld [vmem:[%s1 + $0x1938] sm:$0xff]
  %v858 = vld [vmem:[%s1 + $0x1940] sm:$0xff]
  %v859 = vld [vmem:[%s1 + $0x1948] sm:$0xff]
  %v860 = vld [vmem:[%s1 + $0x1950] sm:$0xff]
  %v861 = vld [vmem:[%s1 + $0x1958] sm:$0xff]
  %v862 = vld [vmem:[%s1 + $0x1960] sm:$0xff]
  %v863 = vld [vmem:[%s1 + $0x1968] sm:$0xff]
  %v864 = vld [vmem:[%s1 + $0x1970] sm:$0xff]
  %v865 = vld [vmem:[%s1 + $0x1978] sm:$0xff]
  %v866 = vld [vmem:[%s1 + $0x1980] sm:$0xff]
  %v867 = vld [vmem:[%s1 + $0x1988] sm:$0xff]
  %v868 = vld [vmem:[%s1 + $0x1990] sm:$0xff]
  %v869 = vld [vmem:[%s1 + $0x1998] sm:$0xff]
  %v870 = vld [vmem:[%s1 + $0x19a0] sm:$0xff]
  %v871 = vld [vmem:[%s1 + $0x19a8] sm:$0xff]
  %v872 = vld [vmem:[%s1 + $0x19b0] sm:$0xff]
  %v873 = vld [vmem:[%s1 + $0x19b8] sm:$0xff]
  %v874 = vld [vmem:[%s1 + $0x19c0] sm:$0xff]
  %v875 = vld [vmem:[%s1 + $0x19c8] sm:$0xff]
  %v876 = vld [vmem:[%s1 + $0x19d0] sm:$0xff]
  %v877 = vld [vmem:[%s1 + $0x19d8] sm:$0xff]
  %v878 = vld [vmem:[%s1 + $0x19e0] sm:$0xff]
  %v879 = vld [vmem:[%s1 + $0x19e8] sm:$0xff]
  %v880 = vld [vmem:[%s1 + $0x19f0] sm:$0xff]
  %v881 = vld [vmem:[%s1 + $0x19f8] sm:$0xff]
  %v882 = vld [vmem:[%s1 + $0x1a00] sm:$0xff]
  %v883 = vld [vmem:[%s1 + $0x1a08] sm:$0xff]
  %v884 = vld [vmem:[%s1 + $0x1a10] sm:$0xff]
  %v885 = vld [vmem:[%s1 + $0x1a18] sm:$0xff]
  %v886 = vld [vmem:[%s1 + $0x1a20] sm:$0xff]
  %v887 = vld [vmem:[%s1 + $0x1a28] sm:$0xff]
  %v888 = vld [vmem:[%s1 + $0x1a30] sm:$0xff]
  %v889 = vld [vmem:[%s1 + $0x1a38] sm:$0xff]
  %v890 = vld [vmem:[%s1 + $0x1a40] sm:$0xff]
  %v891 = vld [vmem:[%s1 + $0x1a48] sm:$0xff]
  %v892 = vld [vmem:[%s1 + $0x1a50] sm:$0xff]
  %v893 = vld [vmem:[%s1 + $0x1a58] sm:$0xff]
  %v894 = vld [vmem:[%s1 + $0x1a60] sm:$0xff]
  %v895 = vld [vmem:[%s1 + $0x1a68] sm:$0xff]
  %v896 = vld [vmem:[%s1 + $0x1a70] sm:$0xff]
  %v897 = vld [vmem:[%s1 + $0x1a78] sm:$0xff]
  %v898 = vld [vmem:[%s1 + $0x1a80] sm:$0xff]
  %v899 = vld [vmem:[%s1 + $0x1a88] sm:$0xff]
  %v900 = vld [vmem:[%s1 + $0x1a90] sm:$0xff]
  %v901 = vld [vmem:[%s1 + $0x1a98] sm:$0xff]
  %v902 = vld [vmem:[%s1 + $0x1aa0] sm:$0xff]
  %v903 = vld [vmem:[%s1 + $0x1aa8] sm:$0xff]
  %v904 = vld [vmem:[%s1 + $0x1ab0] sm:$0xff]
  %v905 = vld [vmem:[%s1 + $0x1ab8] sm:$0xff]
  %v906 = vld [vmem:[%s1 + $0x1ac0] sm:$0xff]
  %v907 = vld [vmem:[%s1 + $0x1ac8] sm:$0xff]
  %v908 = vld [vmem:[%s1 + $0x1ad0] sm:$0xff]
  %v909 = vld [vmem:[%s1 + $0x1ad8] sm:$0xff]
  %v910 = vld [vmem:[%s1 + $0x1ae0] sm:$0xff]
  %v911 = vld [vmem:[%s1 + $0x1ae8] sm:$0xff]
  %v912 = vld [vmem:[%s1 + $0x1af0] sm:$0xff]
  %v913 = vld [vmem:[%s1 + $0x1af8] sm:$0xff]
  %v914 = vld [vmem:[%s1 + $0x1b00] sm:$0xff]
  %v915 = vld [vmem:[%s1 + $0x1b08] sm:$0xff]
  %v916 = vld [vmem:[%s1 + $0x1b10] sm:$0xff]
  %v917 = vld [vmem:[%s1 + $0x1b18] sm:$0xff]
  %v918 = vld [vmem:[%s1 + $0x1b20] sm:$0xff]
  %v919 = vld [vmem:[%s1 + $0x1b28] sm:$0xff]
  %v920 = vld [vmem:[%s1 + $0x1b30] sm:$0xff]
  %v921 = vld [vmem:[%s1 + $0x1b38] sm:$0xff]
  %v922 = vld [vmem:[%s1 + $0x1b40] sm:$0xff]
  %v923 = vld [vmem:[%s1 + $0x1b48] sm:$0xff]
  %v924 = vld [vmem:[%s1 + $0x1b50] sm:$0xff]
  %v925 = vld [vmem:[%s1 + $0x1b58] sm:$0xff]
  %v926 = vld [vmem:[%s1 + $0x1b60] sm:$0xff]
  %v927 = vld [vmem:[%s1 + $0x1b68] sm:$0xff]
  %v928 = vld [vmem:[%s1 + $0x1b70] sm:$0xff]
  %v929 = vld [vmem:[%s1 + $0x1b78] sm:$0xff]
  %v930 = vld [vmem:[%s1 + $0x1b80] sm:$0xff]
  %v931 = vld [vmem:[%s1 + $0x1b88] sm:$0xff]
  %v932 = vld [vmem:[%s1 + $0x1b90] sm:$0xff]
  %v933 = vld [vmem:[%s1 + $0x1b98] sm:$0xff]
  %v934 = vld [vmem:[%s1 + $0x1ba0] sm:$0xff]
  %v935 = vld [vmem:[%s1 + $0x1ba8] sm:$0xff]
  %v936 = vld [vmem:[%s1 + $0x1bb0] sm:$0xff]
  %v937 = vld [vmem:[%s1 + $0x1bb8] sm:$0xff]
  %v938 = vld [vmem:[%s1 + $0x1bc0] sm:$0xff]
  %v939 = vld [vmem:[%s1 + $0x1bc8] sm:$0xff]
  %v940 = vld [vmem:[%s1 + $0x1bd0] sm:$0xff]
  %v941 = vld [vmem:[%s1 + $0x1bd8] sm:$0xff]
  %v942 = vld [vmem:[%s1 + $0x1be0] sm:$0xff]
  %v943 = vld [vmem:[%s1 + $0x1be8] sm:$0xff]
  %v944 = vld [vmem:[%s1 + $0x1bf0] sm:$0xff]
  %v945 = vld [vmem:[%s1 + $0x1bf8] sm:$0xff]
  %v946 = vld [vmem:[%s1 + $0x1c00] sm:$0xff]
  %v947 = vld [vmem:[%s1 + $0x1c08] sm:$0xff]
  %v948 = vld [vmem:[%s1 + $0x1c10] sm:$0xff]
  %v949 = vld [vmem:[%s1 + $0x1c18] sm:$0xff]
  %v950 = vld [vmem:[%s1 + $0x1c20] sm:$0xff]
  %v951 = vld [vmem:[%s1 + $0x1c28] sm:$0xff]
  %v952 = vld [vmem:[%s1 + $0x1c30] sm:$0xff]
  %v953 = vld [vmem:[%s1 + $0x1c38] sm:$0xff]
  %v954 = vld [vmem:[%s1 + $0x1c40] sm:$0xff]
  %v955 = vld [vmem:[%s1 + $0x1c48] sm:$0xff]
  %v956 = vld [vmem:[%s1 + $0x1c50] sm:$0xff]
  %v957 = vld [vmem:[%s1 + $0x1c58] sm:$0xff]
  %v958 = vld [vmem:[%s1 + $0x1c60] sm:$0xff]
  %v959 = vld [vmem:[%s1 + $0x1c68] sm:$0xff]
  %v960 = vld [vmem:[%s1 + $0x1c70] sm:$0xff]
  %v961 = vld [vmem:[%s1 + $0x1c78] sm:$0xff]
  %v962 = vld [vmem:[%s1 + $0x1c80] sm:$0xff]
  %v963 = vld [vmem:[%s1 + $0x1c88] sm:$0xff]
  %v964 = vld [vmem:[%s1 + $0x1c90] sm:$0xff]
  %v965 = vld [vmem:[%s1 + $0x1c98] sm:$0xff]
  %v966 = vld [vmem:[%s1 + $0x1ca0] sm:$0xff]
  %v967 = vld [vmem:[%s1 + $0x1ca8] sm:$0xff]
  %v968 = vld [vmem:[%s1 + $0x1cb0] sm:$0xff]
  %v969 = vld [vmem:[%s1 + $0x1cb8] sm:$0xff]
  %v970 = vld [vmem:[%s1 + $0x1cc0] sm:$0xff]
  %v971 = vld [vmem:[%s1 + $0x1cc8] sm:$0xff]
  %v972 = vld [vmem:[%s1 + $0x1cd0] sm:$0xff]
  %v973 = vld [vmem:[%s1 + $0x1cd8] sm:$0xff]
  %v974 = vld [vmem:[%s1 + $0x1ce0] sm:$0xff]
  %v975 = vld [vmem:[%s1 + $0x1ce8] sm:$0xff]
  %v976 = vld [vmem:[%s1 + $0x1cf0] sm:$0xff]
  %v977 = vld [vmem:[%s1 + $0x1cf8] sm:$0xff]
  %v978 = vld [vmem:[%s1 + $0x1d00] sm:$0xff]
  %v979 = vld [vmem:[%s1 + $0x1d08] sm:$0xff]
  %v980 = vld [vmem:[%s1 + $0x1d10] sm:$0xff]
  %v981 = vld [vmem:[%s1 + $0x1d18] sm:$0xff]
  %v982 = vld [vmem:[%s1 + $0x1d20] sm:$0xff]
  %v983 = vld [vmem:[%s1 + $0x1d28] sm:$0xff]
  %v984 = vld [vmem:[%s1 + $0x1d30] sm:$0xff]
  %v985 = vld [vmem:[%s1 + $0x1d38] sm:$0xff]
  %v986 = vld [vmem:[%s1 + $0x1d40] sm:$0xff]
  %v987 = vld [vmem:[%s1 + $0x1d48] sm:$0xff]
  %v988 = vld [vmem:[%s1 + $0x1d50] sm:$0xff]
  %v989 = vld [vmem:[%s1 + $0x1d58] sm:$0xff]
  %v990 = vld [vmem:[%s1 + $0x1d60] sm:$0xff]
  %v991 = vld [vmem:[%s1 + $0x1d68] sm:$0xff]
  %v992 = vld [vmem:[%s1 + $0x1d70] sm:$0xff]
  %v993 = vld [vmem:[%s1 + $0x1d78] sm:$0xff]
  %v994 = vld [vmem:[%s1 + $0x1d80] sm:$0xff]
  %v995 = vld [vmem:[%s1 + $0x1d88] sm:$0xff]
  %v996 = vld [vmem:[%s1 + $0x1d90] sm:$0xff]
  %v997 = vld [vmem:[%s1 + $0x1d98] sm:$0xff]
  %v998 = vld [vmem:[%s1 + $0x1da0] sm:$0xff]
  %v999 = vld [vmem:[%s1 + $0x1da8] sm:$0xff]
  %v1000 = vld [vmem:[%s1 + $0x1db0] sm:$0xff]
  %v1001 = vld [vmem:[%s1 + $0x1db8] sm:$0xff]
  %v1002 = vld [vmem:[%s1 + $0x1dc0] sm:$0xff]
  %v1003 = vld [vmem:[%s1 + $0x1dc8] sm:$0xff]
  %v1004 = vld [vmem:[%s1 + $0x1dd0] sm:$0xff]
  %v1005 = vld [vmem:[%s1 + $0x1dd8] sm:$0xff]
  %v1006 = vld [vmem:[%s1 + $0x1de0] sm:$0xff]
  %v1007 = vld [vmem:[%s1 + $0x1de8] sm:$0xff]
  %v1008 = vld [vmem:[%s1 + $0x1df0] sm:$0xff]
  %v1009 = vld [vmem:[%s1 + $0x1df8] sm:$0xff]
  %v1010 = vld [vmem:[%s1 + $0x1e00] sm:$0xff]
  %v1011 = vld [vmem:[%s1 + $0x1e08] sm:$0xff]
  %v1012 = vld [vmem:[%s1 + $0x1e10] sm:$0xff]
  %v1013 = vld [vmem:[%s1 + $0x1e18] sm:$0xff]
  %v1014 = vld [vmem:[%s1 + $0x1e20] sm:$0xff]
  %v1015 = vld [vmem:[%s1 + $0x1e28] sm:$0xff]
  %v1016 = vld [vmem:[%s1 + $0x1e30] sm:$0xff]
  %v1017 = vld [vmem:[%s1 + $0x1e38] sm:$0xff]
  %v1018 = vld [vmem:[%s1 + $0x1e40] sm:$0xff]
  %v1019 = vld [vmem:[%s1 + $0x1e48] sm:$0xff]
  %v1020 = vld [vmem:[%s1 + $0x1e50] sm:$0xff]
  %v1021 = vld [vmem:[%s1 + $0x1e58] sm:$0xff]
  %v1022 = vld [vmem:[%s1 + $0x1e60] sm:$0xff]
  %v1023 = vld [vmem:[%s1 + $0x1e68] sm:$0xff]
  %v1024 = vld [vmem:[%s1 + $0x1e70] sm:$0xff]
  %v1025 = vld [vmem:[%s1 + $0x1e78] sm:$0xff]
  %v1026 = vld [vmem:[%s1 + $0x1e80] sm:$0xff]
  %v1027 = vld [vmem:[%s1 + $0x1e88] sm:$0xff]
  %v1028 = vld [vmem:[%s1 + $0x1e90] sm:$0xff]
  %v1029 = vld [vmem:[%s1 + $0x1e98] sm:$0xff]
  %v1030 = vld [vmem:[%s1 + $0x1ea0] sm:$0xff]
  %v1031 = vld [vmem:[%s1 + $0x1ea8] sm:$0xff]
  %v1032 = vld [vmem:[%s1 + $0x1eb0] sm:$0xff]
  %v1033 = vld [vmem:[%s1 + $0x1eb8] sm:$0xff]
  %v1034 = vld [vmem:[%s1 + $0x1ec0] sm:$0xff]
  %v1035 = vld [vmem:[%s1 + $0x1ec8] sm:$0xff]
  %v1036 = vld [vmem:[%s1 + $0x1ed0] sm:$0xff]
  %v1037 = vld [vmem:[%s1 + $0x1ed8] sm:$0xff]
  %v1038 = vld [vmem:[%s1 + $0x1ee0] sm:$0xff]
  %v1039 = vld [vmem:[%s1 + $0x1ee8] sm:$0xff]
  %v1040 = vld [vmem:[%s1 + $0x1ef0] sm:$0xff]
  %v1041 = vld [vmem:[%s1 + $0x1ef8] sm:$0xff]
  %v1042 = vld [vmem:[%s1 + $0x1f00] sm:$0xff]
  %v1043 = vld [vmem:[%s1 + $0x1f08] sm:$0xff]
  %v1044 = vld [vmem:[%s1 + $0x1f10] sm:$0xff]
  %v1045 = vld [vmem:[%s1 + $0x1f18] sm:$0xff]
  %v1046 = vld [vmem:[%s1 + $0x1f20] sm:$0xff]
  %v1047 = vld [vmem:[%s1 + $0x1f28] sm:$0xff]
  %v1048 = vld [vmem:[%s1 + $0x1f30] sm:$0xff]
  %v1049 = vld [vmem:[%s1 + $0x1f38] sm:$0xff]
  %v1050 = vld [vmem:[%s1 + $0x1f40] sm:$0xff]
  %v1051 = vld [vmem:[%s1 + $0x1f48] sm:$0xff]
  %v1052 = vld [vmem:[%s1 + $0x1f50] sm:$0xff]
  %v1053 = vld [vmem:[%s1 + $0x1f58] sm:$0xff]
  %v1054 = vld [vmem:[%s1 + $0x1f60] sm:$0xff]
  %v1055 = vld [vmem:[%s1 + $0x1f68] sm:$0xff]
  %v1056 = vld [vmem:[%s1 + $0x1f70] sm:$0xff]
  %v1057 = vld [vmem:[%s1 + $0x1f78] sm:$0xff]
  %v1058 = vld [vmem:[%s1 + $0x1f80] sm:$0xff]
  %v1059 = vld [vmem:[%s1 + $0x1f88] sm:$0xff]
  %v1060 = vld [vmem:[%s1 + $0x1f90] sm:$0xff]
  %v1061 = vld [vmem:[%s1 + $0x1f98] sm:$0xff]
  %v1062 = vld [vmem:[%s1 + $0x1fa0] sm:$0xff]
  %v1063 = vld [vmem:[%s1 + $0x1fa8] sm:$0xff]
  %v1064 = vld [vmem:[%s1 + $0x1fb0] sm:$0xff]
  %v1065 = vld [vmem:[%s1 + $0x1fb8] sm:$0xff]
  %v1066 = vld [vmem:[%s1 + $0x1fc0] sm:$0xff]
  %v1067 = vld [vmem:[%s1 + $0x1fc8] sm:$0xff]
  %v1068 = vld [vmem:[%s1 + $0x1fd0] sm:$0xff]
  %v1069 = vld [vmem:[%s1 + $0x1fd8] sm:$0xff]
  %v1070 = vld [vmem:[%s1 + $0x1fe0] sm:$0xff]
  %v1071 = vld [vmem:[%s1 + $0x1fe8] sm:$0xff]
  %v1072 = vld [vmem:[%s1 + $0x1ff0] sm:$0xff]
  %v1073 = vld [vmem:[%s1 + $0x1ff8] sm:$0xff]
  %v1074 = vld [vmem:[%s1 + $0x2000] sm:$0xff]
  %v1075 = vld [vmem:[%s1 + $0x2008] sm:$0xff]
  %v1076 = vld [vmem:[%s1 + $0x2010] sm:$0xff]
  %v1077 = vld [vmem:[%s1 + $0x2018] sm:$0xff]
  %v1078 = vld [vmem:[%s1 + $0x2020] sm:$0xff]
  %v1079 = vld [vmem:[%s1 + $0x2028] sm:$0xff]
  %v1080 = vld [vmem:[%s1 + $0x2030] sm:$0xff]
  %v1081 = vld [vmem:[%s1 + $0x2038] sm:$0xff]
  %v1082 = vld [vmem:[%s1 + $0x2040] sm:$0xff]
  %v1083 = vld [vmem:[%s1 + $0x2048] sm:$0xff]
  %v1084 = vld [vmem:[%s1 + $0x2050] sm:$0xff]
  %v1085 = vld [vmem:[%s1 + $0x2058] sm:$0xff]
  %v1086 = vld [vmem:[%s1 + $0x2060] sm:$0xff]
  %v1087 = vld [vmem:[%s1 + $0x2068] sm:$0xff]
  %v1088 = vld [vmem:[%s1 + $0x2070] sm:$0xff]
  %v1089 = vld [vmem:[%s1 + $0x2078] sm:$0xff]
  %v1090 = vld [vmem:[%s1 + $0x2080] sm:$0xff]
  %v1091 = vld [vmem:[%s1 + $0x2088] sm:$0xff]
  %v1092 = vld [vmem:[%s1 + $0x2090] sm:$0xff]
  %v1093 = vld [vmem:[%s1 + $0x2098] sm:$0xff]
  %v1094 = vld [vmem:[%s1 + $0x20a0] sm:$0xff]
  %v1095 = vld [vmem:[%s1 + $0x20a8] sm:$0xff]
  %v1096 = vld [vmem:[%s1 + $0x20b0] sm:$0xff]
  %v1097 = vld [vmem:[%s1 + $0x20b8] sm:$0xff]
  %v1098 = vld [vmem:[%s1 + $0x20c0] sm:$0xff]
  %v1099 = vld [vmem:[%s1 + $0x20c8] sm:$0xff]
  %v1100 = vld [vmem:[%s1 + $0x20d0] sm:$0xff]
  %v1101 = vld [vmem:[%s1 + $0x20d8] sm:$0xff]
  %v1102 = vld [vmem:[%s1 + $0x20e0] sm:$0xff]
  %v1103 = vld [vmem:[%s1 + $0x20e8] sm:$0xff]
  %v1104 = vld [vmem:[%s1 + $0x20f0] sm:$0xff]
  %v1105 = vld [vmem:[%s1 + $0x20f8] sm:$0xff]
  %v1106 = vld [vmem:[%s1 + $0x2100] sm:$0xff]
  %v1107 = vld [vmem:[%s1 + $0x2108] sm:$0xff]
  %v1108 = vld [vmem:[%s1 + $0x2110] sm:$0xff]
  %v1109 = vld [vmem:[%s1 + $0x2118] sm:$0xff]
  %v1110 = vld [vmem:[%s1 + $0x2120] sm:$0xff]
  %v1111 = vld [vmem:[%s1 + $0x2128] sm:$0xff]
  %v1112 = vld [vmem:[%s1 + $0x2130] sm:$0xff]
  %v1113 = vld [vmem:[%s1 + $0x2138] sm:$0xff]
  %v1114 = vld [vmem:[%s1 + $0x2140] sm:$0xff]
  %v1115 = vld [vmem:[%s1 + $0x2148] sm:$0xff]
  %v1116 = vld [vmem:[%s1 + $0x2150] sm:$0xff]
  %v1117 = vld [vmem:[%s1 + $0x2158] sm:$0xff]
  %v1118 = vld [vmem:[%s1 + $0x2160] sm:$0xff]
  %v1119 = vld [vmem:[%s1 + $0x2168] sm:$0xff]
  %v1120 = vld [vmem:[%s1 + $0x2170] sm:$0xff]
  %v1121 = vld [vmem:[%s1 + $0x2178] sm:$0xff]
  %v1122 = vld [vmem:[%s1 + $0x2180] sm:$0xff]
  %v1123 = vld [vmem:[%s1 + $0x2188] sm:$0xff]
  %v1124 = vld [vmem:[%s1 + $0x2190] sm:$0xff]
  %v1125 = vld [vmem:[%s1 + $0x2198] sm:$0xff]
  %v1126 = vld [vmem:[%s1 + $0x21a0] sm:$0xff]
  %v1127 = vld [vmem:[%s1 + $0x21a8] sm:$0xff]
  %v1128 = vld [vmem:[%s1 + $0x21b0] sm:$0xff]
  %v1129 = vld [vmem:[%s1 + $0x21b8] sm:$0xff]
  %v1130 = vld [vmem:[%s1 + $0x21c0] sm:$0xff]
  %v1131 = vld [vmem:[%s1 + $0x21c8] sm:$0xff]
  %v1132 = vld [vmem:[%s1 + $0x21d0] sm:$0xff]
  %v1133 = vld [vmem:[%s1 + $0x21d8] sm:$0xff]
  %v1134 = vld [vmem:[%s1 + $0x21e0] sm:$0xff]
  %v1135 = vld [vmem:[%s1 + $0x21e8] sm:$0xff]
  %v1136 = vld [vmem:[%s1 + $0x21f0] sm:$0xff]
  %v1137 = vld [vmem:[%s1 + $0x21f8] sm:$0xff]
  %v1138 = vld [vmem:[%s1 + $0x2200] sm:$0xff]
  %v1139 = vld [vmem:[%s1 + $0x2208] sm:$0xff]
  %v1140 = vld [vmem:[%s1 + $0x2210] sm:$0xff]
  %v1141 = vld [vmem:[%s1 + $0x2218] sm:$0xff]
  %v1142 = vld [vmem:[%s1 + $0x2220] sm:$0xff]
  %v1143 = vld [vmem:[%s1 + $0x2228] sm:$0xff]
  %v1144 = vld [vmem:[%s1 + $0x2230] sm:$0xff]
  %v1145 = vld [vmem:[%s1 + $0x2238] sm:$0xff]
  %v1146 = vld [vmem:[%s1 + $0x2240] sm:$0xff]
  %v1147 = vld [vmem:[%s1 + $0x2248] sm:$0xff]
  %v1148 = vld [vmem:[%s1 + $0x2250] sm:$0xff]
  %v1149 = vld [vmem:[%s1 + $0x2258] sm:$0xff]
  %v1150 = vld [vmem:[%s1 + $0x2260] sm:$0xff]
  %v1151 = vld [vmem:[%s1 + $0x2268] sm:$0xff]
  %v1152 = vld [vmem:[%s1 + $0x2270] sm:$0xff]
  %v1153 = vld [vmem:[%s1 + $0x2278] sm:$0xff]
  %v1154 = vld [vmem:[%s1 + $0x2280] sm:$0xff]
  %v1155 = vld [vmem:[%s1 + $0x2288] sm:$0xff]
  %v1156 = vld [vmem:[%s1 + $0x2290] sm:$0xff]
  %v1157 = vld [vmem:[%s1 + $0x2298] sm:$0xff]
  %v1158 = vld [vmem:[%s1 + $0x22a0] sm:$0xff]
  %v1159 = vld [vmem:[%s1 + $0x22a8] sm:$0xff]
  %v1160 = vld [vmem:[%s1 + $0x22b0] sm:$0xff]
  %v1161 = vld [vmem:[%s1 + $0x22b8] sm:$0xff]
  %v1162 = vld [vmem:[%s1 + $0x22c0] sm:$0xff]
  %v1163 = vld [vmem:[%s1 + $0x22c8] sm:$0xff]
  %v1164 = vld [vmem:[%s1 + $0x22d0] sm:$0xff]
  %v1165 = vld [vmem:[%s1 + $0x22d8] sm:$0xff]
  %v1166 = vld [vmem:[%s1 + $0x22e0] sm:$0xff]
  %v1167 = vld [vmem:[%s1 + $0x22e8] sm:$0xff]
  %v1168 = vld [vmem:[%s1 + $0x22f0] sm:$0xff]
  %v1169 = vld [vmem:[%s1 + $0x22f8] sm:$0xff]
  %v1170 = vld [vmem:[%s1 + $0x2300] sm:$0xff]
  %v1171 = vld [vmem:[%s1 + $0x2308] sm:$0xff]
  %v1172 = vld [vmem:[%s1 + $0x2310] sm:$0xff]
  %v1173 = vld [vmem:[%s1 + $0x2318] sm:$0xff]
  %v1174 = vld [vmem:[%s1 + $0x2320] sm:$0xff]
  %v1175 = vld [vmem:[%s1 + $0x2328] sm:$0xff]
  %v1176 = vld [vmem:[%s1 + $0x2330] sm:$0xff]
  %v1177 = vld [vmem:[%s1 + $0x2338] sm:$0xff]
  %v1178 = vld [vmem:[%s1 + $0x2340] sm:$0xff]
  %v1179 = vld [vmem:[%s1 + $0x2348] sm:$0xff]
  %v1180 = vld [vmem:[%s1 + $0x2350] sm:$0xff]
  %v1181 = vld [vmem:[%s1 + $0x2358] sm:$0xff]
  %v1182 = vld [vmem:[%s1 + $0x2360] sm:$0xff]
  %v1183 = vld [vmem:[%s1 + $0x2368] sm:$0xff]
  %v1184 = vld [vmem:[%s1 + $0x2370] sm:$0xff]
  %v1185 = vld [vmem:[%s1 + $0x2378] sm:$0xff]
  %v1186 = vld [vmem:[%s1 + $0x2380] sm:$0xff]
  %v1187 = vld [vmem:[%s1 + $0x2388] sm:$0xff]
  %v1188 = vld [vmem:[%s1 + $0x2390] sm:$0xff]
  %v1189 = vld [vmem:[%s1 + $0x2398] sm:$0xff]
  %v1190 = vld [vmem:[%s1 + $0x23a0] sm:$0xff]
  %v1191 = vld [vmem:[%s1 + $0x23a8] sm:$0xff]
  %v1192 = vld [vmem:[%s1 + $0x23b0] sm:$0xff]
  %v1193 = vld [vmem:[%s1 + $0x23b8] sm:$0xff]
  %v1194 = vld [vmem:[%s1 + $0x23c0] sm:$0xff]
  %v1195 = vld [vmem:[%s1 + $0x23c8] sm:$0xff]
  %v1196 = vld [vmem:[%s1 + $0x23d0] sm:$0xff]
  %v1197 = vld [vmem:[%s1 + $0x23d8] sm:$0xff]
  %v1198 = vld [vmem:[%s1 + $0x23e0] sm:$0xff]
  %v1199 = vld [vmem:[%s1 + $0x23e8] sm:$0xff]
  %v1200 = vld [vmem:[%s1 + $0x23f0] sm:$0xff]
  %v1201 = vld [vmem:[%s1 + $0x23f8] sm:$0xff]
  %v1202 = vld [vmem:[%s1 + $0x2400] sm:$0xff]
  %v1203 = vld [vmem:[%s1 + $0x2408] sm:$0xff]
  %v1204 = vld [vmem:[%s1 + $0x2410] sm:$0xff]
  %v1205 = vld [vmem:[%s1 + $0x2418] sm:$0xff]
  %v1206 = vld [vmem:[%s1 + $0x2420] sm:$0xff]
  %v1207 = vld [vmem:[%s1 + $0x2428] sm:$0xff]
  %v1208 = vld [vmem:[%s1 + $0x2430] sm:$0xff]
  %v1209 = vld [vmem:[%s1 + $0x2438] sm:$0xff]
  %v1210 = vld [vmem:[%s1 + $0x2440] sm:$0xff]
  %v1211 = vld [vmem:[%s1 + $0x2448] sm:$0xff]
  %v1212 = vld [vmem:[%s1 + $0x2450] sm:$0xff]
  %v1213 = vld [vmem:[%s1 + $0x2458] sm:$0xff]
  %v1214 = vld [vmem:[%s1 + $0x2460] sm:$0xff]
  %v1215 = vld [vmem:[%s1 + $0x2468] sm:$0xff]
  %v1216 = vld [vmem:[%s1 + $0x2470] sm:$0xff]
  %v1217 = vld [vmem:[%s1 + $0x2478] sm:$0xff]
  %v1218 = vld [vmem:[%s1 + $0x2480] sm:$0xff]
  %v1219 = vld [vmem:[%s1 + $0x2488] sm:$0xff]
  %v1220 = vld [vmem:[%s1 + $0x2490] sm:$0xff]
  %v1221 = vld [vmem:[%s1 + $0x2498] sm:$0xff]
  %v1222 = vld [vmem:[%s1 + $0x24a0] sm:$0xff]
  %v1223 = vld [vmem:[%s1 + $0x24a8] sm:$0xff]
  %v1224 = vld [vmem:[%s1 + $0x24b0] sm:$0xff]
  %v1225 = vld [vmem:[%s1 + $0x24b8] sm:$0xff]
  %v1226 = vld [vmem:[%s1 + $0x24c0] sm:$0xff]
  %v1227 = vld [vmem:[%s1 + $0x24c8] sm:$0xff]
  %v1228 = vld [vmem:[%s1 + $0x24d0] sm:$0xff]
  %v1229 = vld [vmem:[%s1 + $0x24d8] sm:$0xff]
  %v1230 = vld [vmem:[%s1 + $0x24e0] sm:$0xff]
  %v1231 = vld [vmem:[%s1 + $0x24e8] sm:$0xff]
  %v1232 = vld [vmem:[%s1 + $0x24f0] sm:$0xff]
  %v1233 = vld [vmem:[%s1 + $0x24f8] sm:$0xff]
  %v1234 = vld [vmem:[%s1 + $0x2500] sm:$0xff]
  %v1235 = vld [vmem:[%s1 + $0x2508] sm:$0xff]
  %v1236 = vld [vmem:[%s1 + $0x2510] sm:$0xff]
  %v1237 = vld [vmem:[%s1 + $0x2518] sm:$0xff]
  %v1238 = vld [vmem:[%s1 + $0x2520] sm:$0xff]
  %v1239 = vld [vmem:[%s1 + $0x2528] sm:$0xff]
  %v1240 = vld [vmem:[%s1 + $0x2530] sm:$0xff]
  %v1241 = vld [vmem:[%s1 + $0x2538] sm:$0xff]
  %v1242 = vld [vmem:[%s1 + $0x2540] sm:$0xff]
  %v1243 = vld [vmem:[%s1 + $0x2548] sm:$0xff]
  %v1244 = vld [vmem:[%s1 + $0x2550] sm:$0xff]
  %v1245 = vld [vmem:[%s1 + $0x2558] sm:$0xff]
  %v1246 = vld [vmem:[%s1 + $0x2560] sm:$0xff]
  %v1247 = vld [vmem:[%s1 + $0x2568] sm:$0xff]
  %v1248 = vld [vmem:[%s1 + $0x2570] sm:$0xff]
  %v1249 = vld [vmem:[%s1 + $0x2578] sm:$0xff]
  %v1250 = vld [vmem:[%s1 + $0x2580] sm:$0xff]
  %v1251 = vld [vmem:[%s1 + $0x2588] sm:$0xff]
  %v1252 = vld [vmem:[%s1 + $0x2590] sm:$0xff]
  %v1253 = vld [vmem:[%s1 + $0x2598] sm:$0xff]
  %v1254 = vld [vmem:[%s1 + $0x25a0] sm:$0xff]
  %v1255 = vld [vmem:[%s1 + $0x25a8] sm:$0xff]
  %v1256 = vld [vmem:[%s1 + $0x25b0] sm:$0xff]
  %v1257 = vld [vmem:[%s1 + $0x25b8] sm:$0xff]
  %v1258 = vld [vmem:[%s1 + $0x25c0] sm:$0xff]
  %v1259 = vld [vmem:[%s1 + $0x25c8] sm:$0xff]
  %v1260 = vld [vmem:[%s1 + $0x25d0] sm:$0xff]
  %v1261 = vld [vmem:[%s1 + $0x25d8] sm:$0xff]
  %v1262 = vld [vmem:[%s1 + $0x25e0] sm:$0xff]
  %v1263 = vld [vmem:[%s1 + $0x25e8] sm:$0xff]
  %v1264 = vld [vmem:[%s1 + $0x25f0] sm:$0xff]
  %v1265 = vld [vmem:[%s1 + $0x25f8] sm:$0xff]
  %v1266 = vld [vmem:[%s1 + $0x2600] sm:$0xff]
  %v1267 = vld [vmem:[%s1 + $0x2608] sm:$0xff]
  %v1268 = vld [vmem:[%s1 + $0x2610] sm:$0xff]
  %v1269 = vld [vmem:[%s1 + $0x2618] sm:$0xff]
  %v1270 = vld [vmem:[%s1 + $0x2620] sm:$0xff]
  %v1271 = vld [vmem:[%s1 + $0x2628] sm:$0xff]
  %v1272 = vld [vmem:[%s1 + $0x2630] sm:$0xff]
  %v1273 = vld [vmem:[%s1 + $0x2638] sm:$0xff]
  %v1274 = vld [vmem:[%s1 + $0x2640] sm:$0xff]
  %v1275 = vld [vmem:[%s1 + $0x2648] sm:$0xff]
  %v1276 = vld [vmem:[%s1 + $0x2650] sm:$0xff]
  %v1277 = vld [vmem:[%s1 + $0x2658] sm:$0xff]
  %v1278 = vld [vmem:[%s1 + $0x2660] sm:$0xff]
  %v1279 = vld [vmem:[%s1 + $0x2668] sm:$0xff]
  %v1280 = vld [vmem:[%s1 + $0x2670] sm:$0xff]
  %v1281 = vld [vmem:[%s1 + $0x2678] sm:$0xff]
  %v1282 = vld [vmem:[%s1 + $0x2680] sm:$0xff]
  %v1283 = vld [vmem:[%s1 + $0x2688] sm:$0xff]
  %v1284 = vld [vmem:[%s1 + $0x2690] sm:$0xff]
  %v1285 = vld [vmem:[%s1 + $0x2698] sm:$0xff]
  %v1286 = vld [vmem:[%s1 + $0x26a0] sm:$0xff]
  %v1287 = vld [vmem:[%s1 + $0x26a8] sm:$0xff]
  %v1288 = vld [vmem:[%s1 + $0x26b0] sm:$0xff]
  %v1289 = vld [vmem:[%s1 + $0x26b8] sm:$0xff]
  %v1290 = vld [vmem:[%s1 + $0x26c0] sm:$0xff]
  %v1291 = vld [vmem:[%s1 + $0x26c8] sm:$0xff]
  %v1292 = vld [vmem:[%s1 + $0x26d0] sm:$0xff]
  %v1293 = vld [vmem:[%s1 + $0x26d8] sm:$0xff]
  %v1294 = vld [vmem:[%s1 + $0x26e0] sm:$0xff]
  %v1295 = vld [vmem:[%s1 + $0x26e8] sm:$0xff]
  %v1296 = vld [vmem:[%s1 + $0x26f0] sm:$0xff]
  %v1297 = vld [vmem:[%s1 + $0x26f8] sm:$0xff]
  %v1298 = vld [vmem:[%s1 + $0x2700] sm:$0xff]
  %v1299 = vld [vmem:[%s1 + $0x2708] sm:$0xff]
  %v1300 = vld [vmem:[%s1 + $0x2710] sm:$0xff]
  %v1301 = vld [vmem:[%s1 + $0x2718] sm:$0xff]
  %v1302 = vld [vmem:[%s1 + $0x2720] sm:$0xff]
  %v1303 = vld [vmem:[%s1 + $0x2728] sm:$0xff]
  %v1304 = vld [vmem:[%s1 + $0x2730] sm:$0xff]
  %v1305 = vld [vmem:[%s1 + $0x2738] sm:$0xff]
  %v1306 = vld [vmem:[%s1 + $0x2740] sm:$0xff]
  %v1307 = vld [vmem:[%s1 + $0x2748] sm:$0xff]
  %v1308 = vld [vmem:[%s1 + $0x2750] sm:$0xff]
  %v1309 = vld [vmem:[%s1 + $0x2758] sm:$0xff]
  %v1310 = vld [vmem:[%s1 + $0x2760] sm:$0xff]
  %v1311 = vld [vmem:[%s1 + $0x2768] sm:$0xff]
  %v1312 = vld [vmem:[%s1 + $0x2770] sm:$0xff]
  %v1313 = vld [vmem:[%s1 + $0x2778] sm:$0xff]
  %v1314 = vld [vmem:[%s1 + $0x2780] sm:$0xff]
  %v1315 = vld [vmem:[%s1 + $0x2788] sm:$0xff]
  %v1316 = vld [vmem:[%s1 + $0x2790] sm:$0xff]
  %v1317 = vld [vmem:[%s1 + $0x2798] sm:$0xff]
  %v1318 = vld [vmem:[%s1 + $0x27a0] sm:$0xff]
  %v1319 = vld [vmem:[%s1 + $0x27a8] sm:$0xff]
  %v1320 = vld [vmem:[%s1 + $0x27b0] sm:$0xff]
  %v1321 = vld [vmem:[%s1 + $0x27b8] sm:$0xff]
  %v1322 = vld [vmem:[%s1 + $0x27c0] sm:$0xff]
  %v1323 = vld [vmem:[%s1 + $0x27c8] sm:$0xff]
  %v1324 = vld [vmem:[%s1 + $0x27d0] sm:$0xff]
  %v1325 = vld [vmem:[%s1 + $0x27d8] sm:$0xff]
  %v1326 = vld [vmem:[%s1 + $0x27e0] sm:$0xff]
  %v1327 = vld [vmem:[%s1 + $0x27e8] sm:$0xff]
  %v1328 = vld [vmem:[%s1 + $0x27f0] sm:$0xff]
  %v1329 = vld [vmem:[%s1 + $0x27f8] sm:$0xff]
  %v1330 = vld [vmem:[%s1 + $0x2800] sm:$0xff]
  %v1331 = vld [vmem:[%s1 + $0x2808] sm:$0xff]
  %v1332 = vld [vmem:[%s1 + $0x2810] sm:$0xff]
  %v1333 = vld [vmem:[%s1 + $0x2818] sm:$0xff]
  %v1334 = vld [vmem:[%s1 + $0x2820] sm:$0xff]
  %v1335 = vld [vmem:[%s1 + $0x2828] sm:$0xff]
  %v1336 = vld [vmem:[%s1 + $0x2830] sm:$0xff]
  %v1337 = vld [vmem:[%s1 + $0x2838] sm:$0xff]
  %v1338 = vld [vmem:[%s1 + $0x2840] sm:$0xff]
  %v1339 = vld [vmem:[%s1 + $0x2848] sm:$0xff]
  %v1340 = vld [vmem:[%s1 + $0x2850] sm:$0xff]
  %v1341 = vld [vmem:[%s1 + $0x2858] sm:$0xff]
  %v1342 = vld [vmem:[%s1 + $0x2860] sm:$0xff]
  %v1343 = vld [vmem:[%s1 + $0x2868] sm:$0xff]
  %v1344 = vld [vmem:[%s1 + $0x2870] sm:$0xff]
  %v1345 = vld [vmem:[%s1 + $0x2878] sm:$0xff]
  %v1346 = vld [vmem:[%s1 + $0x2880] sm:$0xff]
  %v1347 = vld [vmem:[%s1 + $0x2888] sm:$0xff]
  %v1348 = vld [vmem:[%s1 + $0x2890] sm:$0xff]
  %v1349 = vld [vmem:[%s1 + $0x2898] sm:$0xff]
  %v1350 = vld [vmem:[%s1 + $0x28a0] sm:$0xff]
  %v1351 = vld [vmem:[%s1 + $0x28a8] sm:$0xff]
  %v1352 = vld [vmem:[%s1 + $0x28b0] sm:$0xff]
  %v1353 = vld [vmem:[%s1 + $0x28b8] sm:$0xff]
  %v1354 = vld [vmem:[%s1 + $0x28c0] sm:$0xff]
  %v1355 = vld [vmem:[%s1 + $0x28c8] sm:$0xff]
  %v1356 = vld [vmem:[%s1 + $0x28d0] sm:$0xff]
  %v1357 = vld [vmem:[%s1 + $0x28d8] sm:$0xff]
  %v1358 = vld [vmem:[%s1 + $0x28e0] sm:$0xff]
  %v1359 = vld [vmem:[%s1 + $0x28e8] sm:$0xff]
  %v1360 = vld [vmem:[%s1 + $0x28f0] sm:$0xff]
  %v1361 = vld [vmem:[%s1 + $0x28f8] sm:$0xff]
  %v1362 = vld [vmem:[%s1 + $0x2900] sm:$0xff]
  %v1363 = vld [vmem:[%s1 + $0x2908] sm:$0xff]
  %v1364 = vld [vmem:[%s1 + $0x2910] sm:$0xff]
  %v1365 = vld [vmem:[%s1 + $0x2918] sm:$0xff]
  %v1366 = vld [vmem:[%s1 + $0x2920] sm:$0xff]
  %v1367 = vld [vmem:[%s1 + $0x2928] sm:$0xff]
  %v1368 = vld [vmem:[%s1 + $0x2930] sm:$0xff]
  %v1369 = vld [vmem:[%s1 + $0x2938] sm:$0xff]
  %v1370 = vld [vmem:[%s1 + $0x2940] sm:$0xff]
  %v1371 = vld [vmem:[%s1 + $0x2948] sm:$0xff]
  %v1372 = vld [vmem:[%s1 + $0x2950] sm:$0xff]
  %v1373 = vld [vmem:[%s1 + $0x2958] sm:$0xff]
  %v1374 = vld [vmem:[%s1 + $0x2960] sm:$0xff]
  %v1375 = vld [vmem:[%s1 + $0x2968] sm:$0xff]
  %v1376 = vld [vmem:[%s1 + $0x2970] sm:$0xff]
  %v1377 = vld [vmem:[%s1 + $0x2978] sm:$0xff]
  %v1378 = vld [vmem:[%s1 + $0x2980] sm:$0xff]
  %v1379 = vld [vmem:[%s1 + $0x2988] sm:$0xff]
  %v1380 = vld [vmem:[%s1 + $0x2990] sm:$0xff]
  %v1381 = vld [vmem:[%s1 + $0x2998] sm:$0xff]
  %v1382 = vld [vmem:[%s1 + $0x29a0] sm:$0xff]
  %v1383 = vld [vmem:[%s1 + $0x29a8] sm:$0xff]
  %v1384 = vld [vmem:[%s1 + $0x29b0] sm:$0xff]
  %v1385 = vld [vmem:[%s1 + $0x29b8] sm:$0xff]
  %v1386 = vld [vmem:[%s1 + $0x29c0] sm:$0xff]
  %v1387 = vld [vmem:[%s1 + $0x29c8] sm:$0xff]
  %v1388 = vld [vmem:[%s1 + $0x29d0] sm:$0xff]
  %v1389 = vld [vmem:[%s1 + $0x29d8] sm:$0xff]
  %v1390 = vld [vmem:[%s1 + $0x29e0] sm:$0xff]
  %v1391 = vld [vmem:[%s1 + $0x29e8] sm:$0xff]
  %v1392 = vld [vmem:[%s1 + $0x29f0] sm:$0xff]
  %v1393 = vld [vmem:[%s1 + $0x29f8] sm:$0xff]
  %v1394 = vld [vmem:[%s1 + $0x2a00] sm:$0xff]
  %v1395 = vld [vmem:[%s1 + $0x2a08] sm:$0xff]
  %v1396 = vld [vmem:[%s1 + $0x2a10] sm:$0xff]
  %v1397 = vld [vmem:[%s1 + $0x2a18] sm:$0xff]
  %v1398 = vld [vmem:[%s1 + $0x2a20] sm:$0xff]
  %v1399 = vld [vmem:[%s1 + $0x2a28] sm:$0xff]
  %v1400 = vld [vmem:[%s1 + $0x2a30] sm:$0xff]
  %v1401 = vld [vmem:[%s1 + $0x2a38] sm:$0xff]
  %v1402 = vld [vmem:[%s1 + $0x2a40] sm:$0xff]
  %v1403 = vld [vmem:[%s1 + $0x2a48] sm:$0xff]
  %v1404 = vld [vmem:[%s1 + $0x2a50] sm:$0xff]
  %v1405 = vld [vmem:[%s1 + $0x2a58] sm:$0xff]
  %v1406 = vld [vmem:[%s1 + $0x2a60] sm:$0xff]
  %v1407 = vld [vmem:[%s1 + $0x2a68] sm:$0xff]
  %v1408 = vld [vmem:[%s1 + $0x2a70] sm:$0xff]
  %v1409 = vld [vmem:[%s1 + $0x2a78] sm:$0xff]
  %v1410 = vld [vmem:[%s1 + $0x2a80] sm:$0xff]
  %v1411 = vld [vmem:[%s1 + $0x2a88] sm:$0xff]
  %v1412 = vld [vmem:[%s1 + $0x2a90] sm:$0xff]
  %v1413 = vld [vmem:[%s1 + $0x2a98] sm:$0xff]
  %v1414 = vld [vmem:[%s1 + $0x2aa0] sm:$0xff]
  %v1415 = vld [vmem:[%s1 + $0x2aa8] sm:$0xff]
  %v1416 = vld [vmem:[%s1 + $0x2ab0] sm:$0xff]
  %v1417 = vld [vmem:[%s1 + $0x2ab8] sm:$0xff]
  %v1418 = vld [vmem:[%s1 + $0x2ac0] sm:$0xff]
  %v1419 = vld [vmem:[%s1 + $0x2ac8] sm:$0xff]
  %v1420 = vld [vmem:[%s1 + $0x2ad0] sm:$0xff]
  %v1421 = vld [vmem:[%s1 + $0x2ad8] sm:$0xff]
  %v1422 = vld [vmem:[%s1 + $0x2ae0] sm:$0xff]
  %v1423 = vld [vmem:[%s1 + $0x2ae8] sm:$0xff]
  %v1424 = vld [vmem:[%s1 + $0x2af0] sm:$0xff]
  %v1425 = vld [vmem:[%s1 + $0x2af8] sm:$0xff]
  %v1426 = vld [vmem:[%s1 + $0x2b00] sm:$0xff]
  %v1427 = vld [vmem:[%s1 + $0x2b08] sm:$0xff]
  %v1428 = vld [vmem:[%s1 + $0x2b10] sm:$0xff]
  %v1429 = vld [vmem:[%s1 + $0x2b18] sm:$0xff]
  %v1430 = vld [vmem:[%s1 + $0x2b20] sm:$0xff]
  %v1431 = vld [vmem:[%s1 + $0x2b28] sm:$0xff]
  %v1432 = vld [vmem:[%s1 + $0x2b30] sm:$0xff]
  %v1433 = vld [vmem:[%s1 + $0x2b38] sm:$0xff]
  %v1434 = vld [vmem:[%s1 + $0x2b40] sm:$0xff]
  %v1435 = vld [vmem:[%s1 + $0x2b48] sm:$0xff]
  %v1436 = vld [vmem:[%s1 + $0x2b50] sm:$0xff]
  %v1437 = vld [vmem:[%s1 + $0x2b58] sm:$0xff]
  %v1438 = vld [vmem:[%s1 + $0x2b60] sm:$0xff]
  %v1439 = vld [vmem:[%s1 + $0x2b68] sm:$0xff]
  %v1440 = vld [vmem:[%s1 + $0x2b70] sm:$0xff]
  %v1441 = vld [vmem:[%s1 + $0x2b78] sm:$0xff]
  %v1442 = vld [vmem:[%s1 + $0x2b80] sm:$0xff]
  %v1443 = vld [vmem:[%s1 + $0x2b88] sm:$0xff]
  %v1444 = vld [vmem:[%s1 + $0x2b90] sm:$0xff]
  %v1445 = vld [vmem:[%s1 + $0x2b98] sm:$0xff]
  %v1446 = vld [vmem:[%s1 + $0x2ba0] sm:$0xff]
  %v1447 = vld [vmem:[%s1 + $0x2ba8] sm:$0xff]
  %v1448 = vld [vmem:[%s1 + $0x2bb0] sm:$0xff]
  %v1449 = vld [vmem:[%s1 + $0x2bb8] sm:$0xff]
  %v1450 = vld [vmem:[%s1 + $0x2bc0] sm:$0xff]
  %v1451 = vld [vmem:[%s1 + $0x2bc8] sm:$0xff]
  %v1452 = vld [vmem:[%s1 + $0x2bd0] sm:$0xff]
  %v1453 = vld [vmem:[%s1 + $0x2bd8] sm:$0xff]
  %v1454 = vld [vmem:[%s1 + $0x2be0] sm:$0xff]
  %v1455 = vld [vmem:[%s1 + $0x2be8] sm:$0xff]
  %v1456 = vld [vmem:[%s1 + $0x2bf0] sm:$0xff]
  %v1457 = vld [vmem:[%s1 + $0x2bf8] sm:$0xff]
  %v1458 = vld [vmem:[%s1 + $0x2c00] sm:$0xff]
  %v1459 = vld [vmem:[%s1 + $0x2c08] sm:$0xff]
  %v1460 = vld [vmem:[%s1 + $0x2c10] sm:$0xff]
  %v1461 = vld [vmem:[%s1 + $0x2c18] sm:$0xff]
  %v1462 = vld [vmem:[%s1 + $0x2c20] sm:$0xff]
  %v1463 = vld [vmem:[%s1 + $0x2c28] sm:$0xff]
  %v1464 = vld [vmem:[%s1 + $0x2c30] sm:$0xff]
  %v1465 = vld [vmem:[%s1 + $0x2c38] sm:$0xff]
  %v1466 = vld [vmem:[%s1 + $0x2c40] sm:$0xff]
  %v1467 = vld [vmem:[%s1 + $0x2c48] sm:$0xff]
  %v1468 = vld [vmem:[%s1 + $0x2c50] sm:$0xff]
  %v1469 = vld [vmem:[%s1 + $0x2c58] sm:$0xff]
  %v1470 = vld [vmem:[%s1 + $0x2c60] sm:$0xff]
  %v1471 = vld [vmem:[%s1 + $0x2c68] sm:$0xff]
  %v1472 = vld [vmem:[%s1 + $0x2c70] sm:$0xff]
  %v1473 = vld [vmem:[%s1 + $0x2c78] sm:$0xff]
  %v1474 = vld [vmem:[%s1 + $0x2c80] sm:$0xff]
  %v1475 = vld [vmem:[%s1 + $0x2c88] sm:$0xff]
  %v1476 = vld [vmem:[%s1 + $0x2c90] sm:$0xff]
  %v1477 = vld [vmem:[%s1 + $0x2c98] sm:$0xff]
  %v1478 = vld [vmem:[%s1 + $0x2ca0] sm:$0xff]
  %v1479 = vld [vmem:[%s1 + $0x2ca8] sm:$0xff]
  %v1480 = vld [vmem:[%s1 + $0x2cb0] sm:$0xff]
  %v1481 = vld [vmem:[%s1 + $0x2cb8] sm:$0xff]
  %v1482 = vld [vmem:[%s1 + $0x2cc0] sm:$0xff]
  %v1483 = vld [vmem:[%s1 + $0x2cc8] sm:$0xff]
  %v1484 = vld [vmem:[%s1 + $0x2cd0] sm:$0xff]
  %v1485 = vld [vmem:[%s1 + $0x2cd8] sm:$0xff]
  %v1486 = vld [vmem:[%s1 + $0x2ce0] sm:$0xff]
  %v1487 = vld [vmem:[%s1 + $0x2ce8] sm:$0xff]
  %v1488 = vld [vmem:[%s1 + $0x2cf0] sm:$0xff]
  %v1489 = vld [vmem:[%s1 + $0x2cf8] sm:$0xff]
  %v1490 = vld [vmem:[%s1 + $0x2d00] sm:$0xff]
  %v1491 = vld [vmem:[%s1 + $0x2d08] sm:$0xff]
  %v1492 = vld [vmem:[%s1 + $0x2d10] sm:$0xff]
  %v1493 = vld [vmem:[%s1 + $0x2d18] sm:$0xff]
  %v1494 = vld [vmem:[%s1 + $0x2d20] sm:$0xff]
  %v1495 = vld [vmem:[%s1 + $0x2d28] sm:$0xff]
  %v1496 = vld [vmem:[%s1 + $0x2d30] sm:$0xff]
  %v1497 = vld [vmem:[%s1 + $0x2d38] sm:$0xff]
  %v1498 = vld [vmem:[%s1 + $0x2d40] sm:$0xff]
  %v1499 = vld [vmem:[%s1 + $0x2d48] sm:$0xff]
  %v1500 = vld [vmem:[%s1 + $0x2d50] sm:$0xff]
  %v1501 = vld [vmem:[%s1 + $0x2d58] sm:$0xff]
  %v1502 = vld [vmem:[%s1 + $0x2d60] sm:$0xff]
  %v1503 = vld [vmem:[%s1 + $0x2d68] sm:$0xff]
  %v1504 = vld [vmem:[%s1 + $0x2d70] sm:$0xff]
  %v1505 = vld [vmem:[%s1 + $0x2d78] sm:$0xff]
  %v1506 = vld [vmem:[%s1 + $0x2d80] sm:$0xff]
  %v1507 = vld [vmem:[%s1 + $0x2d88] sm:$0xff]
  %v1508 = vld [vmem:[%s1 + $0x2d90] sm:$0xff]
  %v1509 = vld [vmem:[%s1 + $0x2d98] sm:$0xff]
  %v1510 = vld [vmem:[%s1 + $0x2da0] sm:$0xff]
  %v1511 = vld [vmem:[%s1 + $0x2da8] sm:$0xff]
  %v1512 = vld [vmem:[%s1 + $0x2db0] sm:$0xff]
  %v1513 = vld [vmem:[%s1 + $0x2db8] sm:$0xff]
  %v1514 = vld [vmem:[%s1 + $0x2dc0] sm:$0xff]
  %v1515 = vld [vmem:[%s1 + $0x2dc8] sm:$0xff]
  %v1516 = vld [vmem:[%s1 + $0x2dd0] sm:$0xff]
  %v1517 = vld [vmem:[%s1 + $0x2dd8] sm:$0xff]
  %v1518 = vld [vmem:[%s1 + $0x2de0] sm:$0xff]
  %v1519 = vld [vmem:[%s1 + $0x2de8] sm:$0xff]
  %v1520 = vld [vmem:[%s1 + $0x2df0] sm:$0xff]
  %v1521 = vld [vmem:[%s1 + $0x2df8] sm:$0xff]
  %v1522 = vld [vmem:[%s1 + $0x2e00] sm:$0xff]
  %v1523 = vld [vmem:[%s1 + $0x2e08] sm:$0xff]
  %v1524 = vld [vmem:[%s1 + $0x2e10] sm:$0xff]
  %v1525 = vld [vmem:[%s1 + $0x2e18] sm:$0xff]
  %v1526 = vld [vmem:[%s1 + $0x2e20] sm:$0xff]
  %v1527 = vld [vmem:[%s1 + $0x2e28] sm:$0xff]
  %v1528 = vld [vmem:[%s1 + $0x2e30] sm:$0xff]
  %v1529 = vld [vmem:[%s1 + $0x2e38] sm:$0xff]
  %v1530 = vld [vmem:[%s1 + $0x2e40] sm:$0xff]
  %v1531 = vld [vmem:[%s1 + $0x2e48] sm:$0xff]
  %v1532 = vld [vmem:[%s1 + $0x2e50] sm:$0xff]
  %v1533 = vld [vmem:[%s1 + $0x2e58] sm:$0xff]
  %v1534 = vld [vmem:[%s1 + $0x2e60] sm:$0xff]
  %v1535 = vld [vmem:[%s1 + $0x2e68] sm:$0xff]
  %v1536 = vld [vmem:[%s1 + $0x2e70] sm:$0xff]
  %v1537 = vld [vmem:[%s1 + $0x2e78] sm:$0xff]
  %v1538 = vld [vmem:[%s1 + $0x2e80] sm:$0xff]
  %v1539 = vld [vmem:[%s1 + $0x2e88] sm:$0xff]
  %v1540 = vld [vmem:[%s1 + $0x2e90] sm:$0xff]
  %v1541 = vld [vmem:[%s1 + $0x2e98] sm:$0xff]
  %v1542 = vld [vmem:[%s1 + $0x2ea0] sm:$0xff]
  %v1543 = vld [vmem:[%s1 + $0x2ea8] sm:$0xff]
  %v1544 = vld [vmem:[%s1 + $0x2eb0] sm:$0xff]
  %v1545 = vld [vmem:[%s1 + $0x2eb8] sm:$0xff]
  %v1546 = vld [vmem:[%s1 + $0x2ec0] sm:$0xff]
  %v1547 = vld [vmem:[%s1 + $0x2ec8] sm:$0xff]
  %v1548 = vld [vmem:[%s1 + $0x2ed0] sm:$0xff]
  %v1549 = vld [vmem:[%s1 + $0x2ed8] sm:$0xff]
  %v1550 = vld [vmem:[%s1 + $0x2ee0] sm:$0xff]
  %v1551 = vld [vmem:[%s1 + $0x2ee8] sm:$0xff]
  %v1552 = vld [vmem:[%s1 + $0x2ef0] sm:$0xff]
  %v1553 = vld [vmem:[%s1 + $0x2ef8] sm:$0xff]
  %v1554 = vld [vmem:[%s1 + $0x2f00] sm:$0xff]
  %v1555 = vld [vmem:[%s1 + $0x2f08] sm:$0xff]
  %v1556 = vld [vmem:[%s1 + $0x2f10] sm:$0xff]
  %v1557 = vld [vmem:[%s1 + $0x2f18] sm:$0xff]
  %v1558 = vld [vmem:[%s1 + $0x2f20] sm:$0xff]
  %v1559 = vld [vmem:[%s1 + $0x2f28] sm:$0xff]
  %v1560 = vld [vmem:[%s1 + $0x2f30] sm:$0xff]
  %v1561 = vld [vmem:[%s1 + $0x2f38] sm:$0xff]
  %v1562 = vld [vmem:[%s1 + $0x2f40] sm:$0xff]
  %v1563 = vld [vmem:[%s1 + $0x2f48] sm:$0xff]
  %v1564 = vld [vmem:[%s1 + $0x2f50] sm:$0xff]
  %v1565 = vld [vmem:[%s1 + $0x2f58] sm:$0xff]
  %v1566 = vld [vmem:[%s1 + $0x2f60] sm:$0xff]
  %v1567 = vld [vmem:[%s1 + $0x2f68] sm:$0xff]
  %v1568 = vld [vmem:[%s1 + $0x2f70] sm:$0xff]
  %v1569 = vld [vmem:[%s1 + $0x2f78] sm:$0xff]
  %v1570 = vld [vmem:[%s1 + $0x2f80] sm:$0xff]
  %v1571 = vld [vmem:[%s1 + $0x2f88] sm:$0xff]
  %v1572 = vld [vmem:[%s1 + $0x2f90] sm:$0xff]
  %v1573 = vld [vmem:[%s1 + $0x2f98] sm:$0xff]
  %v1574 = vld [vmem:[%s1 + $0x2fa0] sm:$0xff]
  %v1575 = vld [vmem:[%s1 + $0x2fa8] sm:$0xff]
  %v1576 = vld [vmem:[%s1 + $0x2fb0] sm:$0xff]
  %v1577 = vld [vmem:[%s1 + $0x2fb8] sm:$0xff]
  %v1578 = vld [vmem:[%s1 + $0x2fc0] sm:$0xff]
  %v1579 = vld [vmem:[%s1 + $0x2fc8] sm:$0xff]
  %v1580 = vld [vmem:[%s1 + $0x2fd0] sm:$0xff]
  %v1581 = vld [vmem:[%s1 + $0x2fd8] sm:$0xff]
  %v1582 = vld [vmem:[%s1 + $0x2fe0] sm:$0xff]
  %v1583 = vld [vmem:[%s1 + $0x2fe8] sm:$0xff]
  %v1584 = vld [vmem:[%s1 + $0x2ff0] sm:$0xff]
  %v1585 = vld [vmem:[%s1 + $0x2ff8] sm:$0xff]
  %v1586 = vld [vmem:[%s1 + $0x3000] sm:$0xff]
  %v1587 = vld [vmem:[%s1 + $0x3008] sm:$0xff]
  %v1588 = vld [vmem:[%s1 + $0x3010] sm:$0xff]
  %v1589 = vld [vmem:[%s1 + $0x3018] sm:$0xff]
  %v1590 = vld [vmem:[%s1 + $0x3020] sm:$0xff]
  %v1591 = vld [vmem:[%s1 + $0x3028] sm:$0xff]
  %v1592 = vld [vmem:[%s1 + $0x3030] sm:$0xff]
  %v1593 = vld [vmem:[%s1 + $0x3038] sm:$0xff]
  %v1594 = vld [vmem:[%s1 + $0x3040] sm:$0xff]
  %v1595 = vld [vmem:[%s1 + $0x3048] sm:$0xff]
  %v1596 = vld [vmem:[%s1 + $0x3050] sm:$0xff]
  %v1597 = vld [vmem:[%s1 + $0x3058] sm:$0xff]
  %v1598 = vld [vmem:[%s1 + $0x3060] sm:$0xff]
  %v1599 = vld [vmem:[%s1 + $0x3068] sm:$0xff]
  %v1600 = vld [vmem:[%s1 + $0x3070] sm:$0xff]
  %v1601 = vld [vmem:[%s1 + $0x3078] sm:$0xff]
  %v1602 = vld [vmem:[%s1 + $0x3080] sm:$0xff]
  %v1603 = vld [vmem:[%s1 + $0x3088] sm:$0xff]
  %v1604 = vld [vmem:[%s1 + $0x3090] sm:$0xff]
  %v1605 = vld [vmem:[%s1 + $0x3098] sm:$0xff]
  %v1606 = vld [vmem:[%s1 + $0x30a0] sm:$0xff]
  %v1607 = vld [vmem:[%s1 + $0x30a8] sm:$0xff]
  %v1608 = vld [vmem:[%s1 + $0x30b0] sm:$0xff]
  %v1609 = vld [vmem:[%s1 + $0x30b8] sm:$0xff]
  %v1610 = vld [vmem:[%s1 + $0x30c0] sm:$0xff]
  %v1611 = vld [vmem:[%s1 + $0x30c8] sm:$0xff]
  %v1612 = vld [vmem:[%s1 + $0x30d0] sm:$0xff]
  %v1613 = vld [vmem:[%s1 + $0x30d8] sm:$0xff]
  %v1614 = vld [vmem:[%s1 + $0x30e0] sm:$0xff]
  %v1615 = vld [vmem:[%s1 + $0x30e8] sm:$0xff]
  %v1616 = vld [vmem:[%s1 + $0x30f0] sm:$0xff]
  %v1617 = vld [vmem:[%s1 + $0x30f8] sm:$0xff]
  %v1618 = vld [vmem:[%s1 + $0x3100] sm:$0xff]
  %v1619 = vld [vmem:[%s1 + $0x3108] sm:$0xff]
  %v1620 = vld [vmem:[%s1 + $0x3110] sm:$0xff]
  %v1621 = vld [vmem:[%s1 + $0x3118] sm:$0xff]
  %v1622 = vld [vmem:[%s1 + $0x3120] sm:$0xff]
  %v1623 = vld [vmem:[%s1 + $0x3128] sm:$0xff]
  %v1624 = vld [vmem:[%s1 + $0x3130] sm:$0xff]
  %v1625 = vld [vmem:[%s1 + $0x3138] sm:$0xff]
  %v1626 = vld [vmem:[%s1 + $0x3140] sm:$0xff]
  %v1627 = vld [vmem:[%s1 + $0x3148] sm:$0xff]
  %v1628 = vld [vmem:[%s1 + $0x3150] sm:$0xff]
  %v1629 = vld [vmem:[%s1 + $0x3158] sm:$0xff]
  %v1630 = vld [vmem:[%s1 + $0x3160] sm:$0xff]
  %v1631 = vld [vmem:[%s1 + $0x3168] sm:$0xff]
  %v1632 = vld [vmem:[%s1 + $0x3170] sm:$0xff]
  %v1633 = vld [vmem:[%s1 + $0x3178] sm:$0xff]
  %v1634 = vld [vmem:[%s1 + $0x3180] sm:$0xff]
  %v1635 = vld [vmem:[%s1 + $0x3188] sm:$0xff]
  %v1636 = vld [vmem:[%s1 + $0x3190] sm:$0xff]
  %v1637 = vld [vmem:[%s1 + $0x3198] sm:$0xff]
  %v1638 = vld [vmem:[%s1 + $0x31a0] sm:$0xff]
  %v1639 = vld [vmem:[%s1 + $0x31a8] sm:$0xff]
  %v1640 = vld [vmem:[%s1 + $0x31b0] sm:$0xff]
  %v1641 = vld [vmem:[%s1 + $0x31b8] sm:$0xff]
  %v1642 = vld [vmem:[%s1 + $0x31c0] sm:$0xff]
  %v1643 = vld [vmem:[%s1 + $0x31c8] sm:$0xff]
  %v1644 = vld [vmem:[%s1 + $0x31d0] sm:$0xff]
  %v1645 = vld [vmem:[%s1 + $0x31d8] sm:$0xff]
  %v1646 = vld [vmem:[%s1 + $0x31e0] sm:$0xff]
  %v1647 = vld [vmem:[%s1 + $0x31e8] sm:$0xff]
  %v1648 = vld [vmem:[%s1 + $0x31f0] sm:$0xff]
  %v1649 = vld [vmem:[%s1 + $0x31f8] sm:$0xff]
  %v1650 = vld [vmem:[%s1 + $0x3200] sm:$0xff]
  %v1651 = vld [vmem:[%s1 + $0x3208] sm:$0xff]
  %v1652 = vld [vmem:[%s1 + $0x3210] sm:$0xff]
  %v1653 = vld [vmem:[%s1 + $0x3218] sm:$0xff]
  %v1654 = vld [vmem:[%s1 + $0x3220] sm:$0xff]
  %v1655 = vld [vmem:[%s1 + $0x3228] sm:$0xff]
  %v1656 = vld [vmem:[%s1 + $0x3230] sm:$0xff]
  %v1657 = vld [vmem:[%s1 + $0x3238] sm:$0xff]
  %v1658 = vld [vmem:[%s1 + $0x3240] sm:$0xff]
  %v1659 = vld [vmem:[%s1 + $0x3248] sm:$0xff]
  %v1660 = vld [vmem:[%s1 + $0x3250] sm:$0xff]
  %v1661 = vld [vmem:[%s1 + $0x3258] sm:$0xff]
  %v1662 = vld [vmem:[%s1 + $0x3260] sm:$0xff]
  %v1663 = vld [vmem:[%s1 + $0x3268] sm:$0xff]
  %v1664 = vld [vmem:[%s1 + $0x3270] sm:$0xff]
  %v1665 = vld [vmem:[%s1 + $0x3278] sm:$0xff]
  %v1666 = vld [vmem:[%s1 + $0x3280] sm:$0xff]
  %v1667 = vld [vmem:[%s1 + $0x3288] sm:$0xff]
  %v1668 = vld [vmem:[%s1 + $0x3290] sm:$0xff]
  %v1669 = vld [vmem:[%s1 + $0x3298] sm:$0xff]
  %v1670 = vld [vmem:[%s1 + $0x32a0] sm:$0xff]
  %v1671 = vld [vmem:[%s1 + $0x32a8] sm:$0xff]
  %v1672 = vld [vmem:[%s1 + $0x32b0] sm:$0xff]
  %v1673 = vld [vmem:[%s1 + $0x32b8] sm:$0xff]
  %v1674 = vld [vmem:[%s1 + $0x32c0] sm:$0xff]
  %v1675 = vld [vmem:[%s1 + $0x32c8] sm:$0xff]
  %v1676 = vld [vmem:[%s1 + $0x32d0] sm:$0xff]
  %v1677 = vld [vmem:[%s1 + $0x32d8] sm:$0xff]
  %v1678 = vld [vmem:[%s1 + $0x32e0] sm:$0xff]
  %v1679 = vld [vmem:[%s1 + $0x32e8] sm:$0xff]
  %v1680 = vld [vmem:[%s1 + $0x32f0] sm:$0xff]
  %v1681 = vld [vmem:[%s1 + $0x32f8] sm:$0xff]
  %v1682 = vld [vmem:[%s1 + $0x3300] sm:$0xff]
  %v1683 = vld [vmem:[%s1 + $0x3308] sm:$0xff]
  %v1684 = vld [vmem:[%s1 + $0x3310] sm:$0xff]
  %v1685 = vld [vmem:[%s1 + $0x3318] sm:$0xff]
  %v1686 = vld [vmem:[%s1 + $0x3320] sm:$0xff]
  %v1687 = vld [vmem:[%s1 + $0x3328] sm:$0xff]
  %v1688 = vld [vmem:[%s1 + $0x3330] sm:$0xff]
  %v1689 = vld [vmem:[%s1 + $0x3338] sm:$0xff]
  %v1690 = vld [vmem:[%s1 + $0x3340] sm:$0xff]
  %v1691 = vld [vmem:[%s1 + $0x3348] sm:$0xff]
  %v1692 = vld [vmem:[%s1 + $0x3350] sm:$0xff]
  %v1693 = vld [vmem:[%s1 + $0x3358] sm:$0xff]
  %v1694 = vld [vmem:[%s1 + $0x3360] sm:$0xff]
  %v1695 = vld [vmem:[%s1 + $0x3368] sm:$0xff]
  %v1696 = vld [vmem:[%s1 + $0x3370] sm:$0xff]
  %v1697 = vld [vmem:[%s1 + $0x3378] sm:$0xff]
  %v1698 = vld [vmem:[%s1 + $0x3380] sm:$0xff]
  %v1699 = vld [vmem:[%s1 + $0x3388] sm:$0xff]
  %v1700 = vld [vmem:[%s1 + $0x3390] sm:$0xff]
  %v1701 = vld [vmem:[%s1 + $0x3398] sm:$0xff]
  %v1702 = vld [vmem:[%s1 + $0x33a0] sm:$0xff]
  %v1703 = vld [vmem:[%s1 + $0x33a8] sm:$0xff]
  %v1704 = vld [vmem:[%s1 + $0x33b0] sm:$0xff]
  %v1705 = vld [vmem:[%s1 + $0x33b8] sm:$0xff]
  %v1706 = vld [vmem:[%s1 + $0x33c0] sm:$0xff]
  %v1707 = vld [vmem:[%s1 + $0x33c8] sm:$0xff]
  %v1708 = vld [vmem:[%s1 + $0x33d0] sm:$0xff]
  %v1709 = vld [vmem:[%s1 + $0x33d8] sm:$0xff]
  %v1710 = vld [vmem:[%s1 + $0x33e0] sm:$0xff]
  %v1711 = vld [vmem:[%s1 + $0x33e8] sm:$0xff]
  %v1712 = vld [vmem:[%s1 + $0x33f0] sm:$0xff]
  %v1713 = vld [vmem:[%s1 + $0x33f8] sm:$0xff]
  %v1714 = vld [vmem:[%s1 + $0x3400] sm:$0xff]
  %v1715 = vld [vmem:[%s1 + $0x3408] sm:$0xff]
  %v1716 = vld [vmem:[%s1 + $0x3410] sm:$0xff]
  %v1717 = vld [vmem:[%s1 + $0x3418] sm:$0xff]
  %v1718 = vld [vmem:[%s1 + $0x3420] sm:$0xff]
  %v1719 = vld [vmem:[%s1 + $0x3428] sm:$0xff]
  %v1720 = vld [vmem:[%s1 + $0x3430] sm:$0xff]
  %v1721 = vld [vmem:[%s1 + $0x3438] sm:$0xff]
  %v1722 = vld [vmem:[%s1 + $0x3440] sm:$0xff]
  %v1723 = vld [vmem:[%s1 + $0x3448] sm:$0xff]
  %v1724 = vld [vmem:[%s1 + $0x3450] sm:$0xff]
  %v1725 = vld [vmem:[%s1 + $0x3458] sm:$0xff]
  %v1726 = vld [vmem:[%s1 + $0x3460] sm:$0xff]
  %v1727 = vld [vmem:[%s1 + $0x3468] sm:$0xff]
  %v1728 = vld [vmem:[%s1 + $0x3470] sm:$0xff]
  %v1729 = vld [vmem:[%s1 + $0x3478] sm:$0xff]
  %v1730 = vld [vmem:[%s1 + $0x3480] sm:$0xff]
  %v1731 = vld [vmem:[%s1 + $0x3488] sm:$0xff]
  %v1732 = vld [vmem:[%s1 + $0x3490] sm:$0xff]
  %v1733 = vld [vmem:[%s1 + $0x3498] sm:$0xff]
  %v1734 = vld [vmem:[%s1 + $0x34a0] sm:$0xff]
  %v1735 = vld [vmem:[%s1 + $0x34a8] sm:$0xff]
  %v1736 = vld [vmem:[%s1 + $0x34b0] sm:$0xff]
  %v1737 = vld [vmem:[%s1 + $0x34b8] sm:$0xff]
  %v1738 = vld [vmem:[%s1 + $0x34c0] sm:$0xff]
  %v1739 = vld [vmem:[%s1 + $0x34c8] sm:$0xff]
  %v1740 = vld [vmem:[%s1 + $0x34d0] sm:$0xff]
  %v1741 = vld [vmem:[%s1 + $0x34d8] sm:$0xff]
  %v1742 = vld [vmem:[%s1 + $0x34e0] sm:$0xff]
  %v1743 = vld [vmem:[%s1 + $0x34e8] sm:$0xff]
  %v1744 = vld [vmem:[%s1 + $0x34f0] sm:$0xff]
  %v1745 = vld [vmem:[%s1 + $0x34f8] sm:$0xff]
  %v1746 = vld [vmem:[%s1 + $0x3500] sm:$0xff]
  %v1747 = vld [vmem:[%s1 + $0x3508] sm:$0xff]
  %v1748 = vld [vmem:[%s1 + $0x3510] sm:$0xff]
  %v1749 = vld [vmem:[%s1 + $0x3518] sm:$0xff]
  %v1750 = vld [vmem:[%s1 + $0x3520] sm:$0xff]
  %v1751 = vld [vmem:[%s1 + $0x3528] sm:$0xff]
  %v1752 = vld [vmem:[%s1 + $0x3530] sm:$0xff]
  %v1753 = vld [vmem:[%s1 + $0x3538] sm:$0xff]
  %v1754 = vld [vmem:[%s1 + $0x3540] sm:$0xff]
  %v1755 = vld [vmem:[%s1 + $0x3548] sm:$0xff]
  %v1756 = vld [vmem:[%s1 + $0x3550] sm:$0xff]
  %v1757 = vld [vmem:[%s1 + $0x3558] sm:$0xff]
  %v1758 = vld [vmem:[%s1 + $0x3560] sm:$0xff]
  %v1759 = vld [vmem:[%s1 + $0x3568] sm:$0xff]
  %v1760 = vld [vmem:[%s1 + $0x3570] sm:$0xff]
  %v1761 = vld [vmem:[%s1 + $0x3578] sm:$0xff]
  %v1762 = vld [vmem:[%s1 + $0x3580] sm:$0xff]
  %v1763 = vld [vmem:[%s1 + $0x3588] sm:$0xff]
  %v1764 = vld [vmem:[%s1 + $0x3590] sm:$0xff]
  %v1765 = vld [vmem:[%s1 + $0x3598] sm:$0xff]
  %v1766 = vld [vmem:[%s1 + $0x35a0] sm:$0xff]
  %v1767 = vld [vmem:[%s1 + $0x35a8] sm:$0xff]
  %v1768 = vld [vmem:[%s1 + $0x35b0] sm:$0xff]
  %v1769 = vld [vmem:[%s1 + $0x35b8] sm:$0xff]
  %v1770 = vld [vmem:[%s1 + $0x35c0] sm:$0xff]
  %v1771 = vld [vmem:[%s1 + $0x35c8] sm:$0xff]
  %v1772 = vld [vmem:[%s1 + $0x35d0] sm:$0xff]
  %v1773 = vld [vmem:[%s1 + $0x35d8] sm:$0xff]
  %v1774 = vld [vmem:[%s1 + $0x35e0] sm:$0xff]
  %v1775 = vld [vmem:[%s1 + $0x35e8] sm:$0xff]
  %v1776 = vld [vmem:[%s1 + $0x35f0] sm:$0xff]
  %v1777 = vld [vmem:[%s1 + $0x35f8] sm:$0xff]
  %v1778 = vld [vmem:[%s1 + $0x3600] sm:$0xff]
  %v1779 = vld [vmem:[%s1 + $0x3608] sm:$0xff]
  %v1780 = vld [vmem:[%s1 + $0x3610] sm:$0xff]
  %v1781 = vld [vmem:[%s1 + $0x3618] sm:$0xff]
  %v1782 = vld [vmem:[%s1 + $0x3620] sm:$0xff]
  %v1783 = vld [vmem:[%s1 + $0x3628] sm:$0xff]
  %v1784 = vld [vmem:[%s1 + $0x3630] sm:$0xff]
  %v1785 = vld [vmem:[%s1 + $0x3638] sm:$0xff]
  %v1786 = vld [vmem:[%s1 + $0x3640] sm:$0xff]
  %v1787 = vld [vmem:[%s1 + $0x3648] sm:$0xff]
  %v1788 = vld [vmem:[%s1 + $0x3650] sm:$0xff]
  %v1789 = vld [vmem:[%s1 + $0x3658] sm:$0xff]
  %v1790 = vld [vmem:[%s1 + $0x3660] sm:$0xff]
  %v1791 = vld [vmem:[%s1 + $0x3668] sm:$0xff]
  %v1792 = vld [vmem:[%s1 + $0x3670] sm:$0xff]
  %v1793 = vld [vmem:[%s1 + $0x3678] sm:$0xff]
  %v1794 = vld [vmem:[%s1 + $0x3680] sm:$0xff]
  %v1795 = vld [vmem:[%s1 + $0x3688] sm:$0xff]
  %v1796 = vld [vmem:[%s1 + $0x3690] sm:$0xff]
  %v1797 = vld [vmem:[%s1 + $0x3698] sm:$0xff]
  %v1798 = vld [vmem:[%s1 + $0x36a0] sm:$0xff]
  %v1799 = vld [vmem:[%s1 + $0x36a8] sm:$0xff]
  %v1800 = vld [vmem:[%s1 + $0x36b0] sm:$0xff]
  %v1801 = vld [vmem:[%s1 + $0x36b8] sm:$0xff]
  %v1802 = vld [vmem:[%s1 + $0x36c0] sm:$0xff]
  %v1803 = vld [vmem:[%s1 + $0x36c8] sm:$0xff]
  %v1804 = vld [vmem:[%s1 + $0x36d0] sm:$0xff]
  %v1805 = vld [vmem:[%s1 + $0x36d8] sm:$0xff]
  %v1806 = vld [vmem:[%s1 + $0x36e0] sm:$0xff]
  %v1807 = vld [vmem:[%s1 + $0x36e8] sm:$0xff]
  %v1808 = vld [vmem:[%s1 + $0x36f0] sm:$0xff]
  %v1809 = vld [vmem:[%s1 + $0x36f8] sm:$0xff]
  %v1810 = vld [vmem:[%s1 + $0x3700] sm:$0xff]
  %v1811 = vld [vmem:[%s1 + $0x3708] sm:$0xff]
  %v1812 = vld [vmem:[%s1 + $0x3710] sm:$0xff]
  %v1813 = vld [vmem:[%s1 + $0x3718] sm:$0xff]
  %v1814 = vld [vmem:[%s1 + $0x3720] sm:$0xff]
  %v1815 = vld [vmem:[%s1 + $0x3728] sm:$0xff]
  %v1816 = vld [vmem:[%s1 + $0x3730] sm:$0xff]
  %v1817 = vld [vmem:[%s1 + $0x3738] sm:$0xff]
  %v1818 = vld [vmem:[%s1 + $0x3740] sm:$0xff]
  %v1819 = vld [vmem:[%s1 + $0x3748] sm:$0xff]
  %v1820 = vld [vmem:[%s1 + $0x3750] sm:$0xff]
  %v1821 = vld [vmem:[%s1 + $0x3758] sm:$0xff]
  %v1822 = vld [vmem:[%s1 + $0x3760] sm:$0xff]
  %v1823 = vld [vmem:[%s1 + $0x3768] sm:$0xff]
  %v1824 = vld [vmem:[%s1 + $0x3770] sm:$0xff]
  %v1825 = vld [vmem:[%s1 + $0x3778] sm:$0xff]
  %v1826 = vld [vmem:[%s1 + $0x3780] sm:$0xff]
  %v1827 = vld [vmem:[%s1 + $0x3788] sm:$0xff]
  %v1828 = vld [vmem:[%s1 + $0x3790] sm:$0xff]
  %v1829 = vld [vmem:[%s1 + $0x3798] sm:$0xff]
  %v1830 = vld [vmem:[%s1 + $0x37a0] sm:$0xff]
  %v1831 = vld [vmem:[%s1 + $0x37a8] sm:$0xff]
  %v1832 = vld [vmem:[%s1 + $0x37b0] sm:$0xff]
  %v1833 = vld [vmem:[%s1 + $0x37b8] sm:$0xff]
  %v1834 = vld [vmem:[%s1 + $0x37c0] sm:$0xff]
  %v1835 = vld [vmem:[%s1 + $0x37c8] sm:$0xff]
  %v1836 = vld [vmem:[%s1 + $0x37d0] sm:$0xff]
  %v1837 = vld [vmem:[%s1 + $0x37d8] sm:$0xff]
  %v1838 = vld [vmem:[%s1 + $0x37e0] sm:$0xff]
  %v1839 = vld [vmem:[%s1 + $0x37e8] sm:$0xff]
  %v1840 = vld [vmem:[%s1 + $0x37f0] sm:$0xff]
  %v1841 = vld [vmem:[%s1 + $0x37f8] sm:$0xff]
  %v1842 = vld [vmem:[%s1 + $0x3800] sm:$0xff]
  %v1843 = vld [vmem:[%s1 + $0x3808] sm:$0xff]
  %v1844 = vld [vmem:[%s1 + $0x3810] sm:$0xff]
  %v1845 = vld [vmem:[%s1 + $0x3818] sm:$0xff]
  %v1846 = vld [vmem:[%s1 + $0x3820] sm:$0xff]
  %v1847 = vld [vmem:[%s1 + $0x3828] sm:$0xff]
  %v1848 = vld [vmem:[%s1 + $0x3830] sm:$0xff]
  %v1849 = vld [vmem:[%s1 + $0x3838] sm:$0xff]
  %v1850 = vld [vmem:[%s1 + $0x3840] sm:$0xff]
  %v1851 = vld [vmem:[%s1 + $0x3848] sm:$0xff]
  %v1852 = vld [vmem:[%s1 + $0x3850] sm:$0xff]
  %v1853 = vld [vmem:[%s1 + $0x3858] sm:$0xff]
  %v1854 = vld [vmem:[%s1 + $0x3860] sm:$0xff]
  %v1855 = vld [vmem:[%s1 + $0x3868] sm:$0xff]
  %v1856 = vld [vmem:[%s1 + $0x3870] sm:$0xff]
  %v1857 = vld [vmem:[%s1 + $0x3878] sm:$0xff]
  %v1858 = vld [vmem:[%s1 + $0x3880] sm:$0xff]
  %v1859 = vld [vmem:[%s1 + $0x3888] sm:$0xff]
  %v1860 = vld [vmem:[%s1 + $0x3890] sm:$0xff]
  %v1861 = vld [vmem:[%s1 + $0x3898] sm:$0xff]
  %v1862 = vld [vmem:[%s1 + $0x38a0] sm:$0xff]
  %v1863 = vld [vmem:[%s1 + $0x38a8] sm:$0xff]
  %v1864 = vld [vmem:[%s1 + $0x38b0] sm:$0xff]
  %v1865 = vld [vmem:[%s1 + $0x38b8] sm:$0xff]
  %v1866 = vld [vmem:[%s1 + $0x38c0] sm:$0xff]
  %v1867 = vld [vmem:[%s1 + $0x38c8] sm:$0xff]
  %v1868 = vld [vmem:[%s1 + $0x38d0] sm:$0xff]
  %v1869 = vld [vmem:[%s1 + $0x38d8] sm:$0xff]
  %v1870 = vld [vmem:[%s1 + $0x38e0] sm:$0xff]
  %v1871 = vld [vmem:[%s1 + $0x38e8] sm:$0xff]
  %v1872 = vld [vmem:[%s1 + $0x38f0] sm:$0xff]
  %v1873 = vld [vmem:[%s1 + $0x38f8] sm:$0xff]
  %v1874 = vld [vmem:[%s1 + $0x3900] sm:$0xff]
  %v1875 = vld [vmem:[%s1 + $0x3908] sm:$0xff]
  %v1876 = vld [vmem:[%s1 + $0x3910] sm:$0xff]
  %v1877 = vld [vmem:[%s1 + $0x3918] sm:$0xff]
  %v1878 = vld [vmem:[%s1 + $0x3920] sm:$0xff]
  %v1879 = vld [vmem:[%s1 + $0x3928] sm:$0xff]
  %v1880 = vld [vmem:[%s1 + $0x3930] sm:$0xff]
  %v1881 = vld [vmem:[%s1 + $0x3938] sm:$0xff]
  %v1882 = vld [vmem:[%s1 + $0x3940] sm:$0xff]
  %v1883 = vld [vmem:[%s1 + $0x3948] sm:$0xff]
  %v1884 = vld [vmem:[%s1 + $0x3950] sm:$0xff]
  %v1885 = vld [vmem:[%s1 + $0x3958] sm:$0xff]
  %v1886 = vld [vmem:[%s1 + $0x3960] sm:$0xff]
  %v1887 = vld [vmem:[%s1 + $0x3968] sm:$0xff]
  %v1888 = vld [vmem:[%s1 + $0x3970] sm:$0xff]
  %v1889 = vld [vmem:[%s1 + $0x3978] sm:$0xff]
  %v1890 = vld [vmem:[%s1 + $0x3980] sm:$0xff]
  %v1891 = vld [vmem:[%s1 + $0x3988] sm:$0xff]
  %v1892 = vld [vmem:[%s1 + $0x3990] sm:$0xff]
  %v1893 = vld [vmem:[%s1 + $0x3998] sm:$0xff]
  %v1894 = vld [vmem:[%s1 + $0x39a0] sm:$0xff]
  %v1895 = vld [vmem:[%s1 + $0x39a8] sm:$0xff]
  %v1896 = vld [vmem:[%s1 + $0x39b0] sm:$0xff]
  %v1897 = vld [vmem:[%s1 + $0x39b8] sm:$0xff]
  %v1898 = vld [vmem:[%s1 + $0x39c0] sm:$0xff]
  %v1899 = vld [vmem:[%s1 + $0x39c8] sm:$0xff]
  %v1900 = vld [vmem:[%s1 + $0x39d0] sm:$0xff]
  %v1901 = vld [vmem:[%s1 + $0x39d8] sm:$0xff]
  %v1902 = vld [vmem:[%s1 + $0x39e0] sm:$0xff]
  %v1903 = vld [vmem:[%s1 + $0x39e8] sm:$0xff]
  %v1904 = vld [vmem:[%s1 + $0x39f0] sm:$0xff]
  %v1905 = vld [vmem:[%s1 + $0x39f8] sm:$0xff]
  %v1906 = vld [vmem:[%s1 + $0x3a00] sm:$0xff]
  %v1907 = vld [vmem:[%s1 + $0x3a08] sm:$0xff]
  %v1908 = vld [vmem:[%s1 + $0x3a10] sm:$0xff]
  %v1909 = vld [vmem:[%s1 + $0x3a18] sm:$0xff]
  %v1910 = vld [vmem:[%s1 + $0x3a20] sm:$0xff]
  %v1911 = vld [vmem:[%s1 + $0x3a28] sm:$0xff]
  %v1912 = vld [vmem:[%s1 + $0x3a30] sm:$0xff]
  %v1913 = vld [vmem:[%s1 + $0x3a38] sm:$0xff]
  %v1914 = vld [vmem:[%s1 + $0x3a40] sm:$0xff]
  %v1915 = vld [vmem:[%s1 + $0x3a48] sm:$0xff]
  %v1916 = vld [vmem:[%s1 + $0x3a50] sm:$0xff]
  %v1917 = vld [vmem:[%s1 + $0x3a58] sm:$0xff]
  %v1918 = vld [vmem:[%s1 + $0x3a60] sm:$0xff]
  %v1919 = vld [vmem:[%s1 + $0x3a68] sm:$0xff]
  %v1920 = vld [vmem:[%s1 + $0x3a70] sm:$0xff]
  %v1921 = vld [vmem:[%s1 + $0x3a78] sm:$0xff]
  %v1922 = vld [vmem:[%s1 + $0x3a80] sm:$0xff]
  %v1923 = vld [vmem:[%s1 + $0x3a88] sm:$0xff]
  %v1924 = vld [vmem:[%s1 + $0x3a90] sm:$0xff]
  %v1925 = vld [vmem:[%s1 + $0x3a98] sm:$0xff]
  %v1926 = vld [vmem:[%s1 + $0x3aa0] sm:$0xff]
  %v1927 = vld [vmem:[%s1 + $0x3aa8] sm:$0xff]
  %v1928 = vld [vmem:[%s1 + $0x3ab0] sm:$0xff]
  %v1929 = vld [vmem:[%s1 + $0x3ab8] sm:$0xff]
  %v1930 = vld [vmem:[%s1 + $0x3ac0] sm:$0xff]
  %v1931 = vld [vmem:[%s1 + $0x3ac8] sm:$0xff]
  %v1932 = vld [vmem:[%s1 + $0x3ad0] sm:$0xff]
  %v1933 = vld [vmem:[%s1 + $0x3ad8] sm:$0xff]
  %v1934 = vld [vmem:[%s1 + $0x3ae0] sm:$0xff]
  %v1935 = vld [vmem:[%s1 + $0x3ae8] sm:$0xff]
  %v1936 = vld [vmem:[%s1 + $0x3af0] sm:$0xff]
  %v1937 = vld [vmem:[%s1 + $0x3af8] sm:$0xff]
  %v1938 = vld [vmem:[%s1 + $0x3b00] sm:$0xff]
  %v1939 = vld [vmem:[%s1 + $0x3b08] sm:$0xff]
  %v1940 = vld [vmem:[%s1 + $0x3b10] sm:$0xff]
  %v1941 = vld [vmem:[%s1 + $0x3b18] sm:$0xff]
  %v1942 = vld [vmem:[%s1 + $0x3b20] sm:$0xff]
  %v1943 = vld [vmem:[%s1 + $0x3b28] sm:$0xff]
  %v1944 = vld [vmem:[%s1 + $0x3b30] sm:$0xff]
  %v1945 = vld [vmem:[%s1 + $0x3b38] sm:$0xff]
  %v1946 = vld [vmem:[%s1 + $0x3b40] sm:$0xff]
  %v1947 = vld [vmem:[%s1 + $0x3b48] sm:$0xff]
  %v1948 = vld [vmem:[%s1 + $0x3b50] sm:$0xff]
  %v1949 = vld [vmem:[%s1 + $0x3b58] sm:$0xff]
  %v1950 = vld [vmem:[%s1 + $0x3b60] sm:$0xff]
  %v1951 = vld [vmem:[%s1 + $0x3b68] sm:$0xff]
  %v1952 = vld [vmem:[%s1 + $0x3b70] sm:$0xff]
  %v1953 = vld [vmem:[%s1 + $0x3b78] sm:$0xff]
  %v1954 = vld [vmem:[%s1 + $0x3b80] sm:$0xff]
  %v1955 = vld [vmem:[%s1 + $0x3b88] sm:$0xff]
  %v1956 = vld [vmem:[%s1 + $0x3b90] sm:$0xff]
  %v1957 = vld [vmem:[%s1 + $0x3b98] sm:$0xff]
  %v1958 = vld [vmem:[%s1 + $0x3ba0] sm:$0xff]
  %v1959 = vld [vmem:[%s1 + $0x3ba8] sm:$0xff]
  %v1960 = vld [vmem:[%s1 + $0x3bb0] sm:$0xff]
  %v1961 = vld [vmem:[%s1 + $0x3bb8] sm:$0xff]
  %v1962 = vld [vmem:[%s1 + $0x3bc0] sm:$0xff]
  %v1963 = vld [vmem:[%s1 + $0x3bc8] sm:$0xff]
  %v1964 = vld [vmem:[%s1 + $0x3bd0] sm:$0xff]
  %v1965 = vld [vmem:[%s1 + $0x3bd8] sm:$0xff]
  %v1966 = vld [vmem:[%s1 + $0x3be0] sm:$0xff]
  %v1967 = vld [vmem:[%s1 + $0x3be8] sm:$0xff]
  %v1968 = vld [vmem:[%s1 + $0x3bf0] sm:$0xff]
  %v1969 = vld [vmem:[%s1 + $0x3bf8] sm:$0xff]
  %v1970 = vld [vmem:[%s2] sm:$0xf]
  %v1972 = vlaneseq
  %v1973 = vshrl.u32 %v1972, 7
  %v1974 = vsub.s32 0, %v1973
  %v1975 = vrot.slane %v1970, %v1974
  %v1976 = vlaneseq
  %v1977 = vshrl.u32 %v1976, 7
  %v1978 = vsub.s32 1, %v1977
  %v1979 = vrot.slane %v1970, %v1978
  %v1980 = vlaneseq
  %v1981 = vshrl.u32 %v1980, 7
  %v1982 = vsub.s32 2, %v1981
  %v1983 = vrot.slane %v1970, %v1982
  %v1984 = vlaneseq
  %v1985 = vshrl.u32 %v1984, 7
  %v1986 = vsub.s32 3, %v1985
  %v1987 = vrot.slane %v1970, %v1986
  %1992 = vmatprep.subr.mxu0 %v51
  %1993 = vmatpush1.msra.mxu0 %v50
  %1994 = vmatprep.subr.mxu0 %v55
  %1995 = vmatpush1.msra.mxu0 %v54
  %1996 = vmatprep.subr.mxu0 %v59
  %1997 = vmatpush1.msra.mxu0 %v58
  %1998 = vmatprep.subr.mxu0 %v63
  %1999 = vmatpush1.msra.mxu0 %v62
  %2000 = vmatprep.subr.mxu0 %v67
  %2001 = vmatpush1.msra.mxu0 %v66
  %2002 = vmatprep.subr.mxu0 %v71
  %2003 = vmatpush1.msra.mxu0 %v70
  %2004 = vmatprep.subr.mxu0 %v75
  %2005 = vmatpush1.msra.mxu0 %v74
  %2006 = vmatprep.subr.mxu0 %v79
  %2007 = vmatpush1.msra.mxu0 %v78
  %2008 = vmatprep.subr.mxu0 %v83
  %2009 = vmatpush1.msra.mxu0 %v82
  %2010 = vmatprep.subr.mxu0 %v87
  %2011 = vmatpush1.msra.mxu0 %v86
  %2012 = vmatprep.subr.mxu0 %v91
  %2013 = vmatpush1.msra.mxu0 %v90
  %2014 = vmatprep.subr.mxu0 %v95
  %2015 = vmatpush1.msra.mxu0 %v94
  %2016 = vmatprep.subr.mxu0 %v99
  %2017 = vmatpush1.msra.mxu0 %v98
  %2018 = vmatprep.subr.mxu0 %v103
  %2019 = vmatpush1.msra.mxu0 %v102
  %2020 = vmatprep.subr.mxu0 %v107
  %2021 = vmatpush1.msra.mxu0 %v106
  %2022 = vmatprep.subr.mxu0 %v111
  %2023 = vmatpush1.msra.mxu0 %v110
  %2024 = vmatprep.subr.mxu0 %v115
  %2025 = vmatpush1.msra.mxu0 %v114
  %2026 = vmatprep.subr.mxu0 %v119
  %2027 = vmatpush1.msra.mxu0 %v118
  %2028 = vmatprep.subr.mxu0 %v123
  %2029 = vmatpush1.msra.mxu0 %v122
  %2030 = vmatprep.subr.mxu0 %v127
  %2031 = vmatpush1.msra.mxu0 %v126
  %2032 = vmatprep.subr.mxu0 %v131
  %2033 = vmatpush1.msra.mxu0 %v130
  %2034 = vmatprep.subr.mxu0 %v135
  %2035 = vmatpush1.msra.mxu0 %v134
  %2036 = vmatprep.subr.mxu0 %v139
  %2037 = vmatpush1.msra.mxu0 %v138
  %2038 = vmatprep.subr.mxu0 %v143
  %2039 = vmatpush1.msra.mxu0 %v142
  %2040 = vmatprep.subr.mxu0 %v147
  %2041 = vmatpush1.msra.mxu0 %v146
  %2042 = vmatprep.subr.mxu0 %v151
  %2043 = vmatpush1.msra.mxu0 %v150
  %2044 = vmatprep.subr.mxu0 %v155
  %2045 = vmatpush1.msra.mxu0 %v154
  %2046 = vmatprep.subr.mxu0 %v159
  %2047 = vmatpush1.msra.mxu0 %v158
  %2048 = vmatprep.subr.mxu0 %v163
  %2049 = vmatpush1.msra.mxu0 %v162
  %2050 = vmatprep.subr.mxu0 %v167
  %2051 = vmatpush1.msra.mxu0 %v166
  %2052 = vmatprep.subr.mxu0 %v171
  %2053 = vmatpush1.msra.mxu0 %v170
  %2054 = vmatprep.subr.mxu0 %v175
  %2055 = vmatpush1.msra.mxu0 %v174
  %2056 = vmatprep.mubr.f32.mxu0 %v21
  %2057 = vmatmul.mubr.f32.gmra.mrb[0].mxu0 %v20
  %v2058 = vpop.f32.mrb[0].mxu0
  %v2059 = vadd.f32 %v1975, %v2058
  %v2060 = vpop.f32.mrb[0].mxu0
  %v2061 = vadd.f32 %v1979, %v2060
  %2062 = vdwg.mxu0
  %2063 = vmatprep.subr.mxu0 %v179
  %2064 = vmatpush1.msra.mxu0 %v178
  %2065 = vmatprep.subr.mxu0 %v183
  %2066 = vmatpush1.msra.mxu0 %v182
  %2067 = vmatprep.subr.mxu0 %v187
  %2068 = vmatpush1.msra.mxu0 %v186
  %2069 = vmatprep.subr.mxu0 %v191
  %2070 = vmatpush1.msra.mxu0 %v190
  %2071 = vmatprep.subr.mxu0 %v195
  %2072 = vmatpush1.msra.mxu0 %v194
  %2073 = vmatprep.subr.mxu0 %v199
  %2074 = vmatpush1.msra.mxu0 %v198
  %2075 = vmatprep.subr.mxu0 %v203
  %2076 = vmatpush1.msra.mxu0 %v202
  %2077 = vmatprep.subr.mxu0 %v207
  %2078 = vmatpush1.msra.mxu0 %v206
  %2079 = vmatprep.subr.mxu0 %v211
  %2080 = vmatpush1.msra.mxu0 %v210
  %2081 = vmatprep.subr.mxu0 %v215
  %2082 = vmatpush1.msra.mxu0 %v214
  %2083 = vmatprep.subr.mxu0 %v219
  %2084 = vmatpush1.msra.mxu0 %v218
  %2085 = vmatprep.subr.mxu0 %v223
  %2086 = vmatpush1.msra.mxu0 %v222
  %2087 = vmatprep.subr.mxu0 %v227
  %2088 = vmatpush1.msra.mxu0 %v226
  %2089 = vmatprep.subr.mxu0 %v231
  %2090 = vmatpush1.msra.mxu0 %v230
  %2091 = vmatprep.subr.mxu0 %v235
  %2092 = vmatpush1.msra.mxu0 %v234
  %2093 = vmatprep.subr.mxu0 %v239
  %2094 = vmatpush1.msra.mxu0 %v238
  %2095 = vmatprep.subr.mxu0 %v243
  %2096 = vmatpush1.msra.mxu0 %v242
  %2097 = vmatprep.subr.mxu0 %v247
  %2098 = vmatpush1.msra.mxu0 %v246
  %2099 = vmatprep.subr.mxu0 %v251
  %2100 = vmatpush1.msra.mxu0 %v250
  %2101 = vmatprep.subr.mxu0 %v255
  %2102 = vmatpush1.msra.mxu0 %v254
  %2103 = vmatprep.subr.mxu0 %v259
  %2104 = vmatpush1.msra.mxu0 %v258
  %2105 = vmatprep.subr.mxu0 %v263
  %2106 = vmatpush1.msra.mxu0 %v262
  %2107 = vmatprep.subr.mxu0 %v267
  %2108 = vmatpush1.msra.mxu0 %v266
  %2109 = vmatprep.subr.mxu0 %v271
  %2110 = vmatpush1.msra.mxu0 %v270
  %2111 = vmatprep.subr.mxu0 %v275
  %2112 = vmatpush1.msra.mxu0 %v274
  %2113 = vmatprep.subr.mxu0 %v279
  %2114 = vmatpush1.msra.mxu0 %v278
  %2115 = vmatprep.subr.mxu0 %v283
  %2116 = vmatpush1.msra.mxu0 %v282
  %2117 = vmatprep.subr.mxu0 %v287
  %2118 = vmatpush1.msra.mxu0 %v286
  %2119 = vmatprep.subr.mxu0 %v291
  %2120 = vmatpush1.msra.mxu0 %v290
  %2121 = vmatprep.subr.mxu0 %v295
  %2122 = vmatpush1.msra.mxu0 %v294
  %2123 = vmatprep.subr.mxu0 %v299
  %2124 = vmatpush1.msra.mxu0 %v298
  %2125 = vmatprep.subr.mxu0 %v303
  %2126 = vmatpush1.msra.mxu0 %v302
  %2127 = vmatprep.mubr.f32.mxu0 %v23
  %2128 = vmatmul.mubr.f32.gmra.mrb[0].mxu0 %v22
  %v2129 = vpop.f32.mrb[0].mxu0
  %v2130 = vadd.f32 %v2059, %v2129
  %v2131 = vpop.f32.mrb[0].mxu0
  %v2132 = vadd.f32 %v2061, %v2131
  %2133 = vdwg.mxu0
  %2134 = vmatprep.subr.mxu0 %v307
  %2135 = vmatpush1.msra.mxu0 %v306
  %2136 = vmatprep.subr.mxu0 %v311
  %2137 = vmatpush1.msra.mxu0 %v310
  %2138 = vmatprep.subr.mxu0 %v315
  %2139 = vmatpush1.msra.mxu0 %v314
  %2140 = vmatprep.subr.mxu0 %v319
  %2141 = vmatpush1.msra.mxu0 %v318
  %2142 = vmatprep.subr.mxu0 %v323
  %2143 = vmatpush1.msra.mxu0 %v322
  %2144 = vmatprep.subr.mxu0 %v327
  %2145 = vmatpush1.msra.mxu0 %v326
  %2146 = vmatprep.subr.mxu0 %v331
  %2147 = vmatpush1.msra.mxu0 %v330
  %2148 = vmatprep.subr.mxu0 %v335
  %2149 = vmatpush1.msra.mxu0 %v334
  %2150 = vmatprep.subr.mxu0 %v339
  %2151 = vmatpush1.msra.mxu0 %v338
  %2152 = vmatprep.subr.mxu0 %v343
  %2153 = vmatpush1.msra.mxu0 %v342
  %2154 = vmatprep.subr.mxu0 %v347
  %2155 = vmatpush1.msra.mxu0 %v346
  %2156 = vmatprep.subr.mxu0 %v351
  %2157 = vmatpush1.msra.mxu0 %v350
  %2158 = vmatprep.subr.mxu0 %v355
  %2159 = vmatpush1.msra.mxu0 %v354
  %2160 = vmatprep.subr.mxu0 %v359
  %2161 = vmatpush1.msra.mxu0 %v358
  %2162 = vmatprep.subr.mxu0 %v363
  %2163 = vmatpush1.msra.mxu0 %v362
  %2164 = vmatprep.subr.mxu0 %v367
  %2165 = vmatpush1.msra.mxu0 %v366
  %2166 = vmatprep.subr.mxu0 %v371
  %2167 = vmatpush1.msra.mxu0 %v370
  %2168 = vmatprep.subr.mxu0 %v375
  %2169 = vmatpush1.msra.mxu0 %v374
  %2170 = vmatprep.subr.mxu0 %v379
  %2171 = vmatpush1.msra.mxu0 %v378
  %2172 = vmatprep.subr.mxu0 %v383
  %2173 = vmatpush1.msra.mxu0 %v382
  %2174 = vmatprep.subr.mxu0 %v387
  %2175 = vmatpush1.msra.mxu0 %v386
  %2176 = vmatprep.subr.mxu0 %v391
  %2177 = vmatpush1.msra.mxu0 %v390
  %2178 = vmatprep.subr.mxu0 %v395
  %2179 = vmatpush1.msra.mxu0 %v394
  %2180 = vmatprep.subr.mxu0 %v399
  %2181 = vmatpush1.msra.mxu0 %v398
  %2182 = vmatprep.subr.mxu0 %v403
  %2183 = vmatpush1.msra.mxu0 %v402
  %2184 = vmatprep.subr.mxu0 %v407
  %2185 = vmatpush1.msra.mxu0 %v406
  %2186 = vmatprep.subr.mxu0 %v411
  %2187 = vmatpush1.msra.mxu0 %v410
  %2188 = vmatprep.subr.mxu0 %v415
  %2189 = vmatpush1.msra.mxu0 %v414
  %2190 = vmatprep.subr.mxu0 %v419
  %2191 = vmatpush1.msra.mxu0 %v418
  %2192 = vmatprep.subr.mxu0 %v423
  %2193 = vmatpush1.msra.mxu0 %v422
  %2194 = vmatprep.subr.mxu0 %v427
  %2195 = vmatpush1.msra.mxu0 %v426
  %2196 = vmatprep.subr.mxu0 %v431
  %2197 = vmatpush1.msra.mxu0 %v430
  %2198 = vmatprep.mubr.f32.mxu0 %v25
  %2199 = vmatmul.mubr.f32.gmra.mrb[0].mxu0 %v24
  %v2200 = vpop.f32.mrb[0].mxu0
  %v2201 = vadd.f32 %v2130, %v2200
  %v2202 = vpop.f32.mrb[0].mxu0
  %v2203 = vadd.f32 %v2132, %v2202
  %2204 = vdwg.mxu0
  %2205 = vmatprep.subr.mxu0 %v435
  %2206 = vmatpush1.msra.mxu0 %v434
  %2207 = vmatprep.subr.mxu0 %v439
  %2208 = vmatpush1.msra.mxu0 %v438
  %2209 = vmatprep.subr.mxu0 %v443
  %2210 = vmatpush1.msra.mxu0 %v442
  %2211 = vmatprep.subr.mxu0 %v447
  %2212 = vmatpush1.msra.mxu0 %v446
  %2213 = vmatprep.subr.mxu0 %v451
  %2214 = vmatpush1.msra.mxu0 %v450
  %2215 = vmatprep.subr.mxu0 %v455
  %2216 = vmatpush1.msra.mxu0 %v454
  %2217 = vmatprep.subr.mxu0 %v459
  %2218 = vmatpush1.msra.mxu0 %v458
  %2219 = vmatprep.subr.mxu0 %v463
  %2220 = vmatpush1.msra.mxu0 %v462
  %2221 = vmatprep.subr.mxu0 %v467
  %2222 = vmatpush1.msra.mxu0 %v466
  %2223 = vmatprep.subr.mxu0 %v471
  %2224 = vmatpush1.msra.mxu0 %v470
  %2225 = vmatprep.subr.mxu0 %v475
  %2226 = vmatpush1.msra.mxu0 %v474
  %2227 = vmatprep.subr.mxu0 %v479
  %2228 = vmatpush1.msra.mxu0 %v478
  %2229 = vmatprep.subr.mxu0 %v483
  %2230 = vmatpush1.msra.mxu0 %v482
  %2231 = vmatprep.subr.mxu0 %v487
  %2232 = vmatpush1.msra.mxu0 %v486
  %2233 = vmatprep.subr.mxu0 %v491
  %2234 = vmatpush1.msra.mxu0 %v490
  %2235 = vmatprep.subr.mxu0 %v495
  %2236 = vmatpush1.msra.mxu0 %v494
  %2237 = vmatprep.subr.mxu0 %v499
  %2238 = vmatpush1.msra.mxu0 %v498
  %2239 = vmatprep.subr.mxu0 %v503
  %2240 = vmatpush1.msra.mxu0 %v502
  %2241 = vmatprep.subr.mxu0 %v507
  %2242 = vmatpush1.msra.mxu0 %v506
  %2243 = vmatprep.subr.mxu0 %v511
  %2244 = vmatpush1.msra.mxu0 %v510
  %2245 = vmatprep.subr.mxu0 %v515
  %2246 = vmatpush1.msra.mxu0 %v514
  %2247 = vmatprep.subr.mxu0 %v519
  %2248 = vmatpush1.msra.mxu0 %v518
  %2249 = vmatprep.subr.mxu0 %v523
  %2250 = vmatpush1.msra.mxu0 %v522
  %2251 = vmatprep.subr.mxu0 %v527
  %2252 = vmatpush1.msra.mxu0 %v526
  %2253 = vmatprep.subr.mxu0 %v531
  %2254 = vmatpush1.msra.mxu0 %v530
  %2255 = vmatprep.subr.mxu0 %v535
  %2256 = vmatpush1.msra.mxu0 %v534
  %2257 = vmatprep.subr.mxu0 %v539
  %2258 = vmatpush1.msra.mxu0 %v538
  %2259 = vmatprep.subr.mxu0 %v543
  %2260 = vmatpush1.msra.mxu0 %v542
  %2261 = vmatprep.subr.mxu0 %v547
  %2262 = vmatpush1.msra.mxu0 %v546
  %2263 = vmatprep.subr.mxu0 %v551
  %2264 = vmatpush1.msra.mxu0 %v550
  %2265 = vmatprep.subr.mxu0 %v555
  %2266 = vmatpush1.msra.mxu0 %v554
  %2267 = vmatprep.subr.mxu0 %v559
  %2268 = vmatpush1.msra.mxu0 %v558
  %2269 = vmatprep.mubr.f32.mxu0 %v27
  %2270 = vmatmul.mubr.f32.gmra.mrb[0].mxu0 %v26
  %v2271 = vpop.f32.mrb[0].mxu0
  %v2272 = vadd.f32 %v2201, %v2271
  %v2273 = vpop.f32.mrb[0].mxu0
  %v2274 = vadd.f32 %v2203, %v2273
  %2275 = vdwg.mxu0
  %2276 = vmatprep.subr.mxu0 %v563
  %2277 = vmatpush1.msra.mxu0 %v562
  %2278 = vmatprep.subr.mxu0 %v567
  %2279 = vmatpush1.msra.mxu0 %v566
  %2280 = vmatprep.subr.mxu0 %v571
  %2281 = vmatpush1.msra.mxu0 %v570
  %2282 = vmatprep.subr.mxu0 %v575
  %2283 = vmatpush1.msra.mxu0 %v574
  %2284 = vmatprep.subr.mxu0 %v579
  %2285 = vmatpush1.msra.mxu0 %v578
  %2286 = vmatprep.subr.mxu0 %v583
  %2287 = vmatpush1.msra.mxu0 %v582
  %2288 = vmatprep.subr.mxu0 %v587
  %2289 = vmatpush1.msra.mxu0 %v586
  %2290 = vmatprep.subr.mxu0 %v591
  %2291 = vmatpush1.msra.mxu0 %v590
  %2292 = vmatprep.subr.mxu0 %v595
  %2293 = vmatpush1.msra.mxu0 %v594
  %2294 = vmatprep.subr.mxu0 %v599
  %2295 = vmatpush1.msra.mxu0 %v598
  %2296 = vmatprep.subr.mxu0 %v603
  %2297 = vmatpush1.msra.mxu0 %v602
  %2298 = vmatprep.subr.mxu0 %v607
  %2299 = vmatpush1.msra.mxu0 %v606
  %2300 = vmatprep.subr.mxu0 %v611
  %2301 = vmatpush1.msra.mxu0 %v610
  %2302 = vmatprep.subr.mxu0 %v615
  %2303 = vmatpush1.msra.mxu0 %v614
  %2304 = vmatprep.subr.mxu0 %v619
  %2305 = vmatpush1.msra.mxu0 %v618
  %2306 = vmatprep.subr.mxu0 %v623
  %2307 = vmatpush1.msra.mxu0 %v622
  %2308 = vmatprep.subr.mxu0 %v627
  %2309 = vmatpush1.msra.mxu0 %v626
  %2310 = vmatprep.subr.mxu0 %v631
  %2311 = vmatpush1.msra.mxu0 %v630
  %2312 = vmatprep.subr.mxu0 %v635
  %2313 = vmatpush1.msra.mxu0 %v634
  %2314 = vmatprep.subr.mxu0 %v639
  %2315 = vmatpush1.msra.mxu0 %v638
  %2316 = vmatprep.subr.mxu0 %v643
  %2317 = vmatpush1.msra.mxu0 %v642
  %2318 = vmatprep.subr.mxu0 %v647
  %2319 = vmatpush1.msra.mxu0 %v646
  %2320 = vmatprep.subr.mxu0 %v651
  %2321 = vmatpush1.msra.mxu0 %v650
  %2322 = vmatprep.subr.mxu0 %v655
  %2323 = vmatpush1.msra.mxu0 %v654
  %2324 = vmatprep.subr.mxu0 %v659
  %2325 = vmatpush1.msra.mxu0 %v658
  %2326 = vmatprep.subr.mxu0 %v663
  %2327 = vmatpush1.msra.mxu0 %v662
  %2328 = vmatprep.subr.mxu0 %v667
  %2329 = vmatpush1.msra.mxu0 %v666
  %2330 = vmatprep.subr.mxu0 %v671
  %2331 = vmatpush1.msra.mxu0 %v670
  %2332 = vmatprep.subr.mxu0 %v675
  %2333 = vmatpush1.msra.mxu0 %v674
  %2334 = vmatprep.subr.mxu0 %v679
  %2335 = vmatpush1.msra.mxu0 %v678
  %2336 = vmatprep.subr.mxu0 %v683
  %2337 = vmatpush1.msra.mxu0 %v682
  %2338 = vmatprep.subr.mxu0 %v687
  %2339 = vmatpush1.msra.mxu0 %v686
  %2340 = vmatprep.mubr.f32.mxu0 %v29
  %2341 = vmatmul.mubr.f32.gmra.mrb[0].mxu0 %v28
  %v2342 = vpop.f32.mrb[0].mxu0
  %v2343 = vadd.f32 %v2272, %v2342
  %v2344 = vpop.f32.mrb[0].mxu0
  %v2345 = vadd.f32 %v2274, %v2344
  %2346 = vdwg.mxu0
  %2347 = vmatprep.subr.mxu0 %v691
  %2348 = vmatpush1.msra.mxu0 %v690
  %2349 = vmatprep.subr.mxu0 %v695
  %2350 = vmatpush1.msra.mxu0 %v694
  %2351 = vmatprep.subr.mxu0 %v699
  %2352 = vmatpush1.msra.mxu0 %v698
  %2353 = vmatprep.subr.mxu0 %v703
  %2354 = vmatpush1.msra.mxu0 %v702
  %2355 = vmatprep.subr.mxu0 %v707
  %2356 = vmatpush1.msra.mxu0 %v706
  %2357 = vmatprep.subr.mxu0 %v711
  %2358 = vmatpush1.msra.mxu0 %v710
  %2359 = vmatprep.subr.mxu0 %v715
  %2360 = vmatpush1.msra.mxu0 %v714
  %2361 = vmatprep.subr.mxu0 %v719
  %2362 = vmatpush1.msra.mxu0 %v718
  %2363 = vmatprep.subr.mxu0 %v723
  %2364 = vmatpush1.msra.mxu0 %v722
  %2365 = vmatprep.subr.mxu0 %v727
  %2366 = vmatpush1.msra.mxu0 %v726
  %2367 = vmatprep.subr.mxu0 %v731
  %2368 = vmatpush1.msra.mxu0 %v730
  %2369 = vmatprep.subr.mxu0 %v735
  %2370 = vmatpush1.msra.mxu0 %v734
  %2371 = vmatprep.subr.mxu0 %v739
  %2372 = vmatpush1.msra.mxu0 %v738
  %2373 = vmatprep.subr.mxu0 %v743
  %2374 = vmatpush1.msra.mxu0 %v742
  %2375 = vmatprep.subr.mxu0 %v747
  %2376 = vmatpush1.msra.mxu0 %v746
  %2377 = vmatprep.subr.mxu0 %v751
  %2378 = vmatpush1.msra.mxu0 %v750
  %2379 = vmatprep.subr.mxu0 %v755
  %2380 = vmatpush1.msra.mxu0 %v754
  %2381 = vmatprep.subr.mxu0 %v759
  %2382 = vmatpush1.msra.mxu0 %v758
  %2383 = vmatprep.subr.mxu0 %v763
  %2384 = vmatpush1.msra.mxu0 %v762
  %2385 = vmatprep.subr.mxu0 %v767
  %2386 = vmatpush1.msra.mxu0 %v766
  %2387 = vmatprep.subr.mxu0 %v771
  %2388 = vmatpush1.msra.mxu0 %v770
  %2389 = vmatprep.subr.mxu0 %v775
  %2390 = vmatpush1.msra.mxu0 %v774
  %2391 = vmatprep.subr.mxu0 %v779
  %2392 = vmatpush1.msra.mxu0 %v778
  %2393 = vmatprep.subr.mxu0 %v783
  %2394 = vmatpush1.msra.mxu0 %v782
  %2395 = vmatprep.subr.mxu0 %v787
  %2396 = vmatpush1.msra.mxu0 %v786
  %2397 = vmatprep.subr.mxu0 %v791
  %2398 = vmatpush1.msra.mxu0 %v790
  %2399 = vmatprep.subr.mxu0 %v795
  %2400 = vmatpush1.msra.mxu0 %v794
  %2401 = vmatprep.subr.mxu0 %v799
  %2402 = vmatpush1.msra.mxu0 %v798
  %2403 = vmatprep.subr.mxu0 %v803
  %2404 = vmatpush1.msra.mxu0 %v802
  %2405 = vmatprep.subr.mxu0 %v807
  %2406 = vmatpush1.msra.mxu0 %v806
  %2407 = vmatprep.subr.mxu0 %v811
  %2408 = vmatpush1.msra.mxu0 %v810
  %2409 = vmatprep.subr.mxu0 %v815
  %2410 = vmatpush1.msra.mxu0 %v814
  %2411 = vmatprep.mubr.f32.mxu0 %v31
  %2412 = vmatmul.mubr.f32.gmra.mrb[0].mxu0 %v30
  %v2413 = vpop.f32.mrb[0].mxu0
  %v2414 = vadd.f32 %v2343, %v2413
  %v2415 = vpop.f32.mrb[0].mxu0
  %v2416 = vadd.f32 %v2345, %v2415
  %2417 = vdwg.mxu0
  %2418 = vmatprep.subr.mxu0 %v819
  %2419 = vmatpush1.msra.mxu0 %v818
  %2420 = vmatprep.subr.mxu0 %v823
  %2421 = vmatpush1.msra.mxu0 %v822
  %2422 = vmatprep.subr.mxu0 %v827
  %2423 = vmatpush1.msra.mxu0 %v826
  %2424 = vmatprep.subr.mxu0 %v831
  %2425 = vmatpush1.msra.mxu0 %v830
  %2426 = vmatprep.subr.mxu0 %v835
  %2427 = vmatpush1.msra.mxu0 %v834
  %2428 = vmatprep.subr.mxu0 %v839
  %2429 = vmatpush1.msra.mxu0 %v838
  %2430 = vmatprep.subr.mxu0 %v843
  %2431 = vmatpush1.msra.mxu0 %v842
  %2432 = vmatprep.subr.mxu0 %v847
  %2433 = vmatpush1.msra.mxu0 %v846
  %2434 = vmatprep.subr.mxu0 %v851
  %2435 = vmatpush1.msra.mxu0 %v850
  %2436 = vmatprep.subr.mxu0 %v855
  %2437 = vmatpush1.msra.mxu0 %v854
  %2438 = vmatprep.subr.mxu0 %v859
  %2439 = vmatpush1.msra.mxu0 %v858
  %2440 = vmatprep.subr.mxu0 %v863
  %2441 = vmatpush1.msra.mxu0 %v862
  %2442 = vmatprep.subr.mxu0 %v867
  %2443 = vmatpush1.msra.mxu0 %v866
  %2444 = vmatprep.subr.mxu0 %v871
  %2445 = vmatpush1.msra.mxu0 %v870
  %2446 = vmatprep.subr.mxu0 %v875
  %2447 = vmatpush1.msra.mxu0 %v874
  %2448 = vmatprep.subr.mxu0 %v879
  %2449 = vmatpush1.msra.mxu0 %v878
  %2450 = vmatprep.subr.mxu0 %v883
  %2451 = vmatpush1.msra.mxu0 %v882
  %2452 = vmatprep.subr.mxu0 %v887
  %2453 = vmatpush1.msra.mxu0 %v886
  %2454 = vmatprep.subr.mxu0 %v891
  %2455 = vmatpush1.msra.mxu0 %v890
  %2456 = vmatprep.subr.mxu0 %v895
  %2457 = vmatpush1.msra.mxu0 %v894
  %2458 = vmatprep.subr.mxu0 %v899
  %2459 = vmatpush1.msra.mxu0 %v898
  %2460 = vmatprep.subr.mxu0 %v903
  %2461 = vmatpush1.msra.mxu0 %v902
  %2462 = vmatprep.subr.mxu0 %v907
  %2463 = vmatpush1.msra.mxu0 %v906
  %2464 = vmatprep.subr.mxu0 %v911
  %2465 = vmatpush1.msra.mxu0 %v910
  %2466 = vmatprep.subr.mxu0 %v915
  %2467 = vmatpush1.msra.mxu0 %v914
  %2468 = vmatprep.subr.mxu0 %v919
  %2469 = vmatpush1.msra.mxu0 %v918
  %2470 = vmatprep.subr.mxu0 %v923
  %2471 = vmatpush1.msra.mxu0 %v922
  %2472 = vmatprep.subr.mxu0 %v927
  %2473 = vmatpush1.msra.mxu0 %v926
  %2474 = vmatprep.subr.mxu0 %v931
  %2475 = vmatpush1.msra.mxu0 %v930
  %2476 = vmatprep.subr.mxu0 %v935
  %2477 = vmatpush1.msra.mxu0 %v934
  %2478 = vmatprep.subr.mxu0 %v939
  %2479 = vmatpush1.msra.mxu0 %v938
  %2480 = vmatprep.subr.mxu0 %v943
  %2481 = vmatpush1.msra.mxu0 %v942
  %2482 = vmatprep.mubr.f32.mxu0 %v33
  %2483 = vmatmul.mubr.f32.gmra.mrb[0].mxu0 %v32
  %v2484 = vpop.f32.mrb[0].mxu0
  %v2485 = vadd.f32 %v2414, %v2484
  %v2486 = vpop.f32.mrb[0].mxu0
  %v2487 = vadd.f32 %v2416, %v2486
  %2488 = vdwg.mxu0
  %2489 = vmatprep.subr.mxu0 %v947
  %2490 = vmatpush1.msra.mxu0 %v946
  %2491 = vmatprep.subr.mxu0 %v951
  %2492 = vmatpush1.msra.mxu0 %v950
  %2493 = vmatprep.subr.mxu0 %v955
  %2494 = vmatpush1.msra.mxu0 %v954
  %2495 = vmatprep.subr.mxu0 %v959
  %2496 = vmatpush1.msra.mxu0 %v958
  %2497 = vmatprep.subr.mxu0 %v963
  %2498 = vmatpush1.msra.mxu0 %v962
  %2499 = vmatprep.subr.mxu0 %v967
  %2500 = vmatpush1.msra.mxu0 %v966
  %2501 = vmatprep.subr.mxu0 %v971
  %2502 = vmatpush1.msra.mxu0 %v970
  %2503 = vmatprep.subr.mxu0 %v975
  %2504 = vmatpush1.msra.mxu0 %v974
  %2505 = vmatprep.subr.mxu0 %v979
  %2506 = vmatpush1.msra.mxu0 %v978
  %2507 = vmatprep.subr.mxu0 %v983
  %2508 = vmatpush1.msra.mxu0 %v982
  %2509 = vmatprep.subr.mxu0 %v987
  %2510 = vmatpush1.msra.mxu0 %v986
  %2511 = vmatprep.subr.mxu0 %v991
  %2512 = vmatpush1.msra.mxu0 %v990
  %2513 = vmatprep.subr.mxu0 %v995
  %2514 = vmatpush1.msra.mxu0 %v994
  %2515 = vmatprep.subr.mxu0 %v999
  %2516 = vmatpush1.msra.mxu0 %v998
  %2517 = vmatprep.subr.mxu0 %v1003
  %2518 = vmatpush1.msra.mxu0 %v1002
  %2519 = vmatprep.subr.mxu0 %v1007
  %2520 = vmatpush1.msra.mxu0 %v1006
  %2521 = vmatprep.subr.mxu0 %v1011
  %2522 = vmatpush1.msra.mxu0 %v1010
  %2523 = vmatprep.subr.mxu0 %v1015
  %2524 = vmatpush1.msra.mxu0 %v1014
  %2525 = vmatprep.subr.mxu0 %v1019
  %2526 = vmatpush1.msra.mxu0 %v1018
  %2527 = vmatprep.subr.mxu0 %v1023
  %2528 = vmatpush1.msra.mxu0 %v1022
  %2529 = vmatprep.subr.mxu0 %v1027
  %2530 = vmatpush1.msra.mxu0 %v1026
  %2531 = vmatprep.subr.mxu0 %v1031
  %2532 = vmatpush1.msra.mxu0 %v1030
  %2533 = vmatprep.subr.mxu0 %v1035
  %2534 = vmatpush1.msra.mxu0 %v1034
  %2535 = vmatprep.subr.mxu0 %v1039
  %2536 = vmatpush1.msra.mxu0 %v1038
  %2537 = vmatprep.subr.mxu0 %v1043
  %2538 = vmatpush1.msra.mxu0 %v1042
  %2539 = vmatprep.subr.mxu0 %v1047
  %2540 = vmatpush1.msra.mxu0 %v1046
  %2541 = vmatprep.subr.mxu0 %v1051
  %2542 = vmatpush1.msra.mxu0 %v1050
  %2543 = vmatprep.subr.mxu0 %v1055
  %2544 = vmatpush1.msra.mxu0 %v1054
  %2545 = vmatprep.subr.mxu0 %v1059
  %2546 = vmatpush1.msra.mxu0 %v1058
  %2547 = vmatprep.subr.mxu0 %v1063
  %2548 = vmatpush1.msra.mxu0 %v1062
  %2549 = vmatprep.subr.mxu0 %v1067
  %2550 = vmatpush1.msra.mxu0 %v1066
  %2551 = vmatprep.subr.mxu0 %v1071
  %2552 = vmatpush1.msra.mxu0 %v1070
  %2553 = vmatprep.mubr.f32.mxu0 %v35
  %2554 = vmatmul.mubr.f32.gmra.mrb[0].mxu0 %v34
  %v2555 = vpop.f32.mrb[0].mxu0
  %v2556 = vadd.f32 %v2485, %v2555
  %v2557 = vpop.f32.mrb[0].mxu0
  %v2558 = vadd.f32 %v2487, %v2557
  %2559 = vdwg.mxu0
  %2560 = vmatprep.subr.mxu0 %v1075
  %2561 = vmatpush1.msra.mxu0 %v1074
  %2562 = vmatprep.subr.mxu0 %v1079
  %2563 = vmatpush1.msra.mxu0 %v1078
  %2564 = vmatprep.subr.mxu0 %v1083
  %2565 = vmatpush1.msra.mxu0 %v1082
  %2566 = vmatprep.subr.mxu0 %v1087
  %2567 = vmatpush1.msra.mxu0 %v1086
  %2568 = vmatprep.subr.mxu0 %v1091
  %2569 = vmatpush1.msra.mxu0 %v1090
  %2570 = vmatprep.subr.mxu0 %v1095
  %2571 = vmatpush1.msra.mxu0 %v1094
  %2572 = vmatprep.subr.mxu0 %v1099
  %2573 = vmatpush1.msra.mxu0 %v1098
  %2574 = vmatprep.subr.mxu0 %v1103
  %2575 = vmatpush1.msra.mxu0 %v1102
  %2576 = vmatprep.subr.mxu0 %v1107
  %2577 = vmatpush1.msra.mxu0 %v1106
  %2578 = vmatprep.subr.mxu0 %v1111
  %2579 = vmatpush1.msra.mxu0 %v1110
  %2580 = vmatprep.subr.mxu0 %v1115
  %2581 = vmatpush1.msra.mxu0 %v1114
  %2582 = vmatprep.subr.mxu0 %v1119
  %2583 = vmatpush1.msra.mxu0 %v1118
  %2584 = vmatprep.subr.mxu0 %v1123
  %2585 = vmatpush1.msra.mxu0 %v1122
  %2586 = vmatprep.subr.mxu0 %v1127
  %2587 = vmatpush1.msra.mxu0 %v1126
  %2588 = vmatprep.subr.mxu0 %v1131
  %2589 = vmatpush1.msra.mxu0 %v1130
  %2590 = vmatprep.subr.mxu0 %v1135
  %2591 = vmatpush1.msra.mxu0 %v1134
  %2592 = vmatprep.subr.mxu0 %v1139
  %2593 = vmatpush1.msra.mxu0 %v1138
  %2594 = vmatprep.subr.mxu0 %v1143
  %2595 = vmatpush1.msra.mxu0 %v1142
  %2596 = vmatprep.subr.mxu0 %v1147
  %2597 = vmatpush1.msra.mxu0 %v1146
  %2598 = vmatprep.subr.mxu0 %v1151
  %2599 = vmatpush1.msra.mxu0 %v1150
  %2600 = vmatprep.subr.mxu0 %v1155
  %2601 = vmatpush1.msra.mxu0 %v1154
  %2602 = vmatprep.subr.mxu0 %v1159
  %2603 = vmatpush1.msra.mxu0 %v1158
  %2604 = vmatprep.subr.mxu0 %v1163
  %2605 = vmatpush1.msra.mxu0 %v1162
  %2606 = vmatprep.subr.mxu0 %v1167
  %2607 = vmatpush1.msra.mxu0 %v1166
  %2608 = vmatprep.subr.mxu0 %v1171
  %2609 = vmatpush1.msra.mxu0 %v1170
  %2610 = vmatprep.subr.mxu0 %v1175
  %2611 = vmatpush1.msra.mxu0 %v1174
  %2612 = vmatprep.subr.mxu0 %v1179
  %2613 = vmatpush1.msra.mxu0 %v1178
  %2614 = vmatprep.subr.mxu0 %v1183
  %2615 = vmatpush1.msra.mxu0 %v1182
  %2616 = vmatprep.subr.mxu0 %v1187
  %2617 = vmatpush1.msra.mxu0 %v1186
  %2618 = vmatprep.subr.mxu0 %v1191
  %2619 = vmatpush1.msra.mxu0 %v1190
  %2620 = vmatprep.subr.mxu0 %v1195
  %2621 = vmatpush1.msra.mxu0 %v1194
  %2622 = vmatprep.subr.mxu0 %v1199
  %2623 = vmatpush1.msra.mxu0 %v1198
  %2624 = vmatprep.mubr.f32.mxu0 %v37
  %2625 = vmatmul.mubr.f32.gmra.mrb[0].mxu0 %v36
  %v2626 = vpop.f32.mrb[0].mxu0
  %v2627 = vadd.f32 %v2556, %v2626
  %v2628 = vpop.f32.mrb[0].mxu0
  %v2629 = vadd.f32 %v2558, %v2628
  %2630 = vdwg.mxu0
  %2631 = vmatprep.subr.mxu0 %v1203
  %2632 = vmatpush1.msra.mxu0 %v1202
  %2633 = vmatprep.subr.mxu0 %v1207
  %2634 = vmatpush1.msra.mxu0 %v1206
  %2635 = vmatprep.subr.mxu0 %v1211
  %2636 = vmatpush1.msra.mxu0 %v1210
  %2637 = vmatprep.subr.mxu0 %v1215
  %2638 = vmatpush1.msra.mxu0 %v1214
  %2639 = vmatprep.subr.mxu0 %v1219
  %2640 = vmatpush1.msra.mxu0 %v1218
  %2641 = vmatprep.subr.mxu0 %v1223
  %2642 = vmatpush1.msra.mxu0 %v1222
  %2643 = vmatprep.subr.mxu0 %v1227
  %2644 = vmatpush1.msra.mxu0 %v1226
  %2645 = vmatprep.subr.mxu0 %v1231
  %2646 = vmatpush1.msra.mxu0 %v1230
  %2647 = vmatprep.subr.mxu0 %v1235
  %2648 = vmatpush1.msra.mxu0 %v1234
  %2649 = vmatprep.subr.mxu0 %v1239
  %2650 = vmatpush1.msra.mxu0 %v1238
  %2651 = vmatprep.subr.mxu0 %v1243
  %2652 = vmatpush1.msra.mxu0 %v1242
  %2653 = vmatprep.subr.mxu0 %v1247
  %2654 = vmatpush1.msra.mxu0 %v1246
  %2655 = vmatprep.subr.mxu0 %v1251
  %2656 = vmatpush1.msra.mxu0 %v1250
  %2657 = vmatprep.subr.mxu0 %v1255
  %2658 = vmatpush1.msra.mxu0 %v1254
  %2659 = vmatprep.subr.mxu0 %v1259
  %2660 = vmatpush1.msra.mxu0 %v1258
  %2661 = vmatprep.subr.mxu0 %v1263
  %2662 = vmatpush1.msra.mxu0 %v1262
  %2663 = vmatprep.subr.mxu0 %v1267
  %2664 = vmatpush1.msra.mxu0 %v1266
  %2665 = vmatprep.subr.mxu0 %v1271
  %2666 = vmatpush1.msra.mxu0 %v1270
  %2667 = vmatprep.subr.mxu0 %v1275
  %2668 = vmatpush1.msra.mxu0 %v1274
  %2669 = vmatprep.subr.mxu0 %v1279
  %2670 = vmatpush1.msra.mxu0 %v1278
  %2671 = vmatprep.subr.mxu0 %v1283
  %2672 = vmatpush1.msra.mxu0 %v1282
  %2673 = vmatprep.subr.mxu0 %v1287
  %2674 = vmatpush1.msra.mxu0 %v1286
  %2675 = vmatprep.subr.mxu0 %v1291
  %2676 = vmatpush1.msra.mxu0 %v1290
  %2677 = vmatprep.subr.mxu0 %v1295
  %2678 = vmatpush1.msra.mxu0 %v1294
  %2679 = vmatprep.subr.mxu0 %v1299
  %2680 = vmatpush1.msra.mxu0 %v1298
  %2681 = vmatprep.subr.mxu0 %v1303
  %2682 = vmatpush1.msra.mxu0 %v1302
  %2683 = vmatprep.subr.mxu0 %v1307
  %2684 = vmatpush1.msra.mxu0 %v1306
  %2685 = vmatprep.subr.mxu0 %v1311
  %2686 = vmatpush1.msra.mxu0 %v1310
  %2687 = vmatprep.subr.mxu0 %v1315
  %2688 = vmatpush1.msra.mxu0 %v1314
  %2689 = vmatprep.subr.mxu0 %v1319
  %2690 = vmatpush1.msra.mxu0 %v1318
  %2691 = vmatprep.subr.mxu0 %v1323
  %2692 = vmatpush1.msra.mxu0 %v1322
  %2693 = vmatprep.subr.mxu0 %v1327
  %2694 = vmatpush1.msra.mxu0 %v1326
  %2695 = vmatprep.mubr.f32.mxu0 %v39
  %2696 = vmatmul.mubr.f32.gmra.mrb[0].mxu0 %v38
  %v2697 = vpop.f32.mrb[0].mxu0
  %v2698 = vadd.f32 %v2627, %v2697
  %v2699 = vpop.f32.mrb[0].mxu0
  %v2700 = vadd.f32 %v2629, %v2699
  %2701 = vdwg.mxu0
  %2702 = vmatprep.subr.mxu0 %v1331
  %2703 = vmatpush1.msra.mxu0 %v1330
  %2704 = vmatprep.subr.mxu0 %v1335
  %2705 = vmatpush1.msra.mxu0 %v1334
  %2706 = vmatprep.subr.mxu0 %v1339
  %2707 = vmatpush1.msra.mxu0 %v1338
  %2708 = vmatprep.subr.mxu0 %v1343
  %2709 = vmatpush1.msra.mxu0 %v1342
  %2710 = vmatprep.subr.mxu0 %v1347
  %2711 = vmatpush1.msra.mxu0 %v1346
  %2712 = vmatprep.subr.mxu0 %v1351
  %2713 = vmatpush1.msra.mxu0 %v1350
  %2714 = vmatprep.subr.mxu0 %v1355
  %2715 = vmatpush1.msra.mxu0 %v1354
  %2716 = vmatprep.subr.mxu0 %v1359
  %2717 = vmatpush1.msra.mxu0 %v1358
  %2718 = vmatprep.subr.mxu0 %v1363
  %2719 = vmatpush1.msra.mxu0 %v1362
  %2720 = vmatprep.subr.mxu0 %v1367
  %2721 = vmatpush1.msra.mxu0 %v1366
  %2722 = vmatprep.subr.mxu0 %v1371
  %2723 = vmatpush1.msra.mxu0 %v1370
  %2724 = vmatprep.subr.mxu0 %v1375
  %2725 = vmatpush1.msra.mxu0 %v1374
  %2726 = vmatprep.subr.mxu0 %v1379
  %2727 = vmatpush1.msra.mxu0 %v1378
  %2728 = vmatprep.subr.mxu0 %v1383
  %2729 = vmatpush1.msra.mxu0 %v1382
  %2730 = vmatprep.subr.mxu0 %v1387
  %2731 = vmatpush1.msra.mxu0 %v1386
  %2732 = vmatprep.subr.mxu0 %v1391
  %2733 = vmatpush1.msra.mxu0 %v1390
  %2734 = vmatprep.subr.mxu0 %v1395
  %2735 = vmatpush1.msra.mxu0 %v1394
  %2736 = vmatprep.subr.mxu0 %v1399
  %2737 = vmatpush1.msra.mxu0 %v1398
  %2738 = vmatprep.subr.mxu0 %v1403
  %2739 = vmatpush1.msra.mxu0 %v1402
  %2740 = vmatprep.subr.mxu0 %v1407
  %2741 = vmatpush1.msra.mxu0 %v1406
  %2742 = vmatprep.subr.mxu0 %v1411
  %2743 = vmatpush1.msra.mxu0 %v1410
  %2744 = vmatprep.subr.mxu0 %v1415
  %2745 = vmatpush1.msra.mxu0 %v1414
  %2746 = vmatprep.subr.mxu0 %v1419
  %2747 = vmatpush1.msra.mxu0 %v1418
  %2748 = vmatprep.subr.mxu0 %v1423
  %2749 = vmatpush1.msra.mxu0 %v1422
  %2750 = vmatprep.subr.mxu0 %v1427
  %2751 = vmatpush1.msra.mxu0 %v1426
  %2752 = vmatprep.subr.mxu0 %v1431
  %2753 = vmatpush1.msra.mxu0 %v1430
  %2754 = vmatprep.subr.mxu0 %v1435
  %2755 = vmatpush1.msra.mxu0 %v1434
  %2756 = vmatprep.subr.mxu0 %v1439
  %2757 = vmatpush1.msra.mxu0 %v1438
  %2758 = vmatprep.subr.mxu0 %v1443
  %2759 = vmatpush1.msra.mxu0 %v1442
  %2760 = vmatprep.subr.mxu0 %v1447
  %2761 = vmatpush1.msra.mxu0 %v1446
  %2762 = vmatprep.subr.mxu0 %v1451
  %2763 = vmatpush1.msra.mxu0 %v1450
  %2764 = vmatprep.subr.mxu0 %v1455
  %2765 = vmatpush1.msra.mxu0 %v1454
  %2766 = vmatprep.mubr.f32.mxu0 %v41
  %2767 = vmatmul.mubr.f32.gmra.mrb[0].mxu0 %v40
  %v2768 = vpop.f32.mrb[0].mxu0
  %v2769 = vadd.f32 %v2698, %v2768
  %v2770 = vpop.f32.mrb[0].mxu0
  %v2771 = vadd.f32 %v2700, %v2770
  %2772 = vdwg.mxu0
  %2773 = vmatprep.subr.mxu0 %v1459
  %2774 = vmatpush1.msra.mxu0 %v1458
  %2775 = vmatprep.subr.mxu0 %v1463
  %2776 = vmatpush1.msra.mxu0 %v1462
  %2777 = vmatprep.subr.mxu0 %v1467
  %2778 = vmatpush1.msra.mxu0 %v1466
  %2779 = vmatprep.subr.mxu0 %v1471
  %2780 = vmatpush1.msra.mxu0 %v1470
  %2781 = vmatprep.subr.mxu0 %v1475
  %2782 = vmatpush1.msra.mxu0 %v1474
  %2783 = vmatprep.subr.mxu0 %v1479
  %2784 = vmatpush1.msra.mxu0 %v1478
  %2785 = vmatprep.subr.mxu0 %v1483
  %2786 = vmatpush1.msra.mxu0 %v1482
  %2787 = vmatprep.subr.mxu0 %v1487
  %2788 = vmatpush1.msra.mxu0 %v1486
  %2789 = vmatprep.subr.mxu0 %v1491
  %2790 = vmatpush1.msra.mxu0 %v1490
  %2791 = vmatprep.subr.mxu0 %v1495
  %2792 = vmatpush1.msra.mxu0 %v1494
  %2793 = vmatprep.subr.mxu0 %v1499
  %2794 = vmatpush1.msra.mxu0 %v1498
  %2795 = vmatprep.subr.mxu0 %v1503
  %2796 = vmatpush1.msra.mxu0 %v1502
  %2797 = vmatprep.subr.mxu0 %v1507
  %2798 = vmatpush1.msra.mxu0 %v1506
  %2799 = vmatprep.subr.mxu0 %v1511
  %2800 = vmatpush1.msra.mxu0 %v1510
  %2801 = vmatprep.subr.mxu0 %v1515
  %2802 = vmatpush1.msra.mxu0 %v1514
  %2803 = vmatprep.subr.mxu0 %v1519
  %2804 = vmatpush1.msra.mxu0 %v1518
  %2805 = vmatprep.subr.mxu0 %v1523
  %2806 = vmatpush1.msra.mxu0 %v1522
  %2807 = vmatprep.subr.mxu0 %v1527
  %2808 = vmatpush1.msra.mxu0 %v1526
  %2809 = vmatprep.subr.mxu0 %v1531
  %2810 = vmatpush1.msra.mxu0 %v1530
  %2811 = vmatprep.subr.mxu0 %v1535
  %2812 = vmatpush1.msra.mxu0 %v1534
  %2813 = vmatprep.subr.mxu0 %v1539
  %2814 = vmatpush1.msra.mxu0 %v1538
  %2815 = vmatprep.subr.mxu0 %v1543
  %2816 = vmatpush1.msra.mxu0 %v1542
  %2817 = vmatprep.subr.mxu0 %v1547
  %2818 = vmatpush1.msra.mxu0 %v1546
  %2819 = vmatprep.subr.mxu0 %v1551
  %2820 = vmatpush1.msra.mxu0 %v1550
  %2821 = vmatprep.subr.mxu0 %v1555
  %2822 = vmatpush1.msra.mxu0 %v1554
  %2823 = vmatprep.subr.mxu0 %v1559
  %2824 = vmatpush1.msra.mxu0 %v1558
  %2825 = vmatprep.subr.mxu0 %v1563
  %2826 = vmatpush1.msra.mxu0 %v1562
  %2827 = vmatprep.subr.mxu0 %v1567
  %2828 = vmatpush1.msra.mxu0 %v1566
  %2829 = vmatprep.subr.mxu0 %v1571
  %2830 = vmatpush1.msra.mxu0 %v1570
  %2831 = vmatprep.subr.mxu0 %v1575
  %2832 = vmatpush1.msra.mxu0 %v1574
  %2833 = vmatprep.subr.mxu0 %v1579
  %2834 = vmatpush1.msra.mxu0 %v1578
  %2835 = vmatprep.subr.mxu0 %v1583
  %2836 = vmatpush1.msra.mxu0 %v1582
  %2837 = vmatprep.mubr.f32.mxu0 %v43
  %2838 = vmatmul.mubr.f32.gmra.mrb[0].mxu0 %v42
  %v2839 = vpop.f32.mrb[0].mxu0
  %v2840 = vadd.f32 %v2769, %v2839
  %v2841 = vpop.f32.mrb[0].mxu0
  %v2842 = vadd.f32 %v2771, %v2841
  %2843 = vdwg.mxu0
  %2844 = vmatprep.subr.mxu0 %v1587
  %2845 = vmatpush1.msra.mxu0 %v1586
  %2846 = vmatprep.subr.mxu0 %v1591
  %2847 = vmatpush1.msra.mxu0 %v1590
  %2848 = vmatprep.subr.mxu0 %v1595
  %2849 = vmatpush1.msra.mxu0 %v1594
  %2850 = vmatprep.subr.mxu0 %v1599
  %2851 = vmatpush1.msra.mxu0 %v1598
  %2852 = vmatprep.subr.mxu0 %v1603
  %2853 = vmatpush1.msra.mxu0 %v1602
  %2854 = vmatprep.subr.mxu0 %v1607
  %2855 = vmatpush1.msra.mxu0 %v1606
  %2856 = vmatprep.subr.mxu0 %v1611
  %2857 = vmatpush1.msra.mxu0 %v1610
  %2858 = vmatprep.subr.mxu0 %v1615
  %2859 = vmatpush1.msra.mxu0 %v1614
  %2860 = vmatprep.subr.mxu0 %v1619
  %2861 = vmatpush1.msra.mxu0 %v1618
  %2862 = vmatprep.subr.mxu0 %v1623
  %2863 = vmatpush1.msra.mxu0 %v1622
  %2864 = vmatprep.subr.mxu0 %v1627
  %2865 = vmatpush1.msra.mxu0 %v1626
  %2866 = vmatprep.subr.mxu0 %v1631
  %2867 = vmatpush1.msra.mxu0 %v1630
  %2868 = vmatprep.subr.mxu0 %v1635
  %2869 = vmatpush1.msra.mxu0 %v1634
  %2870 = vmatprep.subr.mxu0 %v1639
  %2871 = vmatpush1.msra.mxu0 %v1638
  %2872 = vmatprep.subr.mxu0 %v1643
  %2873 = vmatpush1.msra.mxu0 %v1642
  %2874 = vmatprep.subr.mxu0 %v1647
  %2875 = vmatpush1.msra.mxu0 %v1646
  %2876 = vmatprep.subr.mxu0 %v1651
  %2877 = vmatpush1.msra.mxu0 %v1650
  %2878 = vmatprep.subr.mxu0 %v1655
  %2879 = vmatpush1.msra.mxu0 %v1654
  %2880 = vmatprep.subr.mxu0 %v1659
  %2881 = vmatpush1.msra.mxu0 %v1658
  %2882 = vmatprep.subr.mxu0 %v1663
  %2883 = vmatpush1.msra.mxu0 %v1662
  %2884 = vmatprep.subr.mxu0 %v1667
  %2885 = vmatpush1.msra.mxu0 %v1666
  %2886 = vmatprep.subr.mxu0 %v1671
  %2887 = vmatpush1.msra.mxu0 %v1670
  %2888 = vmatprep.subr.mxu0 %v1675
  %2889 = vmatpush1.msra.mxu0 %v1674
  %2890 = vmatprep.subr.mxu0 %v1679
  %2891 = vmatpush1.msra.mxu0 %v1678
  %2892 = vmatprep.subr.mxu0 %v1683
  %2893 = vmatpush1.msra.mxu0 %v1682
  %2894 = vmatprep.subr.mxu0 %v1687
  %2895 = vmatpush1.msra.mxu0 %v1686
  %2896 = vmatprep.subr.mxu0 %v1691
  %2897 = vmatpush1.msra.mxu0 %v1690
  %2898 = vmatprep.subr.mxu0 %v1695
  %2899 = vmatpush1.msra.mxu0 %v1694
  %2900 = vmatprep.subr.mxu0 %v1699
  %2901 = vmatpush1.msra.mxu0 %v1698
  %2902 = vmatprep.subr.mxu0 %v1703
  %2903 = vmatpush1.msra.mxu0 %v1702
  %2904 = vmatprep.subr.mxu0 %v1707
  %2905 = vmatpush1.msra.mxu0 %v1706
  %2906 = vmatprep.subr.mxu0 %v1711
  %2907 = vmatpush1.msra.mxu0 %v1710
  %2908 = vmatprep.mubr.f32.mxu0 %v45
  %2909 = vmatmul.mubr.f32.gmra.mrb[0].mxu0 %v44
  %v2910 = vpop.f32.mrb[0].mxu0
  %v2911 = vadd.f32 %v2840, %v2910
  %v2912 = vpop.f32.mrb[0].mxu0
  %v2913 = vadd.f32 %v2842, %v2912
  %2914 = vdwg.mxu0
  %2915 = vmatprep.subr.mxu0 %v1715
  %2916 = vmatpush1.msra.mxu0 %v1714
  %2917 = vmatprep.subr.mxu0 %v1719
  %2918 = vmatpush1.msra.mxu0 %v1718
  %2919 = vmatprep.subr.mxu0 %v1723
  %2920 = vmatpush1.msra.mxu0 %v1722
  %2921 = vmatprep.subr.mxu0 %v1727
  %2922 = vmatpush1.msra.mxu0 %v1726
  %2923 = vmatprep.subr.mxu0 %v1731
  %2924 = vmatpush1.msra.mxu0 %v1730
  %2925 = vmatprep.subr.mxu0 %v1735
  %2926 = vmatpush1.msra.mxu0 %v1734
  %2927 = vmatprep.subr.mxu0 %v1739
  %2928 = vmatpush1.msra.mxu0 %v1738
  %2929 = vmatprep.subr.mxu0 %v1743
  %2930 = vmatpush1.msra.mxu0 %v1742
  %2931 = vmatprep.subr.mxu0 %v1747
  %2932 = vmatpush1.msra.mxu0 %v1746
  %2933 = vmatprep.subr.mxu0 %v1751
  %2934 = vmatpush1.msra.mxu0 %v1750
  %2935 = vmatprep.subr.mxu0 %v1755
  %2936 = vmatpush1.msra.mxu0 %v1754
  %2937 = vmatprep.subr.mxu0 %v1759
  %2938 = vmatpush1.msra.mxu0 %v1758
  %2939 = vmatprep.subr.mxu0 %v1763
  %2940 = vmatpush1.msra.mxu0 %v1762
  %2941 = vmatprep.subr.mxu0 %v1767
  %2942 = vmatpush1.msra.mxu0 %v1766
  %2943 = vmatprep.subr.mxu0 %v1771
  %2944 = vmatpush1.msra.mxu0 %v1770
  %2945 = vmatprep.subr.mxu0 %v1775
  %2946 = vmatpush1.msra.mxu0 %v1774
  %2947 = vmatprep.subr.mxu0 %v1779
  %2948 = vmatpush1.msra.mxu0 %v1778
  %2949 = vmatprep.subr.mxu0 %v1783
  %2950 = vmatpush1.msra.mxu0 %v1782
  %2951 = vmatprep.subr.mxu0 %v1787
  %2952 = vmatpush1.msra.mxu0 %v1786
  %2953 = vmatprep.subr.mxu0 %v1791
  %2954 = vmatpush1.msra.mxu0 %v1790
  %2955 = vmatprep.subr.mxu0 %v1795
  %2956 = vmatpush1.msra.mxu0 %v1794
  %2957 = vmatprep.subr.mxu0 %v1799
  %2958 = vmatpush1.msra.mxu0 %v1798
  %2959 = vmatprep.subr.mxu0 %v1803
  %2960 = vmatpush1.msra.mxu0 %v1802
  %2961 = vmatprep.subr.mxu0 %v1807
  %2962 = vmatpush1.msra.mxu0 %v1806
  %2963 = vmatprep.subr.mxu0 %v1811
  %2964 = vmatpush1.msra.mxu0 %v1810
  %2965 = vmatprep.subr.mxu0 %v1815
  %2966 = vmatpush1.msra.mxu0 %v1814
  %2967 = vmatprep.subr.mxu0 %v1819
  %2968 = vmatpush1.msra.mxu0 %v1818
  %2969 = vmatprep.subr.mxu0 %v1823
  %2970 = vmatpush1.msra.mxu0 %v1822
  %2971 = vmatprep.subr.mxu0 %v1827
  %2972 = vmatpush1.msra.mxu0 %v1826
  %2973 = vmatprep.subr.mxu0 %v1831
  %2974 = vmatpush1.msra.mxu0 %v1830
  %2975 = vmatprep.subr.mxu0 %v1835
  %2976 = vmatpush1.msra.mxu0 %v1834
  %2977 = vmatprep.subr.mxu0 %v1839
  %2978 = vmatpush1.msra.mxu0 %v1838
  %2979 = vmatprep.mubr.f32.mxu0 %v47
  %2980 = vmatmul.mubr.f32.gmra.mrb[0].mxu0 %v46
  %v2981 = vpop.f32.mrb[0].mxu0
  %v2982 = vadd.f32 %v2911, %v2981
  %v2983 = vpop.f32.mrb[0].mxu0
  %v2984 = vadd.f32 %v2913, %v2983
  %2985 = vdwg.mxu0
  %2986 = vmatprep.subr.mxu0 %v1843
  %2987 = vmatpush1.msra.mxu0 %v1842
  %2988 = vmatprep.subr.mxu0 %v1847
  %2989 = vmatpush1.msra.mxu0 %v1846
  %2990 = vmatprep.subr.mxu0 %v1851
  %2991 = vmatpush1.msra.mxu0 %v1850
  %2992 = vmatprep.subr.mxu0 %v1855
  %2993 = vmatpush1.msra.mxu0 %v1854
  %2994 = vmatprep.subr.mxu0 %v1859
  %2995 = vmatpush1.msra.mxu0 %v1858
  %2996 = vmatprep.subr.mxu0 %v1863
  %2997 = vmatpush1.msra.mxu0 %v1862
  %2998 = vmatprep.subr.mxu0 %v1867
  %2999 = vmatpush1.msra.mxu0 %v1866
  %3000 = vmatprep.subr.mxu0 %v1871
  %3001 = vmatpush1.msra.mxu0 %v1870
  %3002 = vmatprep.subr.mxu0 %v1875
  %3003 = vmatpush1.msra.mxu0 %v1874
  %3004 = vmatprep.subr.mxu0 %v1879
  %3005 = vmatpush1.msra.mxu0 %v1878
  %3006 = vmatprep.subr.mxu0 %v1883
  %3007 = vmatpush1.msra.mxu0 %v1882
  %3008 = vmatprep.subr.mxu0 %v1887
  %3009 = vmatpush1.msra.mxu0 %v1886
  %3010 = vmatprep.subr.mxu0 %v1891
  %3011 = vmatpush1.msra.mxu0 %v1890
  %3012 = vmatprep.subr.mxu0 %v1895
  %3013 = vmatpush1.msra.mxu0 %v1894
  %3014 = vmatprep.subr.mxu0 %v1899
  %3015 = vmatpush1.msra.mxu0 %v1898
  %3016 = vmatprep.subr.mxu0 %v1903
  %3017 = vmatpush1.msra.mxu0 %v1902
  %3018 = vmatprep.subr.mxu0 %v1907
  %3019 = vmatpush1.msra.mxu0 %v1906
  %3020 = vmatprep.subr.mxu0 %v1911
  %3021 = vmatpush1.msra.mxu0 %v1910
  %3022 = vmatprep.subr.mxu0 %v1915
  %3023 = vmatpush1.msra.mxu0 %v1914
  %3024 = vmatprep.subr.mxu0 %v1919
  %3025 = vmatpush1.msra.mxu0 %v1918
  %3026 = vmatprep.subr.mxu0 %v1923
  %3027 = vmatpush1.msra.mxu0 %v1922
  %3028 = vmatprep.subr.mxu0 %v1927
  %3029 = vmatpush1.msra.mxu0 %v1926
  %3030 = vmatprep.subr.mxu0 %v1931
  %3031 = vmatpush1.msra.mxu0 %v1930
  %3032 = vmatprep.subr.mxu0 %v1935
  %3033 = vmatpush1.msra.mxu0 %v1934
  %3034 = vmatprep.subr.mxu0 %v1939
  %3035 = vmatpush1.msra.mxu0 %v1938
  %3036 = vmatprep.subr.mxu0 %v1943
  %3037 = vmatpush1.msra.mxu0 %v1942
  %3038 = vmatprep.subr.mxu0 %v1947
  %3039 = vmatpush1.msra.mxu0 %v1946
  %3040 = vmatprep.subr.mxu0 %v1951
  %3041 = vmatpush1.msra.mxu0 %v1950
  %3042 = vmatprep.subr.mxu0 %v1955
  %3043 = vmatpush1.msra.mxu0 %v1954
  %3044 = vmatprep.subr.mxu0 %v1959
  %3045 = vmatpush1.msra.mxu0 %v1958
  %3046 = vmatprep.subr.mxu0 %v1963
  %3047 = vmatpush1.msra.mxu0 %v1962
  %3048 = vmatprep.subr.mxu0 %v1967
  %3049 = vmatpush1.msra.mxu0 %v1966
  %3050 = vmatprep.mubr.f32.mxu0 %v49
  %3051 = vmatmul.mubr.f32.gmra.mrb[0].mxu0 %v48
  %v3052 = vpop.f32.mrb[0].mxu0
  %v3053 = vadd.f32 %v2982, %v3052
  %v3054 = vpop.f32.mrb[0].mxu0
  %v3055 = vadd.f32 %v2984, %v3054
  %3056 = vdwg.mxu0
  %3057 = vmatprep.subr.mxu0 %v53
  %3058 = vmatpush1.msra.mxu0 %v52
  %3059 = vmatprep.subr.mxu0 %v57
  %3060 = vmatpush1.msra.mxu0 %v56
  %3061 = vmatprep.subr.mxu0 %v61
  %3062 = vmatpush1.msra.mxu0 %v60
  %3063 = vmatprep.subr.mxu0 %v65
  %3064 = vmatpush1.msra.mxu0 %v64
  %3065 = vmatprep.subr.mxu0 %v69
  %3066 = vmatpush1.msra.mxu0 %v68
  %3067 = vmatprep.subr.mxu0 %v73
  %3068 = vmatpush1.msra.mxu0 %v72
  %3069 = vmatprep.subr.mxu0 %v77
  %3070 = vmatpush1.msra.mxu0 %v76
  %3071 = vmatprep.subr.mxu0 %v81
  %3072 = vmatpush1.msra.mxu0 %v80
  %3073 = vmatprep.subr.mxu0 %v85
  %3074 = vmatpush1.msra.mxu0 %v84
  %3075 = vmatprep.subr.mxu0 %v89
  %3076 = vmatpush1.msra.mxu0 %v88
  %3077 = vmatprep.subr.mxu0 %v93
  %3078 = vmatpush1.msra.mxu0 %v92
  %3079 = vmatprep.subr.mxu0 %v97
  %3080 = vmatpush1.msra.mxu0 %v96
  %3081 = vmatprep.subr.mxu0 %v101
  %3082 = vmatpush1.msra.mxu0 %v100
  %3083 = vmatprep.subr.mxu0 %v105
  %3084 = vmatpush1.msra.mxu0 %v104
  %3085 = vmatprep.subr.mxu0 %v109
  %3086 = vmatpush1.msra.mxu0 %v108
  %3087 = vmatprep.subr.mxu0 %v113
  %3088 = vmatpush1.msra.mxu0 %v112
  %3089 = vmatprep.subr.mxu0 %v117
  %3090 = vmatpush1.msra.mxu0 %v116
  %3091 = vmatprep.subr.mxu0 %v121
  %3092 = vmatpush1.msra.mxu0 %v120
  %3093 = vmatprep.subr.mxu0 %v125
  %3094 = vmatpush1.msra.mxu0 %v124
  %3095 = vmatprep.subr.mxu0 %v129
  %3096 = vmatpush1.msra.mxu0 %v128
  %3097 = vmatprep.subr.mxu0 %v133
  %3098 = vmatpush1.msra.mxu0 %v132
  %3099 = vmatprep.subr.mxu0 %v137
  %3100 = vmatpush1.msra.mxu0 %v136
  %3101 = vmatprep.subr.mxu0 %v141
  %3102 = vmatpush1.msra.mxu0 %v140
  %3103 = vmatprep.subr.mxu0 %v145
  %3104 = vmatpush1.msra.mxu0 %v144
  %3105 = vmatprep.subr.mxu0 %v149
  %3106 = vmatpush1.msra.mxu0 %v148
  %3107 = vmatprep.subr.mxu0 %v153
  %3108 = vmatpush1.msra.mxu0 %v152
  %3109 = vmatprep.subr.mxu0 %v157
  %3110 = vmatpush1.msra.mxu0 %v156
  %3111 = vmatprep.subr.mxu0 %v161
  %3112 = vmatpush1.msra.mxu0 %v160
  %3113 = vmatprep.subr.mxu0 %v165
  %3114 = vmatpush1.msra.mxu0 %v164
  %3115 = vmatprep.subr.mxu0 %v169
  %3116 = vmatpush1.msra.mxu0 %v168
  %3117 = vmatprep.subr.mxu0 %v173
  %3118 = vmatpush1.msra.mxu0 %v172
  %3119 = vmatprep.subr.mxu0 %v177
  %3120 = vmatpush1.msra.mxu0 %v176
  %3121 = vmatprep.mubr.f32.mxu0 %v21
  %3122 = vmatmul.mubr.f32.gmra.mrb[0].mxu0 %v20
  %v3123 = vpop.f32.mrb[0].mxu0
  %v3124 = vadd.f32 %v1983, %v3123
  %v3125 = vpop.f32.mrb[0].mxu0
  %v3126 = vadd.f32 %v1987, %v3125
  %3127 = vdwg.mxu0
  %3128 = vmatprep.subr.mxu0 %v181
  %3129 = vmatpush1.msra.mxu0 %v180
  %3130 = vmatprep.subr.mxu0 %v185
  %3131 = vmatpush1.msra.mxu0 %v184
  %3132 = vmatprep.subr.mxu0 %v189
  %3133 = vmatpush1.msra.mxu0 %v188
  %3134 = vmatprep.subr.mxu0 %v193
  %3135 = vmatpush1.msra.mxu0 %v192
  %3136 = vmatprep.subr.mxu0 %v197
  %3137 = vmatpush1.msra.mxu0 %v196
  %3138 = vmatprep.subr.mxu0 %v201
  %3139 = vmatpush1.msra.mxu0 %v200
  %3140 = vmatprep.subr.mxu0 %v205
  %3141 = vmatpush1.msra.mxu0 %v204
  %3142 = vmatprep.subr.mxu0 %v209
  %3143 = vmatpush1.msra.mxu0 %v208
  %3144 = vmatprep.subr.mxu0 %v213
  %3145 = vmatpush1.msra.mxu0 %v212
  %3146 = vmatprep.subr.mxu0 %v217
  %3147 = vmatpush1.msra.mxu0 %v216
  %3148 = vmatprep.subr.mxu0 %v221
  %3149 = vmatpush1.msra.mxu0 %v220
  %3150 = vmatprep.subr.mxu0 %v225
  %3151 = vmatpush1.msra.mxu0 %v224
  %3152 = vmatprep.subr.mxu0 %v229
  %3153 = vmatpush1.msra.mxu0 %v228
  %3154 = vmatprep.subr.mxu0 %v233
  %3155 = vmatpush1.msra.mxu0 %v232
  %3156 = vmatprep.subr.mxu0 %v237
  %3157 = vmatpush1.msra.mxu0 %v236
  %3158 = vmatprep.subr.mxu0 %v241
  %3159 = vmatpush1.msra.mxu0 %v240
  %3160 = vmatprep.subr.mxu0 %v245
  %3161 = vmatpush1.msra.mxu0 %v244
  %3162 = vmatprep.subr.mxu0 %v249
  %3163 = vmatpush1.msra.mxu0 %v248
  %3164 = vmatprep.subr.mxu0 %v253
  %3165 = vmatpush1.msra.mxu0 %v252
  %3166 = vmatprep.subr.mxu0 %v257
  %3167 = vmatpush1.msra.mxu0 %v256
  %3168 = vmatprep.subr.mxu0 %v261
  %3169 = vmatpush1.msra.mxu0 %v260
  %3170 = vmatprep.subr.mxu0 %v265
  %3171 = vmatpush1.msra.mxu0 %v264
  %3172 = vmatprep.subr.mxu0 %v269
  %3173 = vmatpush1.msra.mxu0 %v268
  %3174 = vmatprep.subr.mxu0 %v273
  %3175 = vmatpush1.msra.mxu0 %v272
  %3176 = vmatprep.subr.mxu0 %v277
  %3177 = vmatpush1.msra.mxu0 %v276
  %3178 = vmatprep.subr.mxu0 %v281
  %3179 = vmatpush1.msra.mxu0 %v280
  %3180 = vmatprep.subr.mxu0 %v285
  %3181 = vmatpush1.msra.mxu0 %v284
  %3182 = vmatprep.subr.mxu0 %v289
  %3183 = vmatpush1.msra.mxu0 %v288
  %3184 = vmatprep.subr.mxu0 %v293
  %3185 = vmatpush1.msra.mxu0 %v292
  %3186 = vmatprep.subr.mxu0 %v297
  %3187 = vmatpush1.msra.mxu0 %v296
  %3188 = vmatprep.subr.mxu0 %v301
  %3189 = vmatpush1.msra.mxu0 %v300
  %3190 = vmatprep.subr.mxu0 %v305
  %3191 = vmatpush1.msra.mxu0 %v304
  %3192 = vmatprep.mubr.f32.mxu0 %v23
  %3193 = vmatmul.mubr.f32.gmra.mrb[0].mxu0 %v22
  %v3194 = vpop.f32.mrb[0].mxu0
  %v3195 = vadd.f32 %v3124, %v3194
  %v3196 = vpop.f32.mrb[0].mxu0
  %v3197 = vadd.f32 %v3126, %v3196
  %3198 = vdwg.mxu0
  %3199 = vmatprep.subr.mxu0 %v309
  %3200 = vmatpush1.msra.mxu0 %v308
  %3201 = vmatprep.subr.mxu0 %v313
  %3202 = vmatpush1.msra.mxu0 %v312
  %3203 = vmatprep.subr.mxu0 %v317
  %3204 = vmatpush1.msra.mxu0 %v316
  %3205 = vmatprep.subr.mxu0 %v321
  %3206 = vmatpush1.msra.mxu0 %v320
  %3207 = vmatprep.subr.mxu0 %v325
  %3208 = vmatpush1.msra.mxu0 %v324
  %3209 = vmatprep.subr.mxu0 %v329
  %3210 = vmatpush1.msra.mxu0 %v328
  %3211 = vmatprep.subr.mxu0 %v333
  %3212 = vmatpush1.msra.mxu0 %v332
  %3213 = vmatprep.subr.mxu0 %v337
  %3214 = vmatpush1.msra.mxu0 %v336
  %3215 = vmatprep.subr.mxu0 %v341
  %3216 = vmatpush1.msra.mxu0 %v340
  %3217 = vmatprep.subr.mxu0 %v345
  %3218 = vmatpush1.msra.mxu0 %v344
  %3219 = vmatprep.subr.mxu0 %v349
  %3220 = vmatpush1.msra.mxu0 %v348
  %3221 = vmatprep.subr.mxu0 %v353
  %3222 = vmatpush1.msra.mxu0 %v352
  %3223 = vmatprep.subr.mxu0 %v357
  %3224 = vmatpush1.msra.mxu0 %v356
  %3225 = vmatprep.subr.mxu0 %v361
  %3226 = vmatpush1.msra.mxu0 %v360
  %3227 = vmatprep.subr.mxu0 %v365
  %3228 = vmatpush1.msra.mxu0 %v364
  %3229 = vmatprep.subr.mxu0 %v369
  %3230 = vmatpush1.msra.mxu0 %v368
  %3231 = vmatprep.subr.mxu0 %v373
  %3232 = vmatpush1.msra.mxu0 %v372
  %3233 = vmatprep.subr.mxu0 %v377
  %3234 = vmatpush1.msra.mxu0 %v376
  %3235 = vmatprep.subr.mxu0 %v381
  %3236 = vmatpush1.msra.mxu0 %v380
  %3237 = vmatprep.subr.mxu0 %v385
  %3238 = vmatpush1.msra.mxu0 %v384
  %3239 = vmatprep.subr.mxu0 %v389
  %3240 = vmatpush1.msra.mxu0 %v388
  %3241 = vmatprep.subr.mxu0 %v393
  %3242 = vmatpush1.msra.mxu0 %v392
  %3243 = vmatprep.subr.mxu0 %v397
  %3244 = vmatpush1.msra.mxu0 %v396
  %3245 = vmatprep.subr.mxu0 %v401
  %3246 = vmatpush1.msra.mxu0 %v400
  %3247 = vmatprep.subr.mxu0 %v405
  %3248 = vmatpush1.msra.mxu0 %v404
  %3249 = vmatprep.subr.mxu0 %v409
  %3250 = vmatpush1.msra.mxu0 %v408
  %3251 = vmatprep.subr.mxu0 %v413
  %3252 = vmatpush1.msra.mxu0 %v412
  %3253 = vmatprep.subr.mxu0 %v417
  %3254 = vmatpush1.msra.mxu0 %v416
  %3255 = vmatprep.subr.mxu0 %v421
  %3256 = vmatpush1.msra.mxu0 %v420
  %3257 = vmatprep.subr.mxu0 %v425
  %3258 = vmatpush1.msra.mxu0 %v424
  %3259 = vmatprep.subr.mxu0 %v429
  %3260 = vmatpush1.msra.mxu0 %v428
  %3261 = vmatprep.subr.mxu0 %v433
  %3262 = vmatpush1.msra.mxu0 %v432
  %3263 = vmatprep.mubr.f32.mxu0 %v25
  %3264 = vmatmul.mubr.f32.gmra.mrb[0].mxu0 %v24
  %v3265 = vpop.f32.mrb[0].mxu0
  %v3266 = vadd.f32 %v3195, %v3265
  %v3267 = vpop.f32.mrb[0].mxu0
  %v3268 = vadd.f32 %v3197, %v3267
  %3269 = vdwg.mxu0
  %3270 = vmatprep.subr.mxu0 %v437
  %3271 = vmatpush1.msra.mxu0 %v436
  %3272 = vmatprep.subr.mxu0 %v441
  %3273 = vmatpush1.msra.mxu0 %v440
  %3274 = vmatprep.subr.mxu0 %v445
  %3275 = vmatpush1.msra.mxu0 %v444
  %3276 = vmatprep.subr.mxu0 %v449
  %3277 = vmatpush1.msra.mxu0 %v448
  %3278 = vmatprep.subr.mxu0 %v453
  %3279 = vmatpush1.msra.mxu0 %v452
  %3280 = vmatprep.subr.mxu0 %v457
  %3281 = vmatpush1.msra.mxu0 %v456
  %3282 = vmatprep.subr.mxu0 %v461
  %3283 = vmatpush1.msra.mxu0 %v460
  %3284 = vmatprep.subr.mxu0 %v465
  %3285 = vmatpush1.msra.mxu0 %v464
  %3286 = vmatprep.subr.mxu0 %v469
  %3287 = vmatpush1.msra.mxu0 %v468
  %3288 = vmatprep.subr.mxu0 %v473
  %3289 = vmatpush1.msra.mxu0 %v472
  %3290 = vmatprep.subr.mxu0 %v477
  %3291 = vmatpush1.msra.mxu0 %v476
  %3292 = vmatprep.subr.mxu0 %v481
  %3293 = vmatpush1.msra.mxu0 %v480
  %3294 = vmatprep.subr.mxu0 %v485
  %3295 = vmatpush1.msra.mxu0 %v484
  %3296 = vmatprep.subr.mxu0 %v489
  %3297 = vmatpush1.msra.mxu0 %v488
  %3298 = vmatprep.subr.mxu0 %v493
  %3299 = vmatpush1.msra.mxu0 %v492
  %3300 = vmatprep.subr.mxu0 %v497
  %3301 = vmatpush1.msra.mxu0 %v496
  %3302 = vmatprep.subr.mxu0 %v501
  %3303 = vmatpush1.msra.mxu0 %v500
  %3304 = vmatprep.subr.mxu0 %v505
  %3305 = vmatpush1.msra.mxu0 %v504
  %3306 = vmatprep.subr.mxu0 %v509
  %3307 = vmatpush1.msra.mxu0 %v508
  %3308 = vmatprep.subr.mxu0 %v513
  %3309 = vmatpush1.msra.mxu0 %v512
  %3310 = vmatprep.subr.mxu0 %v517
  %3311 = vmatpush1.msra.mxu0 %v516
  %3312 = vmatprep.subr.mxu0 %v521
  %3313 = vmatpush1.msra.mxu0 %v520
  %3314 = vmatprep.subr.mxu0 %v525
  %3315 = vmatpush1.msra.mxu0 %v524
  %3316 = vmatprep.subr.mxu0 %v529
  %3317 = vmatpush1.msra.mxu0 %v528
  %3318 = vmatprep.subr.mxu0 %v533
  %3319 = vmatpush1.msra.mxu0 %v532
  %3320 = vmatprep.subr.mxu0 %v537
  %3321 = vmatpush1.msra.mxu0 %v536
  %3322 = vmatprep.subr.mxu0 %v541
  %3323 = vmatpush1.msra.mxu0 %v540
  %3324 = vmatprep.subr.mxu0 %v545
  %3325 = vmatpush1.msra.mxu0 %v544
  %3326 = vmatprep.subr.mxu0 %v549
  %3327 = vmatpush1.msra.mxu0 %v548
  %3328 = vmatprep.subr.mxu0 %v553
  %3329 = vmatpush1.msra.mxu0 %v552
  %3330 = vmatprep.subr.mxu0 %v557
  %3331 = vmatpush1.msra.mxu0 %v556
  %3332 = vmatprep.subr.mxu0 %v561
  %3333 = vmatpush1.msra.mxu0 %v560
  %3334 = vmatprep.mubr.f32.mxu0 %v27
  %3335 = vmatmul.mubr.f32.gmra.mrb[0].mxu0 %v26
  %v3336 = vpop.f32.mrb[0].mxu0
  %v3337 = vadd.f32 %v3266, %v3336
  %v3338 = vpop.f32.mrb[0].mxu0
  %v3339 = vadd.f32 %v3268, %v3338
  %3340 = vdwg.mxu0
  %3341 = vmatprep.subr.mxu0 %v565
  %3342 = vmatpush1.msra.mxu0 %v564
  %3343 = vmatprep.subr.mxu0 %v569
  %3344 = vmatpush1.msra.mxu0 %v568
  %3345 = vmatprep.subr.mxu0 %v573
  %3346 = vmatpush1.msra.mxu0 %v572
  %3347 = vmatprep.subr.mxu0 %v577
  %3348 = vmatpush1.msra.mxu0 %v576
  %3349 = vmatprep.subr.mxu0 %v581
  %3350 = vmatpush1.msra.mxu0 %v580
  %3351 = vmatprep.subr.mxu0 %v585
  %3352 = vmatpush1.msra.mxu0 %v584
  %3353 = vmatprep.subr.mxu0 %v589
  %3354 = vmatpush1.msra.mxu0 %v588
  %3355 = vmatprep.subr.mxu0 %v593
  %3356 = vmatpush1.msra.mxu0 %v592
  %3357 = vmatprep.subr.mxu0 %v597
  %3358 = vmatpush1.msra.mxu0 %v596
  %3359 = vmatprep.subr.mxu0 %v601
  %3360 = vmatpush1.msra.mxu0 %v600
  %3361 = vmatprep.subr.mxu0 %v605
  %3362 = vmatpush1.msra.mxu0 %v604
  %3363 = vmatprep.subr.mxu0 %v609
  %3364 = vmatpush1.msra.mxu0 %v608
  %3365 = vmatprep.subr.mxu0 %v613
  %3366 = vmatpush1.msra.mxu0 %v612
  %3367 = vmatprep.subr.mxu0 %v617
  %3368 = vmatpush1.msra.mxu0 %v616
  %3369 = vmatprep.subr.mxu0 %v621
  %3370 = vmatpush1.msra.mxu0 %v620
  %3371 = vmatprep.subr.mxu0 %v625
  %3372 = vmatpush1.msra.mxu0 %v624
  %3373 = vmatprep.subr.mxu0 %v629
  %3374 = vmatpush1.msra.mxu0 %v628
  %3375 = vmatprep.subr.mxu0 %v633
  %3376 = vmatpush1.msra.mxu0 %v632
  %3377 = vmatprep.subr.mxu0 %v637
  %3378 = vmatpush1.msra.mxu0 %v636
  %3379 = vmatprep.subr.mxu0 %v641
  %3380 = vmatpush1.msra.mxu0 %v640
  %3381 = vmatprep.subr.mxu0 %v645
  %3382 = vmatpush1.msra.mxu0 %v644
  %3383 = vmatprep.subr.mxu0 %v649
  %3384 = vmatpush1.msra.mxu0 %v648
  %3385 = vmatprep.subr.mxu0 %v653
  %3386 = vmatpush1.msra.mxu0 %v652
  %3387 = vmatprep.subr.mxu0 %v657
  %3388 = vmatpush1.msra.mxu0 %v656
  %3389 = vmatprep.subr.mxu0 %v661
  %3390 = vmatpush1.msra.mxu0 %v660
  %3391 = vmatprep.subr.mxu0 %v665
  %3392 = vmatpush1.msra.mxu0 %v664
  %3393 = vmatprep.subr.mxu0 %v669
  %3394 = vmatpush1.msra.mxu0 %v668
  %3395 = vmatprep.subr.mxu0 %v673
  %3396 = vmatpush1.msra.mxu0 %v672
  %3397 = vmatprep.subr.mxu0 %v677
  %3398 = vmatpush1.msra.mxu0 %v676
  %3399 = vmatprep.subr.mxu0 %v681
  %3400 = vmatpush1.msra.mxu0 %v680
  %3401 = vmatprep.subr.mxu0 %v685
  %3402 = vmatpush1.msra.mxu0 %v684
  %3403 = vmatprep.subr.mxu0 %v689
  %3404 = vmatpush1.msra.mxu0 %v688
  %3405 = vmatprep.mubr.f32.mxu0 %v29
  %3406 = vmatmul.mubr.f32.gmra.mrb[0].mxu0 %v28
  %v3407 = vpop.f32.mrb[0].mxu0
  %v3408 = vadd.f32 %v3337, %v3407
  %v3409 = vpop.f32.mrb[0].mxu0
  %v3410 = vadd.f32 %v3339, %v3409
  %3411 = vdwg.mxu0
  %3412 = vmatprep.subr.mxu0 %v693
  %3413 = vmatpush1.msra.mxu0 %v692
  %3414 = vmatprep.subr.mxu0 %v697
  %3415 = vmatpush1.msra.mxu0 %v696
  %3416 = vmatprep.subr.mxu0 %v701
  %3417 = vmatpush1.msra.mxu0 %v700
  %3418 = vmatprep.subr.mxu0 %v705
  %3419 = vmatpush1.msra.mxu0 %v704
  %3420 = vmatprep.subr.mxu0 %v709
  %3421 = vmatpush1.msra.mxu0 %v708
  %3422 = vmatprep.subr.mxu0 %v713
  %3423 = vmatpush1.msra.mxu0 %v712
  %3424 = vmatprep.subr.mxu0 %v717
  %3425 = vmatpush1.msra.mxu0 %v716
  %3426 = vmatprep.subr.mxu0 %v721
  %3427 = vmatpush1.msra.mxu0 %v720
  %3428 = vmatprep.subr.mxu0 %v725
  %3429 = vmatpush1.msra.mxu0 %v724
  %3430 = vmatprep.subr.mxu0 %v729
  %3431 = vmatpush1.msra.mxu0 %v728
  %3432 = vmatprep.subr.mxu0 %v733
  %3433 = vmatpush1.msra.mxu0 %v732
  %3434 = vmatprep.subr.mxu0 %v737
  %3435 = vmatpush1.msra.mxu0 %v736
  %3436 = vmatprep.subr.mxu0 %v741
  %3437 = vmatpush1.msra.mxu0 %v740
  %3438 = vmatprep.subr.mxu0 %v745
  %3439 = vmatpush1.msra.mxu0 %v744
  %3440 = vmatprep.subr.mxu0 %v749
  %3441 = vmatpush1.msra.mxu0 %v748
  %3442 = vmatprep.subr.mxu0 %v753
  %3443 = vmatpush1.msra.mxu0 %v752
  %3444 = vmatprep.subr.mxu0 %v757
  %3445 = vmatpush1.msra.mxu0 %v756
  %3446 = vmatprep.subr.mxu0 %v761
  %3447 = vmatpush1.msra.mxu0 %v760
  %3448 = vmatprep.subr.mxu0 %v765
  %3449 = vmatpush1.msra.mxu0 %v764
  %3450 = vmatprep.subr.mxu0 %v769
  %3451 = vmatpush1.msra.mxu0 %v768
  %3452 = vmatprep.subr.mxu0 %v773
  %3453 = vmatpush1.msra.mxu0 %v772
  %3454 = vmatprep.subr.mxu0 %v777
  %3455 = vmatpush1.msra.mxu0 %v776
  %3456 = vmatprep.subr.mxu0 %v781
  %3457 = vmatpush1.msra.mxu0 %v780
  %3458 = vmatprep.subr.mxu0 %v785
  %3459 = vmatpush1.msra.mxu0 %v784
  %3460 = vmatprep.subr.mxu0 %v789
  %3461 = vmatpush1.msra.mxu0 %v788
  %3462 = vmatprep.subr.mxu0 %v793
  %3463 = vmatpush1.msra.mxu0 %v792
  %3464 = vmatprep.subr.mxu0 %v797
  %3465 = vmatpush1.msra.mxu0 %v796
  %3466 = vmatprep.subr.mxu0 %v801
  %3467 = vmatpush1.msra.mxu0 %v800
  %3468 = vmatprep.subr.mxu0 %v805
  %3469 = vmatpush1.msra.mxu0 %v804
  %3470 = vmatprep.subr.mxu0 %v809
  %3471 = vmatpush1.msra.mxu0 %v808
  %3472 = vmatprep.subr.mxu0 %v813
  %3473 = vmatpush1.msra.mxu0 %v812
  %3474 = vmatprep.subr.mxu0 %v817
  %3475 = vmatpush1.msra.mxu0 %v816
  %3476 = vmatprep.mubr.f32.mxu0 %v31
  %3477 = vmatmul.mubr.f32.gmra.mrb[0].mxu0 %v30
  %v3478 = vpop.f32.mrb[0].mxu0
  %v3479 = vadd.f32 %v3408, %v3478
  %v3480 = vpop.f32.mrb[0].mxu0
  %v3481 = vadd.f32 %v3410, %v3480
  %3482 = vdwg.mxu0
  %3483 = vmatprep.subr.mxu0 %v821
  %3484 = vmatpush1.msra.mxu0 %v820
  %3485 = vmatprep.subr.mxu0 %v825
  %3486 = vmatpush1.msra.mxu0 %v824
  %3487 = vmatprep.subr.mxu0 %v829
  %3488 = vmatpush1.msra.mxu0 %v828
  %3489 = vmatprep.subr.mxu0 %v833
  %3490 = vmatpush1.msra.mxu0 %v832
  %3491 = vmatprep.subr.mxu0 %v837
  %3492 = vmatpush1.msra.mxu0 %v836
  %3493 = vmatprep.subr.mxu0 %v841
  %3494 = vmatpush1.msra.mxu0 %v840
  %3495 = vmatprep.subr.mxu0 %v845
  %3496 = vmatpush1.msra.mxu0 %v844
  %3497 = vmatprep.subr.mxu0 %v849
  %3498 = vmatpush1.msra.mxu0 %v848
  %3499 = vmatprep.subr.mxu0 %v853
  %3500 = vmatpush1.msra.mxu0 %v852
  %3501 = vmatprep.subr.mxu0 %v857
  %3502 = vmatpush1.msra.mxu0 %v856
  %3503 = vmatprep.subr.mxu0 %v861
  %3504 = vmatpush1.msra.mxu0 %v860
  %3505 = vmatprep.subr.mxu0 %v865
  %3506 = vmatpush1.msra.mxu0 %v864
  %3507 = vmatprep.subr.mxu0 %v869
  %3508 = vmatpush1.msra.mxu0 %v868
  %3509 = vmatprep.subr.mxu0 %v873
  %3510 = vmatpush1.msra.mxu0 %v872
  %3511 = vmatprep.subr.mxu0 %v877
  %3512 = vmatpush1.msra.mxu0 %v876
  %3513 = vmatprep.subr.mxu0 %v881
  %3514 = vmatpush1.msra.mxu0 %v880
  %3515 = vmatprep.subr.mxu0 %v885
  %3516 = vmatpush1.msra.mxu0 %v884
  %3517 = vmatprep.subr.mxu0 %v889
  %3518 = vmatpush1.msra.mxu0 %v888
  %3519 = vmatprep.subr.mxu0 %v893
  %3520 = vmatpush1.msra.mxu0 %v892
  %3521 = vmatprep.subr.mxu0 %v897
  %3522 = vmatpush1.msra.mxu0 %v896
  %3523 = vmatprep.subr.mxu0 %v901
  %3524 = vmatpush1.msra.mxu0 %v900
  %3525 = vmatprep.subr.mxu0 %v905
  %3526 = vmatpush1.msra.mxu0 %v904
  %3527 = vmatprep.subr.mxu0 %v909
  %3528 = vmatpush1.msra.mxu0 %v908
  %3529 = vmatprep.subr.mxu0 %v913
  %3530 = vmatpush1.msra.mxu0 %v912
  %3531 = vmatprep.subr.mxu0 %v917
  %3532 = vmatpush1.msra.mxu0 %v916
  %3533 = vmatprep.subr.mxu0 %v921
  %3534 = vmatpush1.msra.mxu0 %v920
  %3535 = vmatprep.subr.mxu0 %v925
  %3536 = vmatpush1.msra.mxu0 %v924
  %3537 = vmatprep.subr.mxu0 %v929
  %3538 = vmatpush1.msra.mxu0 %v928
  %3539 = vmatprep.subr.mxu0 %v933
  %3540 = vmatpush1.msra.mxu0 %v932
  %3541 = vmatprep.subr.mxu0 %v937
  %3542 = vmatpush1.msra.mxu0 %v936
  %3543 = vmatprep.subr.mxu0 %v941
  %3544 = vmatpush1.msra.mxu0 %v940
  %3545 = vmatprep.subr.mxu0 %v945
  %3546 = vmatpush1.msra.mxu0 %v944
  %3547 = vmatprep.mubr.f32.mxu0 %v33
  %3548 = vmatmul.mubr.f32.gmra.mrb[0].mxu0 %v32
  %v3549 = vpop.f32.mrb[0].mxu0
  %v3550 = vadd.f32 %v3479, %v3549
  %v3551 = vpop.f32.mrb[0].mxu0
  %v3552 = vadd.f32 %v3481, %v3551
  %3553 = vdwg.mxu0
  %3554 = vmatprep.subr.mxu0 %v949
  %3555 = vmatpush1.msra.mxu0 %v948
  %3556 = vmatprep.subr.mxu0 %v953
  %3557 = vmatpush1.msra.mxu0 %v952
  %3558 = vmatprep.subr.mxu0 %v957
  %3559 = vmatpush1.msra.mxu0 %v956
  %3560 = vmatprep.subr.mxu0 %v961
  %3561 = vmatpush1.msra.mxu0 %v960
  %3562 = vmatprep.subr.mxu0 %v965
  %3563 = vmatpush1.msra.mxu0 %v964
  %3564 = vmatprep.subr.mxu0 %v969
  %3565 = vmatpush1.msra.mxu0 %v968
  %3566 = vmatprep.subr.mxu0 %v973
  %3567 = vmatpush1.msra.mxu0 %v972
  %3568 = vmatprep.subr.mxu0 %v977
  %3569 = vmatpush1.msra.mxu0 %v976
  %3570 = vmatprep.subr.mxu0 %v981
  %3571 = vmatpush1.msra.mxu0 %v980
  %3572 = vmatprep.subr.mxu0 %v985
  %3573 = vmatpush1.msra.mxu0 %v984
  %3574 = vmatprep.subr.mxu0 %v989
  %3575 = vmatpush1.msra.mxu0 %v988
  %3576 = vmatprep.subr.mxu0 %v993
  %3577 = vmatpush1.msra.mxu0 %v992
  %3578 = vmatprep.subr.mxu0 %v997
  %3579 = vmatpush1.msra.mxu0 %v996
  %3580 = vmatprep.subr.mxu0 %v1001
  %3581 = vmatpush1.msra.mxu0 %v1000
  %3582 = vmatprep.subr.mxu0 %v1005
  %3583 = vmatpush1.msra.mxu0 %v1004
  %3584 = vmatprep.subr.mxu0 %v1009
  %3585 = vmatpush1.msra.mxu0 %v1008
  %3586 = vmatprep.subr.mxu0 %v1013
  %3587 = vmatpush1.msra.mxu0 %v1012
  %3588 = vmatprep.subr.mxu0 %v1017
  %3589 = vmatpush1.msra.mxu0 %v1016
  %3590 = vmatprep.subr.mxu0 %v1021
  %3591 = vmatpush1.msra.mxu0 %v1020
  %3592 = vmatprep.subr.mxu0 %v1025
  %3593 = vmatpush1.msra.mxu0 %v1024
  %3594 = vmatprep.subr.mxu0 %v1029
  %3595 = vmatpush1.msra.mxu0 %v1028
  %3596 = vmatprep.subr.mxu0 %v1033
  %3597 = vmatpush1.msra.mxu0 %v1032
  %3598 = vmatprep.subr.mxu0 %v1037
  %3599 = vmatpush1.msra.mxu0 %v1036
  %3600 = vmatprep.subr.mxu0 %v1041
  %3601 = vmatpush1.msra.mxu0 %v1040
  %3602 = vmatprep.subr.mxu0 %v1045
  %3603 = vmatpush1.msra.mxu0 %v1044
  %3604 = vmatprep.subr.mxu0 %v1049
  %3605 = vmatpush1.msra.mxu0 %v1048
  %3606 = vmatprep.subr.mxu0 %v1053
  %3607 = vmatpush1.msra.mxu0 %v1052
  %3608 = vmatprep.subr.mxu0 %v1057
  %3609 = vmatpush1.msra.mxu0 %v1056
  %3610 = vmatprep.subr.mxu0 %v1061
  %3611 = vmatpush1.msra.mxu0 %v1060
  %3612 = vmatprep.subr.mxu0 %v1065
  %3613 = vmatpush1.msra.mxu0 %v1064
  %3614 = vmatprep.subr.mxu0 %v1069
  %3615 = vmatpush1.msra.mxu0 %v1068
  %3616 = vmatprep.subr.mxu0 %v1073
  %3617 = vmatpush1.msra.mxu0 %v1072
  %3618 = vmatprep.mubr.f32.mxu0 %v35
  %3619 = vmatmul.mubr.f32.gmra.mrb[0].mxu0 %v34
  %v3620 = vpop.f32.mrb[0].mxu0
  %v3621 = vadd.f32 %v3550, %v3620
  %v3622 = vpop.f32.mrb[0].mxu0
  %v3623 = vadd.f32 %v3552, %v3622
  %3624 = vdwg.mxu0
  %3625 = vmatprep.subr.mxu0 %v1077
  %3626 = vmatpush1.msra.mxu0 %v1076
  %3627 = vmatprep.subr.mxu0 %v1081
  %3628 = vmatpush1.msra.mxu0 %v1080
  %3629 = vmatprep.subr.mxu0 %v1085
  %3630 = vmatpush1.msra.mxu0 %v1084
  %3631 = vmatprep.subr.mxu0 %v1089
  %3632 = vmatpush1.msra.mxu0 %v1088
  %3633 = vmatprep.subr.mxu0 %v1093
  %3634 = vmatpush1.msra.mxu0 %v1092
  %3635 = vmatprep.subr.mxu0 %v1097
  %3636 = vmatpush1.msra.mxu0 %v1096
  %3637 = vmatprep.subr.mxu0 %v1101
  %3638 = vmatpush1.msra.mxu0 %v1100
  %3639 = vmatprep.subr.mxu0 %v1105
  %3640 = vmatpush1.msra.mxu0 %v1104
  %3641 = vmatprep.subr.mxu0 %v1109
  %3642 = vmatpush1.msra.mxu0 %v1108
  %3643 = vmatprep.subr.mxu0 %v1113
  %3644 = vmatpush1.msra.mxu0 %v1112
  %3645 = vmatprep.subr.mxu0 %v1117
  %3646 = vmatpush1.msra.mxu0 %v1116
  %3647 = vmatprep.subr.mxu0 %v1121
  %3648 = vmatpush1.msra.mxu0 %v1120
  %3649 = vmatprep.subr.mxu0 %v1125
  %3650 = vmatpush1.msra.mxu0 %v1124
  %3651 = vmatprep.subr.mxu0 %v1129
  %3652 = vmatpush1.msra.mxu0 %v1128
  %3653 = vmatprep.subr.mxu0 %v1133
  %3654 = vmatpush1.msra.mxu0 %v1132
  %3655 = vmatprep.subr.mxu0 %v1137
  %3656 = vmatpush1.msra.mxu0 %v1136
  %3657 = vmatprep.subr.mxu0 %v1141
  %3658 = vmatpush1.msra.mxu0 %v1140
  %3659 = vmatprep.subr.mxu0 %v1145
  %3660 = vmatpush1.msra.mxu0 %v1144
  %3661 = vmatprep.subr.mxu0 %v1149
  %3662 = vmatpush1.msra.mxu0 %v1148
  %3663 = vmatprep.subr.mxu0 %v1153
  %3664 = vmatpush1.msra.mxu0 %v1152
  %3665 = vmatprep.subr.mxu0 %v1157
  %3666 = vmatpush1.msra.mxu0 %v1156
  %3667 = vmatprep.subr.mxu0 %v1161
  %3668 = vmatpush1.msra.mxu0 %v1160
  %3669 = vmatprep.subr.mxu0 %v1165
  %3670 = vmatpush1.msra.mxu0 %v1164
  %3671 = vmatprep.subr.mxu0 %v1169
  %3672 = vmatpush1.msra.mxu0 %v1168
  %3673 = vmatprep.subr.mxu0 %v1173
  %3674 = vmatpush1.msra.mxu0 %v1172
  %3675 = vmatprep.subr.mxu0 %v1177
  %3676 = vmatpush1.msra.mxu0 %v1176
  %3677 = vmatprep.subr.mxu0 %v1181
  %3678 = vmatpush1.msra.mxu0 %v1180
  %3679 = vmatprep.subr.mxu0 %v1185
  %3680 = vmatpush1.msra.mxu0 %v1184
  %3681 = vmatprep.subr.mxu0 %v1189
  %3682 = vmatpush1.msra.mxu0 %v1188
  %3683 = vmatprep.subr.mxu0 %v1193
  %3684 = vmatpush1.msra.mxu0 %v1192
  %3685 = vmatprep.subr.mxu0 %v1197
  %3686 = vmatpush1.msra.mxu0 %v1196
  %3687 = vmatprep.subr.mxu0 %v1201
  %3688 = vmatpush1.msra.mxu0 %v1200
  %3689 = vmatprep.mubr.f32.mxu0 %v37
  %3690 = vmatmul.mubr.f32.gmra.mrb[0].mxu0 %v36
  %v3691 = vpop.f32.mrb[0].mxu0
  %v3692 = vadd.f32 %v3621, %v3691
  %v3693 = vpop.f32.mrb[0].mxu0
  %v3694 = vadd.f32 %v3623, %v3693
  %3695 = vdwg.mxu0
  %3696 = vmatprep.subr.mxu0 %v1205
  %3697 = vmatpush1.msra.mxu0 %v1204
  %3698 = vmatprep.subr.mxu0 %v1209
  %3699 = vmatpush1.msra.mxu0 %v1208
  %3700 = vmatprep.subr.mxu0 %v1213
  %3701 = vmatpush1.msra.mxu0 %v1212
  %3702 = vmatprep.subr.mxu0 %v1217
  %3703 = vmatpush1.msra.mxu0 %v1216
  %3704 = vmatprep.subr.mxu0 %v1221
  %3705 = vmatpush1.msra.mxu0 %v1220
  %3706 = vmatprep.subr.mxu0 %v1225
  %3707 = vmatpush1.msra.mxu0 %v1224
  %3708 = vmatprep.subr.mxu0 %v1229
  %3709 = vmatpush1.msra.mxu0 %v1228
  %3710 = vmatprep.subr.mxu0 %v1233
  %3711 = vmatpush1.msra.mxu0 %v1232
  %3712 = vmatprep.subr.mxu0 %v1237
  %3713 = vmatpush1.msra.mxu0 %v1236
  %3714 = vmatprep.subr.mxu0 %v1241
  %3715 = vmatpush1.msra.mxu0 %v1240
  %3716 = vmatprep.subr.mxu0 %v1245
  %3717 = vmatpush1.msra.mxu0 %v1244
  %3718 = vmatprep.subr.mxu0 %v1249
  %3719 = vmatpush1.msra.mxu0 %v1248
  %3720 = vmatprep.subr.mxu0 %v1253
  %3721 = vmatpush1.msra.mxu0 %v1252
  %3722 = vmatprep.subr.mxu0 %v1257
  %3723 = vmatpush1.msra.mxu0 %v1256
  %3724 = vmatprep.subr.mxu0 %v1261
  %3725 = vmatpush1.msra.mxu0 %v1260
  %3726 = vmatprep.subr.mxu0 %v1265
  %3727 = vmatpush1.msra.mxu0 %v1264
  %3728 = vmatprep.subr.mxu0 %v1269
  %3729 = vmatpush1.msra.mxu0 %v1268
  %3730 = vmatprep.subr.mxu0 %v1273
  %3731 = vmatpush1.msra.mxu0 %v1272
  %3732 = vmatprep.subr.mxu0 %v1277
  %3733 = vmatpush1.msra.mxu0 %v1276
  %3734 = vmatprep.subr.mxu0 %v1281
  %3735 = vmatpush1.msra.mxu0 %v1280
  %3736 = vmatprep.subr.mxu0 %v1285
  %3737 = vmatpush1.msra.mxu0 %v1284
  %3738 = vmatprep.subr.mxu0 %v1289
  %3739 = vmatpush1.msra.mxu0 %v1288
  %3740 = vmatprep.subr.mxu0 %v1293
  %3741 = vmatpush1.msra.mxu0 %v1292
  %3742 = vmatprep.subr.mxu0 %v1297
  %3743 = vmatpush1.msra.mxu0 %v1296
  %3744 = vmatprep.subr.mxu0 %v1301
  %3745 = vmatpush1.msra.mxu0 %v1300
  %3746 = vmatprep.subr.mxu0 %v1305
  %3747 = vmatpush1.msra.mxu0 %v1304
  %3748 = vmatprep.subr.mxu0 %v1309
  %3749 = vmatpush1.msra.mxu0 %v1308
  %3750 = vmatprep.subr.mxu0 %v1313
  %3751 = vmatpush1.msra.mxu0 %v1312
  %3752 = vmatprep.subr.mxu0 %v1317
  %3753 = vmatpush1.msra.mxu0 %v1316
  %3754 = vmatprep.subr.mxu0 %v1321
  %3755 = vmatpush1.msra.mxu0 %v1320
  %3756 = vmatprep.subr.mxu0 %v1325
  %3757 = vmatpush1.msra.mxu0 %v1324
  %3758 = vmatprep.subr.mxu0 %v1329
  %3759 = vmatpush1.msra.mxu0 %v1328
  %3760 = vmatprep.mubr.f32.mxu0 %v39
  %3761 = vmatmul.mubr.f32.gmra.mrb[0].mxu0 %v38
  %v3762 = vpop.f32.mrb[0].mxu0
  %v3763 = vadd.f32 %v3692, %v3762
  %v3764 = vpop.f32.mrb[0].mxu0
  %v3765 = vadd.f32 %v3694, %v3764
  %3766 = vdwg.mxu0
  %3767 = vmatprep.subr.mxu0 %v1333
  %3768 = vmatpush1.msra.mxu0 %v1332
  %3769 = vmatprep.subr.mxu0 %v1337
  %3770 = vmatpush1.msra.mxu0 %v1336
  %3771 = vmatprep.subr.mxu0 %v1341
  %3772 = vmatpush1.msra.mxu0 %v1340
  %3773 = vmatprep.subr.mxu0 %v1345
  %3774 = vmatpush1.msra.mxu0 %v1344
  %3775 = vmatprep.subr.mxu0 %v1349
  %3776 = vmatpush1.msra.mxu0 %v1348
  %3777 = vmatprep.subr.mxu0 %v1353
  %3778 = vmatpush1.msra.mxu0 %v1352
  %3779 = vmatprep.subr.mxu0 %v1357
  %3780 = vmatpush1.msra.mxu0 %v1356
  %3781 = vmatprep.subr.mxu0 %v1361
  %3782 = vmatpush1.msra.mxu0 %v1360
  %3783 = vmatprep.subr.mxu0 %v1365
  %3784 = vmatpush1.msra.mxu0 %v1364
  %3785 = vmatprep.subr.mxu0 %v1369
  %3786 = vmatpush1.msra.mxu0 %v1368
  %3787 = vmatprep.subr.mxu0 %v1373
  %3788 = vmatpush1.msra.mxu0 %v1372
  %3789 = vmatprep.subr.mxu0 %v1377
  %3790 = vmatpush1.msra.mxu0 %v1376
  %3791 = vmatprep.subr.mxu0 %v1381
  %3792 = vmatpush1.msra.mxu0 %v1380
  %3793 = vmatprep.subr.mxu0 %v1385
  %3794 = vmatpush1.msra.mxu0 %v1384
  %3795 = vmatprep.subr.mxu0 %v1389
  %3796 = vmatpush1.msra.mxu0 %v1388
  %3797 = vmatprep.subr.mxu0 %v1393
  %3798 = vmatpush1.msra.mxu0 %v1392
  %3799 = vmatprep.subr.mxu0 %v1397
  %3800 = vmatpush1.msra.mxu0 %v1396
  %3801 = vmatprep.subr.mxu0 %v1401
  %3802 = vmatpush1.msra.mxu0 %v1400
  %3803 = vmatprep.subr.mxu0 %v1405
  %3804 = vmatpush1.msra.mxu0 %v1404
  %3805 = vmatprep.subr.mxu0 %v1409
  %3806 = vmatpush1.msra.mxu0 %v1408
  %3807 = vmatprep.subr.mxu0 %v1413
  %3808 = vmatpush1.msra.mxu0 %v1412
  %3809 = vmatprep.subr.mxu0 %v1417
  %3810 = vmatpush1.msra.mxu0 %v1416
  %3811 = vmatprep.subr.mxu0 %v1421
  %3812 = vmatpush1.msra.mxu0 %v1420
  %3813 = vmatprep.subr.mxu0 %v1425
  %3814 = vmatpush1.msra.mxu0 %v1424
  %3815 = vmatprep.subr.mxu0 %v1429
  %3816 = vmatpush1.msra.mxu0 %v1428
  %3817 = vmatprep.subr.mxu0 %v1433
  %3818 = vmatpush1.msra.mxu0 %v1432
  %3819 = vmatprep.subr.mxu0 %v1437
  %3820 = vmatpush1.msra.mxu0 %v1436
  %3821 = vmatprep.subr.mxu0 %v1441
  %3822 = vmatpush1.msra.mxu0 %v1440
  %3823 = vmatprep.subr.mxu0 %v1445
  %3824 = vmatpush1.msra.mxu0 %v1444
  %3825 = vmatprep.subr.mxu0 %v1449
  %3826 = vmatpush1.msra.mxu0 %v1448
  %3827 = vmatprep.subr.mxu0 %v1453
  %3828 = vmatpush1.msra.mxu0 %v1452
  %3829 = vmatprep.subr.mxu0 %v1457
  %3830 = vmatpush1.msra.mxu0 %v1456
  %3831 = vmatprep.mubr.f32.mxu0 %v41
  %3832 = vmatmul.mubr.f32.gmra.mrb[0].mxu0 %v40
  %v3833 = vpop.f32.mrb[0].mxu0
  %v3834 = vadd.f32 %v3763, %v3833
  %v3835 = vpop.f32.mrb[0].mxu0
  %v3836 = vadd.f32 %v3765, %v3835
  %3837 = vdwg.mxu0
  %3838 = vmatprep.subr.mxu0 %v1461
  %3839 = vmatpush1.msra.mxu0 %v1460
  %3840 = vmatprep.subr.mxu0 %v1465
  %3841 = vmatpush1.msra.mxu0 %v1464
  %3842 = vmatprep.subr.mxu0 %v1469
  %3843 = vmatpush1.msra.mxu0 %v1468
  %3844 = vmatprep.subr.mxu0 %v1473
  %3845 = vmatpush1.msra.mxu0 %v1472
  %3846 = vmatprep.subr.mxu0 %v1477
  %3847 = vmatpush1.msra.mxu0 %v1476
  %3848 = vmatprep.subr.mxu0 %v1481
  %3849 = vmatpush1.msra.mxu0 %v1480
  %3850 = vmatprep.subr.mxu0 %v1485
  %3851 = vmatpush1.msra.mxu0 %v1484
  %3852 = vmatprep.subr.mxu0 %v1489
  %3853 = vmatpush1.msra.mxu0 %v1488
  %3854 = vmatprep.subr.mxu0 %v1493
  %3855 = vmatpush1.msra.mxu0 %v1492
  %3856 = vmatprep.subr.mxu0 %v1497
  %3857 = vmatpush1.msra.mxu0 %v1496
  %3858 = vmatprep.subr.mxu0 %v1501
  %3859 = vmatpush1.msra.mxu0 %v1500
  %3860 = vmatprep.subr.mxu0 %v1505
  %3861 = vmatpush1.msra.mxu0 %v1504
  %3862 = vmatprep.subr.mxu0 %v1509
  %3863 = vmatpush1.msra.mxu0 %v1508
  %3864 = vmatprep.subr.mxu0 %v1513
  %3865 = vmatpush1.msra.mxu0 %v1512
  %3866 = vmatprep.subr.mxu0 %v1517
  %3867 = vmatpush1.msra.mxu0 %v1516
  %3868 = vmatprep.subr.mxu0 %v1521
  %3869 = vmatpush1.msra.mxu0 %v1520
  %3870 = vmatprep.subr.mxu0 %v1525
  %3871 = vmatpush1.msra.mxu0 %v1524
  %3872 = vmatprep.subr.mxu0 %v1529
  %3873 = vmatpush1.msra.mxu0 %v1528
  %3874 = vmatprep.subr.mxu0 %v1533
  %3875 = vmatpush1.msra.mxu0 %v1532
  %3876 = vmatprep.subr.mxu0 %v1537
  %3877 = vmatpush1.msra.mxu0 %v1536
  %3878 = vmatprep.subr.mxu0 %v1541
  %3879 = vmatpush1.msra.mxu0 %v1540
  %3880 = vmatprep.subr.mxu0 %v1545
  %3881 = vmatpush1.msra.mxu0 %v1544
  %3882 = vmatprep.subr.mxu0 %v1549
  %3883 = vmatpush1.msra.mxu0 %v1548
  %3884 = vmatprep.subr.mxu0 %v1553
  %3885 = vmatpush1.msra.mxu0 %v1552
  %3886 = vmatprep.subr.mxu0 %v1557
  %3887 = vmatpush1.msra.mxu0 %v1556
  %3888 = vmatprep.subr.mxu0 %v1561
  %3889 = vmatpush1.msra.mxu0 %v1560
  %3890 = vmatprep.subr.mxu0 %v1565
  %3891 = vmatpush1.msra.mxu0 %v1564
  %3892 = vmatprep.subr.mxu0 %v1569
  %3893 = vmatpush1.msra.mxu0 %v1568
  %3894 = vmatprep.subr.mxu0 %v1573
  %3895 = vmatpush1.msra.mxu0 %v1572
  %3896 = vmatprep.subr.mxu0 %v1577
  %3897 = vmatpush1.msra.mxu0 %v1576
  %3898 = vmatprep.subr.mxu0 %v1581
  %3899 = vmatpush1.msra.mxu0 %v1580
  %3900 = vmatprep.subr.mxu0 %v1585
  %3901 = vmatpush1.msra.mxu0 %v1584
  %3902 = vmatprep.mubr.f32.mxu0 %v43
  %3903 = vmatmul.mubr.f32.gmra.mrb[0].mxu0 %v42
  %v3904 = vpop.f32.mrb[0].mxu0
  %v3905 = vadd.f32 %v3834, %v3904
  %v3906 = vpop.f32.mrb[0].mxu0
  %v3907 = vadd.f32 %v3836, %v3906
  %3908 = vdwg.mxu0
  %3909 = vmatprep.subr.mxu0 %v1589
  %3910 = vmatpush1.msra.mxu0 %v1588
  %3911 = vmatprep.subr.mxu0 %v1593
  %3912 = vmatpush1.msra.mxu0 %v1592
  %3913 = vmatprep.subr.mxu0 %v1597
  %3914 = vmatpush1.msra.mxu0 %v1596
  %3915 = vmatprep.subr.mxu0 %v1601
  %3916 = vmatpush1.msra.mxu0 %v1600
  %3917 = vmatprep.subr.mxu0 %v1605
  %3918 = vmatpush1.msra.mxu0 %v1604
  %3919 = vmatprep.subr.mxu0 %v1609
  %3920 = vmatpush1.msra.mxu0 %v1608
  %3921 = vmatprep.subr.mxu0 %v1613
  %3922 = vmatpush1.msra.mxu0 %v1612
  %3923 = vmatprep.subr.mxu0 %v1617
  %3924 = vmatpush1.msra.mxu0 %v1616
  %3925 = vmatprep.subr.mxu0 %v1621
  %3926 = vmatpush1.msra.mxu0 %v1620
  %3927 = vmatprep.subr.mxu0 %v1625
  %3928 = vmatpush1.msra.mxu0 %v1624
  %3929 = vmatprep.subr.mxu0 %v1629
  %3930 = vmatpush1.msra.mxu0 %v1628
  %3931 = vmatprep.subr.mxu0 %v1633
  %3932 = vmatpush1.msra.mxu0 %v1632
  %3933 = vmatprep.subr.mxu0 %v1637
  %3934 = vmatpush1.msra.mxu0 %v1636
  %3935 = vmatprep.subr.mxu0 %v1641
  %3936 = vmatpush1.msra.mxu0 %v1640
  %3937 = vmatprep.subr.mxu0 %v1645
  %3938 = vmatpush1.msra.mxu0 %v1644
  %3939 = vmatprep.subr.mxu0 %v1649
  %3940 = vmatpush1.msra.mxu0 %v1648
  %3941 = vmatprep.subr.mxu0 %v1653
  %3942 = vmatpush1.msra.mxu0 %v1652
  %3943 = vmatprep.subr.mxu0 %v1657
  %3944 = vmatpush1.msra.mxu0 %v1656
  %3945 = vmatprep.subr.mxu0 %v1661
  %3946 = vmatpush1.msra.mxu0 %v1660
  %3947 = vmatprep.subr.mxu0 %v1665
  %3948 = vmatpush1.msra.mxu0 %v1664
  %3949 = vmatprep.subr.mxu0 %v1669
  %3950 = vmatpush1.msra.mxu0 %v1668
  %3951 = vmatprep.subr.mxu0 %v1673
  %3952 = vmatpush1.msra.mxu0 %v1672
  %3953 = vmatprep.subr.mxu0 %v1677
  %3954 = vmatpush1.msra.mxu0 %v1676
  %3955 = vmatprep.subr.mxu0 %v1681
  %3956 = vmatpush1.msra.mxu0 %v1680
  %3957 = vmatprep.subr.mxu0 %v1685
  %3958 = vmatpush1.msra.mxu0 %v1684
  %3959 = vmatprep.subr.mxu0 %v1689
  %3960 = vmatpush1.msra.mxu0 %v1688
  %3961 = vmatprep.subr.mxu0 %v1693
  %3962 = vmatpush1.msra.mxu0 %v1692
  %3963 = vmatprep.subr.mxu0 %v1697
  %3964 = vmatpush1.msra.mxu0 %v1696
  %3965 = vmatprep.subr.mxu0 %v1701
  %3966 = vmatpush1.msra.mxu0 %v1700
  %3967 = vmatprep.subr.mxu0 %v1705
  %3968 = vmatpush1.msra.mxu0 %v1704
  %3969 = vmatprep.subr.mxu0 %v1709
  %3970 = vmatpush1.msra.mxu0 %v1708
  %3971 = vmatprep.subr.mxu0 %v1713
  %3972 = vmatpush1.msra.mxu0 %v1712
  %3973 = vmatprep.mubr.f32.mxu0 %v45
  %3974 = vmatmul.mubr.f32.gmra.mrb[0].mxu0 %v44
  %v3975 = vpop.f32.mrb[0].mxu0
  %v3976 = vadd.f32 %v3905, %v3975
  %v3977 = vpop.f32.mrb[0].mxu0
  %v3978 = vadd.f32 %v3907, %v3977
  %3979 = vdwg.mxu0
  %3980 = vmatprep.subr.mxu0 %v1717
  %3981 = vmatpush1.msra.mxu0 %v1716
  %3982 = vmatprep.subr.mxu0 %v1721
  %3983 = vmatpush1.msra.mxu0 %v1720
  %3984 = vmatprep.subr.mxu0 %v1725
  %3985 = vmatpush1.msra.mxu0 %v1724
  %3986 = vmatprep.subr.mxu0 %v1729
  %3987 = vmatpush1.msra.mxu0 %v1728
  %3988 = vmatprep.subr.mxu0 %v1733
  %3989 = vmatpush1.msra.mxu0 %v1732
  %3990 = vmatprep.subr.mxu0 %v1737
  %3991 = vmatpush1.msra.mxu0 %v1736
  %3992 = vmatprep.subr.mxu0 %v1741
  %3993 = vmatpush1.msra.mxu0 %v1740
  %3994 = vmatprep.subr.mxu0 %v1745
  %3995 = vmatpush1.msra.mxu0 %v1744
  %3996 = vmatprep.subr.mxu0 %v1749
  %3997 = vmatpush1.msra.mxu0 %v1748
  %3998 = vmatprep.subr.mxu0 %v1753
  %3999 = vmatpush1.msra.mxu0 %v1752
  %4000 = vmatprep.subr.mxu0 %v1757
  %4001 = vmatpush1.msra.mxu0 %v1756
  %4002 = vmatprep.subr.mxu0 %v1761
  %4003 = vmatpush1.msra.mxu0 %v1760
  %4004 = vmatprep.subr.mxu0 %v1765
  %4005 = vmatpush1.msra.mxu0 %v1764
  %4006 = vmatprep.subr.mxu0 %v1769
  %4007 = vmatpush1.msra.mxu0 %v1768
  %4008 = vmatprep.subr.mxu0 %v1773
  %4009 = vmatpush1.msra.mxu0 %v1772
  %4010 = vmatprep.subr.mxu0 %v1777
  %4011 = vmatpush1.msra.mxu0 %v1776
  %4012 = vmatprep.subr.mxu0 %v1781
  %4013 = vmatpush1.msra.mxu0 %v1780
  %4014 = vmatprep.subr.mxu0 %v1785
  %4015 = vmatpush1.msra.mxu0 %v1784
  %4016 = vmatprep.subr.mxu0 %v1789
  %4017 = vmatpush1.msra.mxu0 %v1788
  %4018 = vmatprep.subr.mxu0 %v1793
  %4019 = vmatpush1.msra.mxu0 %v1792
  %4020 = vmatprep.subr.mxu0 %v1797
  %4021 = vmatpush1.msra.mxu0 %v1796
  %4022 = vmatprep.subr.mxu0 %v1801
  %4023 = vmatpush1.msra.mxu0 %v1800
  %4024 = vmatprep.subr.mxu0 %v1805
  %4025 = vmatpush1.msra.mxu0 %v1804
  %4026 = vmatprep.subr.mxu0 %v1809
  %4027 = vmatpush1.msra.mxu0 %v1808
  %4028 = vmatprep.subr.mxu0 %v1813
  %4029 = vmatpush1.msra.mxu0 %v1812
  %4030 = vmatprep.subr.mxu0 %v1817
  %4031 = vmatpush1.msra.mxu0 %v1816
  %4032 = vmatprep.subr.mxu0 %v1821
  %4033 = vmatpush1.msra.mxu0 %v1820
  %4034 = vmatprep.subr.mxu0 %v1825
  %4035 = vmatpush1.msra.mxu0 %v1824
  %4036 = vmatprep.subr.mxu0 %v1829
  %4037 = vmatpush1.msra.mxu0 %v1828
  %4038 = vmatprep.subr.mxu0 %v1833
  %4039 = vmatpush1.msra.mxu0 %v1832
  %4040 = vmatprep.subr.mxu0 %v1837
  %4041 = vmatpush1.msra.mxu0 %v1836
  %4042 = vmatprep.subr.mxu0 %v1841
  %4043 = vmatpush1.msra.mxu0 %v1840
  %4044 = vmatprep.mubr.f32.mxu0 %v47
  %4045 = vmatmul.mubr.f32.gmra.mrb[0].mxu0 %v46
  %v4046 = vpop.f32.mrb[0].mxu0
  %v4047 = vadd.f32 %v3976, %v4046
  %v4048 = vpop.f32.mrb[0].mxu0
  %v4049 = vadd.f32 %v3978, %v4048
  %4050 = vdwg.mxu0
  %4051 = vmatprep.subr.mxu0 %v1845
  %4052 = vmatpush1.msra.mxu0 %v1844
  %4053 = vmatprep.subr.mxu0 %v1849
  %4054 = vmatpush1.msra.mxu0 %v1848
  %4055 = vmatprep.subr.mxu0 %v1853
  %4056 = vmatpush1.msra.mxu0 %v1852
  %4057 = vmatprep.subr.mxu0 %v1857
  %4058 = vmatpush1.msra.mxu0 %v1856
  %4059 = vmatprep.subr.mxu0 %v1861
  %4060 = vmatpush1.msra.mxu0 %v1860
  %4061 = vmatprep.subr.mxu0 %v1865
  %4062 = vmatpush1.msra.mxu0 %v1864
  %4063 = vmatprep.subr.mxu0 %v1869
  %4064 = vmatpush1.msra.mxu0 %v1868
  %4065 = vmatprep.subr.mxu0 %v1873
  %4066 = vmatpush1.msra.mxu0 %v1872
  %4067 = vmatprep.subr.mxu0 %v1877
  %4068 = vmatpush1.msra.mxu0 %v1876
  %4069 = vmatprep.subr.mxu0 %v1881
  %4070 = vmatpush1.msra.mxu0 %v1880
  %4071 = vmatprep.subr.mxu0 %v1885
  %4072 = vmatpush1.msra.mxu0 %v1884
  %4073 = vmatprep.subr.mxu0 %v1889
  %4074 = vmatpush1.msra.mxu0 %v1888
  %4075 = vmatprep.subr.mxu0 %v1893
  %4076 = vmatpush1.msra.mxu0 %v1892
  %4077 = vmatprep.subr.mxu0 %v1897
  %4078 = vmatpush1.msra.mxu0 %v1896
  %4079 = vmatprep.subr.mxu0 %v1901
  %4080 = vmatpush1.msra.mxu0 %v1900
  %4081 = vmatprep.subr.mxu0 %v1905
  %4082 = vmatpush1.msra.mxu0 %v1904
  %4083 = vmatprep.subr.mxu0 %v1909
  %4084 = vmatpush1.msra.mxu0 %v1908
  %4085 = vmatprep.subr.mxu0 %v1913
  %4086 = vmatpush1.msra.mxu0 %v1912
  %4087 = vmatprep.subr.mxu0 %v1917
  %4088 = vmatpush1.msra.mxu0 %v1916
  %4089 = vmatprep.subr.mxu0 %v1921
  %4090 = vmatpush1.msra.mxu0 %v1920
  %4091 = vmatprep.subr.mxu0 %v1925
  %4092 = vmatpush1.msra.mxu0 %v1924
  %4093 = vmatprep.subr.mxu0 %v1929
  %4094 = vmatpush1.msra.mxu0 %v1928
  %4095 = vmatprep.subr.mxu0 %v1933
  %4096 = vmatpush1.msra.mxu0 %v1932
  %4097 = vmatprep.subr.mxu0 %v1937
  %4098 = vmatpush1.msra.mxu0 %v1936
  %4099 = vmatprep.subr.mxu0 %v1941
  %4100 = vmatpush1.msra.mxu0 %v1940
  %4101 = vmatprep.subr.mxu0 %v1945
  %4102 = vmatpush1.msra.mxu0 %v1944
  %4103 = vmatprep.subr.mxu0 %v1949
  %4104 = vmatpush1.msra.mxu0 %v1948
  %4105 = vmatprep.subr.mxu0 %v1953
  %4106 = vmatpush1.msra.mxu0 %v1952
  %4107 = vmatprep.subr.mxu0 %v1957
  %4108 = vmatpush1.msra.mxu0 %v1956
  %4109 = vmatprep.subr.mxu0 %v1961
  %4110 = vmatpush1.msra.mxu0 %v1960
  %4111 = vmatprep.subr.mxu0 %v1965
  %4112 = vmatpush1.msra.mxu0 %v1964
  %4113 = vmatprep.subr.mxu0 %v1969
  %4114 = vmatpush1.msra.mxu0 %v1968
  %4115 = vmatprep.mubr.f32.mxu0 %v49
  %4116 = vmatmul.mubr.f32.gmra.mrb[0].mxu0 %v48
  %v4117 = vpop.f32.mrb[0].mxu0
  %v4118 = vadd.f32 %v4047, %v4117
  %v4119 = vpop.f32.mrb[0].mxu0
  %v4120 = vadd.f32 %v4049, %v4119
  %4121 = vdwg.mxu0
  %v4122 = vmax.f32 %v3053, 0.0
  %v4123 = vmax.f32 %v3055, 0.0
  %v4124 = vmax.f32 %v4118, 0.0
  %v4125 = vmax.f32 %v4120, 0.0
  %v4126 = vld [vmem:[%s3] sm:$0xff]
  %v4127 = vld [vmem:[%s3 + $0x8] sm:$0xff]
  %v4128 = vld [vmem:[%s3 + $0x10] sm:$0xff]
  %v4129 = vld [vmem:[%s3 + $0x18] sm:$0xff]
  %v4130 = vld [vmem:[%s3 + $0x20] sm:$0xff]
  %v4131 = vld [vmem:[%s3 + $0x28] sm:$0xff]
  %v4132 = vld [vmem:[%s3 + $0x30] sm:$0xff]
  %v4133 = vld [vmem:[%s3 + $0x38] sm:$0xff]
  %v4134 = vld [vmem:[%s3 + $0x40] sm:$0xff]
  %v4135 = vld [vmem:[%s3 + $0x48] sm:$0xff]
  %v4136 = vld [vmem:[%s3 + $0x50] sm:$0xff]
  %v4137 = vld [vmem:[%s3 + $0x58] sm:$0xff]
  %v4138 = vld [vmem:[%s3 + $0x60] sm:$0xff]
  %v4139 = vld [vmem:[%s3 + $0x68] sm:$0xff]
  %v4140 = vld [vmem:[%s3 + $0x70] sm:$0xff]
  %v4141 = vld [vmem:[%s3 + $0x78] sm:$0xff]
  %v4142 = vld [vmem:[%s3 + $0x80] sm:$0xff]
  %v4143 = vld [vmem:[%s3 + $0x88] sm:$0xff]
  %v4144 = vld [vmem:[%s3 + $0x90] sm:$0xff]
  %v4145 = vld [vmem:[%s3 + $0x98] sm:$0xff]
  %v4146 = vld [vmem:[%s3 + $0xa0] sm:$0xff]
  %v4147 = vld [vmem:[%s3 + $0xa8] sm:$0xff]
  %v4148 = vld [vmem:[%s3 + $0xb0] sm:$0xff]
  %v4149 = vld [vmem:[%s3 + $0xb8] sm:$0xff]
  %v4150 = vld [vmem:[%s3 + $0xc0] sm:$0xff]
  %v4151 = vld [vmem:[%s3 + $0xc8] sm:$0xff]
  %v4152 = vld [vmem:[%s3 + $0xd0] sm:$0xff]
  %v4153 = vld [vmem:[%s3 + $0xd8] sm:$0xff]
  %v4154 = vld [vmem:[%s3 + $0xe0] sm:$0xff]
  %v4155 = vld [vmem:[%s3 + $0xe8] sm:$0xff]
  %v4156 = vld [vmem:[%s3 + $0xf0] sm:$0xff]
  %v4157 = vld [vmem:[%s3 + $0xf8] sm:$0xff]
  %v4158 = vld [vmem:[%s3 + $0x100] sm:$0xff]
  %v4159 = vld [vmem:[%s3 + $0x108] sm:$0xff]
  %v4160 = vld [vmem:[%s3 + $0x110] sm:$0xff]
  %v4161 = vld [vmem:[%s3 + $0x118] sm:$0xff]
  %v4162 = vld [vmem:[%s3 + $0x120] sm:$0xff]
  %v4163 = vld [vmem:[%s3 + $0x128] sm:$0xff]
  %v4164 = vld [vmem:[%s3 + $0x130] sm:$0xff]
  %v4165 = vld [vmem:[%s3 + $0x138] sm:$0xff]
  %v4166 = vld [vmem:[%s3 + $0x140] sm:$0xff]
  %v4167 = vld [vmem:[%s3 + $0x148] sm:$0xff]
  %v4168 = vld [vmem:[%s3 + $0x150] sm:$0xff]
  %v4169 = vld [vmem:[%s3 + $0x158] sm:$0xff]
  %v4170 = vld [vmem:[%s3 + $0x160] sm:$0xff]
  %v4171 = vld [vmem:[%s3 + $0x168] sm:$0xff]
  %v4172 = vld [vmem:[%s3 + $0x170] sm:$0xff]
  %v4173 = vld [vmem:[%s3 + $0x178] sm:$0xff]
  %v4174 = vld [vmem:[%s3 + $0x180] sm:$0xff]
  %v4175 = vld [vmem:[%s3 + $0x188] sm:$0xff]
  %v4176 = vld [vmem:[%s3 + $0x190] sm:$0xff]
  %v4177 = vld [vmem:[%s3 + $0x198] sm:$0xff]
  %v4178 = vld [vmem:[%s3 + $0x1a0] sm:$0xff]
  %v4179 = vld [vmem:[%s3 + $0x1a8] sm:$0xff]
  %v4180 = vld [vmem:[%s3 + $0x1b0] sm:$0xff]
  %v4181 = vld [vmem:[%s3 + $0x1b8] sm:$0xff]
  %v4182 = vld [vmem:[%s3 + $0x1c0] sm:$0xff]
  %v4183 = vld [vmem:[%s3 + $0x1c8] sm:$0xff]
  %v4184 = vld [vmem:[%s3 + $0x1d0] sm:$0xff]
  %v4185 = vld [vmem:[%s3 + $0x1d8] sm:$0xff]
  %v4186 = vld [vmem:[%s3 + $0x1e0] sm:$0xff]
  %v4187 = vld [vmem:[%s3 + $0x1e8] sm:$0xff]
  %v4188 = vld [vmem:[%s3 + $0x1f0] sm:$0xff]
  %v4189 = vld [vmem:[%s3 + $0x1f8] sm:$0xff]
  %v4190 = vld [vmem:[%s4] sm:$0x1]
  %v4192 = vlaneseq
  %v4193 = vshrl.u32 %v4192, 7
  %v4194 = vsub.s32 0, %v4193
  %v4195 = vrot.slane %v4190, %v4194
  %4197 = vmatprep.subr.mxu0 0.0
  %4198 = vmatpush1.msra.mxu0 %v4126
  %4199 = vmatprep.subr.mxu0 0.0
  %4200 = vmatpush1.msra.mxu0 %v4127
  %4201 = vmatprep.subr.mxu0 0.0
  %4202 = vmatpush1.msra.mxu0 %v4128
  %4203 = vmatprep.subr.mxu0 0.0
  %4204 = vmatpush1.msra.mxu0 %v4129
  %4205 = vmatprep.subr.mxu0 0.0
  %4206 = vmatpush1.msra.mxu0 %v4130
  %4207 = vmatprep.subr.mxu0 0.0
  %4208 = vmatpush1.msra.mxu0 %v4131
  %4209 = vmatprep.subr.mxu0 0.0
  %4210 = vmatpush1.msra.mxu0 %v4132
  %4211 = vmatprep.subr.mxu0 0.0
  %4212 = vmatpush1.msra.mxu0 %v4133
  %4213 = vmatprep.subr.mxu0 0.0
  %4214 = vmatpush1.msra.mxu0 %v4134
  %4215 = vmatprep.subr.mxu0 0.0
  %4216 = vmatpush1.msra.mxu0 %v4135
  %4217 = vmatprep.subr.mxu0 0.0
  %4218 = vmatpush1.msra.mxu0 %v4136
  %4219 = vmatprep.subr.mxu0 0.0
  %4220 = vmatpush1.msra.mxu0 %v4137
  %4221 = vmatprep.subr.mxu0 0.0
  %4222 = vmatpush1.msra.mxu0 %v4138
  %4223 = vmatprep.subr.mxu0 0.0
  %4224 = vmatpush1.msra.mxu0 %v4139
  %4225 = vmatprep.subr.mxu0 0.0
  %4226 = vmatpush1.msra.mxu0 %v4140
  %4227 = vmatprep.subr.mxu0 0.0
  %4228 = vmatpush1.msra.mxu0 %v4141
  %4229 = vmatprep.subr.mxu0 0.0
  %4230 = vmatpush1.msra.mxu0 %v4142
  %4231 = vmatprep.subr.mxu0 0.0
  %4232 = vmatpush1.msra.mxu0 %v4143
  %4233 = vmatprep.subr.mxu0 0.0
  %4234 = vmatpush1.msra.mxu0 %v4144
  %4235 = vmatprep.subr.mxu0 0.0
  %4236 = vmatpush1.msra.mxu0 %v4145
  %4237 = vmatprep.subr.mxu0 0.0
  %4238 = vmatpush1.msra.mxu0 %v4146
  %4239 = vmatprep.subr.mxu0 0.0
  %4240 = vmatpush1.msra.mxu0 %v4147
  %4241 = vmatprep.subr.mxu0 0.0
  %4242 = vmatpush1.msra.mxu0 %v4148
  %4243 = vmatprep.subr.mxu0 0.0
  %4244 = vmatpush1.msra.mxu0 %v4149
  %4245 = vmatprep.subr.mxu0 0.0
  %4246 = vmatpush1.msra.mxu0 %v4150
  %4247 = vmatprep.subr.mxu0 0.0
  %4248 = vmatpush1.msra.mxu0 %v4151
  %4249 = vmatprep.subr.mxu0 0.0
  %4250 = vmatpush1.msra.mxu0 %v4152
  %4251 = vmatprep.subr.mxu0 0.0
  %4252 = vmatpush1.msra.mxu0 %v4153
  %4253 = vmatprep.subr.mxu0 0.0
  %4254 = vmatpush1.msra.mxu0 %v4154
  %4255 = vmatprep.subr.mxu0 0.0
  %4256 = vmatpush1.msra.mxu0 %v4155
  %4257 = vmatprep.subr.mxu0 0.0
  %4258 = vmatpush1.msra.mxu0 %v4156
  %4259 = vmatprep.subr.mxu0 0.0
  %4260 = vmatpush1.msra.mxu0 %v4157
  %4261 = vmatprep.mubr.f32.mxu0 %v4123
  %4262 = vmatmul.mubr.f32.gmra.mrb[0].mxu0 %v4122
  %v4263 = vpop.f32.mrb[0].mxu0
  %v4264 = vadd.f32 %v4195, %v4263
  %v4265 = vpop.f32.mrb[0].mxu0
  %4266 = vdwg.mxu0
  %4267 = vmatprep.subr.mxu0 0.0
  %4268 = vmatpush1.msra.mxu0 %v4158
  %4269 = vmatprep.subr.mxu0 0.0
  %4270 = vmatpush1.msra.mxu0 %v4159
  %4271 = vmatprep.subr.mxu0 0.0
  %4272 = vmatpush1.msra.mxu0 %v4160
  %4273 = vmatprep.subr.mxu0 0.0
  %4274 = vmatpush1.msra.mxu0 %v4161
  %4275 = vmatprep.subr.mxu0 0.0
  %4276 = vmatpush1.msra.mxu0 %v4162
  %4277 = vmatprep.subr.mxu0 0.0
  %4278 = vmatpush1.msra.mxu0 %v4163
  %4279 = vmatprep.subr.mxu0 0.0
  %4280 = vmatpush1.msra.mxu0 %v4164
  %4281 = vmatprep.subr.mxu0 0.0
  %4282 = vmatpush1.msra.mxu0 %v4165
  %4283 = vmatprep.subr.mxu0 0.0
  %4284 = vmatpush1.msra.mxu0 %v4166
  %4285 = vmatprep.subr.mxu0 0.0
  %4286 = vmatpush1.msra.mxu0 %v4167
  %4287 = vmatprep.subr.mxu0 0.0
  %4288 = vmatpush1.msra.mxu0 %v4168
  %4289 = vmatprep.subr.mxu0 0.0
  %4290 = vmatpush1.msra.mxu0 %v4169
  %4291 = vmatprep.subr.mxu0 0.0
  %4292 = vmatpush1.msra.mxu0 %v4170
  %4293 = vmatprep.subr.mxu0 0.0
  %4294 = vmatpush1.msra.mxu0 %v4171
  %4295 = vmatprep.subr.mxu0 0.0
  %4296 = vmatpush1.msra.mxu0 %v4172
  %4297 = vmatprep.subr.mxu0 0.0
  %4298 = vmatpush1.msra.mxu0 %v4173
  %4299 = vmatprep.subr.mxu0 0.0
  %4300 = vmatpush1.msra.mxu0 %v4174
  %4301 = vmatprep.subr.mxu0 0.0
  %4302 = vmatpush1.msra.mxu0 %v4175
  %4303 = vmatprep.subr.mxu0 0.0
  %4304 = vmatpush1.msra.mxu0 %v4176
  %4305 = vmatprep.subr.mxu0 0.0
  %4306 = vmatpush1.msra.mxu0 %v4177
  %4307 = vmatprep.subr.mxu0 0.0
  %4308 = vmatpush1.msra.mxu0 %v4178
  %4309 = vmatprep.subr.mxu0 0.0
  %4310 = vmatpush1.msra.mxu0 %v4179
  %4311 = vmatprep.subr.mxu0 0.0
  %4312 = vmatpush1.msra.mxu0 %v4180
  %4313 = vmatprep.subr.mxu0 0.0
  %4314 = vmatpush1.msra.mxu0 %v4181
  %4315 = vmatprep.subr.mxu0 0.0
  %4316 = vmatpush1.msra.mxu0 %v4182
  %4317 = vmatprep.subr.mxu0 0.0
  %4318 = vmatpush1.msra.mxu0 %v4183
  %4319 = vmatprep.subr.mxu0 0.0
  %4320 = vmatpush1.msra.mxu0 %v4184
  %4321 = vmatprep.subr.mxu0 0.0
  %4322 = vmatpush1.msra.mxu0 %v4185
  %4323 = vmatprep.subr.mxu0 0.0
  %4324 = vmatpush1.msra.mxu0 %v4186
  %4325 = vmatprep.subr.mxu0 0.0
  %4326 = vmatpush1.msra.mxu0 %v4187
  %4327 = vmatprep.subr.mxu0 0.0
  %4328 = vmatpush1.msra.mxu0 %v4188
  %4329 = vmatprep.subr.mxu0 0.0
  %4330 = vmatpush1.msra.mxu0 %v4189
  %4331 = vmatprep.mubr.f32.mxu0 %v4125
  %4332 = vmatmul.mubr.f32.gmra.mrb[0].mxu0 %v4124
  %v4333 = vpop.f32.mrb[0].mxu0
  %v4334 = vadd.f32 %v4264, %v4333
  %v4335 = vpop.f32.mrb[0].mxu0
  %4336 = vdwg.mxu0
  %4337 = vst [vmem:[%s5] sm:$0xff] %v4334
  // Predicated region
  $region22: #{cnn_forward.7} parent=0 // pred_check
    _
  $region23: #{cnn_forward.7} parent=0 // pred_check_branch
    %4339 = sbr.rel (0) target = $region25
  $region24: #{cnn_forward.7} parent=0 // pred_region
    _
  $region25: #{cnn_forward.7} parent=0 // pred_fallthru
    _
  // Predicated region
  $region26: #{cnn_forward.7} parent=0 // pred_check
    _
  $region27: #{cnn_forward.7} parent=0 // pred_check_branch
    %4341 = sbr.rel (0) target = $region29
  $region28: #{cnn_forward.7} parent=0 // pred_region
    _
  $region29: #{cnn_forward.7} parent=0 // pred_fallthru
    _

</llo_original>
